<compile_context>
chip_gen: v7x
topology: tpu7x:2x2x1
jax: 0.10.0
libtpu: 0.0.40
codegen_flags: <defaults>
</compile_context>

<pallas_src>
import jax
import jax.numpy as jnp
from jax.experimental import pallas as pl
from jax.experimental.pallas import tpu as pltpu

_PROJ_EPS = 4e-3      # hyptorch.pmath BALL_EPS[float32]
_MIN_NORM = 1e-5


# ----------------------------------------------------------------------------
# Pallas kernel 1: fused 3x3 conv (9 shifted bf16 MXU dots) + conv-bias + BN(eval)
# + ReLU + W-half of MaxPool2d(2).  One image per grid step ("parallel" grid).
#
# The padded NHWC image is split (in XLA) into its even / odd padded-column planes
# and flattened to (Hp*Wp2, Cin); every 3x3 tap then becomes a *contiguous* row
# window of one of the two planes, so no im2col tensor ever hits HBM.  Each output
# row k = h*Wp2 + j is valid for j < W//2; the last column per row is junk and is
# dropped in the wrapper together with the H-half of the pool.
# ----------------------------------------------------------------------------
def _make_conv_kernel(M, Wp2, Cout):
    def kernel(xe_ref, xo_ref, w_ref, s_ref, b_ref, o_ref):
        refs = (xe_ref, xo_ref)          # even / odd padded-column planes, (1, R, Cin) bf16
        scale = s_ref[...]               # (1, Cout) f32
        shift = b_ref[...]               # (1, Cout) f32
        pooled = None
        for par in range(2):             # output-column parity == W-half of the 2x2 pool
            acc = jnp.zeros((M, Cout), jnp.float32)
            for dh in range(3):
                for dw in range(3):
                    src = refs[(par + dw) % 2]
                    col = (par + dw) // 2
                    start = dh * Wp2 + col
                    patch = src[0, start:start + M, :]              # (M, Cin) bf16
                    acc = acc + jnp.dot(patch, w_ref[dh * 3 + dw],
                                        preferred_element_type=jnp.float32)
            y = jnp.maximum(acc * scale + shift, 0.0)               # bias + BN(eval) + ReLU
            pooled = y if pooled is None else jnp.maximum(pooled, y)
        o_ref[0, :, :] = pooled
    return kernel


def _conv_block(x_nhwc, w, b, gamma, beta):
    N, H, W, Cin = x_nhwc.shape
    Cout = w.shape[-1]
    Hp, Wp = H + 2, W + 2
    Wp2 = Wp // 2                    # columns per parity plane (= W//2 + 1)
    W2 = W // 2
    M = H * Wp2                      # rows computed per image (last column per row is junk)
    R = Hp * Wp2 + 8                 # flattened plane rows (+ room for the largest tap shift)

    xp = jnp.pad(x_nhwc, ((0, 0), (1, 1), (1, 1), (0, 0)))

    def plane(z):                    # (N, Hp, Wp2, Cin) -> flattened bf16 plane (N, R, Cin)
        z = z.reshape(N, Hp * Wp2, Cin)
        z = jnp.pad(z, ((0, 0), (0, R - Hp * Wp2), (0, 0)))
        return z.astype(jnp.bfloat16)

    xe = plane(xp[:, :, 0::2, :])    # even padded columns
    xo = plane(xp[:, :, 1::2, :])    # odd padded columns

    w9 = w.reshape(9, Cin, Cout).astype(jnp.bfloat16)
    eps = 1e-5                       # BatchNorm eval: running_mean=0, running_var=1 (PyTorch init)
    # TODO(synk): derive scale/shift from real running stats once checkpoints are loaded.
    scale = (gamma / jnp.sqrt(1.0 + eps)).astype(jnp.float32).reshape(1, Cout)
    shift = (beta + scale[0] * b).astype(jnp.float32).reshape(1, Cout)

    out = pl.pallas_call(
        _make_conv_kernel(M, Wp2, Cout),
        out_shape=jax.ShapeDtypeStruct((N, M, Cout), jnp.float32),
        grid=(N,),
        in_specs=[
            pl.BlockSpec((1, R, Cin), lambda n: (n, 0, 0)),
            pl.BlockSpec((1, R, Cin), lambda n: (n, 0, 0)),
            pl.BlockSpec((9, Cin, Cout), lambda n: (0, 0, 0)),
            pl.BlockSpec((1, Cout), lambda n: (0, 0)),
            pl.BlockSpec((1, Cout), lambda n: (0, 0)),
        ],
        out_specs=pl.BlockSpec((1, M, Cout), lambda n: (n, 0, 0)),
        compiler_params=pltpu.CompilerParams(dimension_semantics=("parallel",)),
    )(xe, xo, w9, scale, shift)

    y = out.reshape(N, H, Wp2, Cout)[:, :, :W2, :]         # drop junk column
    y = y.reshape(N, H // 2, 2, W2, Cout).max(axis=2)      # H-half of MaxPool2d(2)
    return y


def _encoder(x_nchw, enc_params):
    x = jnp.transpose(x_nchw, (0, 2, 3, 1))                # NCHW -> NHWC
    for (w, b, gamma, beta) in enc_params:
        x = _conv_block(x, w, b, gamma, beta)
    N = x.shape[0]
    return jnp.transpose(x, (0, 3, 1, 2)).reshape(N, -1)   # torch (C,H,W) flatten order


# ----------------------------------------------------------------------------
# Pallas kernel 2: fused e2p (expmap0 + project) for prototypes AND queries plus the
# Poincare distance matrix.  expmap0/project are scalar row-scalings, so everything
# reduces to a single tangent Gram matmul + 2-D elementwise math (no [way, Nq, D]).
#   proto_tan: [way, D], query_t: [D, Nq], c: [way, 1]  ->  dist: [way, Nq]
# ----------------------------------------------------------------------------
def _e2p_dist_kernel(p_ref, qt_ref, c_ref, o_ref):
    p = p_ref[...]                                   # (way, D)  tangent prototypes
    qt = qt_ref[...]                                 # (D, Nq)   tangent queries (transposed)
    c = c_ref[...]                                   # (way, 1)  per-way curvature
    sqrt_c = jnp.sqrt(c)
    inv_sqrt_c = jax.lax.rsqrt(c)
    maxnorm = (1.0 - _PROJ_EPS) * inv_sqrt_c         # (way, 1)

    # e2p scale for the prototypes (per way)
    pn2 = jnp.sum(p * p, axis=-1, keepdims=True)     # (way, 1)
    pn = jnp.sqrt(pn2)
    ap = sqrt_c * jnp.maximum(pn, _MIN_NORM)
    pe = jnp.tanh(ap) * pl.reciprocal(ap, approx=True)
    pg = jnp.maximum(pe * pn, _MIN_NORM)
    t = pe * jnp.where(pg > maxnorm, maxnorm * pl.reciprocal(pg, approx=True), 1.0)
    x2 = (t * t) * pn2                               # ||e2p(proto)||^2, (way, 1)

    # e2p scale for the queries, per (way, query)
    qn2 = jnp.sum(qt * qt, axis=0, keepdims=True)    # (1, Nq)
    qn = jnp.sqrt(qn2)
    aq = sqrt_c * jnp.maximum(qn, _MIN_NORM)         # (way, Nq)
    qe = jnp.tanh(aq) * pl.reciprocal(aq, approx=True)
    qg = jnp.maximum(qe * qn, _MIN_NORM)
    s = qe * jnp.where(qg > maxnorm, maxnorm * pl.reciprocal(qg, approx=True), 1.0)
    y2 = (s * s) * qn2                               # ||e2p(query)||^2, (way, Nq)

    g = jnp.dot(p, qt, preferred_element_type=jnp.float32)   # tangent Gram, (way, Nq)
    pq = (t * s) * g                                 # <e2p(proto), e2p(query)>

    # || mobius_add(-proto_p, query_p) || via scalar identities
    a = 1.0 - 2.0 * c * pq + c * y2
    bb = 1.0 - c * x2
    dn = 1.0 - 2.0 * c * pq + (c * c) * x2 * y2 + 1e-5
    num2 = jnp.maximum(a * a * x2 - 2.0 * a * bb * pq + bb * bb * y2, 0.0)
    nrm = jnp.sqrt(num2) * pl.reciprocal(dn, approx=True)
    z = jnp.clip(sqrt_c * nrm, -1.0 + 1e-5, 1.0 - 1e-5)
    # dist = 2/sqrt(c) * artanh(z) = (1/sqrt(c)) * log((1+z)/(1-z))
    o_ref[...] = inv_sqrt_c * jnp.log((1.0 + z) * pl.reciprocal(1.0 - z, approx=True))


def _e2p_dist(proto_tan, query_t, c_col):
    Wn = proto_tan.shape[0]
    Nq = query_t.shape[1]
    return pl.pallas_call(
        _e2p_dist_kernel,
        out_shape=jax.ShapeDtypeStruct((Wn, Nq), jnp.float32),
    )(proto_tan.astype(jnp.float32), query_t.astype(jnp.float32), c_col.astype(jnp.float32))


# ----------------------------------------------------------------------------
# Pallas kernel 3: fused Controller MLP (3 layers + sigmoid, all in VMEM).
# ----------------------------------------------------------------------------
def _make_controller_kernel(inv_divide):
    def kernel(x_ref, w1, b1, w2, b2, w3, b3, o_ref):
        h = jnp.maximum(jnp.dot(x_ref[...], w1[...],
                                preferred_element_type=jnp.float32) + b1[...], 0.0)
        h = jnp.maximum(jnp.dot(h, w2[...],
                                preferred_element_type=jnp.float32) + b2[...], 0.0)
        o = jnp.dot(h, w3[...], preferred_element_type=jnp.float32) + b3[...]
        o_ref[...] = pl.reciprocal(1.0 + jnp.exp(-o), approx=True) * inv_divide
    return kernel


def _controller(proto, all_rep, cp, divide):
    x = jnp.concatenate([proto, all_rep], axis=-1).astype(jnp.float32)   # (way, 2*dim)
    way = x.shape[0]
    return pl.pallas_call(
        _make_controller_kernel(1.0 / divide),
        out_shape=jax.ShapeDtypeStruct((way, 1), jnp.float32),
    )(x, cp["w1"], cp["b1"].reshape(1, -1), cp["w2"], cp["b2"].reshape(1, -1),
      cp["w3"], cp["b3"].reshape(1, -1))


# ----------------------------------------------------------------------------
# Pallas kernel 4: fused rerank_Controller MLP (2 layers + softmax + sigmoid).
# ----------------------------------------------------------------------------
def _make_rerank_kernel(rerank):
    def kernel(x_ref, w1, b1, w2, b2, iw_ref, on_ref):
        h = jnp.maximum(jnp.dot(x_ref[...], w1[...],
                                preferred_element_type=jnp.float32) + b1[...], 0.0)
        o = jnp.dot(h, w2[...], preferred_element_type=jnp.float32) + b2[...]   # (way, r+1)
        lg = o[:, :rerank]
        e = jnp.exp(lg - jnp.max(lg, axis=-1, keepdims=True))
        iw_ref[...] = e * pl.reciprocal(jnp.sum(e, axis=-1, keepdims=True), approx=True)
        on = o[:, rerank:rerank + 1]
        on_ref[...] = pl.reciprocal(1.0 + jnp.exp(-on), approx=True)
    return kernel


def _rerank_controller(feats, rp, rerank):
    way = feats.shape[0]
    return pl.pallas_call(
        _make_rerank_kernel(rerank),
        out_shape=(jax.ShapeDtypeStruct((way, rerank), jnp.float32),
                   jax.ShapeDtypeStruct((way, 1), jnp.float32)),
    )(feats.astype(jnp.float32), rp["w1"], rp["b1"].reshape(1, -1),
      rp["w2"], rp["b2"].reshape(1, -1))


# ----------------------------------------------------------------------------
# ProtoNet forward
# ----------------------------------------------------------------------------
def protonet_forward(data_shot, data_query, params, args):
    shot, way = args["shot"], args["way"]
    rerank, temperature = args["rerank"], args["temperature"]

    ns = data_shot.shape[0]
    feats = _encoder(jnp.concatenate([data_shot, data_query], axis=0), params["encoder"])
    f_shot, f_query = feats[:ns], feats[ns:]
    Nq = f_query.shape[0]

    all_data = jnp.mean(feats, axis=0)                               # mean over cat([shot, query])
    proto_cat = f_shot.reshape(shot, way, -1).mean(axis=0)           # [way, dim]
    all_rep = jnp.broadcast_to(all_data, proto_cat.shape)            # repeat(way, 1)

    c_col = _controller(proto_cat, all_rep, params["controller"], args["divide"])   # [way, 1]

    query_t = f_query.T                                              # [D, Nq], shared by both dist calls
    dis_mat = _e2p_dist(proto_cat, query_t, c_col)                   # [way, Nq]

    # TODO(synk): jnp.argsort tie-breaking may differ from torch.sort on exactly tied distances.
    indices = jnp.argsort(dis_mat, axis=-1)                          # torch.sort (ascending)

    # --- batched rerank features (replaces the per-way Python gather loop) ---
    dis_sorted = jnp.take_along_axis(dis_mat, indices, axis=1)       # [way, Nq]
    n_i_d = dis_sorted[:, :rerank]                                   # [way, rerank]
    o_i_d = jnp.mean(dis_sorted[:, rerank:], axis=1)                 # [way]
    g_new = jnp.take(dis_mat, indices[:, :rerank], axis=1)           # [j, i, r] = dis_mat[j, idx_new_i[r]]
    n_o_d = (jnp.sum(g_new, axis=0) - n_i_d) / (way - 1.0)           # [way, rerank]
    g_old = jnp.take(dis_mat, indices[:, rerank:], axis=1)           # [j, i, Nq-r]
    row_old = jnp.sum(g_old, axis=2)                                 # [j, i]
    tail = jnp.sum(dis_mat[:, rerank:], axis=1)                      # [j] positional slice (reference quirk)
    jj = jnp.arange(way)[:, None]
    ii = jnp.arange(way)[None, :]
    part1 = jnp.sum(jnp.where(jj < ii, row_old, 0.0), axis=0)        # rows j<i: gathered idx_old_i
    part2 = jnp.sum(jnp.where(jj > ii, tail[:, None], 0.0), axis=0)  # rows j>i: positional [rerank:]
    o_o_d = (part1 + part2) / ((way - 1.0) * (Nq - rerank))
    rerank_feats = jnp.concatenate(
        [n_i_d, n_o_d, o_i_d[:, None], o_o_d[:, None]], axis=1)      # [way, 2*rerank+2]

    i_weight, old_new = _rerank_controller(rerank_feats, params["rerank"], rerank)

    q_sel = jnp.take(f_query, indices[:, :rerank], axis=0)           # [way, rerank, D]
    wdq = jnp.einsum("wr,wrd->wd", i_weight, q_sel)                  # [way, D]
    tmp = proto_cat * old_new + wdq * (1.0 - old_new)                # [way, D]

    new_dis_mat = _e2p_dist(tmp, query_t, c_col)                     # [way, Nq]
    logits = -new_dis_mat.T / temperature                            # [Nq, way]
    return logits


# ----------------------------------------------------------------------------
# Deterministic parameter init (synthetic; no checkpoint loading).
# ----------------------------------------------------------------------------
def init_params(key, dim, rerank, in_ch=3):
    hid = dim
    ks = jax.random.split(key, 12)
    chans = [in_ch, hid, hid, hid, dim]
    enc = []
    for li in range(4):
        cin, cout = chans[li], chans[li + 1]
        w = jax.random.normal(ks[li], (3, 3, cin, cout), jnp.float32) * 0.1
        b = jnp.zeros((cout,), jnp.float32)
        gamma = jnp.ones((cout,), jnp.float32)   # BN affine (PyTorch defaults)
        beta = jnp.zeros((cout,), jnp.float32)
        enc.append((w, b, gamma, beta))
    ctrl = {
        "w1": jax.random.normal(ks[4], (2 * dim, 128), jnp.float32) * 0.05,
        "b1": jnp.zeros((128,), jnp.float32),
        "w2": jax.random.normal(ks[5], (128, 64), jnp.float32) * 0.05,
        "b2": jnp.zeros((64,), jnp.float32),
        "w3": jax.random.normal(ks[6], (64, 1), jnp.float32) * 0.05,
        "b3": jnp.zeros((1,), jnp.float32),
    }
    rr = {
        "w1": jax.random.normal(ks[7], (2 * rerank + 2, rerank), jnp.float32) * 0.1,
        "b1": jnp.zeros((rerank,), jnp.float32),
        "w2": jax.random.normal(ks[8], (rerank, rerank + 1), jnp.float32) * 0.1,
        "b2": jnp.zeros((rerank + 1,), jnp.float32),
    }
    return {"encoder": enc, "controller": ctrl, "rerank": rr}


if __name__ == "__main__":
    key = jax.random.PRNGKey(0)
    way, shot, query_per = 5, 1, 3
    dim = 32            # args.dim (ConvNet z_dim; 16x16 input -> 1x1 spatial -> dim features)
    rerank = 4          # args.rerank
    temperature = 16.0  # args.temperature
    divide = 1.0        # args.divide

    k1, k2, k3 = jax.random.split(key, 3)
    data_shot = jax.random.normal(k1, (shot * way, 3, 16, 16), jnp.float32)        # NCHW
    data_query = jax.random.normal(k2, (way * query_per, 3, 16, 16), jnp.float32)  # NCHW
    params = init_params(k3, dim, rerank)

    args = dict(shot=shot, way=way, rerank=rerank, temperature=temperature, divide=divide)
    fwd = jax.jit(lambda s, q: protonet_forward(s, q, params, args))
    logits = jax.block_until_ready(fwd(data_shot, data_query))
    assert logits.shape == (way * query_per, way), logits.shape
    assert bool(jnp.all(jnp.isfinite(logits)))
    print("KERNEL_OK")
</pallas_src>

<mosaic_0001>
module attributes {stable_mosaic.version = 11 : i64} {
  func.func @kernel(%arg0: i32, %arg1: memref<1x170x3xbf16, #tpu.memory_space<vmem>>, %arg2: memref<1x170x3xbf16, #tpu.memory_space<vmem>>, %arg3: memref<9x3x32xbf16, #tpu.memory_space<vmem>>, %arg4: memref<1x32xf32, #tpu.memory_space<vmem>>, %arg5: memref<1x32xf32, #tpu.memory_space<vmem>>, %arg6: memref<1x144x32xf32, #tpu.memory_space<vmem>>) attributes {dimension_semantics = [#tpu.dimension_semantics<parallel>], iteration_bounds = array<i64: 20>, scalar_prefetch = 0 : i64, scratch_operands = 0 : i64, tpu.core_type = #tpu.core_type<tc>, window_params = [{transform_indices = @transform_0, window_bounds = array<i64: 1, 170, 3>}, {transform_indices = @transform_1, window_bounds = array<i64: 1, 170, 3>}, {pipeline_mode = #tpu.pipeline_mode<synchronous>, transform_indices = @transform_2, window_bounds = array<i64: 9, 3, 32>}, {pipeline_mode = #tpu.pipeline_mode<synchronous>, transform_indices = @transform_3, window_bounds = array<i64: 1, 32>}, {pipeline_mode = #tpu.pipeline_mode<synchronous>, transform_indices = @transform_4, window_bounds = array<i64: 1, 32>}, {transform_indices = @transform_5, window_bounds = array<i64: 1, 144, 32>}]} {
    %c0 = arith.constant 0 : index
    %c0_0 = arith.constant 0 : index
    %0 = vector.load %arg4[%c0, %c0_0] : memref<1x32xf32, #tpu.memory_space<vmem>>, vector<1x32xf32>
    %c0_1 = arith.constant 0 : index
    %c0_2 = arith.constant 0 : index
    %1 = vector.load %arg5[%c0_1, %c0_2] : memref<1x32xf32, #tpu.memory_space<vmem>>, vector<1x32xf32>
    %cst = arith.constant 0.000000e+00 : f32
    %2 = vector.broadcast %cst : f32 to vector<144x32xf32>
    %c0_3 = arith.constant 0 : index
    %c0_4 = arith.constant 0 : index
    %c0_5 = arith.constant 0 : index
    %3 = vector.load %arg1[%c0_3, %c0_4, %c0_5] : memref<1x170x3xbf16, #tpu.memory_space<vmem>>, vector<1x144x3xbf16>
    %4 = vector.shape_cast %3 : vector<1x144x3xbf16> to vector<144x3xbf16>
    %c0_6 = arith.constant 0 : index
    %c0_7 = arith.constant 0 : index
    %c0_8 = arith.constant 0 : index
    %5 = vector.load %arg3[%c0_6, %c0_7, %c0_8] : memref<9x3x32xbf16, #tpu.memory_space<vmem>>, vector<1x3x32xbf16>
    %6 = vector.shape_cast %5 : vector<1x3x32xbf16> to vector<3x32xbf16>
    %cst_9 = arith.constant dense<0.000000e+00> : vector<144x32xf32>
    %7 = tpu.matmul %4, %6, %cst_9 {dimension_numbers = #tpu.dot_dimension_numbers<[1], [0], [0], [1], [0, 0, 1, 1], [], []>} : vector<144x3xbf16>, vector<3x32xbf16>, vector<144x32xf32> -> vector<144x32xf32>
    %8 = arith.addf %2, %7 : vector<144x32xf32>
    %c0_10 = arith.constant 0 : index
    %c0_11 = arith.constant 0 : index
    %c0_12 = arith.constant 0 : index
    %9 = vector.load %arg2[%c0_10, %c0_11, %c0_12] : memref<1x170x3xbf16, #tpu.memory_space<vmem>>, vector<1x144x3xbf16>
    %10 = vector.shape_cast %9 : vector<1x144x3xbf16> to vector<144x3xbf16>
    %c1 = arith.constant 1 : index
    %c0_13 = arith.constant 0 : index
    %c0_14 = arith.constant 0 : index
    %11 = vector.load %arg3[%c1, %c0_13, %c0_14] : memref<9x3x32xbf16, #tpu.memory_space<vmem>>, vector<1x3x32xbf16>
    %12 = vector.shape_cast %11 : vector<1x3x32xbf16> to vector<3x32xbf16>
    %cst_15 = arith.constant dense<0.000000e+00> : vector<144x32xf32>
    %13 = tpu.matmul %10, %12, %cst_15 {dimension_numbers = #tpu.dot_dimension_numbers<[1], [0], [0], [1], [0, 0, 1, 1], [], []>} : vector<144x3xbf16>, vector<3x32xbf16>, vector<144x32xf32> -> vector<144x32xf32>
    %14 = arith.addf %8, %13 : vector<144x32xf32>
    %c0_16 = arith.constant 0 : index
    %c1_17 = arith.constant 1 : index
    %c0_18 = arith.constant 0 : index
    %15 = vector.load %arg1[%c0_16, %c1_17, %c0_18] : memref<1x170x3xbf16, #tpu.memory_space<vmem>>, vector<1x144x3xbf16>
    %16 = vector.shape_cast %15 : vector<1x144x3xbf16> to vector<144x3xbf16>
    %c2 = arith.constant 2 : index
    %c0_19 = arith.constant 0 : index
    %c0_20 = arith.constant 0 : index
    %17 = vector.load %arg3[%c2, %c0_19, %c0_20] : memref<9x3x32xbf16, #tpu.memory_space<vmem>>, vector<1x3x32xbf16>
    %18 = vector.shape_cast %17 : vector<1x3x32xbf16> to vector<3x32xbf16>
    %cst_21 = arith.constant dense<0.000000e+00> : vector<144x32xf32>
    %19 = tpu.matmul %16, %18, %cst_21 {dimension_numbers = #tpu.dot_dimension_numbers<[1], [0], [0], [1], [0, 0, 1, 1], [], []>} : vector<144x3xbf16>, vector<3x32xbf16>, vector<144x32xf32> -> vector<144x32xf32>
    %20 = arith.addf %14, %19 : vector<144x32xf32>
    %c0_22 = arith.constant 0 : index
    %c9 = arith.constant 9 : index
    %c0_23 = arith.constant 0 : index
    %21 = vector.load %arg1[%c0_22, %c9, %c0_23] : memref<1x170x3xbf16, #tpu.memory_space<vmem>>, vector<1x144x3xbf16>
    %22 = vector.shape_cast %21 : vector<1x144x3xbf16> to vector<144x3xbf16>
    %c3 = arith.constant 3 : index
    %c0_24 = arith.constant 0 : index
    %c0_25 = arith.constant 0 : index
    %23 = vector.load %arg3[%c3, %c0_24, %c0_25] : memref<9x3x32xbf16, #tpu.memory_space<vmem>>, vector<1x3x32xbf16>
    %24 = vector.shape_cast %23 : vector<1x3x32xbf16> to vector<3x32xbf16>
    %cst_26 = arith.constant dense<0.000000e+00> : vector<144x32xf32>
    %25 = tpu.matmul %22, %24, %cst_26 {dimension_numbers = #tpu.dot_dimension_numbers<[1], [0], [0], [1], [0, 0, 1, 1], [], []>} : vector<144x3xbf16>, vector<3x32xbf16>, vector<144x32xf32> -> vector<144x32xf32>
    %26 = arith.addf %20, %25 : vector<144x32xf32>
    %c0_27 = arith.constant 0 : index
    %c9_28 = arith.constant 9 : index
    %c0_29 = arith.constant 0 : index
    %27 = vector.load %arg2[%c0_27, %c9_28, %c0_29] : memref<1x170x3xbf16, #tpu.memory_space<vmem>>, vector<1x144x3xbf16>
    %28 = vector.shape_cast %27 : vector<1x144x3xbf16> to vector<144x3xbf16>
    %c4 = arith.constant 4 : index
    %c0_30 = arith.constant 0 : index
    %c0_31 = arith.constant 0 : index
    %29 = vector.load %arg3[%c4, %c0_30, %c0_31] : memref<9x3x32xbf16, #tpu.memory_space<vmem>>, vector<1x3x32xbf16>
    %30 = vector.shape_cast %29 : vector<1x3x32xbf16> to vector<3x32xbf16>
    %cst_32 = arith.constant dense<0.000000e+00> : vector<144x32xf32>
    %31 = tpu.matmul %28, %30, %cst_32 {dimension_numbers = #tpu.dot_dimension_numbers<[1], [0], [0], [1], [0, 0, 1, 1], [], []>} : vector<144x3xbf16>, vector<3x32xbf16>, vector<144x32xf32> -> vector<144x32xf32>
    %32 = arith.addf %26, %31 : vector<144x32xf32>
    %c0_33 = arith.constant 0 : index
    %c10 = arith.constant 10 : index
    %c0_34 = arith.constant 0 : index
    %33 = vector.load %arg1[%c0_33, %c10, %c0_34] : memref<1x170x3xbf16, #tpu.memory_space<vmem>>, vector<1x144x3xbf16>
    %34 = vector.shape_cast %33 : vector<1x144x3xbf16> to vector<144x3xbf16>
    %c5 = arith.constant 5 : index
    %c0_35 = arith.constant 0 : index
    %c0_36 = arith.constant 0 : index
    %35 = vector.load %arg3[%c5, %c0_35, %c0_36] : memref<9x3x32xbf16, #tpu.memory_space<vmem>>, vector<1x3x32xbf16>
    %36 = vector.shape_cast %35 : vector<1x3x32xbf16> to vector<3x32xbf16>
    %cst_37 = arith.constant dense<0.000000e+00> : vector<144x32xf32>
    %37 = tpu.matmul %34, %36, %cst_37 {dimension_numbers = #tpu.dot_dimension_numbers<[1], [0], [0], [1], [0, 0, 1, 1], [], []>} : vector<144x3xbf16>, vector<3x32xbf16>, vector<144x32xf32> -> vector<144x32xf32>
    %38 = arith.addf %32, %37 : vector<144x32xf32>
    %c0_38 = arith.constant 0 : index
    %c18 = arith.constant 18 : index
    %c0_39 = arith.constant 0 : index
    %39 = vector.load %arg1[%c0_38, %c18, %c0_39] : memref<1x170x3xbf16, #tpu.memory_space<vmem>>, vector<1x144x3xbf16>
    %40 = vector.shape_cast %39 : vector<1x144x3xbf16> to vector<144x3xbf16>
    %c6 = arith.constant 6 : index
    %c0_40 = arith.constant 0 : index
    %c0_41 = arith.constant 0 : index
    %41 = vector.load %arg3[%c6, %c0_40, %c0_41] : memref<9x3x32xbf16, #tpu.memory_space<vmem>>, vector<1x3x32xbf16>
    %42 = vector.shape_cast %41 : vector<1x3x32xbf16> to vector<3x32xbf16>
    %cst_42 = arith.constant dense<0.000000e+00> : vector<144x32xf32>
    %43 = tpu.matmul %40, %42, %cst_42 {dimension_numbers = #tpu.dot_dimension_numbers<[1], [0], [0], [1], [0, 0, 1, 1], [], []>} : vector<144x3xbf16>, vector<3x32xbf16>, vector<144x32xf32> -> vector<144x32xf32>
    %44 = arith.addf %38, %43 : vector<144x32xf32>
    %c0_43 = arith.constant 0 : index
    %c18_44 = arith.constant 18 : index
    %c0_45 = arith.constant 0 : index
    %45 = vector.load %arg2[%c0_43, %c18_44, %c0_45] : memref<1x170x3xbf16, #tpu.memory_space<vmem>>, vector<1x144x3xbf16>
    %46 = vector.shape_cast %45 : vector<1x144x3xbf16> to vector<144x3xbf16>
    %c7 = arith.constant 7 : index
    %c0_46 = arith.constant 0 : index
    %c0_47 = arith.constant 0 : index
    %47 = vector.load %arg3[%c7, %c0_46, %c0_47] : memref<9x3x32xbf16, #tpu.memory_space<vmem>>, vector<1x3x32xbf16>
    %48 = vector.shape_cast %47 : vector<1x3x32xbf16> to vector<3x32xbf16>
    %cst_48 = arith.constant dense<0.000000e+00> : vector<144x32xf32>
    %49 = tpu.matmul %46, %48, %cst_48 {dimension_numbers = #tpu.dot_dimension_numbers<[1], [0], [0], [1], [0, 0, 1, 1], [], []>} : vector<144x3xbf16>, vector<3x32xbf16>, vector<144x32xf32> -> vector<144x32xf32>
    %50 = arith.addf %44, %49 : vector<144x32xf32>
    %c0_49 = arith.constant 0 : index
    %c19 = arith.constant 19 : index
    %c0_50 = arith.constant 0 : index
    %51 = vector.load %arg1[%c0_49, %c19, %c0_50] : memref<1x170x3xbf16, #tpu.memory_space<vmem>>, vector<1x144x3xbf16>
    %52 = vector.shape_cast %51 : vector<1x144x3xbf16> to vector<144x3xbf16>
    %c8 = arith.constant 8 : index
    %c0_51 = arith.constant 0 : index
    %c0_52 = arith.constant 0 : index
    %53 = vector.load %arg3[%c8, %c0_51, %c0_52] : memref<9x3x32xbf16, #tpu.memory_space<vmem>>, vector<1x3x32xbf16>
    %54 = vector.shape_cast %53 : vector<1x3x32xbf16> to vector<3x32xbf16>
    %cst_53 = arith.constant dense<0.000000e+00> : vector<144x32xf32>
    %55 = tpu.matmul %52, %54, %cst_53 {dimension_numbers = #tpu.dot_dimension_numbers<[1], [0], [0], [1], [0, 0, 1, 1], [], []>} : vector<144x3xbf16>, vector<3x32xbf16>, vector<144x32xf32> -> vector<144x32xf32>
    %56 = arith.addf %50, %55 : vector<144x32xf32>
    %57 = vector.broadcast %0 : vector<1x32xf32> to vector<144x32xf32>
    %58 = arith.mulf %56, %57 : vector<144x32xf32>
    %59 = vector.broadcast %1 : vector<1x32xf32> to vector<144x32xf32>
    %60 = arith.addf %58, %59 : vector<144x32xf32>
    %cst_54 = arith.constant 0.000000e+00 : f32
    %61 = vector.broadcast %cst_54 : f32 to vector<144x32xf32>
    %62 = arith.maximumf %60, %61 : vector<144x32xf32>
    %cst_55 = arith.constant 0.000000e+00 : f32
    %63 = vector.broadcast %cst_55 : f32 to vector<144x32xf32>
    %c0_56 = arith.constant 0 : index
    %c0_57 = arith.constant 0 : index
    %c0_58 = arith.constant 0 : index
    %64 = vector.load %arg2[%c0_56, %c0_57, %c0_58] : memref<1x170x3xbf16, #tpu.memory_space<vmem>>, vector<1x144x3xbf16>
    %65 = vector.shape_cast %64 : vector<1x144x3xbf16> to vector<144x3xbf16>
    %c0_59 = arith.constant 0 : index
    %c0_60 = arith.constant 0 : index
    %c0_61 = arith.constant 0 : index
    %66 = vector.load %arg3[%c0_59, %c0_60, %c0_61] : memref<9x3x32xbf16, #tpu.memory_space<vmem>>, vector<1x3x32xbf16>
    %67 = vector.shape_cast %66 : vector<1x3x32xbf16> to vector<3x32xbf16>
    %cst_62 = arith.constant dense<0.000000e+00> : vector<144x32xf32>
    %68 = tpu.matmul %65, %67, %cst_62 {dimension_numbers = #tpu.dot_dimension_numbers<[1], [0], [0], [1], [0, 0, 1, 1], [], []>} : vector<144x3xbf16>, vector<3x32xbf16>, vector<144x32xf32> -> vector<144x32xf32>
    %69 = arith.addf %63, %68 : vector<144x32xf32>
    %c0_63 = arith.constant 0 : index
    %c1_64 = arith.constant 1 : index
    %c0_65 = arith.constant 0 : index
    %70 = vector.load %arg1[%c0_63, %c1_64, %c0_65] : memref<1x170x3xbf16, #tpu.memory_space<vmem>>, vector<1x144x3xbf16>
    %71 = vector.shape_cast %70 : vector<1x144x3xbf16> to vector<144x3xbf16>
    %c1_66 = arith.constant 1 : index
    %c0_67 = arith.constant 0 : index
    %c0_68 = arith.constant 0 : index
    %72 = vector.load %arg3[%c1_66, %c0_67, %c0_68] : memref<9x3x32xbf16, #tpu.memory_space<vmem>>, vector<1x3x32xbf16>
    %73 = vector.shape_cast %72 : vector<1x3x32xbf16> to vector<3x32xbf16>
    %cst_69 = arith.constant dense<0.000000e+00> : vector<144x32xf32>
    %74 = tpu.matmul %71, %73, %cst_69 {dimension_numbers = #tpu.dot_dimension_numbers<[1], [0], [0], [1], [0, 0, 1, 1], [], []>} : vector<144x3xbf16>, vector<3x32xbf16>, vector<144x32xf32> -> vector<144x32xf32>
    %75 = arith.addf %69, %74 : vector<144x32xf32>
    %c0_70 = arith.constant 0 : index
    %c1_71 = arith.constant 1 : index
    %c0_72 = arith.constant 0 : index
    %76 = vector.load %arg2[%c0_70, %c1_71, %c0_72] : memref<1x170x3xbf16, #tpu.memory_space<vmem>>, vector<1x144x3xbf16>
    %77 = vector.shape_cast %76 : vector<1x144x3xbf16> to vector<144x3xbf16>
    %c2_73 = arith.constant 2 : index
    %c0_74 = arith.constant 0 : index
    %c0_75 = arith.constant 0 : index
    %78 = vector.load %arg3[%c2_73, %c0_74, %c0_75] : memref<9x3x32xbf16, #tpu.memory_space<vmem>>, vector<1x3x32xbf16>
    %79 = vector.shape_cast %78 : vector<1x3x32xbf16> to vector<3x32xbf16>
    %cst_76 = arith.constant dense<0.000000e+00> : vector<144x32xf32>
    %80 = tpu.matmul %77, %79, %cst_76 {dimension_numbers = #tpu.dot_dimension_numbers<[1], [0], [0], [1], [0, 0, 1, 1], [], []>} : vector<144x3xbf16>, vector<3x32xbf16>, vector<144x32xf32> -> vector<144x32xf32>
    %81 = arith.addf %75, %80 : vector<144x32xf32>
    %c0_77 = arith.constant 0 : index
    %c9_78 = arith.constant 9 : index
    %c0_79 = arith.constant 0 : index
    %82 = vector.load %arg2[%c0_77, %c9_78, %c0_79] : memref<1x170x3xbf16, #tpu.memory_space<vmem>>, vector<1x144x3xbf16>
    %83 = vector.shape_cast %82 : vector<1x144x3xbf16> to vector<144x3xbf16>
    %c3_80 = arith.constant 3 : index
    %c0_81 = arith.constant 0 : index
    %c0_82 = arith.constant 0 : index
    %84 = vector.load %arg3[%c3_80, %c0_81, %c0_82] : memref<9x3x32xbf16, #tpu.memory_space<vmem>>, vector<1x3x32xbf16>
    %85 = vector.shape_cast %84 : vector<1x3x32xbf16> to vector<3x32xbf16>
    %cst_83 = arith.constant dense<0.000000e+00> : vector<144x32xf32>
    %86 = tpu.matmul %83, %85, %cst_83 {dimension_numbers = #tpu.dot_dimension_numbers<[1], [0], [0], [1], [0, 0, 1, 1], [], []>} : vector<144x3xbf16>, vector<3x32xbf16>, vector<144x32xf32> -> vector<144x32xf32>
    %87 = arith.addf %81, %86 : vector<144x32xf32>
    %c0_84 = arith.constant 0 : index
    %c10_85 = arith.constant 10 : index
    %c0_86 = arith.constant 0 : index
    %88 = vector.load %arg1[%c0_84, %c10_85, %c0_86] : memref<1x170x3xbf16, #tpu.memory_space<vmem>>, vector<1x144x3xbf16>
    %89 = vector.shape_cast %88 : vector<1x144x3xbf16> to vector<144x3xbf16>
    %c4_87 = arith.constant 4 : index
    %c0_88 = arith.constant 0 : index
    %c0_89 = arith.constant 0 : index
    %90 = vector.load %arg3[%c4_87, %c0_88, %c0_89] : memref<9x3x32xbf16, #tpu.memory_space<vmem>>, vector<1x3x32xbf16>
    %91 = vector.shape_cast %90 : vector<1x3x32xbf16> to vector<3x32xbf16>
    %cst_90 = arith.constant dense<0.000000e+00> : vector<144x32xf32>
    %92 = tpu.matmul %89, %91, %cst_90 {dimension_numbers = #tpu.dot_dimension_numbers<[1], [0], [0], [1], [0, 0, 1, 1], [], []>} : vector<144x3xbf16>, vector<3x32xbf16>, vector<144x32xf32> -> vector<144x32xf32>
    %93 = arith.addf %87, %92 : vector<144x32xf32>
    %c0_91 = arith.constant 0 : index
    %c10_92 = arith.constant 10 : index
    %c0_93 = arith.constant 0 : index
    %94 = vector.load %arg2[%c0_91, %c10_92, %c0_93] : memref<1x170x3xbf16, #tpu.memory_space<vmem>>, vector<1x144x3xbf16>
    %95 = vector.shape_cast %94 : vector<1x144x3xbf16> to vector<144x3xbf16>
    %c5_94 = arith.constant 5 : index
    %c0_95 = arith.constant 0 : index
    %c0_96 = arith.constant 0 : index
    %96 = vector.load %arg3[%c5_94, %c0_95, %c0_96] : memref<9x3x32xbf16, #tpu.memory_space<vmem>>, vector<1x3x32xbf16>
    %97 = vector.shape_cast %96 : vector<1x3x32xbf16> to vector<3x32xbf16>
    %cst_97 = arith.constant dense<0.000000e+00> : vector<144x32xf32>
    %98 = tpu.matmul %95, %97, %cst_97 {dimension_numbers = #tpu.dot_dimension_numbers<[1], [0], [0], [1], [0, 0, 1, 1], [], []>} : vector<144x3xbf16>, vector<3x32xbf16>, vector<144x32xf32> -> vector<144x32xf32>
    %99 = arith.addf %93, %98 : vector<144x32xf32>
    %c0_98 = arith.constant 0 : index
    %c18_99 = arith.constant 18 : index
    %c0_100 = arith.constant 0 : index
    %100 = vector.load %arg2[%c0_98, %c18_99, %c0_100] : memref<1x170x3xbf16, #tpu.memory_space<vmem>>, vector<1x144x3xbf16>
    %101 = vector.shape_cast %100 : vector<1x144x3xbf16> to vector<144x3xbf16>
    %c6_101 = arith.constant 6 : index
    %c0_102 = arith.constant 0 : index
    %c0_103 = arith.constant 0 : index
    %102 = vector.load %arg3[%c6_101, %c0_102, %c0_103] : memref<9x3x32xbf16, #tpu.memory_space<vmem>>, vector<1x3x32xbf16>
    %103 = vector.shape_cast %102 : vector<1x3x32xbf16> to vector<3x32xbf16>
    %cst_104 = arith.constant dense<0.000000e+00> : vector<144x32xf32>
    %104 = tpu.matmul %101, %103, %cst_104 {dimension_numbers = #tpu.dot_dimension_numbers<[1], [0], [0], [1], [0, 0, 1, 1], [], []>} : vector<144x3xbf16>, vector<3x32xbf16>, vector<144x32xf32> -> vector<144x32xf32>
    %105 = arith.addf %99, %104 : vector<144x32xf32>
    %c0_105 = arith.constant 0 : index
    %c19_106 = arith.constant 19 : index
    %c0_107 = arith.constant 0 : index
    %106 = vector.load %arg1[%c0_105, %c19_106, %c0_107] : memref<1x170x3xbf16, #tpu.memory_space<vmem>>, vector<1x144x3xbf16>
    %107 = vector.shape_cast %106 : vector<1x144x3xbf16> to vector<144x3xbf16>
    %c7_108 = arith.constant 7 : index
    %c0_109 = arith.constant 0 : index
    %c0_110 = arith.constant 0 : index
    %108 = vector.load %arg3[%c7_108, %c0_109, %c0_110] : memref<9x3x32xbf16, #tpu.memory_space<vmem>>, vector<1x3x32xbf16>
    %109 = vector.shape_cast %108 : vector<1x3x32xbf16> to vector<3x32xbf16>
    %cst_111 = arith.constant dense<0.000000e+00> : vector<144x32xf32>
    %110 = tpu.matmul %107, %109, %cst_111 {dimension_numbers = #tpu.dot_dimension_numbers<[1], [0], [0], [1], [0, 0, 1, 1], [], []>} : vector<144x3xbf16>, vector<3x32xbf16>, vector<144x32xf32> -> vector<144x32xf32>
    %111 = arith.addf %105, %110 : vector<144x32xf32>
    %c0_112 = arith.constant 0 : index
    %c19_113 = arith.constant 19 : index
    %c0_114 = arith.constant 0 : index
    %112 = vector.load %arg2[%c0_112, %c19_113, %c0_114] : memref<1x170x3xbf16, #tpu.memory_space<vmem>>, vector<1x144x3xbf16>
    %113 = vector.shape_cast %112 : vector<1x144x3xbf16> to vector<144x3xbf16>
    %c8_115 = arith.constant 8 : index
    %c0_116 = arith.constant 0 : index
    %c0_117 = arith.constant 0 : index
    %114 = vector.load %arg3[%c8_115, %c0_116, %c0_117] : memref<9x3x32xbf16, #tpu.memory_space<vmem>>, vector<1x3x32xbf16>
    %115 = vector.shape_cast %114 : vector<1x3x32xbf16> to vector<3x32xbf16>
    %cst_118 = arith.constant dense<0.000000e+00> : vector<144x32xf32>
    %116 = tpu.matmul %113, %115, %cst_118 {dimension_numbers = #tpu.dot_dimension_numbers<[1], [0], [0], [1], [0, 0, 1, 1], [], []>} : vector<144x3xbf16>, vector<3x32xbf16>, vector<144x32xf32> -> vector<144x32xf32>
    %117 = arith.addf %111, %116 : vector<144x32xf32>
    %118 = vector.broadcast %0 : vector<1x32xf32> to vector<144x32xf32>
    %119 = arith.mulf %117, %118 : vector<144x32xf32>
    %120 = vector.broadcast %1 : vector<1x32xf32> to vector<144x32xf32>
    %121 = arith.addf %119, %120 : vector<144x32xf32>
    %cst_119 = arith.constant 0.000000e+00 : f32
    %122 = vector.broadcast %cst_119 : f32 to vector<144x32xf32>
    %123 = arith.maximumf %121, %122 : vector<144x32xf32>
    %124 = arith.maximumf %62, %123 : vector<144x32xf32>
    %c0_120 = arith.constant 0 : index
    %c0_121 = arith.constant 0 : index
    %c0_122 = arith.constant 0 : index
    %125 = vector.load %arg6[%c0_120, %c0_121, %c0_122] : memref<1x144x32xf32, #tpu.memory_space<vmem>>, vector<1x144x32xf32>
    %126 = vector.shape_cast %125 : vector<1x144x32xf32> to vector<144x32xf32>
    %127 = vector.shape_cast %124 : vector<144x32xf32> to vector<1x144x32xf32>
    tpu.vector_store %arg6[%c0_120, %c0_121, %c0_122], %127 {strides = array<i32>} : memref<1x144x32xf32, #tpu.memory_space<vmem>>, vector<1x144x32xf32>,
    return
  }
  func.func @transform_0(%arg0: i32) -> (i32, i32, i32) {
    %c0_i32 = arith.constant 0 : i32
    %c0_i32_0 = arith.constant 0 : i32
    %c0_i32_1 = arith.constant 0 : i32
    return %arg0, %c0_i32, %c0_i32_0 : i32, i32, i32
  }
  func.func @transform_1(%arg0: i32) -> (i32, i32, i32) {
    %c0_i32 = arith.constant 0 : i32
    %c0_i32_0 = arith.constant 0 : i32
    %c0_i32_1 = arith.constant 0 : i32
    return %arg0, %c0_i32, %c0_i32_0 : i32, i32, i32
  }
  func.func @transform_2(%arg0: i32) -> (i32, i32, i32) {
    %c0_i32 = arith.constant 0 : i32
    %c0_i32_0 = arith.constant 0 : i32
    %c0_i32_1 = arith.constant 0 : i32
    %c0_i32_2 = arith.constant 0 : i32
    return %c0_i32, %c0_i32_0, %c0_i32_1 : i32, i32, i32
  }
  func.func @transform_3(%arg0: i32) -> (i32, i32) {
    %c0_i32 = arith.constant 0 : i32
    %c0_i32_0 = arith.constant 0 : i32
    %c0_i32_1 = arith.constant 0 : i32
    return %c0_i32, %c0_i32_0 : i32, i32
  }
  func.func @transform_4(%arg0: i32) -> (i32, i32) {
    %c0_i32 = arith.constant 0 : i32
    %c0_i32_0 = arith.constant 0 : i32
    %c0_i32_1 = arith.constant 0 : i32
    return %c0_i32, %c0_i32_0 : i32, i32
  }
  func.func @transform_5(%arg0: i32) -> (i32, i32, i32) {
    %c0_i32 = arith.constant 0 : i32
    %c0_i32_0 = arith.constant 0 : i32
    %c0_i32_1 = arith.constant 0 : i32
    return %arg0, %c0_i32, %c0_i32_0 : i32, i32, i32
  }
}

module attributes {stable_mosaic.version = 11 : i64} {
  func.func @kernel(%arg0: i32, %arg1: memref<1x58x32xbf16, #tpu.memory_space<vmem>>, %arg2: memref<1x58x32xbf16, #tpu.memory_space<vmem>>, %arg3: memref<9x32x32xbf16, #tpu.memory_space<vmem>>, %arg4: memref<1x32xf32, #tpu.memory_space<vmem>>, %arg5: memref<1x32xf32, #tpu.memory_space<vmem>>, %arg6: memref<1x40x32xf32, #tpu.memory_space<vmem>>) attributes {dimension_semantics = [#tpu.dimension_semantics<parallel>], iteration_bounds = array<i64: 20>, scalar_prefetch = 0 : i64, scratch_operands = 0 : i64, tpu.core_type = #tpu.core_type<tc>, window_params = [{transform_indices = @transform_0, window_bounds = array<i64: 1, 58, 32>}, {transform_indices = @transform_1, window_bounds = array<i64: 1, 58, 32>}, {pipeline_mode = #tpu.pipeline_mode<synchronous>, transform_indices = @transform_2, window_bounds = array<i64: 9, 32, 32>}, {pipeline_mode = #tpu.pipeline_mode<synchronous>, transform_indices = @transform_3, window_bounds = array<i64: 1, 32>}, {pipeline_mode = #tpu.pipeline_mode<synchronous>, transform_indices = @transform_4, window_bounds = array<i64: 1, 32>}, {transform_indices = @transform_5, window_bounds = array<i64: 1, 40, 32>}]} {
    %c0 = arith.constant 0 : index
    %c0_0 = arith.constant 0 : index
    %0 = vector.load %arg4[%c0, %c0_0] : memref<1x32xf32, #tpu.memory_space<vmem>>, vector<1x32xf32>
    %c0_1 = arith.constant 0 : index
    %c0_2 = arith.constant 0 : index
    %1 = vector.load %arg5[%c0_1, %c0_2] : memref<1x32xf32, #tpu.memory_space<vmem>>, vector<1x32xf32>
    %cst = arith.constant 0.000000e+00 : f32
    %2 = vector.broadcast %cst : f32 to vector<40x32xf32>
    %c0_3 = arith.constant 0 : index
    %c0_4 = arith.constant 0 : index
    %c0_5 = arith.constant 0 : index
    %3 = vector.load %arg1[%c0_3, %c0_4, %c0_5] : memref<1x58x32xbf16, #tpu.memory_space<vmem>>, vector<1x40x32xbf16>
    %4 = vector.shape_cast %3 : vector<1x40x32xbf16> to vector<40x32xbf16>
    %c0_6 = arith.constant 0 : index
    %c0_7 = arith.constant 0 : index
    %c0_8 = arith.constant 0 : index
    %5 = vector.load %arg3[%c0_6, %c0_7, %c0_8] : memref<9x32x32xbf16, #tpu.memory_space<vmem>>, vector<1x32x32xbf16>
    %6 = vector.shape_cast %5 : vector<1x32x32xbf16> to vector<32x32xbf16>
    %cst_9 = arith.constant dense<0.000000e+00> : vector<40x32xf32>
    %7 = tpu.matmul %4, %6, %cst_9 {dimension_numbers = #tpu.dot_dimension_numbers<[1], [0], [0], [1], [0, 0, 1, 1], [], []>} : vector<40x32xbf16>, vector<32x32xbf16>, vector<40x32xf32> -> vector<40x32xf32>
    %8 = arith.addf %2, %7 : vector<40x32xf32>
    %c0_10 = arith.constant 0 : index
    %c0_11 = arith.constant 0 : index
    %c0_12 = arith.constant 0 : index
    %9 = vector.load %arg2[%c0_10, %c0_11, %c0_12] : memref<1x58x32xbf16, #tpu.memory_space<vmem>>, vector<1x40x32xbf16>
    %10 = vector.shape_cast %9 : vector<1x40x32xbf16> to vector<40x32xbf16>
    %c1 = arith.constant 1 : index
    %c0_13 = arith.constant 0 : index
    %c0_14 = arith.constant 0 : index
    %11 = vector.load %arg3[%c1, %c0_13, %c0_14] : memref<9x32x32xbf16, #tpu.memory_space<vmem>>, vector<1x32x32xbf16>
    %12 = vector.shape_cast %11 : vector<1x32x32xbf16> to vector<32x32xbf16>
    %cst_15 = arith.constant dense<0.000000e+00> : vector<40x32xf32>
    %13 = tpu.matmul %10, %12, %cst_15 {dimension_numbers = #tpu.dot_dimension_numbers<[1], [0], [0], [1], [0, 0, 1, 1], [], []>} : vector<40x32xbf16>, vector<32x32xbf16>, vector<40x32xf32> -> vector<40x32xf32>
    %14 = arith.addf %8, %13 : vector<40x32xf32>
    %c0_16 = arith.constant 0 : index
    %c1_17 = arith.constant 1 : index
    %c0_18 = arith.constant 0 : index
    %15 = vector.load %arg1[%c0_16, %c1_17, %c0_18] : memref<1x58x32xbf16, #tpu.memory_space<vmem>>, vector<1x40x32xbf16>
    %16 = vector.shape_cast %15 : vector<1x40x32xbf16> to vector<40x32xbf16>
    %c2 = arith.constant 2 : index
    %c0_19 = arith.constant 0 : index
    %c0_20 = arith.constant 0 : index
    %17 = vector.load %arg3[%c2, %c0_19, %c0_20] : memref<9x32x32xbf16, #tpu.memory_space<vmem>>, vector<1x32x32xbf16>
    %18 = vector.shape_cast %17 : vector<1x32x32xbf16> to vector<32x32xbf16>
    %cst_21 = arith.constant dense<0.000000e+00> : vector<40x32xf32>
    %19 = tpu.matmul %16, %18, %cst_21 {dimension_numbers = #tpu.dot_dimension_numbers<[1], [0], [0], [1], [0, 0, 1, 1], [], []>} : vector<40x32xbf16>, vector<32x32xbf16>, vector<40x32xf32> -> vector<40x32xf32>
    %20 = arith.addf %14, %19 : vector<40x32xf32>
    %c0_22 = arith.constant 0 : index
    %c5 = arith.constant 5 : index
    %c0_23 = arith.constant 0 : index
    %21 = vector.load %arg1[%c0_22, %c5, %c0_23] : memref<1x58x32xbf16, #tpu.memory_space<vmem>>, vector<1x40x32xbf16>
    %22 = vector.shape_cast %21 : vector<1x40x32xbf16> to vector<40x32xbf16>
    %c3 = arith.constant 3 : index
    %c0_24 = arith.constant 0 : index
    %c0_25 = arith.constant 0 : index
    %23 = vector.load %arg3[%c3, %c0_24, %c0_25] : memref<9x32x32xbf16, #tpu.memory_space<vmem>>, vector<1x32x32xbf16>
    %24 = vector.shape_cast %23 : vector<1x32x32xbf16> to vector<32x32xbf16>
    %cst_26 = arith.constant dense<0.000000e+00> : vector<40x32xf32>
    %25 = tpu.matmul %22, %24, %cst_26 {dimension_numbers = #tpu.dot_dimension_numbers<[1], [0], [0], [1], [0, 0, 1, 1], [], []>} : vector<40x32xbf16>, vector<32x32xbf16>, vector<40x32xf32> -> vector<40x32xf32>
    %26 = arith.addf %20, %25 : vector<40x32xf32>
    %c0_27 = arith.constant 0 : index
    %c5_28 = arith.constant 5 : index
    %c0_29 = arith.constant 0 : index
    %27 = vector.load %arg2[%c0_27, %c5_28, %c0_29] : memref<1x58x32xbf16, #tpu.memory_space<vmem>>, vector<1x40x32xbf16>
    %28 = vector.shape_cast %27 : vector<1x40x32xbf16> to vector<40x32xbf16>
    %c4 = arith.constant 4 : index
    %c0_30 = arith.constant 0 : index
    %c0_31 = arith.constant 0 : index
    %29 = vector.load %arg3[%c4, %c0_30, %c0_31] : memref<9x32x32xbf16, #tpu.memory_space<vmem>>, vector<1x32x32xbf16>
    %30 = vector.shape_cast %29 : vector<1x32x32xbf16> to vector<32x32xbf16>
    %cst_32 = arith.constant dense<0.000000e+00> : vector<40x32xf32>
    %31 = tpu.matmul %28, %30, %cst_32 {dimension_numbers = #tpu.dot_dimension_numbers<[1], [0], [0], [1], [0, 0, 1, 1], [], []>} : vector<40x32xbf16>, vector<32x32xbf16>, vector<40x32xf32> -> vector<40x32xf32>
    %32 = arith.addf %26, %31 : vector<40x32xf32>
    %c0_33 = arith.constant 0 : index
    %c6 = arith.constant 6 : index
    %c0_34 = arith.constant 0 : index
    %33 = vector.load %arg1[%c0_33, %c6, %c0_34] : memref<1x58x32xbf16, #tpu.memory_space<vmem>>, vector<1x40x32xbf16>
    %34 = vector.shape_cast %33 : vector<1x40x32xbf16> to vector<40x32xbf16>
    %c5_35 = arith.constant 5 : index
    %c0_36 = arith.constant 0 : index
    %c0_37 = arith.constant 0 : index
    %35 = vector.load %arg3[%c5_35, %c0_36, %c0_37] : memref<9x32x32xbf16, #tpu.memory_space<vmem>>, vector<1x32x32xbf16>
    %36 = vector.shape_cast %35 : vector<1x32x32xbf16> to vector<32x32xbf16>
    %cst_38 = arith.constant dense<0.000000e+00> : vector<40x32xf32>
    %37 = tpu.matmul %34, %36, %cst_38 {dimension_numbers = #tpu.dot_dimension_numbers<[1], [0], [0], [1], [0, 0, 1, 1], [], []>} : vector<40x32xbf16>, vector<32x32xbf16>, vector<40x32xf32> -> vector<40x32xf32>
    %38 = arith.addf %32, %37 : vector<40x32xf32>
    %c0_39 = arith.constant 0 : index
    %c10 = arith.constant 10 : index
    %c0_40 = arith.constant 0 : index
    %39 = vector.load %arg1[%c0_39, %c10, %c0_40] : memref<1x58x32xbf16, #tpu.memory_space<vmem>>, vector<1x40x32xbf16>
    %40 = vector.shape_cast %39 : vector<1x40x32xbf16> to vector<40x32xbf16>
    %c6_41 = arith.constant 6 : index
    %c0_42 = arith.constant 0 : index
    %c0_43 = arith.constant 0 : index
    %41 = vector.load %arg3[%c6_41, %c0_42, %c0_43] : memref<9x32x32xbf16, #tpu.memory_space<vmem>>, vector<1x32x32xbf16>
    %42 = vector.shape_cast %41 : vector<1x32x32xbf16> to vector<32x32xbf16>
    %cst_44 = arith.constant dense<0.000000e+00> : vector<40x32xf32>
    %43 = tpu.matmul %40, %42, %cst_44 {dimension_numbers = #tpu.dot_dimension_numbers<[1], [0], [0], [1], [0, 0, 1, 1], [], []>} : vector<40x32xbf16>, vector<32x32xbf16>, vector<40x32xf32> -> vector<40x32xf32>
    %44 = arith.addf %38, %43 : vector<40x32xf32>
    %c0_45 = arith.constant 0 : index
    %c10_46 = arith.constant 10 : index
    %c0_47 = arith.constant 0 : index
    %45 = vector.load %arg2[%c0_45, %c10_46, %c0_47] : memref<1x58x32xbf16, #tpu.memory_space<vmem>>, vector<1x40x32xbf16>
    %46 = vector.shape_cast %45 : vector<1x40x32xbf16> to vector<40x32xbf16>
    %c7 = arith.constant 7 : index
    %c0_48 = arith.constant 0 : index
    %c0_49 = arith.constant 0 : index
    %47 = vector.load %arg3[%c7, %c0_48, %c0_49] : memref<9x32x32xbf16, #tpu.memory_space<vmem>>, vector<1x32x32xbf16>
    %48 = vector.shape_cast %47 : vector<1x32x32xbf16> to vector<32x32xbf16>
    %cst_50 = arith.constant dense<0.000000e+00> : vector<40x32xf32>
    %49 = tpu.matmul %46, %48, %cst_50 {dimension_numbers = #tpu.dot_dimension_numbers<[1], [0], [0], [1], [0, 0, 1, 1], [], []>} : vector<40x32xbf16>, vector<32x32xbf16>, vector<40x32xf32> -> vector<40x32xf32>
    %50 = arith.addf %44, %49 : vector<40x32xf32>
    %c0_51 = arith.constant 0 : index
    %c11 = arith.constant 11 : index
    %c0_52 = arith.constant 0 : index
    %51 = vector.load %arg1[%c0_51, %c11, %c0_52] : memref<1x58x32xbf16, #tpu.memory_space<vmem>>, vector<1x40x32xbf16>
    %52 = vector.shape_cast %51 : vector<1x40x32xbf16> to vector<40x32xbf16>
    %c8 = arith.constant 8 : index
    %c0_53 = arith.constant 0 : index
    %c0_54 = arith.constant 0 : index
    %53 = vector.load %arg3[%c8, %c0_53, %c0_54] : memref<9x32x32xbf16, #tpu.memory_space<vmem>>, vector<1x32x32xbf16>
    %54 = vector.shape_cast %53 : vector<1x32x32xbf16> to vector<32x32xbf16>
    %cst_55 = arith.constant dense<0.000000e+00> : vector<40x32xf32>
    %55 = tpu.matmul %52, %54, %cst_55 {dimension_numbers = #tpu.dot_dimension_numbers<[1], [0], [0], [1], [0, 0, 1, 1], [], []>} : vector<40x32xbf16>, vector<32x32xbf16>, vector<40x32xf32> -> vector<40x32xf32>
    %56 = arith.addf %50, %55 : vector<40x32xf32>
    %57 = vector.broadcast %0 : vector<1x32xf32> to vector<40x32xf32>
    %58 = arith.mulf %56, %57 : vector<40x32xf32>
    %59 = vector.broadcast %1 : vector<1x32xf32> to vector<40x32xf32>
    %60 = arith.addf %58, %59 : vector<40x32xf32>
    %cst_56 = arith.constant 0.000000e+00 : f32
    %61 = vector.broadcast %cst_56 : f32 to vector<40x32xf32>
    %62 = arith.maximumf %60, %61 : vector<40x32xf32>
    %cst_57 = arith.constant 0.000000e+00 : f32
    %63 = vector.broadcast %cst_57 : f32 to vector<40x32xf32>
    %c0_58 = arith.constant 0 : index
    %c0_59 = arith.constant 0 : index
    %c0_60 = arith.constant 0 : index
    %64 = vector.load %arg2[%c0_58, %c0_59, %c0_60] : memref<1x58x32xbf16, #tpu.memory_space<vmem>>, vector<1x40x32xbf16>
    %65 = vector.shape_cast %64 : vector<1x40x32xbf16> to vector<40x32xbf16>
    %c0_61 = arith.constant 0 : index
    %c0_62 = arith.constant 0 : index
    %c0_63 = arith.constant 0 : index
    %66 = vector.load %arg3[%c0_61, %c0_62, %c0_63] : memref<9x32x32xbf16, #tpu.memory_space<vmem>>, vector<1x32x32xbf16>
    %67 = vector.shape_cast %66 : vector<1x32x32xbf16> to vector<32x32xbf16>
    %cst_64 = arith.constant dense<0.000000e+00> : vector<40x32xf32>
    %68 = tpu.matmul %65, %67, %cst_64 {dimension_numbers = #tpu.dot_dimension_numbers<[1], [0], [0], [1], [0, 0, 1, 1], [], []>} : vector<40x32xbf16>, vector<32x32xbf16>, vector<40x32xf32> -> vector<40x32xf32>
    %69 = arith.addf %63, %68 : vector<40x32xf32>
    %c0_65 = arith.constant 0 : index
    %c1_66 = arith.constant 1 : index
    %c0_67 = arith.constant 0 : index
    %70 = vector.load %arg1[%c0_65, %c1_66, %c0_67] : memref<1x58x32xbf16, #tpu.memory_space<vmem>>, vector<1x40x32xbf16>
    %71 = vector.shape_cast %70 : vector<1x40x32xbf16> to vector<40x32xbf16>
    %c1_68 = arith.constant 1 : index
    %c0_69 = arith.constant 0 : index
    %c0_70 = arith.constant 0 : index
    %72 = vector.load %arg3[%c1_68, %c0_69, %c0_70] : memref<9x32x32xbf16, #tpu.memory_space<vmem>>, vector<1x32x32xbf16>
    %73 = vector.shape_cast %72 : vector<1x32x32xbf16> to vector<32x32xbf16>
    %cst_71 = arith.constant dense<0.000000e+00> : vector<40x32xf32>
    %74 = tpu.matmul %71, %73, %cst_71 {dimension_numbers = #tpu.dot_dimension_numbers<[1], [0], [0], [1], [0, 0, 1, 1], [], []>} : vector<40x32xbf16>, vector<32x32xbf16>, vector<40x32xf32> -> vector<40x32xf32>
    %75 = arith.addf %69, %74 : vector<40x32xf32>
    %c0_72 = arith.constant 0 : index
    %c1_73 = arith.constant 1 : index
    %c0_74 = arith.constant 0 : index
    %76 = vector.load %arg2[%c0_72, %c1_73, %c0_74] : memref<1x58x32xbf16, #tpu.memory_space<vmem>>, vector<1x40x32xbf16>
    %77 = vector.shape_cast %76 : vector<1x40x32xbf16> to vector<40x32xbf16>
    %c2_75 = arith.constant 2 : index
    %c0_76 = arith.constant 0 : index
    %c0_77 = arith.constant 0 : index
    %78 = vector.load %arg3[%c2_75, %c0_76, %c0_77] : memref<9x32x32xbf16, #tpu.memory_space<vmem>>, vector<1x32x32xbf16>
    %79 = vector.shape_cast %78 : vector<1x32x32xbf16> to vector<32x32xbf16>
    %cst_78 = arith.constant dense<0.000000e+00> : vector<40x32xf32>
    %80 = tpu.matmul %77, %79, %cst_78 {dimension_numbers = #tpu.dot_dimension_numbers<[1], [0], [0], [1], [0, 0, 1, 1], [], []>} : vector<40x32xbf16>, vector<32x32xbf16>, vector<40x32xf32> -> vector<40x32xf32>
    %81 = arith.addf %75, %80 : vector<40x32xf32>
    %c0_79 = arith.constant 0 : index
    %c5_80 = arith.constant 5 : index
    %c0_81 = arith.constant 0 : index
    %82 = vector.load %arg2[%c0_79, %c5_80, %c0_81] : memref<1x58x32xbf16, #tpu.memory_space<vmem>>, vector<1x40x32xbf16>
    %83 = vector.shape_cast %82 : vector<1x40x32xbf16> to vector<40x32xbf16>
    %c3_82 = arith.constant 3 : index
    %c0_83 = arith.constant 0 : index
    %c0_84 = arith.constant 0 : index
    %84 = vector.load %arg3[%c3_82, %c0_83, %c0_84] : memref<9x32x32xbf16, #tpu.memory_space<vmem>>, vector<1x32x32xbf16>
    %85 = vector.shape_cast %84 : vector<1x32x32xbf16> to vector<32x32xbf16>
    %cst_85 = arith.constant dense<0.000000e+00> : vector<40x32xf32>
    %86 = tpu.matmul %83, %85, %cst_85 {dimension_numbers = #tpu.dot_dimension_numbers<[1], [0], [0], [1], [0, 0, 1, 1], [], []>} : vector<40x32xbf16>, vector<32x32xbf16>, vector<40x32xf32> -> vector<40x32xf32>
    %87 = arith.addf %81, %86 : vector<40x32xf32>
    %c0_86 = arith.constant 0 : index
    %c6_87 = arith.constant 6 : index
    %c0_88 = arith.constant 0 : index
    %88 = vector.load %arg1[%c0_86, %c6_87, %c0_88] : memref<1x58x32xbf16, #tpu.memory_space<vmem>>, vector<1x40x32xbf16>
    %89 = vector.shape_cast %88 : vector<1x40x32xbf16> to vector<40x32xbf16>
    %c4_89 = arith.constant 4 : index
    %c0_90 = arith.constant 0 : index
    %c0_91 = arith.constant 0 : index
    %90 = vector.load %arg3[%c4_89, %c0_90, %c0_91] : memref<9x32x32xbf16, #tpu.memory_space<vmem>>, vector<1x32x32xbf16>
    %91 = vector.shape_cast %90 : vector<1x32x32xbf16> to vector<32x32xbf16>
    %cst_92 = arith.constant dense<0.000000e+00> : vector<40x32xf32>
    %92 = tpu.matmul %89, %91, %cst_92 {dimension_numbers = #tpu.dot_dimension_numbers<[1], [0], [0], [1], [0, 0, 1, 1], [], []>} : vector<40x32xbf16>, vector<32x32xbf16>, vector<40x32xf32> -> vector<40x32xf32>
    %93 = arith.addf %87, %92 : vector<40x32xf32>
    %c0_93 = arith.constant 0 : index
    %c6_94 = arith.constant 6 : index
    %c0_95 = arith.constant 0 : index
    %94 = vector.load %arg2[%c0_93, %c6_94, %c0_95] : memref<1x58x32xbf16, #tpu.memory_space<vmem>>, vector<1x40x32xbf16>
    %95 = vector.shape_cast %94 : vector<1x40x32xbf16> to vector<40x32xbf16>
    %c5_96 = arith.constant 5 : index
    %c0_97 = arith.constant 0 : index
    %c0_98 = arith.constant 0 : index
    %96 = vector.load %arg3[%c5_96, %c0_97, %c0_98] : memref<9x32x32xbf16, #tpu.memory_space<vmem>>, vector<1x32x32xbf16>
    %97 = vector.shape_cast %96 : vector<1x32x32xbf16> to vector<32x32xbf16>
    %cst_99 = arith.constant dense<0.000000e+00> : vector<40x32xf32>
    %98 = tpu.matmul %95, %97, %cst_99 {dimension_numbers = #tpu.dot_dimension_numbers<[1], [0], [0], [1], [0, 0, 1, 1], [], []>} : vector<40x32xbf16>, vector<32x32xbf16>, vector<40x32xf32> -> vector<40x32xf32>
    %99 = arith.addf %93, %98 : vector<40x32xf32>
    %c0_100 = arith.constant 0 : index
    %c10_101 = arith.constant 10 : index
    %c0_102 = arith.constant 0 : index
    %100 = vector.load %arg2[%c0_100, %c10_101, %c0_102] : memref<1x58x32xbf16, #tpu.memory_space<vmem>>, vector<1x40x32xbf16>
    %101 = vector.shape_cast %100 : vector<1x40x32xbf16> to vector<40x32xbf16>
    %c6_103 = arith.constant 6 : index
    %c0_104 = arith.constant 0 : index
    %c0_105 = arith.constant 0 : index
    %102 = vector.load %arg3[%c6_103, %c0_104, %c0_105] : memref<9x32x32xbf16, #tpu.memory_space<vmem>>, vector<1x32x32xbf16>
    %103 = vector.shape_cast %102 : vector<1x32x32xbf16> to vector<32x32xbf16>
    %cst_106 = arith.constant dense<0.000000e+00> : vector<40x32xf32>
    %104 = tpu.matmul %101, %103, %cst_106 {dimension_numbers = #tpu.dot_dimension_numbers<[1], [0], [0], [1], [0, 0, 1, 1], [], []>} : vector<40x32xbf16>, vector<32x32xbf16>, vector<40x32xf32> -> vector<40x32xf32>
    %105 = arith.addf %99, %104 : vector<40x32xf32>
    %c0_107 = arith.constant 0 : index
    %c11_108 = arith.constant 11 : index
    %c0_109 = arith.constant 0 : index
    %106 = vector.load %arg1[%c0_107, %c11_108, %c0_109] : memref<1x58x32xbf16, #tpu.memory_space<vmem>>, vector<1x40x32xbf16>
    %107 = vector.shape_cast %106 : vector<1x40x32xbf16> to vector<40x32xbf16>
    %c7_110 = arith.constant 7 : index
    %c0_111 = arith.constant 0 : index
    %c0_112 = arith.constant 0 : index
    %108 = vector.load %arg3[%c7_110, %c0_111, %c0_112] : memref<9x32x32xbf16, #tpu.memory_space<vmem>>, vector<1x32x32xbf16>
    %109 = vector.shape_cast %108 : vector<1x32x32xbf16> to vector<32x32xbf16>
    %cst_113 = arith.constant dense<0.000000e+00> : vector<40x32xf32>
    %110 = tpu.matmul %107, %109, %cst_113 {dimension_numbers = #tpu.dot_dimension_numbers<[1], [0], [0], [1], [0, 0, 1, 1], [], []>} : vector<40x32xbf16>, vector<32x32xbf16>, vector<40x32xf32> -> vector<40x32xf32>
    %111 = arith.addf %105, %110 : vector<40x32xf32>
    %c0_114 = arith.constant 0 : index
    %c11_115 = arith.constant 11 : index
    %c0_116 = arith.constant 0 : index
    %112 = vector.load %arg2[%c0_114, %c11_115, %c0_116] : memref<1x58x32xbf16, #tpu.memory_space<vmem>>, vector<1x40x32xbf16>
    %113 = vector.shape_cast %112 : vector<1x40x32xbf16> to vector<40x32xbf16>
    %c8_117 = arith.constant 8 : index
    %c0_118 = arith.constant 0 : index
    %c0_119 = arith.constant 0 : index
    %114 = vector.load %arg3[%c8_117, %c0_118, %c0_119] : memref<9x32x32xbf16, #tpu.memory_space<vmem>>, vector<1x32x32xbf16>
    %115 = vector.shape_cast %114 : vector<1x32x32xbf16> to vector<32x32xbf16>
    %cst_120 = arith.constant dense<0.000000e+00> : vector<40x32xf32>
    %116 = tpu.matmul %113, %115, %cst_120 {dimension_numbers = #tpu.dot_dimension_numbers<[1], [0], [0], [1], [0, 0, 1, 1], [], []>} : vector<40x32xbf16>, vector<32x32xbf16>, vector<40x32xf32> -> vector<40x32xf32>
    %117 = arith.addf %111, %116 : vector<40x32xf32>
    %118 = vector.broadcast %0 : vector<1x32xf32> to vector<40x32xf32>
    %119 = arith.mulf %117, %118 : vector<40x32xf32>
    %120 = vector.broadcast %1 : vector<1x32xf32> to vector<40x32xf32>
    %121 = arith.addf %119, %120 : vector<40x32xf32>
    %cst_121 = arith.constant 0.000000e+00 : f32
    %122 = vector.broadcast %cst_121 : f32 to vector<40x32xf32>
    %123 = arith.maximumf %121, %122 : vector<40x32xf32>
    %124 = arith.maximumf %62, %123 : vector<40x32xf32>
    %c0_122 = arith.constant 0 : index
    %c0_123 = arith.constant 0 : index
    %c0_124 = arith.constant 0 : index
    %125 = vector.load %arg6[%c0_122, %c0_123, %c0_124] : memref<1x40x32xf32, #tpu.memory_space<vmem>>, vector<1x40x32xf32>
    %126 = vector.shape_cast %125 : vector<1x40x32xf32> to vector<40x32xf32>
    %127 = vector.shape_cast %124 : vector<40x32xf32> to vector<1x40x32xf32>
    tpu.vector_store %arg6[%c0_122, %c0_123, %c0_124], %127 {strides = array<i32>} : memref<1x40x32xf32, #tpu.memory_space<vmem>>, vector<1x40x32xf32>,
    return
  }
  func.func @transform_0(%arg0: i32) -> (i32, i32, i32) {
    %c0_i32 = arith.constant 0 : i32
    %c0_i32_0 = arith.constant 0 : i32
    %c0_i32_1 = arith.constant 0 : i32
    return %arg0, %c0_i32, %c0_i32_0 : i32, i32, i32
  }
  func.func @transform_1(%arg0: i32) -> (i32, i32, i32) {
    %c0_i32 = arith.constant 0 : i32
    %c0_i32_0 = arith.constant 0 : i32
    %c0_i32_1 = arith.constant 0 : i32
    return %arg0, %c0_i32, %c0_i32_0 : i32, i32, i32
  }
  func.func @transform_2(%arg0: i32) -> (i32, i32, i32) {
    %c0_i32 = arith.constant 0 : i32
    %c0_i32_0 = arith.constant 0 : i32
    %c0_i32_1 = arith.constant 0 : i32
    %c0_i32_2 = arith.constant 0 : i32
    return %c0_i32, %c0_i32_0, %c0_i32_1 : i32, i32, i32
  }
  func.func @transform_3(%arg0: i32) -> (i32, i32) {
    %c0_i32 = arith.constant 0 : i32
    %c0_i32_0 = arith.constant 0 : i32
    %c0_i32_1 = arith.constant 0 : i32
    return %c0_i32, %c0_i32_0 : i32, i32
  }
  func.func @transform_4(%arg0: i32) -> (i32, i32) {
    %c0_i32 = arith.constant 0 : i32
    %c0_i32_0 = arith.constant 0 : i32
    %c0_i32_1 = arith.constant 0 : i32
    return %c0_i32, %c0_i32_0 : i32, i32
  }
  func.func @transform_5(%arg0: i32) -> (i32, i32, i32) {
    %c0_i32 = arith.constant 0 : i32
    %c0_i32_0 = arith.constant 0 : i32
    %c0_i32_1 = arith.constant 0 : i32
    return %arg0, %c0_i32, %c0_i32_0 : i32, i32, i32
  }
}

module attributes {stable_mosaic.version = 11 : i64} {
  func.func @kernel(%arg0: i32, %arg1: memref<1x26x32xbf16, #tpu.memory_space<vmem>>, %arg2: memref<1x26x32xbf16, #tpu.memory_space<vmem>>, %arg3: memref<9x32x32xbf16, #tpu.memory_space<vmem>>, %arg4: memref<1x32xf32, #tpu.memory_space<vmem>>, %arg5: memref<1x32xf32, #tpu.memory_space<vmem>>, %arg6: memref<1x12x32xf32, #tpu.memory_space<vmem>>) attributes {dimension_semantics = [#tpu.dimension_semantics<parallel>], iteration_bounds = array<i64: 20>, scalar_prefetch = 0 : i64, scratch_operands = 0 : i64, tpu.core_type = #tpu.core_type<tc>, window_params = [{transform_indices = @transform_0, window_bounds = array<i64: 1, 26, 32>}, {transform_indices = @transform_1, window_bounds = array<i64: 1, 26, 32>}, {pipeline_mode = #tpu.pipeline_mode<synchronous>, transform_indices = @transform_2, window_bounds = array<i64: 9, 32, 32>}, {pipeline_mode = #tpu.pipeline_mode<synchronous>, transform_indices = @transform_3, window_bounds = array<i64: 1, 32>}, {pipeline_mode = #tpu.pipeline_mode<synchronous>, transform_indices = @transform_4, window_bounds = array<i64: 1, 32>}, {transform_indices = @transform_5, window_bounds = array<i64: 1, 12, 32>}]} {
    %c0 = arith.constant 0 : index
    %c0_0 = arith.constant 0 : index
    %0 = vector.load %arg4[%c0, %c0_0] : memref<1x32xf32, #tpu.memory_space<vmem>>, vector<1x32xf32>
    %c0_1 = arith.constant 0 : index
    %c0_2 = arith.constant 0 : index
    %1 = vector.load %arg5[%c0_1, %c0_2] : memref<1x32xf32, #tpu.memory_space<vmem>>, vector<1x32xf32>
    %cst = arith.constant 0.000000e+00 : f32
    %2 = vector.broadcast %cst : f32 to vector<12x32xf32>
    %c0_3 = arith.constant 0 : index
    %c0_4 = arith.constant 0 : index
    %c0_5 = arith.constant 0 : index
    %3 = vector.load %arg1[%c0_3, %c0_4, %c0_5] : memref<1x26x32xbf16, #tpu.memory_space<vmem>>, vector<1x12x32xbf16>
    %4 = vector.shape_cast %3 : vector<1x12x32xbf16> to vector<12x32xbf16>
    %c0_6 = arith.constant 0 : index
    %c0_7 = arith.constant 0 : index
    %c0_8 = arith.constant 0 : index
    %5 = vector.load %arg3[%c0_6, %c0_7, %c0_8] : memref<9x32x32xbf16, #tpu.memory_space<vmem>>, vector<1x32x32xbf16>
    %6 = vector.shape_cast %5 : vector<1x32x32xbf16> to vector<32x32xbf16>
    %cst_9 = arith.constant dense<0.000000e+00> : vector<12x32xf32>
    %7 = tpu.matmul %4, %6, %cst_9 {dimension_numbers = #tpu.dot_dimension_numbers<[1], [0], [0], [1], [0, 0, 1, 1], [], []>} : vector<12x32xbf16>, vector<32x32xbf16>, vector<12x32xf32> -> vector<12x32xf32>
    %8 = arith.addf %2, %7 : vector<12x32xf32>
    %c0_10 = arith.constant 0 : index
    %c0_11 = arith.constant 0 : index
    %c0_12 = arith.constant 0 : index
    %9 = vector.load %arg2[%c0_10, %c0_11, %c0_12] : memref<1x26x32xbf16, #tpu.memory_space<vmem>>, vector<1x12x32xbf16>
    %10 = vector.shape_cast %9 : vector<1x12x32xbf16> to vector<12x32xbf16>
    %c1 = arith.constant 1 : index
    %c0_13 = arith.constant 0 : index
    %c0_14 = arith.constant 0 : index
    %11 = vector.load %arg3[%c1, %c0_13, %c0_14] : memref<9x32x32xbf16, #tpu.memory_space<vmem>>, vector<1x32x32xbf16>
    %12 = vector.shape_cast %11 : vector<1x32x32xbf16> to vector<32x32xbf16>
    %cst_15 = arith.constant dense<0.000000e+00> : vector<12x32xf32>
    %13 = tpu.matmul %10, %12, %cst_15 {dimension_numbers = #tpu.dot_dimension_numbers<[1], [0], [0], [1], [0, 0, 1, 1], [], []>} : vector<12x32xbf16>, vector<32x32xbf16>, vector<12x32xf32> -> vector<12x32xf32>
    %14 = arith.addf %8, %13 : vector<12x32xf32>
    %c0_16 = arith.constant 0 : index
    %c1_17 = arith.constant 1 : index
    %c0_18 = arith.constant 0 : index
    %15 = vector.load %arg1[%c0_16, %c1_17, %c0_18] : memref<1x26x32xbf16, #tpu.memory_space<vmem>>, vector<1x12x32xbf16>
    %16 = vector.shape_cast %15 : vector<1x12x32xbf16> to vector<12x32xbf16>
    %c2 = arith.constant 2 : index
    %c0_19 = arith.constant 0 : index
    %c0_20 = arith.constant 0 : index
    %17 = vector.load %arg3[%c2, %c0_19, %c0_20] : memref<9x32x32xbf16, #tpu.memory_space<vmem>>, vector<1x32x32xbf16>
    %18 = vector.shape_cast %17 : vector<1x32x32xbf16> to vector<32x32xbf16>
    %cst_21 = arith.constant dense<0.000000e+00> : vector<12x32xf32>
    %19 = tpu.matmul %16, %18, %cst_21 {dimension_numbers = #tpu.dot_dimension_numbers<[1], [0], [0], [1], [0, 0, 1, 1], [], []>} : vector<12x32xbf16>, vector<32x32xbf16>, vector<12x32xf32> -> vector<12x32xf32>
    %20 = arith.addf %14, %19 : vector<12x32xf32>
    %c0_22 = arith.constant 0 : index
    %c3 = arith.constant 3 : index
    %c0_23 = arith.constant 0 : index
    %21 = vector.load %arg1[%c0_22, %c3, %c0_23] : memref<1x26x32xbf16, #tpu.memory_space<vmem>>, vector<1x12x32xbf16>
    %22 = vector.shape_cast %21 : vector<1x12x32xbf16> to vector<12x32xbf16>
    %c3_24 = arith.constant 3 : index
    %c0_25 = arith.constant 0 : index
    %c0_26 = arith.constant 0 : index
    %23 = vector.load %arg3[%c3_24, %c0_25, %c0_26] : memref<9x32x32xbf16, #tpu.memory_space<vmem>>, vector<1x32x32xbf16>
    %24 = vector.shape_cast %23 : vector<1x32x32xbf16> to vector<32x32xbf16>
    %cst_27 = arith.constant dense<0.000000e+00> : vector<12x32xf32>
    %25 = tpu.matmul %22, %24, %cst_27 {dimension_numbers = #tpu.dot_dimension_numbers<[1], [0], [0], [1], [0, 0, 1, 1], [], []>} : vector<12x32xbf16>, vector<32x32xbf16>, vector<12x32xf32> -> vector<12x32xf32>
    %26 = arith.addf %20, %25 : vector<12x32xf32>
    %c0_28 = arith.constant 0 : index
    %c3_29 = arith.constant 3 : index
    %c0_30 = arith.constant 0 : index
    %27 = vector.load %arg2[%c0_28, %c3_29, %c0_30] : memref<1x26x32xbf16, #tpu.memory_space<vmem>>, vector<1x12x32xbf16>
    %28 = vector.shape_cast %27 : vector<1x12x32xbf16> to vector<12x32xbf16>
    %c4 = arith.constant 4 : index
    %c0_31 = arith.constant 0 : index
    %c0_32 = arith.constant 0 : index
    %29 = vector.load %arg3[%c4, %c0_31, %c0_32] : memref<9x32x32xbf16, #tpu.memory_space<vmem>>, vector<1x32x32xbf16>
    %30 = vector.shape_cast %29 : vector<1x32x32xbf16> to vector<32x32xbf16>
    %cst_33 = arith.constant dense<0.000000e+00> : vector<12x32xf32>
    %31 = tpu.matmul %28, %30, %cst_33 {dimension_numbers = #tpu.dot_dimension_numbers<[1], [0], [0], [1], [0, 0, 1, 1], [], []>} : vector<12x32xbf16>, vector<32x32xbf16>, vector<12x32xf32> -> vector<12x32xf32>
    %32 = arith.addf %26, %31 : vector<12x32xf32>
    %c0_34 = arith.constant 0 : index
    %c4_35 = arith.constant 4 : index
    %c0_36 = arith.constant 0 : index
    %33 = vector.load %arg1[%c0_34, %c4_35, %c0_36] : memref<1x26x32xbf16, #tpu.memory_space<vmem>>, vector<1x12x32xbf16>
    %34 = vector.shape_cast %33 : vector<1x12x32xbf16> to vector<12x32xbf16>
    %c5 = arith.constant 5 : index
    %c0_37 = arith.constant 0 : index
    %c0_38 = arith.constant 0 : index
    %35 = vector.load %arg3[%c5, %c0_37, %c0_38] : memref<9x32x32xbf16, #tpu.memory_space<vmem>>, vector<1x32x32xbf16>
    %36 = vector.shape_cast %35 : vector<1x32x32xbf16> to vector<32x32xbf16>
    %cst_39 = arith.constant dense<0.000000e+00> : vector<12x32xf32>
    %37 = tpu.matmul %34, %36, %cst_39 {dimension_numbers = #tpu.dot_dimension_numbers<[1], [0], [0], [1], [0, 0, 1, 1], [], []>} : vector<12x32xbf16>, vector<32x32xbf16>, vector<12x32xf32> -> vector<12x32xf32>
    %38 = arith.addf %32, %37 : vector<12x32xf32>
    %c0_40 = arith.constant 0 : index
    %c6 = arith.constant 6 : index
    %c0_41 = arith.constant 0 : index
    %39 = vector.load %arg1[%c0_40, %c6, %c0_41] : memref<1x26x32xbf16, #tpu.memory_space<vmem>>, vector<1x12x32xbf16>
    %40 = vector.shape_cast %39 : vector<1x12x32xbf16> to vector<12x32xbf16>
    %c6_42 = arith.constant 6 : index
    %c0_43 = arith.constant 0 : index
    %c0_44 = arith.constant 0 : index
    %41 = vector.load %arg3[%c6_42, %c0_43, %c0_44] : memref<9x32x32xbf16, #tpu.memory_space<vmem>>, vector<1x32x32xbf16>
    %42 = vector.shape_cast %41 : vector<1x32x32xbf16> to vector<32x32xbf16>
    %cst_45 = arith.constant dense<0.000000e+00> : vector<12x32xf32>
    %43 = tpu.matmul %40, %42, %cst_45 {dimension_numbers = #tpu.dot_dimension_numbers<[1], [0], [0], [1], [0, 0, 1, 1], [], []>} : vector<12x32xbf16>, vector<32x32xbf16>, vector<12x32xf32> -> vector<12x32xf32>
    %44 = arith.addf %38, %43 : vector<12x32xf32>
    %c0_46 = arith.constant 0 : index
    %c6_47 = arith.constant 6 : index
    %c0_48 = arith.constant 0 : index
    %45 = vector.load %arg2[%c0_46, %c6_47, %c0_48] : memref<1x26x32xbf16, #tpu.memory_space<vmem>>, vector<1x12x32xbf16>
    %46 = vector.shape_cast %45 : vector<1x12x32xbf16> to vector<12x32xbf16>
    %c7 = arith.constant 7 : index
    %c0_49 = arith.constant 0 : index
    %c0_50 = arith.constant 0 : index
    %47 = vector.load %arg3[%c7, %c0_49, %c0_50] : memref<9x32x32xbf16, #tpu.memory_space<vmem>>, vector<1x32x32xbf16>
    %48 = vector.shape_cast %47 : vector<1x32x32xbf16> to vector<32x32xbf16>
    %cst_51 = arith.constant dense<0.000000e+00> : vector<12x32xf32>
    %49 = tpu.matmul %46, %48, %cst_51 {dimension_numbers = #tpu.dot_dimension_numbers<[1], [0], [0], [1], [0, 0, 1, 1], [], []>} : vector<12x32xbf16>, vector<32x32xbf16>, vector<12x32xf32> -> vector<12x32xf32>
    %50 = arith.addf %44, %49 : vector<12x32xf32>
    %c0_52 = arith.constant 0 : index
    %c7_53 = arith.constant 7 : index
    %c0_54 = arith.constant 0 : index
    %51 = vector.load %arg1[%c0_52, %c7_53, %c0_54] : memref<1x26x32xbf16, #tpu.memory_space<vmem>>, vector<1x12x32xbf16>
    %52 = vector.shape_cast %51 : vector<1x12x32xbf16> to vector<12x32xbf16>
    %c8 = arith.constant 8 : index
    %c0_55 = arith.constant 0 : index
    %c0_56 = arith.constant 0 : index
    %53 = vector.load %arg3[%c8, %c0_55, %c0_56] : memref<9x32x32xbf16, #tpu.memory_space<vmem>>, vector<1x32x32xbf16>
    %54 = vector.shape_cast %53 : vector<1x32x32xbf16> to vector<32x32xbf16>
    %cst_57 = arith.constant dense<0.000000e+00> : vector<12x32xf32>
    %55 = tpu.matmul %52, %54, %cst_57 {dimension_numbers = #tpu.dot_dimension_numbers<[1], [0], [0], [1], [0, 0, 1, 1], [], []>} : vector<12x32xbf16>, vector<32x32xbf16>, vector<12x32xf32> -> vector<12x32xf32>
    %56 = arith.addf %50, %55 : vector<12x32xf32>
    %57 = vector.broadcast %0 : vector<1x32xf32> to vector<12x32xf32>
    %58 = arith.mulf %56, %57 : vector<12x32xf32>
    %59 = vector.broadcast %1 : vector<1x32xf32> to vector<12x32xf32>
    %60 = arith.addf %58, %59 : vector<12x32xf32>
    %cst_58 = arith.constant 0.000000e+00 : f32
    %61 = vector.broadcast %cst_58 : f32 to vector<12x32xf32>
    %62 = arith.maximumf %60, %61 : vector<12x32xf32>
    %cst_59 = arith.constant 0.000000e+00 : f32
    %63 = vector.broadcast %cst_59 : f32 to vector<12x32xf32>
    %c0_60 = arith.constant 0 : index
    %c0_61 = arith.constant 0 : index
    %c0_62 = arith.constant 0 : index
    %64 = vector.load %arg2[%c0_60, %c0_61, %c0_62] : memref<1x26x32xbf16, #tpu.memory_space<vmem>>, vector<1x12x32xbf16>
    %65 = vector.shape_cast %64 : vector<1x12x32xbf16> to vector<12x32xbf16>
    %c0_63 = arith.constant 0 : index
    %c0_64 = arith.constant 0 : index
    %c0_65 = arith.constant 0 : index
    %66 = vector.load %arg3[%c0_63, %c0_64, %c0_65] : memref<9x32x32xbf16, #tpu.memory_space<vmem>>, vector<1x32x32xbf16>
    %67 = vector.shape_cast %66 : vector<1x32x32xbf16> to vector<32x32xbf16>
    %cst_66 = arith.constant dense<0.000000e+00> : vector<12x32xf32>
    %68 = tpu.matmul %65, %67, %cst_66 {dimension_numbers = #tpu.dot_dimension_numbers<[1], [0], [0], [1], [0, 0, 1, 1], [], []>} : vector<12x32xbf16>, vector<32x32xbf16>, vector<12x32xf32> -> vector<12x32xf32>
    %69 = arith.addf %63, %68 : vector<12x32xf32>
    %c0_67 = arith.constant 0 : index
    %c1_68 = arith.constant 1 : index
    %c0_69 = arith.constant 0 : index
    %70 = vector.load %arg1[%c0_67, %c1_68, %c0_69] : memref<1x26x32xbf16, #tpu.memory_space<vmem>>, vector<1x12x32xbf16>
    %71 = vector.shape_cast %70 : vector<1x12x32xbf16> to vector<12x32xbf16>
    %c1_70 = arith.constant 1 : index
    %c0_71 = arith.constant 0 : index
    %c0_72 = arith.constant 0 : index
    %72 = vector.load %arg3[%c1_70, %c0_71, %c0_72] : memref<9x32x32xbf16, #tpu.memory_space<vmem>>, vector<1x32x32xbf16>
    %73 = vector.shape_cast %72 : vector<1x32x32xbf16> to vector<32x32xbf16>
    %cst_73 = arith.constant dense<0.000000e+00> : vector<12x32xf32>
    %74 = tpu.matmul %71, %73, %cst_73 {dimension_numbers = #tpu.dot_dimension_numbers<[1], [0], [0], [1], [0, 0, 1, 1], [], []>} : vector<12x32xbf16>, vector<32x32xbf16>, vector<12x32xf32> -> vector<12x32xf32>
    %75 = arith.addf %69, %74 : vector<12x32xf32>
    %c0_74 = arith.constant 0 : index
    %c1_75 = arith.constant 1 : index
    %c0_76 = arith.constant 0 : index
    %76 = vector.load %arg2[%c0_74, %c1_75, %c0_76] : memref<1x26x32xbf16, #tpu.memory_space<vmem>>, vector<1x12x32xbf16>
    %77 = vector.shape_cast %76 : vector<1x12x32xbf16> to vector<12x32xbf16>
    %c2_77 = arith.constant 2 : index
    %c0_78 = arith.constant 0 : index
    %c0_79 = arith.constant 0 : index
    %78 = vector.load %arg3[%c2_77, %c0_78, %c0_79] : memref<9x32x32xbf16, #tpu.memory_space<vmem>>, vector<1x32x32xbf16>
    %79 = vector.shape_cast %78 : vector<1x32x32xbf16> to vector<32x32xbf16>
    %cst_80 = arith.constant dense<0.000000e+00> : vector<12x32xf32>
    %80 = tpu.matmul %77, %79, %cst_80 {dimension_numbers = #tpu.dot_dimension_numbers<[1], [0], [0], [1], [0, 0, 1, 1], [], []>} : vector<12x32xbf16>, vector<32x32xbf16>, vector<12x32xf32> -> vector<12x32xf32>
    %81 = arith.addf %75, %80 : vector<12x32xf32>
    %c0_81 = arith.constant 0 : index
    %c3_82 = arith.constant 3 : index
    %c0_83 = arith.constant 0 : index
    %82 = vector.load %arg2[%c0_81, %c3_82, %c0_83] : memref<1x26x32xbf16, #tpu.memory_space<vmem>>, vector<1x12x32xbf16>
    %83 = vector.shape_cast %82 : vector<1x12x32xbf16> to vector<12x32xbf16>
    %c3_84 = arith.constant 3 : index
    %c0_85 = arith.constant 0 : index
    %c0_86 = arith.constant 0 : index
    %84 = vector.load %arg3[%c3_84, %c0_85, %c0_86] : memref<9x32x32xbf16, #tpu.memory_space<vmem>>, vector<1x32x32xbf16>
    %85 = vector.shape_cast %84 : vector<1x32x32xbf16> to vector<32x32xbf16>
    %cst_87 = arith.constant dense<0.000000e+00> : vector<12x32xf32>
    %86 = tpu.matmul %83, %85, %cst_87 {dimension_numbers = #tpu.dot_dimension_numbers<[1], [0], [0], [1], [0, 0, 1, 1], [], []>} : vector<12x32xbf16>, vector<32x32xbf16>, vector<12x32xf32> -> vector<12x32xf32>
    %87 = arith.addf %81, %86 : vector<12x32xf32>
    %c0_88 = arith.constant 0 : index
    %c4_89 = arith.constant 4 : index
    %c0_90 = arith.constant 0 : index
    %88 = vector.load %arg1[%c0_88, %c4_89, %c0_90] : memref<1x26x32xbf16, #tpu.memory_space<vmem>>, vector<1x12x32xbf16>
    %89 = vector.shape_cast %88 : vector<1x12x32xbf16> to vector<12x32xbf16>
    %c4_91 = arith.constant 4 : index
    %c0_92 = arith.constant 0 : index
    %c0_93 = arith.constant 0 : index
    %90 = vector.load %arg3[%c4_91, %c0_92, %c0_93] : memref<9x32x32xbf16, #tpu.memory_space<vmem>>, vector<1x32x32xbf16>
    %91 = vector.shape_cast %90 : vector<1x32x32xbf16> to vector<32x32xbf16>
    %cst_94 = arith.constant dense<0.000000e+00> : vector<12x32xf32>
    %92 = tpu.matmul %89, %91, %cst_94 {dimension_numbers = #tpu.dot_dimension_numbers<[1], [0], [0], [1], [0, 0, 1, 1], [], []>} : vector<12x32xbf16>, vector<32x32xbf16>, vector<12x32xf32> -> vector<12x32xf32>
    %93 = arith.addf %87, %92 : vector<12x32xf32>
    %c0_95 = arith.constant 0 : index
    %c4_96 = arith.constant 4 : index
    %c0_97 = arith.constant 0 : index
    %94 = vector.load %arg2[%c0_95, %c4_96, %c0_97] : memref<1x26x32xbf16, #tpu.memory_space<vmem>>, vector<1x12x32xbf16>
    %95 = vector.shape_cast %94 : vector<1x12x32xbf16> to vector<12x32xbf16>
    %c5_98 = arith.constant 5 : index
    %c0_99 = arith.constant 0 : index
    %c0_100 = arith.constant 0 : index
    %96 = vector.load %arg3[%c5_98, %c0_99, %c0_100] : memref<9x32x32xbf16, #tpu.memory_space<vmem>>, vector<1x32x32xbf16>
    %97 = vector.shape_cast %96 : vector<1x32x32xbf16> to vector<32x32xbf16>
    %cst_101 = arith.constant dense<0.000000e+00> : vector<12x32xf32>
    %98 = tpu.matmul %95, %97, %cst_101 {dimension_numbers = #tpu.dot_dimension_numbers<[1], [0], [0], [1], [0, 0, 1, 1], [], []>} : vector<12x32xbf16>, vector<32x32xbf16>, vector<12x32xf32> -> vector<12x32xf32>
    %99 = arith.addf %93, %98 : vector<12x32xf32>
    %c0_102 = arith.constant 0 : index
    %c6_103 = arith.constant 6 : index
    %c0_104 = arith.constant 0 : index
    %100 = vector.load %arg2[%c0_102, %c6_103, %c0_104] : memref<1x26x32xbf16, #tpu.memory_space<vmem>>, vector<1x12x32xbf16>
    %101 = vector.shape_cast %100 : vector<1x12x32xbf16> to vector<12x32xbf16>
    %c6_105 = arith.constant 6 : index
    %c0_106 = arith.constant 0 : index
    %c0_107 = arith.constant 0 : index
    %102 = vector.load %arg3[%c6_105, %c0_106, %c0_107] : memref<9x32x32xbf16, #tpu.memory_space<vmem>>, vector<1x32x32xbf16>
    %103 = vector.shape_cast %102 : vector<1x32x32xbf16> to vector<32x32xbf16>
    %cst_108 = arith.constant dense<0.000000e+00> : vector<12x32xf32>
    %104 = tpu.matmul %101, %103, %cst_108 {dimension_numbers = #tpu.dot_dimension_numbers<[1], [0], [0], [1], [0, 0, 1, 1], [], []>} : vector<12x32xbf16>, vector<32x32xbf16>, vector<12x32xf32> -> vector<12x32xf32>
    %105 = arith.addf %99, %104 : vector<12x32xf32>
    %c0_109 = arith.constant 0 : index
    %c7_110 = arith.constant 7 : index
    %c0_111 = arith.constant 0 : index
    %106 = vector.load %arg1[%c0_109, %c7_110, %c0_111] : memref<1x26x32xbf16, #tpu.memory_space<vmem>>, vector<1x12x32xbf16>
    %107 = vector.shape_cast %106 : vector<1x12x32xbf16> to vector<12x32xbf16>
    %c7_112 = arith.constant 7 : index
    %c0_113 = arith.constant 0 : index
    %c0_114 = arith.constant 0 : index
    %108 = vector.load %arg3[%c7_112, %c0_113, %c0_114] : memref<9x32x32xbf16, #tpu.memory_space<vmem>>, vector<1x32x32xbf16>
    %109 = vector.shape_cast %108 : vector<1x32x32xbf16> to vector<32x32xbf16>
    %cst_115 = arith.constant dense<0.000000e+00> : vector<12x32xf32>
    %110 = tpu.matmul %107, %109, %cst_115 {dimension_numbers = #tpu.dot_dimension_numbers<[1], [0], [0], [1], [0, 0, 1, 1], [], []>} : vector<12x32xbf16>, vector<32x32xbf16>, vector<12x32xf32> -> vector<12x32xf32>
    %111 = arith.addf %105, %110 : vector<12x32xf32>
    %c0_116 = arith.constant 0 : index
    %c7_117 = arith.constant 7 : index
    %c0_118 = arith.constant 0 : index
    %112 = vector.load %arg2[%c0_116, %c7_117, %c0_118] : memref<1x26x32xbf16, #tpu.memory_space<vmem>>, vector<1x12x32xbf16>
    %113 = vector.shape_cast %112 : vector<1x12x32xbf16> to vector<12x32xbf16>
    %c8_119 = arith.constant 8 : index
    %c0_120 = arith.constant 0 : index
    %c0_121 = arith.constant 0 : index
    %114 = vector.load %arg3[%c8_119, %c0_120, %c0_121] : memref<9x32x32xbf16, #tpu.memory_space<vmem>>, vector<1x32x32xbf16>
    %115 = vector.shape_cast %114 : vector<1x32x32xbf16> to vector<32x32xbf16>
    %cst_122 = arith.constant dense<0.000000e+00> : vector<12x32xf32>
    %116 = tpu.matmul %113, %115, %cst_122 {dimension_numbers = #tpu.dot_dimension_numbers<[1], [0], [0], [1], [0, 0, 1, 1], [], []>} : vector<12x32xbf16>, vector<32x32xbf16>, vector<12x32xf32> -> vector<12x32xf32>
    %117 = arith.addf %111, %116 : vector<12x32xf32>
    %118 = vector.broadcast %0 : vector<1x32xf32> to vector<12x32xf32>
    %119 = arith.mulf %117, %118 : vector<12x32xf32>
    %120 = vector.broadcast %1 : vector<1x32xf32> to vector<12x32xf32>
    %121 = arith.addf %119, %120 : vector<12x32xf32>
    %cst_123 = arith.constant 0.000000e+00 : f32
    %122 = vector.broadcast %cst_123 : f32 to vector<12x32xf32>
    %123 = arith.maximumf %121, %122 : vector<12x32xf32>
    %124 = arith.maximumf %62, %123 : vector<12x32xf32>
    %c0_124 = arith.constant 0 : index
    %c0_125 = arith.constant 0 : index
    %c0_126 = arith.constant 0 : index
    %125 = vector.load %arg6[%c0_124, %c0_125, %c0_126] : memref<1x12x32xf32, #tpu.memory_space<vmem>>, vector<1x12x32xf32>
    %126 = vector.shape_cast %125 : vector<1x12x32xf32> to vector<12x32xf32>
    %127 = vector.shape_cast %124 : vector<12x32xf32> to vector<1x12x32xf32>
    tpu.vector_store %arg6[%c0_124, %c0_125, %c0_126], %127 {strides = array<i32>} : memref<1x12x32xf32, #tpu.memory_space<vmem>>, vector<1x12x32xf32>,
    return
  }
  func.func @transform_0(%arg0: i32) -> (i32, i32, i32) {
    %c0_i32 = arith.constant 0 : i32
    %c0_i32_0 = arith.constant 0 : i32
    %c0_i32_1 = arith.constant 0 : i32
    return %arg0, %c0_i32, %c0_i32_0 : i32, i32, i32
  }
  func.func @transform_1(%arg0: i32) -> (i32, i32, i32) {
    %c0_i32 = arith.constant 0 : i32
    %c0_i32_0 = arith.constant 0 : i32
    %c0_i32_1 = arith.constant 0 : i32
    return %arg0, %c0_i32, %c0_i32_0 : i32, i32, i32
  }
  func.func @transform_2(%arg0: i32) -> (i32, i32, i32) {
    %c0_i32 = arith.constant 0 : i32
    %c0_i32_0 = arith.constant 0 : i32
    %c0_i32_1 = arith.constant 0 : i32
    %c0_i32_2 = arith.constant 0 : i32
    return %c0_i32, %c0_i32_0, %c0_i32_1 : i32, i32, i32
  }
  func.func @transform_3(%arg0: i32) -> (i32, i32) {
    %c0_i32 = arith.constant 0 : i32
    %c0_i32_0 = arith.constant 0 : i32
    %c0_i32_1 = arith.constant 0 : i32
    return %c0_i32, %c0_i32_0 : i32, i32
  }
  func.func @transform_4(%arg0: i32) -> (i32, i32) {
    %c0_i32 = arith.constant 0 : i32
    %c0_i32_0 = arith.constant 0 : i32
    %c0_i32_1 = arith.constant 0 : i32
    return %c0_i32, %c0_i32_0 : i32, i32
  }
  func.func @transform_5(%arg0: i32) -> (i32, i32, i32) {
    %c0_i32 = arith.constant 0 : i32
    %c0_i32_0 = arith.constant 0 : i32
    %c0_i32_1 = arith.constant 0 : i32
    return %arg0, %c0_i32, %c0_i32_0 : i32, i32, i32
  }
}

module attributes {stable_mosaic.version = 11 : i64} {
  func.func @kernel(%arg0: i32, %arg1: memref<1x16x32xbf16, #tpu.memory_space<vmem>>, %arg2: memref<1x16x32xbf16, #tpu.memory_space<vmem>>, %arg3: memref<9x32x32xbf16, #tpu.memory_space<vmem>>, %arg4: memref<1x32xf32, #tpu.memory_space<vmem>>, %arg5: memref<1x32xf32, #tpu.memory_space<vmem>>, %arg6: memref<1x4x32xf32, #tpu.memory_space<vmem>>) attributes {dimension_semantics = [#tpu.dimension_semantics<parallel>], iteration_bounds = array<i64: 20>, scalar_prefetch = 0 : i64, scratch_operands = 0 : i64, tpu.core_type = #tpu.core_type<tc>, window_params = [{transform_indices = @transform_0, window_bounds = array<i64: 1, 16, 32>}, {transform_indices = @transform_1, window_bounds = array<i64: 1, 16, 32>}, {pipeline_mode = #tpu.pipeline_mode<synchronous>, transform_indices = @transform_2, window_bounds = array<i64: 9, 32, 32>}, {pipeline_mode = #tpu.pipeline_mode<synchronous>, transform_indices = @transform_3, window_bounds = array<i64: 1, 32>}, {pipeline_mode = #tpu.pipeline_mode<synchronous>, transform_indices = @transform_4, window_bounds = array<i64: 1, 32>}, {transform_indices = @transform_5, window_bounds = array<i64: 1, 4, 32>}]} {
    %c0 = arith.constant 0 : index
    %c0_0 = arith.constant 0 : index
    %0 = vector.load %arg4[%c0, %c0_0] : memref<1x32xf32, #tpu.memory_space<vmem>>, vector<1x32xf32>
    %c0_1 = arith.constant 0 : index
    %c0_2 = arith.constant 0 : index
    %1 = vector.load %arg5[%c0_1, %c0_2] : memref<1x32xf32, #tpu.memory_space<vmem>>, vector<1x32xf32>
    %cst = arith.constant 0.000000e+00 : f32
    %2 = vector.broadcast %cst : f32 to vector<4x32xf32>
    %c0_3 = arith.constant 0 : index
    %c0_4 = arith.constant 0 : index
    %c0_5 = arith.constant 0 : index
    %3 = vector.load %arg1[%c0_3, %c0_4, %c0_5] : memref<1x16x32xbf16, #tpu.memory_space<vmem>>, vector<1x4x32xbf16>
    %4 = vector.shape_cast %3 : vector<1x4x32xbf16> to vector<4x32xbf16>
    %c0_6 = arith.constant 0 : index
    %c0_7 = arith.constant 0 : index
    %c0_8 = arith.constant 0 : index
    %5 = vector.load %arg3[%c0_6, %c0_7, %c0_8] : memref<9x32x32xbf16, #tpu.memory_space<vmem>>, vector<1x32x32xbf16>
    %6 = vector.shape_cast %5 : vector<1x32x32xbf16> to vector<32x32xbf16>
    %cst_9 = arith.constant dense<0.000000e+00> : vector<4x32xf32>
    %7 = tpu.matmul %4, %6, %cst_9 {dimension_numbers = #tpu.dot_dimension_numbers<[1], [0], [0], [1], [0, 0, 1, 1], [], []>} : vector<4x32xbf16>, vector<32x32xbf16>, vector<4x32xf32> -> vector<4x32xf32>
    %8 = arith.addf %2, %7 : vector<4x32xf32>
    %c0_10 = arith.constant 0 : index
    %c0_11 = arith.constant 0 : index
    %c0_12 = arith.constant 0 : index
    %9 = vector.load %arg2[%c0_10, %c0_11, %c0_12] : memref<1x16x32xbf16, #tpu.memory_space<vmem>>, vector<1x4x32xbf16>
    %10 = vector.shape_cast %9 : vector<1x4x32xbf16> to vector<4x32xbf16>
    %c1 = arith.constant 1 : index
    %c0_13 = arith.constant 0 : index
    %c0_14 = arith.constant 0 : index
    %11 = vector.load %arg3[%c1, %c0_13, %c0_14] : memref<9x32x32xbf16, #tpu.memory_space<vmem>>, vector<1x32x32xbf16>
    %12 = vector.shape_cast %11 : vector<1x32x32xbf16> to vector<32x32xbf16>
    %cst_15 = arith.constant dense<0.000000e+00> : vector<4x32xf32>
    %13 = tpu.matmul %10, %12, %cst_15 {dimension_numbers = #tpu.dot_dimension_numbers<[1], [0], [0], [1], [0, 0, 1, 1], [], []>} : vector<4x32xbf16>, vector<32x32xbf16>, vector<4x32xf32> -> vector<4x32xf32>
    %14 = arith.addf %8, %13 : vector<4x32xf32>
    %c0_16 = arith.constant 0 : index
    %c1_17 = arith.constant 1 : index
    %c0_18 = arith.constant 0 : index
    %15 = vector.load %arg1[%c0_16, %c1_17, %c0_18] : memref<1x16x32xbf16, #tpu.memory_space<vmem>>, vector<1x4x32xbf16>
    %16 = vector.shape_cast %15 : vector<1x4x32xbf16> to vector<4x32xbf16>
    %c2 = arith.constant 2 : index
    %c0_19 = arith.constant 0 : index
    %c0_20 = arith.constant 0 : index
    %17 = vector.load %arg3[%c2, %c0_19, %c0_20] : memref<9x32x32xbf16, #tpu.memory_space<vmem>>, vector<1x32x32xbf16>
    %18 = vector.shape_cast %17 : vector<1x32x32xbf16> to vector<32x32xbf16>
    %cst_21 = arith.constant dense<0.000000e+00> : vector<4x32xf32>
    %19 = tpu.matmul %16, %18, %cst_21 {dimension_numbers = #tpu.dot_dimension_numbers<[1], [0], [0], [1], [0, 0, 1, 1], [], []>} : vector<4x32xbf16>, vector<32x32xbf16>, vector<4x32xf32> -> vector<4x32xf32>
    %20 = arith.addf %14, %19 : vector<4x32xf32>
    %c0_22 = arith.constant 0 : index
    %c2_23 = arith.constant 2 : index
    %c0_24 = arith.constant 0 : index
    %21 = vector.load %arg1[%c0_22, %c2_23, %c0_24] : memref<1x16x32xbf16, #tpu.memory_space<vmem>>, vector<1x4x32xbf16>
    %22 = vector.shape_cast %21 : vector<1x4x32xbf16> to vector<4x32xbf16>
    %c3 = arith.constant 3 : index
    %c0_25 = arith.constant 0 : index
    %c0_26 = arith.constant 0 : index
    %23 = vector.load %arg3[%c3, %c0_25, %c0_26] : memref<9x32x32xbf16, #tpu.memory_space<vmem>>, vector<1x32x32xbf16>
    %24 = vector.shape_cast %23 : vector<1x32x32xbf16> to vector<32x32xbf16>
    %cst_27 = arith.constant dense<0.000000e+00> : vector<4x32xf32>
    %25 = tpu.matmul %22, %24, %cst_27 {dimension_numbers = #tpu.dot_dimension_numbers<[1], [0], [0], [1], [0, 0, 1, 1], [], []>} : vector<4x32xbf16>, vector<32x32xbf16>, vector<4x32xf32> -> vector<4x32xf32>
    %26 = arith.addf %20, %25 : vector<4x32xf32>
    %c0_28 = arith.constant 0 : index
    %c2_29 = arith.constant 2 : index
    %c0_30 = arith.constant 0 : index
    %27 = vector.load %arg2[%c0_28, %c2_29, %c0_30] : memref<1x16x32xbf16, #tpu.memory_space<vmem>>, vector<1x4x32xbf16>
    %28 = vector.shape_cast %27 : vector<1x4x32xbf16> to vector<4x32xbf16>
    %c4 = arith.constant 4 : index
    %c0_31 = arith.constant 0 : index
    %c0_32 = arith.constant 0 : index
    %29 = vector.load %arg3[%c4, %c0_31, %c0_32] : memref<9x32x32xbf16, #tpu.memory_space<vmem>>, vector<1x32x32xbf16>
    %30 = vector.shape_cast %29 : vector<1x32x32xbf16> to vector<32x32xbf16>
    %cst_33 = arith.constant dense<0.000000e+00> : vector<4x32xf32>
    %31 = tpu.matmul %28, %30, %cst_33 {dimension_numbers = #tpu.dot_dimension_numbers<[1], [0], [0], [1], [0, 0, 1, 1], [], []>} : vector<4x32xbf16>, vector<32x32xbf16>, vector<4x32xf32> -> vector<4x32xf32>
    %32 = arith.addf %26, %31 : vector<4x32xf32>
    %c0_34 = arith.constant 0 : index
    %c3_35 = arith.constant 3 : index
    %c0_36 = arith.constant 0 : index
    %33 = vector.load %arg1[%c0_34, %c3_35, %c0_36] : memref<1x16x32xbf16, #tpu.memory_space<vmem>>, vector<1x4x32xbf16>
    %34 = vector.shape_cast %33 : vector<1x4x32xbf16> to vector<4x32xbf16>
    %c5 = arith.constant 5 : index
    %c0_37 = arith.constant 0 : index
    %c0_38 = arith.constant 0 : index
    %35 = vector.load %arg3[%c5, %c0_37, %c0_38] : memref<9x32x32xbf16, #tpu.memory_space<vmem>>, vector<1x32x32xbf16>
    %36 = vector.shape_cast %35 : vector<1x32x32xbf16> to vector<32x32xbf16>
    %cst_39 = arith.constant dense<0.000000e+00> : vector<4x32xf32>
    %37 = tpu.matmul %34, %36, %cst_39 {dimension_numbers = #tpu.dot_dimension_numbers<[1], [0], [0], [1], [0, 0, 1, 1], [], []>} : vector<4x32xbf16>, vector<32x32xbf16>, vector<4x32xf32> -> vector<4x32xf32>
    %38 = arith.addf %32, %37 : vector<4x32xf32>
    %c0_40 = arith.constant 0 : index
    %c4_41 = arith.constant 4 : index
    %c0_42 = arith.constant 0 : index
    %39 = vector.load %arg1[%c0_40, %c4_41, %c0_42] : memref<1x16x32xbf16, #tpu.memory_space<vmem>>, vector<1x4x32xbf16>
    %40 = vector.shape_cast %39 : vector<1x4x32xbf16> to vector<4x32xbf16>
    %c6 = arith.constant 6 : index
    %c0_43 = arith.constant 0 : index
    %c0_44 = arith.constant 0 : index
    %41 = vector.load %arg3[%c6, %c0_43, %c0_44] : memref<9x32x32xbf16, #tpu.memory_space<vmem>>, vector<1x32x32xbf16>
    %42 = vector.shape_cast %41 : vector<1x32x32xbf16> to vector<32x32xbf16>
    %cst_45 = arith.constant dense<0.000000e+00> : vector<4x32xf32>
    %43 = tpu.matmul %40, %42, %cst_45 {dimension_numbers = #tpu.dot_dimension_numbers<[1], [0], [0], [1], [0, 0, 1, 1], [], []>} : vector<4x32xbf16>, vector<32x32xbf16>, vector<4x32xf32> -> vector<4x32xf32>
    %44 = arith.addf %38, %43 : vector<4x32xf32>
    %c0_46 = arith.constant 0 : index
    %c4_47 = arith.constant 4 : index
    %c0_48 = arith.constant 0 : index
    %45 = vector.load %arg2[%c0_46, %c4_47, %c0_48] : memref<1x16x32xbf16, #tpu.memory_space<vmem>>, vector<1x4x32xbf16>
    %46 = vector.shape_cast %45 : vector<1x4x32xbf16> to vector<4x32xbf16>
    %c7 = arith.constant 7 : index
    %c0_49 = arith.constant 0 : index
    %c0_50 = arith.constant 0 : index
    %47 = vector.load %arg3[%c7, %c0_49, %c0_50] : memref<9x32x32xbf16, #tpu.memory_space<vmem>>, vector<1x32x32xbf16>
    %48 = vector.shape_cast %47 : vector<1x32x32xbf16> to vector<32x32xbf16>
    %cst_51 = arith.constant dense<0.000000e+00> : vector<4x32xf32>
    %49 = tpu.matmul %46, %48, %cst_51 {dimension_numbers = #tpu.dot_dimension_numbers<[1], [0], [0], [1], [0, 0, 1, 1], [], []>} : vector<4x32xbf16>, vector<32x32xbf16>, vector<4x32xf32> -> vector<4x32xf32>
    %50 = arith.addf %44, %49 : vector<4x32xf32>
    %c0_52 = arith.constant 0 : index
    %c5_53 = arith.constant 5 : index
    %c0_54 = arith.constant 0 : index
    %51 = vector.load %arg1[%c0_52, %c5_53, %c0_54] : memref<1x16x32xbf16, #tpu.memory_space<vmem>>, vector<1x4x32xbf16>
    %52 = vector.shape_cast %51 : vector<1x4x32xbf16> to vector<4x32xbf16>
    %c8 = arith.constant 8 : index
    %c0_55 = arith.constant 0 : index
    %c0_56 = arith.constant 0 : index
    %53 = vector.load %arg3[%c8, %c0_55, %c0_56] : memref<9x32x32xbf16, #tpu.memory_space<vmem>>, vector<1x32x32xbf16>
    %54 = vector.shape_cast %53 : vector<1x32x32xbf16> to vector<32x32xbf16>
    %cst_57 = arith.constant dense<0.000000e+00> : vector<4x32xf32>
    %55 = tpu.matmul %52, %54, %cst_57 {dimension_numbers = #tpu.dot_dimension_numbers<[1], [0], [0], [1], [0, 0, 1, 1], [], []>} : vector<4x32xbf16>, vector<32x32xbf16>, vector<4x32xf32> -> vector<4x32xf32>
    %56 = arith.addf %50, %55 : vector<4x32xf32>
    %57 = vector.broadcast %0 : vector<1x32xf32> to vector<4x32xf32>
    %58 = arith.mulf %56, %57 : vector<4x32xf32>
    %59 = vector.broadcast %1 : vector<1x32xf32> to vector<4x32xf32>
    %60 = arith.addf %58, %59 : vector<4x32xf32>
    %cst_58 = arith.constant 0.000000e+00 : f32
    %61 = vector.broadcast %cst_58 : f32 to vector<4x32xf32>
    %62 = arith.maximumf %60, %61 : vector<4x32xf32>
    %cst_59 = arith.constant 0.000000e+00 : f32
    %63 = vector.broadcast %cst_59 : f32 to vector<4x32xf32>
    %c0_60 = arith.constant 0 : index
    %c0_61 = arith.constant 0 : index
    %c0_62 = arith.constant 0 : index
    %64 = vector.load %arg2[%c0_60, %c0_61, %c0_62] : memref<1x16x32xbf16, #tpu.memory_space<vmem>>, vector<1x4x32xbf16>
    %65 = vector.shape_cast %64 : vector<1x4x32xbf16> to vector<4x32xbf16>
    %c0_63 = arith.constant 0 : index
    %c0_64 = arith.constant 0 : index
    %c0_65 = arith.constant 0 : index
    %66 = vector.load %arg3[%c0_63, %c0_64, %c0_65] : memref<9x32x32xbf16, #tpu.memory_space<vmem>>, vector<1x32x32xbf16>
    %67 = vector.shape_cast %66 : vector<1x32x32xbf16> to vector<32x32xbf16>
    %cst_66 = arith.constant dense<0.000000e+00> : vector<4x32xf32>
    %68 = tpu.matmul %65, %67, %cst_66 {dimension_numbers = #tpu.dot_dimension_numbers<[1], [0], [0], [1], [0, 0, 1, 1], [], []>} : vector<4x32xbf16>, vector<32x32xbf16>, vector<4x32xf32> -> vector<4x32xf32>
    %69 = arith.addf %63, %68 : vector<4x32xf32>
    %c0_67 = arith.constant 0 : index
    %c1_68 = arith.constant 1 : index
    %c0_69 = arith.constant 0 : index
    %70 = vector.load %arg1[%c0_67, %c1_68, %c0_69] : memref<1x16x32xbf16, #tpu.memory_space<vmem>>, vector<1x4x32xbf16>
    %71 = vector.shape_cast %70 : vector<1x4x32xbf16> to vector<4x32xbf16>
    %c1_70 = arith.constant 1 : index
    %c0_71 = arith.constant 0 : index
    %c0_72 = arith.constant 0 : index
    %72 = vector.load %arg3[%c1_70, %c0_71, %c0_72] : memref<9x32x32xbf16, #tpu.memory_space<vmem>>, vector<1x32x32xbf16>
    %73 = vector.shape_cast %72 : vector<1x32x32xbf16> to vector<32x32xbf16>
    %cst_73 = arith.constant dense<0.000000e+00> : vector<4x32xf32>
    %74 = tpu.matmul %71, %73, %cst_73 {dimension_numbers = #tpu.dot_dimension_numbers<[1], [0], [0], [1], [0, 0, 1, 1], [], []>} : vector<4x32xbf16>, vector<32x32xbf16>, vector<4x32xf32> -> vector<4x32xf32>
    %75 = arith.addf %69, %74 : vector<4x32xf32>
    %c0_74 = arith.constant 0 : index
    %c1_75 = arith.constant 1 : index
    %c0_76 = arith.constant 0 : index
    %76 = vector.load %arg2[%c0_74, %c1_75, %c0_76] : memref<1x16x32xbf16, #tpu.memory_space<vmem>>, vector<1x4x32xbf16>
    %77 = vector.shape_cast %76 : vector<1x4x32xbf16> to vector<4x32xbf16>
    %c2_77 = arith.constant 2 : index
    %c0_78 = arith.constant 0 : index
    %c0_79 = arith.constant 0 : index
    %78 = vector.load %arg3[%c2_77, %c0_78, %c0_79] : memref<9x32x32xbf16, #tpu.memory_space<vmem>>, vector<1x32x32xbf16>
    %79 = vector.shape_cast %78 : vector<1x32x32xbf16> to vector<32x32xbf16>
    %cst_80 = arith.constant dense<0.000000e+00> : vector<4x32xf32>
    %80 = tpu.matmul %77, %79, %cst_80 {dimension_numbers = #tpu.dot_dimension_numbers<[1], [0], [0], [1], [0, 0, 1, 1], [], []>} : vector<4x32xbf16>, vector<32x32xbf16>, vector<4x32xf32> -> vector<4x32xf32>
    %81 = arith.addf %75, %80 : vector<4x32xf32>
    %c0_81 = arith.constant 0 : index
    %c2_82 = arith.constant 2 : index
    %c0_83 = arith.constant 0 : index
    %82 = vector.load %arg2[%c0_81, %c2_82, %c0_83] : memref<1x16x32xbf16, #tpu.memory_space<vmem>>, vector<1x4x32xbf16>
    %83 = vector.shape_cast %82 : vector<1x4x32xbf16> to vector<4x32xbf16>
    %c3_84 = arith.constant 3 : index
    %c0_85 = arith.constant 0 : index
    %c0_86 = arith.constant 0 : index
    %84 = vector.load %arg3[%c3_84, %c0_85, %c0_86] : memref<9x32x32xbf16, #tpu.memory_space<vmem>>, vector<1x32x32xbf16>
    %85 = vector.shape_cast %84 : vector<1x32x32xbf16> to vector<32x32xbf16>
    %cst_87 = arith.constant dense<0.000000e+00> : vector<4x32xf32>
    %86 = tpu.matmul %83, %85, %cst_87 {dimension_numbers = #tpu.dot_dimension_numbers<[1], [0], [0], [1], [0, 0, 1, 1], [], []>} : vector<4x32xbf16>, vector<32x32xbf16>, vector<4x32xf32> -> vector<4x32xf32>
    %87 = arith.addf %81, %86 : vector<4x32xf32>
    %c0_88 = arith.constant 0 : index
    %c3_89 = arith.constant 3 : index
    %c0_90 = arith.constant 0 : index
    %88 = vector.load %arg1[%c0_88, %c3_89, %c0_90] : memref<1x16x32xbf16, #tpu.memory_space<vmem>>, vector<1x4x32xbf16>
    %89 = vector.shape_cast %88 : vector<1x4x32xbf16> to vector<4x32xbf16>
    %c4_91 = arith.constant 4 : index
    %c0_92 = arith.constant 0 : index
    %c0_93 = arith.constant 0 : index
    %90 = vector.load %arg3[%c4_91, %c0_92, %c0_93] : memref<9x32x32xbf16, #tpu.memory_space<vmem>>, vector<1x32x32xbf16>
    %91 = vector.shape_cast %90 : vector<1x32x32xbf16> to vector<32x32xbf16>
    %cst_94 = arith.constant dense<0.000000e+00> : vector<4x32xf32>
    %92 = tpu.matmul %89, %91, %cst_94 {dimension_numbers = #tpu.dot_dimension_numbers<[1], [0], [0], [1], [0, 0, 1, 1], [], []>} : vector<4x32xbf16>, vector<32x32xbf16>, vector<4x32xf32> -> vector<4x32xf32>
    %93 = arith.addf %87, %92 : vector<4x32xf32>
    %c0_95 = arith.constant 0 : index
    %c3_96 = arith.constant 3 : index
    %c0_97 = arith.constant 0 : index
    %94 = vector.load %arg2[%c0_95, %c3_96, %c0_97] : memref<1x16x32xbf16, #tpu.memory_space<vmem>>, vector<1x4x32xbf16>
    %95 = vector.shape_cast %94 : vector<1x4x32xbf16> to vector<4x32xbf16>
    %c5_98 = arith.constant 5 : index
    %c0_99 = arith.constant 0 : index
    %c0_100 = arith.constant 0 : index
    %96 = vector.load %arg3[%c5_98, %c0_99, %c0_100] : memref<9x32x32xbf16, #tpu.memory_space<vmem>>, vector<1x32x32xbf16>
    %97 = vector.shape_cast %96 : vector<1x32x32xbf16> to vector<32x32xbf16>
    %cst_101 = arith.constant dense<0.000000e+00> : vector<4x32xf32>
    %98 = tpu.matmul %95, %97, %cst_101 {dimension_numbers = #tpu.dot_dimension_numbers<[1], [0], [0], [1], [0, 0, 1, 1], [], []>} : vector<4x32xbf16>, vector<32x32xbf16>, vector<4x32xf32> -> vector<4x32xf32>
    %99 = arith.addf %93, %98 : vector<4x32xf32>
    %c0_102 = arith.constant 0 : index
    %c4_103 = arith.constant 4 : index
    %c0_104 = arith.constant 0 : index
    %100 = vector.load %arg2[%c0_102, %c4_103, %c0_104] : memref<1x16x32xbf16, #tpu.memory_space<vmem>>, vector<1x4x32xbf16>
    %101 = vector.shape_cast %100 : vector<1x4x32xbf16> to vector<4x32xbf16>
    %c6_105 = arith.constant 6 : index
    %c0_106 = arith.constant 0 : index
    %c0_107 = arith.constant 0 : index
    %102 = vector.load %arg3[%c6_105, %c0_106, %c0_107] : memref<9x32x32xbf16, #tpu.memory_space<vmem>>, vector<1x32x32xbf16>
    %103 = vector.shape_cast %102 : vector<1x32x32xbf16> to vector<32x32xbf16>
    %cst_108 = arith.constant dense<0.000000e+00> : vector<4x32xf32>
    %104 = tpu.matmul %101, %103, %cst_108 {dimension_numbers = #tpu.dot_dimension_numbers<[1], [0], [0], [1], [0, 0, 1, 1], [], []>} : vector<4x32xbf16>, vector<32x32xbf16>, vector<4x32xf32> -> vector<4x32xf32>
    %105 = arith.addf %99, %104 : vector<4x32xf32>
    %c0_109 = arith.constant 0 : index
    %c5_110 = arith.constant 5 : index
    %c0_111 = arith.constant 0 : index
    %106 = vector.load %arg1[%c0_109, %c5_110, %c0_111] : memref<1x16x32xbf16, #tpu.memory_space<vmem>>, vector<1x4x32xbf16>
    %107 = vector.shape_cast %106 : vector<1x4x32xbf16> to vector<4x32xbf16>
    %c7_112 = arith.constant 7 : index
    %c0_113 = arith.constant 0 : index
    %c0_114 = arith.constant 0 : index
    %108 = vector.load %arg3[%c7_112, %c0_113, %c0_114] : memref<9x32x32xbf16, #tpu.memory_space<vmem>>, vector<1x32x32xbf16>
    %109 = vector.shape_cast %108 : vector<1x32x32xbf16> to vector<32x32xbf16>
    %cst_115 = arith.constant dense<0.000000e+00> : vector<4x32xf32>
    %110 = tpu.matmul %107, %109, %cst_115 {dimension_numbers = #tpu.dot_dimension_numbers<[1], [0], [0], [1], [0, 0, 1, 1], [], []>} : vector<4x32xbf16>, vector<32x32xbf16>, vector<4x32xf32> -> vector<4x32xf32>
    %111 = arith.addf %105, %110 : vector<4x32xf32>
    %c0_116 = arith.constant 0 : index
    %c5_117 = arith.constant 5 : index
    %c0_118 = arith.constant 0 : index
    %112 = vector.load %arg2[%c0_116, %c5_117, %c0_118] : memref<1x16x32xbf16, #tpu.memory_space<vmem>>, vector<1x4x32xbf16>
    %113 = vector.shape_cast %112 : vector<1x4x32xbf16> to vector<4x32xbf16>
    %c8_119 = arith.constant 8 : index
    %c0_120 = arith.constant 0 : index
    %c0_121 = arith.constant 0 : index
    %114 = vector.load %arg3[%c8_119, %c0_120, %c0_121] : memref<9x32x32xbf16, #tpu.memory_space<vmem>>, vector<1x32x32xbf16>
    %115 = vector.shape_cast %114 : vector<1x32x32xbf16> to vector<32x32xbf16>
    %cst_122 = arith.constant dense<0.000000e+00> : vector<4x32xf32>
    %116 = tpu.matmul %113, %115, %cst_122 {dimension_numbers = #tpu.dot_dimension_numbers<[1], [0], [0], [1], [0, 0, 1, 1], [], []>} : vector<4x32xbf16>, vector<32x32xbf16>, vector<4x32xf32> -> vector<4x32xf32>
    %117 = arith.addf %111, %116 : vector<4x32xf32>
    %118 = vector.broadcast %0 : vector<1x32xf32> to vector<4x32xf32>
    %119 = arith.mulf %117, %118 : vector<4x32xf32>
    %120 = vector.broadcast %1 : vector<1x32xf32> to vector<4x32xf32>
    %121 = arith.addf %119, %120 : vector<4x32xf32>
    %cst_123 = arith.constant 0.000000e+00 : f32
    %122 = vector.broadcast %cst_123 : f32 to vector<4x32xf32>
    %123 = arith.maximumf %121, %122 : vector<4x32xf32>
    %124 = arith.maximumf %62, %123 : vector<4x32xf32>
    %c0_124 = arith.constant 0 : index
    %c0_125 = arith.constant 0 : index
    %c0_126 = arith.constant 0 : index
    %125 = vector.load %arg6[%c0_124, %c0_125, %c0_126] : memref<1x4x32xf32, #tpu.memory_space<vmem>>, vector<1x4x32xf32>
    %126 = vector.shape_cast %125 : vector<1x4x32xf32> to vector<4x32xf32>
    %127 = vector.shape_cast %124 : vector<4x32xf32> to vector<1x4x32xf32>
    tpu.vector_store %arg6[%c0_124, %c0_125, %c0_126], %127 {strides = array<i32>} : memref<1x4x32xf32, #tpu.memory_space<vmem>>, vector<1x4x32xf32>,
    return
  }
  func.func @transform_0(%arg0: i32) -> (i32, i32, i32) {
    %c0_i32 = arith.constant 0 : i32
    %c0_i32_0 = arith.constant 0 : i32
    %c0_i32_1 = arith.constant 0 : i32
    return %arg0, %c0_i32, %c0_i32_0 : i32, i32, i32
  }
  func.func @transform_1(%arg0: i32) -> (i32, i32, i32) {
    %c0_i32 = arith.constant 0 : i32
    %c0_i32_0 = arith.constant 0 : i32
    %c0_i32_1 = arith.constant 0 : i32
    return %arg0, %c0_i32, %c0_i32_0 : i32, i32, i32
  }
  func.func @transform_2(%arg0: i32) -> (i32, i32, i32) {
    %c0_i32 = arith.constant 0 : i32
    %c0_i32_0 = arith.constant 0 : i32
    %c0_i32_1 = arith.constant 0 : i32
    %c0_i32_2 = arith.constant 0 : i32
    return %c0_i32, %c0_i32_0, %c0_i32_1 : i32, i32, i32
  }
  func.func @transform_3(%arg0: i32) -> (i32, i32) {
    %c0_i32 = arith.constant 0 : i32
    %c0_i32_0 = arith.constant 0 : i32
    %c0_i32_1 = arith.constant 0 : i32
    return %c0_i32, %c0_i32_0 : i32, i32
  }
  func.func @transform_4(%arg0: i32) -> (i32, i32) {
    %c0_i32 = arith.constant 0 : i32
    %c0_i32_0 = arith.constant 0 : i32
    %c0_i32_1 = arith.constant 0 : i32
    return %c0_i32, %c0_i32_0 : i32, i32
  }
  func.func @transform_5(%arg0: i32) -> (i32, i32, i32) {
    %c0_i32 = arith.constant 0 : i32
    %c0_i32_0 = arith.constant 0 : i32
    %c0_i32_1 = arith.constant 0 : i32
    return %arg0, %c0_i32, %c0_i32_0 : i32, i32, i32
  }
}

module attributes {stable_mosaic.version = 11 : i64} {
  func.func @kernel(%arg0: memref<5x64xf32, #tpu.memory_space<vmem>>, %arg1: memref<64x128xf32, #tpu.memory_space<vmem>>, %arg2: memref<1x128xf32, #tpu.memory_space<vmem>>, %arg3: memref<128x64xf32, #tpu.memory_space<vmem>>, %arg4: memref<1x64xf32, #tpu.memory_space<vmem>>, %arg5: memref<64x1xf32, #tpu.memory_space<vmem>>, %arg6: memref<1x1xf32, #tpu.memory_space<vmem>>, %arg7: memref<5x1xf32, #tpu.memory_space<vmem>>) attributes {dimension_semantics = [], scalar_prefetch = 0 : i64, scratch_operands = 0 : i64, tpu.core_type = #tpu.core_type<tc>} {
    %c0 = arith.constant 0 : index
    %c0_0 = arith.constant 0 : index
    %0 = vector.load %arg0[%c0, %c0_0] : memref<5x64xf32, #tpu.memory_space<vmem>>, vector<5x64xf32>
    %c0_1 = arith.constant 0 : index
    %c0_2 = arith.constant 0 : index
    %1 = vector.load %arg1[%c0_1, %c0_2] : memref<64x128xf32, #tpu.memory_space<vmem>>, vector<64x128xf32>
    %cst = arith.constant dense<0.000000e+00> : vector<5x128xf32>
    %2 = tpu.matmul %0, %1, %cst {dimension_numbers = #tpu.dot_dimension_numbers<[1], [0], [0], [1], [0, 0, 1, 1], [], []>} : vector<5x64xf32>, vector<64x128xf32>, vector<5x128xf32> -> vector<5x128xf32>
    %c0_3 = arith.constant 0 : index
    %c0_4 = arith.constant 0 : index
    %3 = vector.load %arg2[%c0_3, %c0_4] : memref<1x128xf32, #tpu.memory_space<vmem>>, vector<1x128xf32>
    %4 = vector.broadcast %3 : vector<1x128xf32> to vector<5x128xf32>
    %5 = arith.addf %2, %4 : vector<5x128xf32>
    %cst_5 = arith.constant 0.000000e+00 : f32
    %6 = vector.broadcast %cst_5 : f32 to vector<5x128xf32>
    %7 = arith.maximumf %5, %6 : vector<5x128xf32>
    %c0_6 = arith.constant 0 : index
    %c0_7 = arith.constant 0 : index
    %8 = vector.load %arg3[%c0_6, %c0_7] : memref<128x64xf32, #tpu.memory_space<vmem>>, vector<128x64xf32>
    %cst_8 = arith.constant dense<0.000000e+00> : vector<5x64xf32>
    %9 = tpu.matmul %7, %8, %cst_8 {dimension_numbers = #tpu.dot_dimension_numbers<[1], [0], [0], [1], [0, 0, 1, 1], [], []>} : vector<5x128xf32>, vector<128x64xf32>, vector<5x64xf32> -> vector<5x64xf32>
    %c0_9 = arith.constant 0 : index
    %c0_10 = arith.constant 0 : index
    %10 = vector.load %arg4[%c0_9, %c0_10] : memref<1x64xf32, #tpu.memory_space<vmem>>, vector<1x64xf32>
    %11 = vector.broadcast %10 : vector<1x64xf32> to vector<5x64xf32>
    %12 = arith.addf %9, %11 : vector<5x64xf32>
    %cst_11 = arith.constant 0.000000e+00 : f32
    %13 = vector.broadcast %cst_11 : f32 to vector<5x64xf32>
    %14 = arith.maximumf %12, %13 : vector<5x64xf32>
    %c0_12 = arith.constant 0 : index
    %c0_13 = arith.constant 0 : index
    %15 = vector.load %arg5[%c0_12, %c0_13] : memref<64x1xf32, #tpu.memory_space<vmem>>, vector<64x1xf32>
    %cst_14 = arith.constant dense<0.000000e+00> : vector<5x1xf32>
    %16 = tpu.matmul %14, %15, %cst_14 {dimension_numbers = #tpu.dot_dimension_numbers<[1], [0], [0], [1], [0, 0, 1, 1], [], []>} : vector<5x64xf32>, vector<64x1xf32>, vector<5x1xf32> -> vector<5x1xf32>
    %c0_15 = arith.constant 0 : index
    %c0_16 = arith.constant 0 : index
    %17 = vector.load %arg6[%c0_15, %c0_16] : memref<1x1xf32, #tpu.memory_space<vmem>>, vector<1x1xf32>
    %18 = vector.broadcast %17 : vector<1x1xf32> to vector<5x1xf32>
    %19 = arith.addf %16, %18 : vector<5x1xf32>
    %cst_17 = arith.constant 0.000000e+00 : f32
    %20 = vector.broadcast %cst_17 : f32 to vector<5x1xf32>
    %21 = arith.subf %20, %19 : vector<5x1xf32>
    %22 = math.exp %21 : vector<5x1xf32>
    %cst_18 = arith.constant 1.000000e+00 : f32
    %23 = vector.broadcast %cst_18 : f32 to vector<5x1xf32>
    %24 = arith.addf %23, %22 : vector<5x1xf32>
    %25 = tpu.reciprocal %24 {approx = true} : vector<5x1xf32> -> vector<5x1xf32>
    %cst_19 = arith.constant 1.000000e+00 : f32
    %26 = vector.broadcast %cst_19 : f32 to vector<5x1xf32>
    %27 = arith.mulf %25, %26 : vector<5x1xf32>
    %c0_20 = arith.constant 0 : index
    %c0_21 = arith.constant 0 : index
    %28 = vector.load %arg7[%c0_20, %c0_21] : memref<5x1xf32, #tpu.memory_space<vmem>>, vector<5x1xf32>
    tpu.vector_store %arg7[%c0_20, %c0_21], %27 {strides = array<i32>} : memref<5x1xf32, #tpu.memory_space<vmem>>, vector<5x1xf32>,
    return
  }
}

module attributes {stable_mosaic.version = 11 : i64} {
  func.func @_e2p_dist_kernel(%arg0: memref<5x32xf32, #tpu.memory_space<vmem>>, %arg1: memref<32x15xf32, #tpu.memory_space<vmem>>, %arg2: memref<5x1xf32, #tpu.memory_space<vmem>>, %arg3: memref<5x15xf32, #tpu.memory_space<vmem>>) attributes {dimension_semantics = [], scalar_prefetch = 0 : i64, scratch_operands = 0 : i64, tpu.core_type = #tpu.core_type<tc>} {
    %c0 = arith.constant 0 : index
    %c0_0 = arith.constant 0 : index
    %0 = vector.load %arg0[%c0, %c0_0] : memref<5x32xf32, #tpu.memory_space<vmem>>, vector<5x32xf32>
    %c0_1 = arith.constant 0 : index
    %c0_2 = arith.constant 0 : index
    %1 = vector.load %arg1[%c0_1, %c0_2] : memref<32x15xf32, #tpu.memory_space<vmem>>, vector<32x15xf32>
    %c0_3 = arith.constant 0 : index
    %c0_4 = arith.constant 0 : index
    %2 = vector.load %arg2[%c0_3, %c0_4] : memref<5x1xf32, #tpu.memory_space<vmem>>, vector<5x1xf32>
    %3 = math.sqrt %2 : vector<5x1xf32>
    %4 = math.rsqrt %2 : vector<5x1xf32>
    %cst = arith.constant 0.995999991 : f32
    %5 = vector.broadcast %cst : f32 to vector<5x1xf32>
    %6 = arith.mulf %5, %4 : vector<5x1xf32>
    %7 = arith.mulf %0, %0 : vector<5x32xf32>
    %cst_5 = arith.constant dense<0.000000e+00> : vector<5xf32>
    %8 = vector.multi_reduction <add>, %7, %cst_5 [1] : vector<5x32xf32> to vector<5xf32>
    %9 = vector.shape_cast %8 : vector<5xf32> to vector<5x1xf32>
    %10 = math.sqrt %9 : vector<5x1xf32>
    %cst_6 = arith.constant 9.99999974E-6 : f32
    %11 = vector.broadcast %cst_6 : f32 to vector<5x1xf32>
    %12 = arith.maximumf %10, %11 : vector<5x1xf32>
    %13 = arith.mulf %3, %12 : vector<5x1xf32>
    %14 = math.tanh %13 : vector<5x1xf32>
    %15 = tpu.reciprocal %13 {approx = true} : vector<5x1xf32> -> vector<5x1xf32>
    %16 = arith.mulf %14, %15 : vector<5x1xf32>
    %17 = arith.mulf %16, %10 : vector<5x1xf32>
    %cst_7 = arith.constant 9.99999974E-6 : f32
    %18 = vector.broadcast %cst_7 : f32 to vector<5x1xf32>
    %19 = arith.maximumf %17, %18 : vector<5x1xf32>
    %20 = arith.cmpf ogt, %19, %6 : vector<5x1xf32>
    %21 = tpu.reciprocal %19 {approx = true} : vector<5x1xf32> -> vector<5x1xf32>
    %22 = arith.mulf %6, %21 : vector<5x1xf32>
    %cst_8 = arith.constant 1.000000e+00 : f32
    %23 = vector.broadcast %cst_8 : f32 to vector<5x1xf32>
    %24 = arith.select %20, %22, %23 : vector<5x1xi1>, vector<5x1xf32>
    %25 = arith.mulf %16, %24 : vector<5x1xf32>
    %26 = arith.mulf %25, %25 : vector<5x1xf32>
    %27 = arith.mulf %26, %9 : vector<5x1xf32>
    %28 = arith.mulf %1, %1 : vector<32x15xf32>
    %cst_9 = arith.constant dense<0.000000e+00> : vector<15xf32>
    %29 = vector.multi_reduction <add>, %28, %cst_9 [0] : vector<32x15xf32> to vector<15xf32>
    %30 = vector.shape_cast %29 : vector<15xf32> to vector<1x15xf32>
    %31 = math.sqrt %30 : vector<1x15xf32>
    %cst_10 = arith.constant 9.99999974E-6 : f32
    %32 = vector.broadcast %cst_10 : f32 to vector<1x15xf32>
    %33 = arith.maximumf %31, %32 : vector<1x15xf32>
    %34 = vector.broadcast %3 : vector<5x1xf32> to vector<5x15xf32>
    %35 = vector.broadcast %33 : vector<1x15xf32> to vector<5x15xf32>
    %36 = arith.mulf %34, %35 : vector<5x15xf32>
    %37 = math.tanh %36 : vector<5x15xf32>
    %38 = tpu.reciprocal %36 {approx = true} : vector<5x15xf32> -> vector<5x15xf32>
    %39 = arith.mulf %37, %38 : vector<5x15xf32>
    %40 = vector.broadcast %31 : vector<1x15xf32> to vector<5x15xf32>
    %41 = arith.mulf %39, %40 : vector<5x15xf32>
    %cst_11 = arith.constant 9.99999974E-6 : f32
    %42 = vector.broadcast %cst_11 : f32 to vector<5x15xf32>
    %43 = arith.maximumf %41, %42 : vector<5x15xf32>
    %44 = vector.broadcast %6 : vector<5x1xf32> to vector<5x15xf32>
    %45 = arith.cmpf ogt, %43, %44 : vector<5x15xf32>
    %46 = tpu.reciprocal %43 {approx = true} : vector<5x15xf32> -> vector<5x15xf32>
    %47 = vector.broadcast %6 : vector<5x1xf32> to vector<5x15xf32>
    %48 = arith.mulf %47, %46 : vector<5x15xf32>
    %cst_12 = arith.constant 1.000000e+00 : f32
    %49 = vector.broadcast %cst_12 : f32 to vector<5x15xf32>
    %50 = arith.select %45, %48, %49 : vector<5x15xi1>, vector<5x15xf32>
    %51 = arith.mulf %39, %50 : vector<5x15xf32>
    %52 = arith.mulf %51, %51 : vector<5x15xf32>
    %53 = vector.broadcast %30 : vector<1x15xf32> to vector<5x15xf32>
    %54 = arith.mulf %52, %53 : vector<5x15xf32>
    %cst_13 = arith.constant dense<0.000000e+00> : vector<5x15xf32>
    %55 = tpu.matmul %0, %1, %cst_13 {dimension_numbers = #tpu.dot_dimension_numbers<[1], [0], [0], [1], [0, 0, 1, 1], [], []>} : vector<5x32xf32>, vector<32x15xf32>, vector<5x15xf32> -> vector<5x15xf32>
    %56 = vector.broadcast %25 : vector<5x1xf32> to vector<5x15xf32>
    %57 = arith.mulf %56, %51 : vector<5x15xf32>
    %58 = arith.mulf %57, %55 : vector<5x15xf32>
    %cst_14 = arith.constant 2.000000e+00 : f32
    %59 = vector.broadcast %cst_14 : f32 to vector<5x1xf32>
    %60 = arith.mulf %59, %2 : vector<5x1xf32>
    %61 = vector.broadcast %60 : vector<5x1xf32> to vector<5x15xf32>
    %62 = arith.mulf %61, %58 : vector<5x15xf32>
    %cst_15 = arith.constant 1.000000e+00 : f32
    %63 = vector.broadcast %cst_15 : f32 to vector<5x15xf32>
    %64 = arith.subf %63, %62 : vector<5x15xf32>
    %65 = vector.broadcast %2 : vector<5x1xf32> to vector<5x15xf32>
    %66 = arith.mulf %65, %54 : vector<5x15xf32>
    %67 = arith.addf %64, %66 : vector<5x15xf32>
    %68 = arith.mulf %2, %27 : vector<5x1xf32>
    %cst_16 = arith.constant 1.000000e+00 : f32
    %69 = vector.broadcast %cst_16 : f32 to vector<5x1xf32>
    %70 = arith.subf %69, %68 : vector<5x1xf32>
    %cst_17 = arith.constant 2.000000e+00 : f32
    %71 = vector.broadcast %cst_17 : f32 to vector<5x1xf32>
    %72 = arith.mulf %71, %2 : vector<5x1xf32>
    %73 = vector.broadcast %72 : vector<5x1xf32> to vector<5x15xf32>
    %74 = arith.mulf %73, %58 : vector<5x15xf32>
    %cst_18 = arith.constant 1.000000e+00 : f32
    %75 = vector.broadcast %cst_18 : f32 to vector<5x15xf32>
    %76 = arith.subf %75, %74 : vector<5x15xf32>
    %77 = arith.mulf %2, %2 : vector<5x1xf32>
    %78 = arith.mulf %77, %27 : vector<5x1xf32>
    %79 = vector.broadcast %78 : vector<5x1xf32> to vector<5x15xf32>
    %80 = arith.mulf %79, %54 : vector<5x15xf32>
    %81 = arith.addf %76, %80 : vector<5x15xf32>
    %cst_19 = arith.constant 9.99999974E-6 : f32
    %82 = vector.broadcast %cst_19 : f32 to vector<5x15xf32>
    %83 = arith.addf %81, %82 : vector<5x15xf32>
    %84 = arith.mulf %67, %67 : vector<5x15xf32>
    %85 = vector.broadcast %27 : vector<5x1xf32> to vector<5x15xf32>
    %86 = arith.mulf %84, %85 : vector<5x15xf32>
    %cst_20 = arith.constant 2.000000e+00 : f32
    %87 = vector.broadcast %cst_20 : f32 to vector<5x15xf32>
    %88 = arith.mulf %87, %67 : vector<5x15xf32>
    %89 = vector.broadcast %70 : vector<5x1xf32> to vector<5x15xf32>
    %90 = arith.mulf %88, %89 : vector<5x15xf32>
    %91 = arith.mulf %90, %58 : vector<5x15xf32>
    %92 = arith.subf %86, %91 : vector<5x15xf32>
    %93 = arith.mulf %70, %70 : vector<5x1xf32>
    %94 = vector.broadcast %93 : vector<5x1xf32> to vector<5x15xf32>
    %95 = arith.mulf %94, %54 : vector<5x15xf32>
    %96 = arith.addf %92, %95 : vector<5x15xf32>
    %cst_21 = arith.constant 0.000000e+00 : f32
    %97 = vector.broadcast %cst_21 : f32 to vector<5x15xf32>
    %98 = arith.maximumf %96, %97 : vector<5x15xf32>
    %99 = math.sqrt %98 : vector<5x15xf32>
    %100 = tpu.reciprocal %83 {approx = true} : vector<5x15xf32> -> vector<5x15xf32>
    %101 = arith.mulf %99, %100 : vector<5x15xf32>
    %102 = vector.broadcast %3 : vector<5x1xf32> to vector<5x15xf32>
    %103 = arith.mulf %102, %101 : vector<5x15xf32>
    %cst_22 = arith.constant -0.999989986 : f32
    %cst_23 = arith.constant 0.999989986 : f32
    %104 = vector.broadcast %cst_22 : f32 to vector<5x15xf32>
    %105 = arith.maximumf %104, %103 : vector<5x15xf32>
    %106 = vector.broadcast %cst_23 : f32 to vector<5x15xf32>
    %107 = arith.minimumf %106, %105 : vector<5x15xf32>
    %cst_24 = arith.constant 1.000000e+00 : f32
    %108 = vector.broadcast %cst_24 : f32 to vector<5x15xf32>
    %109 = arith.addf %108, %107 : vector<5x15xf32>
    %cst_25 = arith.constant 1.000000e+00 : f32
    %110 = vector.broadcast %cst_25 : f32 to vector<5x15xf32>
    %111 = arith.subf %110, %107 : vector<5x15xf32>
    %112 = tpu.reciprocal %111 {approx = true} : vector<5x15xf32> -> vector<5x15xf32>
    %113 = arith.mulf %109, %112 : vector<5x15xf32>
    %114 = math.log %113 : vector<5x15xf32>
    %115 = vector.broadcast %4 : vector<5x1xf32> to vector<5x15xf32>
    %116 = arith.mulf %115, %114 : vector<5x15xf32>
    %c0_26 = arith.constant 0 : index
    %c0_27 = arith.constant 0 : index
    %117 = vector.load %arg3[%c0_26, %c0_27] : memref<5x15xf32, #tpu.memory_space<vmem>>, vector<5x15xf32>
    tpu.vector_store %arg3[%c0_26, %c0_27], %116 {strides = array<i32>} : memref<5x15xf32, #tpu.memory_space<vmem>>, vector<5x15xf32>,
    return
  }
}

module attributes {stable_mosaic.version = 11 : i64} {
  func.func @kernel(%arg0: memref<5x10xf32, #tpu.memory_space<vmem>>, %arg1: memref<10x4xf32, #tpu.memory_space<vmem>>, %arg2: memref<1x4xf32, #tpu.memory_space<vmem>>, %arg3: memref<4x5xf32, #tpu.memory_space<vmem>>, %arg4: memref<1x5xf32, #tpu.memory_space<vmem>>, %arg5: memref<5x4xf32, #tpu.memory_space<vmem>>, %arg6: memref<5x1xf32, #tpu.memory_space<vmem>>) attributes {dimension_semantics = [], scalar_prefetch = 0 : i64, scratch_operands = 0 : i64, tpu.core_type = #tpu.core_type<tc>} {
    %c0 = arith.constant 0 : index
    %c0_0 = arith.constant 0 : index
    %0 = vector.load %arg0[%c0, %c0_0] : memref<5x10xf32, #tpu.memory_space<vmem>>, vector<5x10xf32>
    %c0_1 = arith.constant 0 : index
    %c0_2 = arith.constant 0 : index
    %1 = vector.load %arg1[%c0_1, %c0_2] : memref<10x4xf32, #tpu.memory_space<vmem>>, vector<10x4xf32>
    %cst = arith.constant dense<0.000000e+00> : vector<5x4xf32>
    %2 = tpu.matmul %0, %1, %cst {dimension_numbers = #tpu.dot_dimension_numbers<[1], [0], [0], [1], [0, 0, 1, 1], [], []>} : vector<5x10xf32>, vector<10x4xf32>, vector<5x4xf32> -> vector<5x4xf32>
    %c0_3 = arith.constant 0 : index
    %c0_4 = arith.constant 0 : index
    %3 = vector.load %arg2[%c0_3, %c0_4] : memref<1x4xf32, #tpu.memory_space<vmem>>, vector<1x4xf32>
    %4 = vector.broadcast %3 : vector<1x4xf32> to vector<5x4xf32>
    %5 = arith.addf %2, %4 : vector<5x4xf32>
    %cst_5 = arith.constant 0.000000e+00 : f32
    %6 = vector.broadcast %cst_5 : f32 to vector<5x4xf32>
    %7 = arith.maximumf %5, %6 : vector<5x4xf32>
    %c0_6 = arith.constant 0 : index
    %c0_7 = arith.constant 0 : index
    %8 = vector.load %arg3[%c0_6, %c0_7] : memref<4x5xf32, #tpu.memory_space<vmem>>, vector<4x5xf32>
    %cst_8 = arith.constant dense<0.000000e+00> : vector<5x5xf32>
    %9 = tpu.matmul %7, %8, %cst_8 {dimension_numbers = #tpu.dot_dimension_numbers<[1], [0], [0], [1], [0, 0, 1, 1], [], []>} : vector<5x4xf32>, vector<4x5xf32>, vector<5x5xf32> -> vector<5x5xf32>
    %c0_9 = arith.constant 0 : index
    %c0_10 = arith.constant 0 : index
    %10 = vector.load %arg4[%c0_9, %c0_10] : memref<1x5xf32, #tpu.memory_space<vmem>>, vector<1x5xf32>
    %11 = vector.broadcast %10 : vector<1x5xf32> to vector<5x5xf32>
    %12 = arith.addf %9, %11 : vector<5x5xf32>
    %13 = vector.extract_strided_slice %12 {offsets = [0, 0], sizes = [5, 4], strides = [1, 1]} : vector<5x5xf32> to vector<5x4xf32>
    %cst_11 = arith.constant dense<0xFF800000> : vector<5xf32>
    %14 = vector.multi_reduction <maximumf>, %13, %cst_11 [1] : vector<5x4xf32> to vector<5xf32>
    %15 = vector.shape_cast %14 : vector<5xf32> to vector<5x1xf32>
    %16 = vector.broadcast %15 : vector<5x1xf32> to vector<5x4xf32>
    %17 = arith.subf %13, %16 : vector<5x4xf32>
    %18 = math.exp %17 : vector<5x4xf32>
    %cst_12 = arith.constant dense<0.000000e+00> : vector<5xf32>
    %19 = vector.multi_reduction <add>, %18, %cst_12 [1] : vector<5x4xf32> to vector<5xf32>
    %20 = vector.shape_cast %19 : vector<5xf32> to vector<5x1xf32>
    %21 = tpu.reciprocal %20 {approx = true} : vector<5x1xf32> -> vector<5x1xf32>
    %22 = vector.broadcast %21 : vector<5x1xf32> to vector<5x4xf32>
    %23 = arith.mulf %18, %22 : vector<5x4xf32>
    %c0_13 = arith.constant 0 : index
    %c0_14 = arith.constant 0 : index
    %24 = vector.load %arg5[%c0_13, %c0_14] : memref<5x4xf32, #tpu.memory_space<vmem>>, vector<5x4xf32>
    tpu.vector_store %arg5[%c0_13, %c0_14], %23 {strides = array<i32>} : memref<5x4xf32, #tpu.memory_space<vmem>>, vector<5x4xf32>,
    %25 = vector.extract_strided_slice %12 {offsets = [0, 4], sizes = [5, 1], strides = [1, 1]} : vector<5x5xf32> to vector<5x1xf32>
    %cst_15 = arith.constant 0.000000e+00 : f32
    %26 = vector.broadcast %cst_15 : f32 to vector<5x1xf32>
    %27 = arith.subf %26, %25 : vector<5x1xf32>
    %28 = math.exp %27 : vector<5x1xf32>
    %cst_16 = arith.constant 1.000000e+00 : f32
    %29 = vector.broadcast %cst_16 : f32 to vector<5x1xf32>
    %30 = arith.addf %29, %28 : vector<5x1xf32>
    %31 = tpu.reciprocal %30 {approx = true} : vector<5x1xf32> -> vector<5x1xf32>
    %c0_17 = arith.constant 0 : index
    %c0_18 = arith.constant 0 : index
    %32 = vector.load %arg6[%c0_17, %c0_18] : memref<5x1xf32, #tpu.memory_space<vmem>>, vector<5x1xf32>
    tpu.vector_store %arg6[%c0_17, %c0_18], %31 {strides = array<i32>} : memref<5x1xf32, #tpu.memory_space<vmem>>, vector<5x1xf32>,
    return
  }
}

</mosaic_0001>

<llo_original>
// kernel: _lambda_.8
$region0: #{_lambda_.8}
  #allocation0 [shape = 'u32[]', space=smem, size = 0x4, offset = 0x4, fixed_abs, tag = 'smem constant byte address 0x4 - core index']
  #allocation1 [shape = 'u32[144,128]{1,0:T(1,128)}', space=vmem, size = 0x12000, scoped, tag = 'internal scratch']
  %s0 = inlined_call_operand.vmem [shape: bf16[20,170,3], index: 0, kind: input, shape index: {}]
  %s1 = inlined_call_operand.vmem [shape: bf16[20,170,3], index: 1, kind: input, shape index: {}]
  %s2 = inlined_call_operand.vmem [shape: bf16[9,3,32], index: 2, kind: input, shape index: {}]
  %s3 = inlined_call_operand.vmem [shape: f32[1,32], index: 3, kind: input, shape index: {}]
  %s4 = inlined_call_operand.vmem [shape: f32[1,32], index: 4, kind: input, shape index: {}]
  %s5 = inlined_call_operand.vmem [shape: f32[20,144,32], index: 5, kind: output, shape index: {}]
  %s6 = sld [smem:[#allocation0]]
  $region53: #{_lambda_.8} parent=0
    _
  %s8 = ssub.s32 1, %s6
  %s9 = scalar_select 0, %s8, %s6
  loop: start=0, step=1, limit=22
  $region2: #{_lambda_.8} parent=0 // loop_pre_header
    _
  $region3: #{_lambda_.8} parent=0 // loop_header
    %s11 = sphi 0, %s15
    %p12 = scmp.ge.s32.totalorder %s11, 22
    %s21 = sphi 0, %s23
    %s24 = sphi 0, %s21
    %s25 = sphi 0, %s24
    %s41 = sphi 0, %s25
    %s47 = sphi 0, %s49
    %s50 = sphi 0, %s47
    %s51 = sphi 0, %s50
    %s67 = sphi 0, %s51
    %s71 = sphi 0, %s71
    %s73 = sphi 0, %s71
    %s74 = sphi 0, %s73
    %s88 = sphi 0, %s74
    %s92 = sphi 0, %s92
    %s94 = sphi 0, %s92
    %s95 = sphi 0, %s94
    %s109 = sphi 0, %s95
    %s113 = sphi 0, %s113
    %s115 = sphi 0, %s113
    %s116 = sphi 0, %s115
    %s130 = sphi 0, %s116
    %s136 = sphi 0, %s138
    %s139 = sphi 0, %s136
    %s140 = sphi 0, %s139
    %s156 = sphi 0, %s140
  $region4: #{_lambda_.8} parent=0 // loop_header_branch
    %14 = sbr.rel (%p12) target = $region8
  $region5: #{_lambda_.8} parent=0 // loop_body
    %s16 = ssub.s32 %s11, 1
    %s17 = ssub.s32 %s11, 2
    %s18 = sadd.s32 %s11, 1
    %s19 = ssub.s32 %s11, %s18
    %p20 = scmp.eq.s32.totalorder %s19, 0
    %s22 = sadd.s32 %s21, 1
    %s23 = scalar_select %p20, %s21, %s22
    %p26 = pneg %p20
    %p27 = scmp.eq.s32.totalorder %s11, 19
    %p28 = por %p26, %p27
    %p29 = scmp.ne.s32.totalorder %s21, %s24
    %p30 = scmp.eq.s32.totalorder %s11, 0
    %p31 = por %p29, %p30
    %p32 = scmp.ne.s32.totalorder %s21, %s24
    %p33 = scmp.eq.s32.totalorder %s16, 19
    %p34 = por %p32, %p33
    %p35 = scmp.ne.s32.totalorder %s24, %s25
    %p36 = scmp.eq.s32.totalorder %s16, 0
    %p37 = por %p35, %p36
    %p38 = scmp.ne.s32.totalorder %s24, %s25
    %p39 = scmp.eq.s32.totalorder %s17, 19
    %p40 = por %p38, %p39
    %p42 = scmp.ne.s32.totalorder %s25, %s41
    %p43 = scmp.eq.s32.totalorder %s17, 0
    %p44 = por %p42, %p43
    %s45 = ssub.s32 %s11, %s18
    %p46 = scmp.eq.s32.totalorder %s45, 0
    %s48 = sadd.s32 %s47, 1
    %s49 = scalar_select %p46, %s47, %s48
    %p52 = pneg %p46
    %p53 = scmp.eq.s32.totalorder %s11, 19
    %p54 = por %p52, %p53
    %p55 = scmp.ne.s32.totalorder %s47, %s50
    %p56 = scmp.eq.s32.totalorder %s11, 0
    %p57 = por %p55, %p56
    %p58 = scmp.ne.s32.totalorder %s47, %s50
    %p59 = scmp.eq.s32.totalorder %s16, 19
    %p60 = por %p58, %p59
    %p61 = scmp.ne.s32.totalorder %s50, %s51
    %p62 = scmp.eq.s32.totalorder %s16, 0
    %p63 = por %p61, %p62
    %p64 = scmp.ne.s32.totalorder %s50, %s51
    %p65 = scmp.eq.s32.totalorder %s17, 19
    %p66 = por %p64, %p65
    %p68 = scmp.ne.s32.totalorder %s51, %s67
    %p69 = scmp.eq.s32.totalorder %s17, 0
    %p70 = por %p68, %p69
    %s72 = sadd.s32 %s71, 1
    %p75 = scmp.eq.s32.totalorder %s11, 19
    %p76 = scmp.ne.s32.totalorder %s71, %s73
    %p77 = scmp.eq.s32.totalorder %s11, 0
    %p78 = por %p76, %p77
    %p79 = scmp.ne.s32.totalorder %s71, %s73
    %p80 = scmp.eq.s32.totalorder %s16, 19
    %p81 = por %p79, %p80
    %p82 = scmp.ne.s32.totalorder %s73, %s74
    %p83 = scmp.eq.s32.totalorder %s16, 0
    %p84 = por %p82, %p83
    %p85 = scmp.ne.s32.totalorder %s73, %s74
    %p86 = scmp.eq.s32.totalorder %s17, 19
    %p87 = por %p85, %p86
    %p89 = scmp.ne.s32.totalorder %s74, %s88
    %p90 = scmp.eq.s32.totalorder %s17, 0
    %p91 = por %p89, %p90
    %s93 = sadd.s32 %s92, 1
    %p96 = scmp.eq.s32.totalorder %s11, 19
    %p97 = scmp.ne.s32.totalorder %s92, %s94
    %p98 = scmp.eq.s32.totalorder %s11, 0
    %p99 = por %p97, %p98
    %p100 = scmp.ne.s32.totalorder %s92, %s94
    %p101 = scmp.eq.s32.totalorder %s16, 19
    %p102 = por %p100, %p101
    %p103 = scmp.ne.s32.totalorder %s94, %s95
    %p104 = scmp.eq.s32.totalorder %s16, 0
    %p105 = por %p103, %p104
    %p106 = scmp.ne.s32.totalorder %s94, %s95
    %p107 = scmp.eq.s32.totalorder %s17, 19
    %p108 = por %p106, %p107
    %p110 = scmp.ne.s32.totalorder %s95, %s109
    %p111 = scmp.eq.s32.totalorder %s17, 0
    %p112 = por %p110, %p111
    %s114 = sadd.s32 %s113, 1
    %p117 = scmp.eq.s32.totalorder %s11, 19
    %p118 = scmp.ne.s32.totalorder %s113, %s115
    %p119 = scmp.eq.s32.totalorder %s11, 0
    %p120 = por %p118, %p119
    %p121 = scmp.ne.s32.totalorder %s113, %s115
    %p122 = scmp.eq.s32.totalorder %s16, 19
    %p123 = por %p121, %p122
    %p124 = scmp.ne.s32.totalorder %s115, %s116
    %p125 = scmp.eq.s32.totalorder %s16, 0
    %p126 = por %p124, %p125
    %p127 = scmp.ne.s32.totalorder %s115, %s116
    %p128 = scmp.eq.s32.totalorder %s17, 19
    %p129 = por %p127, %p128
    %p131 = scmp.ne.s32.totalorder %s116, %s130
    %p132 = scmp.eq.s32.totalorder %s17, 0
    %p133 = por %p131, %p132
    %s134 = ssub.s32 %s11, %s18
    %p135 = scmp.eq.s32.totalorder %s134, 0
    %s137 = sadd.s32 %s136, 1
    %s138 = scalar_select %p135, %s136, %s137
    %p141 = pneg %p135
    %p142 = scmp.eq.s32.totalorder %s11, 19
    %p143 = por %p141, %p142
    %p144 = scmp.ne.s32.totalorder %s136, %s139
    %p145 = scmp.eq.s32.totalorder %s11, 0
    %p146 = por %p144, %p145
    %p147 = scmp.ne.s32.totalorder %s136, %s139
    %p148 = scmp.eq.s32.totalorder %s16, 19
    %p149 = por %p147, %p148
    %p150 = scmp.ne.s32.totalorder %s139, %s140
    %p151 = scmp.eq.s32.totalorder %s16, 0
    %p152 = por %p150, %p151
    %p153 = scmp.ne.s32.totalorder %s139, %s140
    %p154 = scmp.eq.s32.totalorder %s17, 19
    %p155 = por %p153, %p154
    %p157 = scmp.ne.s32.totalorder %s140, %s156
    %p158 = scmp.eq.s32.totalorder %s17, 0
    %p159 = por %p157, %p158
    %p160 = scmp.le.s32.totalorder 1, %s11
    %p161 = scmp.lt.s32.totalorder %s11, 21
    %p162 = pnand %p160, %p161
    %p163 = pneg %p162
    // Predicated region
    $region9: #{_lambda_.8} parent=5 // pred_check
      _
    $region10: #{_lambda_.8} parent=5 // pred_check_branch
      %165 = sbr.rel (%p162) target = $region12
    $region11: #{_lambda_.8} parent=5 // pred_region
      %s166 = ssub.s32 %s11, 1
      // Predicated region
      $region13: #{_lambda_.8} parent=11 // pred_check
        %p167 = pneg %p84
      $region14: #{_lambda_.8} parent=11 // pred_check_branch
        %169 = sbr.rel (%p167) target = $region16
      $region15: #{_lambda_.8} parent=11 // pred_region
        _
      $region16: #{_lambda_.8} parent=11 // pred_fallthru
        _
      // Predicated region
      $region17: #{_lambda_.8} parent=11 // pred_check
        %p170 = pneg %p105
      $region18: #{_lambda_.8} parent=11 // pred_check_branch
        %172 = sbr.rel (%p170) target = $region20
      $region19: #{_lambda_.8} parent=11 // pred_region
        _
      $region20: #{_lambda_.8} parent=11 // pred_fallthru
        _
      // Predicated region
      $region21: #{_lambda_.8} parent=11 // pred_check
        %p173 = pneg %p126
      $region22: #{_lambda_.8} parent=11 // pred_check_branch
        %175 = sbr.rel (%p173) target = $region24
      $region23: #{_lambda_.8} parent=11 // pred_region
        _
      $region24: #{_lambda_.8} parent=11 // pred_fallthru
        _
    $region12: #{_lambda_.8} parent=5 // pred_fallthru
      _
    %p176 = scmp.lt.s32.totalorder %s11, 20
    // Predicated region
    $region25: #{_lambda_.8} parent=5 // pred_check
      %p177 = pneg %p176
    $region26: #{_lambda_.8} parent=5 // pred_check_branch
      %179 = sbr.rel (%p177) target = $region28
    $region27: #{_lambda_.8} parent=5 // pred_region
      // Predicated region
      $region29: #{_lambda_.8} parent=27 // pred_check
        %p180 = pneg %p31
      $region30: #{_lambda_.8} parent=27 // pred_check_branch
        %182 = sbr.rel (%p180) target = $region32
      $region31: #{_lambda_.8} parent=27 // pred_region
        %p183 = scmp.lt.s32.totalorder %s11, 19
        %s184 = scalar_select %p183, %s11, 19
        %s185 = smul.addr %s184, 22
        %s186 = smul.addr %s185, 4
        %s187 = scalar_lea.vmem %s0, %s186
      $region32: #{_lambda_.8} parent=27 // pred_fallthru
        _
      // Predicated region
      $region33: #{_lambda_.8} parent=27 // pred_check
        %p188 = pneg %p57
      $region34: #{_lambda_.8} parent=27 // pred_check_branch
        %190 = sbr.rel (%p188) target = $region36
      $region35: #{_lambda_.8} parent=27 // pred_region
        %p191 = scmp.lt.s32.totalorder %s11, 19
        %s192 = scalar_select %p191, %s11, 19
        %s193 = smul.addr %s192, 22
        %s194 = smul.addr %s193, 4
        %s195 = scalar_lea.vmem %s1, %s194
      $region36: #{_lambda_.8} parent=27 // pred_fallthru
        _
    $region28: #{_lambda_.8} parent=5 // pred_fallthru
      _
    %p196 = scmp.le.s32.totalorder 1, %s11
    %p197 = scmp.lt.s32.totalorder %s11, 21
    %p198 = pnand %p196, %p197
    %p199 = pneg %p198
    // Predicated region
    $region37: #{_lambda_.8} parent=5 // pred_check
      _
    $region38: #{_lambda_.8} parent=5 // pred_check_branch
      %201 = sbr.rel (%p198) target = $region40
    $region39: #{_lambda_.8} parent=5 // pred_region
      %s202 = ssub.s32 %s11, 1
      %p203 = scmp.lt.s32.totalorder %s16, 19
      %s204 = scalar_select %p203, %s16, 19
      %s205 = smul.addr %s204, 22
      %s206 = smul.addr %s205, 4
      %s207 = scalar_lea.vmem %s0, %s206
      %p208 = pneg %p37
      %p209 = pneg %p34
      %p210 = scmp.lt.s32.totalorder %s16, 19
      %s211 = scalar_select %p210, %s16, 19
      %s212 = smul.addr %s211, 22
      %s213 = smul.addr %s212, 4
      %s214 = scalar_lea.vmem %s1, %s213
      %p215 = pneg %p63
      %p216 = pneg %p60
      %p217 = pneg %p84
      %p218 = pneg %p81
      %p219 = pneg %p105
      %p220 = pneg %p102
      %p221 = pneg %p126
      %p222 = pneg %p123
      %p223 = pneg %p152
      %p224 = pneg %p149
      %p225 = scmp.lt.s32.totalorder %s16, 19
      %s226 = scalar_select %p225, %s16, 19
      %s227 = smul.addr %s226, 18
      %s228 = smul.addr %s227, 8
      %s229 = scalar_lea.vmem %s5, %s228
      %p230 = scmp.lt.s32.totalorder %s16, 19
      %s231 = scalar_select %p230, %s16, 19
      %s232 = smul.addr %s231, 22
      %s233 = smul.addr %s232, 4
      %s234 = scalar_lea.vmem %s0, %s233
      %p235 = scmp.lt.s32.totalorder %s16, 19
      %s236 = scalar_select %p235, %s16, 19
      %s237 = smul.addr %s236, 22
      %s238 = smul.addr %s237, 4
      %s239 = scalar_lea.vmem %s1, %s238
      %p240 = scmp.lt.s32.totalorder %s16, 19
      %s241 = scalar_select %p240, %s16, 19
      %s242 = smul.addr %s241, 18
      %s243 = smul.addr %s242, 8
      %s244 = scalar_lea.vmem %s5, %s243
      %v246 = vld [vmem:[%s3] sm:$0x1]
      %v247 = vld [vmem:[%s4] sm:$0x1]
      %v248 = vld [vmem:[%s234] sm:$0xf]
      %v249 = vld [vmem:[%s234 + $0x4] sm:$0xf]
      %v250 = vld [vmem:[%s234 + $0x8] sm:$0xf]
      %v251 = vld [vmem:[%s234 + $0xc] sm:$0xf]
      %v252 = vld [vmem:[%s234 + $0x10] sm:$0xf]
      %v253 = vld [vmem:[%s234 + $0x14] sm:$0xf]
      %v254 = vld [vmem:[%s234 + $0x18] sm:$0xf]
      %v255 = vld [vmem:[%s234 + $0x1c] sm:$0xf]
      %v256 = vld [vmem:[%s234 + $0x20] sm:$0xf]
      %v257 = vld [vmem:[%s234 + $0x24] sm:$0xf]
      %v258 = vld [vmem:[%s234 + $0x28] sm:$0xf]
      %v259 = vld [vmem:[%s234 + $0x2c] sm:$0xf]
      %v260 = vld [vmem:[%s234 + $0x30] sm:$0xf]
      %v261 = vld [vmem:[%s234 + $0x34] sm:$0xf]
      %v262 = vld [vmem:[%s234 + $0x38] sm:$0xf]
      %v263 = vld [vmem:[%s234 + $0x3c] sm:$0xf]
      %v264 = vld [vmem:[%s234 + $0x40] sm:$0xf]
      %v265 = vld [vmem:[%s234 + $0x44] sm:$0xf]
      %v266 = vld [vmem:[%s2] sm:$0x3]
      %v267 = vld [vmem:[%s239] sm:$0xf]
      %v268 = vld [vmem:[%s239 + $0x4] sm:$0xf]
      %v269 = vld [vmem:[%s239 + $0x8] sm:$0xf]
      %v270 = vld [vmem:[%s239 + $0xc] sm:$0xf]
      %v271 = vld [vmem:[%s239 + $0x10] sm:$0xf]
      %v272 = vld [vmem:[%s239 + $0x14] sm:$0xf]
      %v273 = vld [vmem:[%s239 + $0x18] sm:$0xf]
      %v274 = vld [vmem:[%s239 + $0x1c] sm:$0xf]
      %v275 = vld [vmem:[%s239 + $0x20] sm:$0xf]
      %v276 = vld [vmem:[%s239 + $0x24] sm:$0xf]
      %v277 = vld [vmem:[%s239 + $0x28] sm:$0xf]
      %v278 = vld [vmem:[%s239 + $0x2c] sm:$0xf]
      %v279 = vld [vmem:[%s239 + $0x30] sm:$0xf]
      %v280 = vld [vmem:[%s239 + $0x34] sm:$0xf]
      %v281 = vld [vmem:[%s239 + $0x38] sm:$0xf]
      %v282 = vld [vmem:[%s239 + $0x3c] sm:$0xf]
      %v283 = vld [vmem:[%s239 + $0x40] sm:$0xf]
      %v284 = vld [vmem:[%s239 + $0x44] sm:$0xf]
      %s285 = scalar_lea.vmem %s2, 2
      %v286 = vld [vmem:[%s285] sm:$0x3]
      %v305 = vunpack.c.l.b16 %v267
      %v306 = vunpack.c.l.b16 %v268
      %v307 = vunpack.c.l.b16 %v269
      %v308 = vunpack.c.l.b16 %v270
      %v309 = vunpack.c.l.b16 %v271
      %v310 = vunpack.c.l.b16 %v272
      %v311 = vunpack.c.l.b16 %v273
      %v312 = vunpack.c.l.b16 %v274
      %v313 = vunpack.c.l.b16 %v275
      %v314 = vunpack.c.l.b16 %v276
      %v315 = vunpack.c.l.b16 %v277
      %v316 = vunpack.c.l.b16 %v278
      %v317 = vunpack.c.l.b16 %v279
      %v318 = vunpack.c.l.b16 %v280
      %v319 = vunpack.c.l.b16 %v281
      %v320 = vunpack.c.l.b16 %v282
      %v321 = vunpack.c.l.b16 %v283
      %v322 = vunpack.c.l.b16 %v284
      %v323 = vpack.c.b16 %v306, %v305
      %v324 = vpack.c.b16 %v308, %v307
      %v325 = vpack.c.b16 %v310, %v309
      %v326 = vpack.c.b16 %v312, %v311
      %v327 = vpack.c.b16 %v314, %v313
      %v328 = vpack.c.b16 %v316, %v315
      %v329 = vpack.c.b16 %v318, %v317
      %v330 = vpack.c.b16 %v320, %v319
      %v331 = vpack.c.b16 %v322, %v321
      %vm332 = vcmask 23552
      %v334 = vsel %vm332, %v323, 0
      %v337 = vsel %vm332, %v324, 0
      %v340 = vsel %vm332, %v325, 0
      %v343 = vsel %vm332, %v326, 0
      %v346 = vsel %vm332, %v327, 0
      %v349 = vsel %vm332, %v328, 0
      %v352 = vsel %vm332, %v329, 0
      %v355 = vsel %vm332, %v330, 0
      %v358 = vsel %vm332, %v331, 0
      %vm360 = vcmask 1040384
      %vm361 = vcmask 1041408
      %v362 = vsel %vm360, 4294967295, 65535
      %v363 = vsel %vm361, %v362, 0
      %v365 = vand.u32 %v286, %v363
      %367 = vmatprep.subr.bf16.mxu0 0
      %368 = vmatpush1.bf16.msra.mxu0 %v365
      %369 = vmatprep.subr.bf16.mxu0 0
      %370 = vmatpush1.bf16.msra.mxu0 0
      %371 = vmatprep.subr.bf16.mxu0 0
      %372 = vmatpush1.bf16.msra.mxu0 0
      %373 = vmatprep.subr.bf16.mxu0 0
      %374 = vmatpush1.bf16.msra.mxu0 0
      %375 = vmatprep.subr.bf16.mxu0 0
      %376 = vmatpush1.bf16.msra.mxu0 0
      %377 = vmatprep.subr.bf16.mxu0 0
      %378 = vmatpush1.bf16.msra.mxu0 0
      %379 = vmatprep.subr.bf16.mxu0 0
      %380 = vmatpush1.bf16.msra.mxu0 0
      %381 = vmatprep.subr.bf16.mxu0 0
      %382 = vmatpush1.bf16.msra.mxu0 0
      %383 = vmatprep.subr.bf16.mxu0 0
      %384 = vmatpush1.bf16.msra.mxu0 0
      %385 = vmatprep.subr.bf16.mxu0 0
      %386 = vmatpush1.bf16.msra.mxu0 0
      %387 = vmatprep.subr.bf16.mxu0 0
      %388 = vmatpush1.bf16.msra.mxu0 0
      %389 = vmatprep.subr.bf16.mxu0 0
      %390 = vmatpush1.bf16.msra.mxu0 0
      %391 = vmatprep.subr.bf16.mxu0 0
      %392 = vmatpush1.bf16.msra.mxu0 0
      %393 = vmatprep.subr.bf16.mxu0 0
      %394 = vmatpush1.bf16.msra.mxu0 0
      %395 = vmatprep.subr.bf16.mxu0 0
      %396 = vmatpush1.bf16.msra.mxu0 0
      %397 = vmatprep.subr.bf16.mxu0 0
      %398 = vmatpush1.bf16.msra.mxu0 0
      %399 = vmatprep.mubr.bf16.mxu0 0
      %400 = vmatmul.mubr.bf16.gmra.mrb[0].mxu0 %v334
      %v401 = vpop.f32.mrb[0].mxu0
      %v402 = vadd.f32 0.0, %v401
      %v403 = vpop.f32.mrb[0].mxu0
      %v404 = vpop.f32.mrb[0].mxu0
      %v405 = vadd.f32 0.0, %v404
      %v406 = vpop.f32.mrb[0].mxu0
      %407 = vmatprep.mubr.bf16.mxu0 0
      %408 = vmatmul.mubr.bf16.gmra.mrb[0].mxu0 %v337
      %v409 = vpop.f32.mrb[0].mxu0
      %v410 = vadd.f32 0.0, %v409
      %v411 = vpop.f32.mrb[0].mxu0
      %v412 = vpop.f32.mrb[0].mxu0
      %v413 = vadd.f32 0.0, %v412
      %v414 = vpop.f32.mrb[0].mxu0
      %415 = vmatprep.mubr.bf16.mxu0 0
      %416 = vmatmul.mubr.bf16.gmra.mrb[0].mxu0 %v340
      %v417 = vpop.f32.mrb[0].mxu0
      %v418 = vadd.f32 0.0, %v417
      %v419 = vpop.f32.mrb[0].mxu0
      %v420 = vpop.f32.mrb[0].mxu0
      %v421 = vadd.f32 0.0, %v420
      %v422 = vpop.f32.mrb[0].mxu0
      %423 = vmatprep.mubr.bf16.mxu0 0
      %424 = vmatmul.mubr.bf16.gmra.mrb[0].mxu0 %v343
      %v425 = vpop.f32.mrb[0].mxu0
      %v426 = vadd.f32 0.0, %v425
      %v427 = vpop.f32.mrb[0].mxu0
      %v428 = vpop.f32.mrb[0].mxu0
      %v429 = vadd.f32 0.0, %v428
      %v430 = vpop.f32.mrb[0].mxu0
      %431 = vmatprep.mubr.bf16.mxu0 0
      %432 = vmatmul.mubr.bf16.gmra.mrb[0].mxu0 %v346
      %v433 = vpop.f32.mrb[0].mxu0
      %v434 = vadd.f32 0.0, %v433
      %v435 = vpop.f32.mrb[0].mxu0
      %v436 = vpop.f32.mrb[0].mxu0
      %v437 = vadd.f32 0.0, %v436
      %v438 = vpop.f32.mrb[0].mxu0
      %439 = vmatprep.mubr.bf16.mxu0 0
      %440 = vmatmul.mubr.bf16.gmra.mrb[0].mxu0 %v349
      %v441 = vpop.f32.mrb[0].mxu0
      %v442 = vadd.f32 0.0, %v441
      %v443 = vpop.f32.mrb[0].mxu0
      %v444 = vpop.f32.mrb[0].mxu0
      %v445 = vadd.f32 0.0, %v444
      %v446 = vpop.f32.mrb[0].mxu0
      %447 = vmatprep.mubr.bf16.mxu0 0
      %448 = vmatmul.mubr.bf16.gmra.mrb[0].mxu0 %v352
      %v449 = vpop.f32.mrb[0].mxu0
      %v450 = vadd.f32 0.0, %v449
      %v451 = vpop.f32.mrb[0].mxu0
      %v452 = vpop.f32.mrb[0].mxu0
      %v453 = vadd.f32 0.0, %v452
      %v454 = vpop.f32.mrb[0].mxu0
      %455 = vmatprep.mubr.bf16.mxu0 0
      %456 = vmatmul.mubr.bf16.gmra.mrb[0].mxu0 %v355
      %v457 = vpop.f32.mrb[0].mxu0
      %v458 = vadd.f32 0.0, %v457
      %v459 = vpop.f32.mrb[0].mxu0
      %v460 = vpop.f32.mrb[0].mxu0
      %v461 = vadd.f32 0.0, %v460
      %v462 = vpop.f32.mrb[0].mxu0
      %463 = vmatprep.mubr.bf16.mxu0 0
      %464 = vmatmul.mubr.bf16.gmra.mrb[0].mxu0 %v358
      %v465 = vpop.f32.mrb[0].mxu0
      %v466 = vadd.f32 0.0, %v465
      %v467 = vpop.f32.mrb[0].mxu0
      %v468 = vpop.f32.mrb[0].mxu0
      %v469 = vadd.f32 0.0, %v468
      %v470 = vpop.f32.mrb[0].mxu0
      %471 = vdwg.mxu0
      %v490 = vunpack.c.l.b16 %v248
      %v491 = vunpack.c.l.b16 %v249
      %v492 = vunpack.c.l.b16 %v250
      %v493 = vunpack.c.l.b16 %v251
      %v494 = vunpack.c.l.b16 %v252
      %v495 = vunpack.c.l.b16 %v253
      %v496 = vunpack.c.l.b16 %v254
      %v497 = vunpack.c.l.b16 %v255
      %v498 = vunpack.c.l.b16 %v256
      %v499 = vunpack.c.l.b16 %v257
      %v500 = vunpack.c.l.b16 %v258
      %v501 = vunpack.c.l.b16 %v259
      %v502 = vunpack.c.l.b16 %v260
      %v503 = vunpack.c.l.b16 %v261
      %v504 = vunpack.c.l.b16 %v262
      %v505 = vunpack.c.l.b16 %v263
      %v506 = vunpack.c.l.b16 %v264
      %v507 = vunpack.c.l.b16 %v265
      %v508 = vpack.c.b16 %v491, %v490
      %v509 = vpack.c.b16 %v493, %v492
      %v510 = vpack.c.b16 %v495, %v494
      %v511 = vpack.c.b16 %v497, %v496
      %v512 = vpack.c.b16 %v499, %v498
      %v513 = vpack.c.b16 %v501, %v500
      %v514 = vpack.c.b16 %v503, %v502
      %v515 = vpack.c.b16 %v505, %v504
      %v516 = vpack.c.b16 %v507, %v506
      %v518 = vsel %vm332, %v508, 0
      %v521 = vsel %vm332, %v509, 0
      %v524 = vsel %vm332, %v510, 0
      %v527 = vsel %vm332, %v511, 0
      %v530 = vsel %vm332, %v512, 0
      %v533 = vsel %vm332, %v513, 0
      %v536 = vsel %vm332, %v514, 0
      %v539 = vsel %vm332, %v515, 0
      %v542 = vsel %vm332, %v516, 0
      %v545 = vand.u32 %v266, %v363
      %547 = vmatprep.subr.bf16.mxu0 0
      %548 = vmatpush1.bf16.msra.mxu0 %v545
      %549 = vmatprep.subr.bf16.mxu0 0
      %550 = vmatpush1.bf16.msra.mxu0 0
      %551 = vmatprep.subr.bf16.mxu0 0
      %552 = vmatpush1.bf16.msra.mxu0 0
      %553 = vmatprep.subr.bf16.mxu0 0
      %554 = vmatpush1.bf16.msra.mxu0 0
      %555 = vmatprep.subr.bf16.mxu0 0
      %556 = vmatpush1.bf16.msra.mxu0 0
      %557 = vmatprep.subr.bf16.mxu0 0
      %558 = vmatpush1.bf16.msra.mxu0 0
      %559 = vmatprep.subr.bf16.mxu0 0
      %560 = vmatpush1.bf16.msra.mxu0 0
      %561 = vmatprep.subr.bf16.mxu0 0
      %562 = vmatpush1.bf16.msra.mxu0 0
      %563 = vmatprep.subr.bf16.mxu0 0
      %564 = vmatpush1.bf16.msra.mxu0 0
      %565 = vmatprep.subr.bf16.mxu0 0
      %566 = vmatpush1.bf16.msra.mxu0 0
      %567 = vmatprep.subr.bf16.mxu0 0
      %568 = vmatpush1.bf16.msra.mxu0 0
      %569 = vmatprep.subr.bf16.mxu0 0
      %570 = vmatpush1.bf16.msra.mxu0 0
      %571 = vmatprep.subr.bf16.mxu0 0
      %572 = vmatpush1.bf16.msra.mxu0 0
      %573 = vmatprep.subr.bf16.mxu0 0
      %574 = vmatpush1.bf16.msra.mxu0 0
      %575 = vmatprep.subr.bf16.mxu0 0
      %576 = vmatpush1.bf16.msra.mxu0 0
      %577 = vmatprep.subr.bf16.mxu0 0
      %578 = vmatpush1.bf16.msra.mxu0 0
      %579 = vmatprep.mubr.bf16.mxu0 0
      %580 = vmatmul.mubr.bf16.gmra.mrb[0].mxu0 %v518
      %v581 = vpop.f32.mrb[0].mxu0
      %v582 = vadd.f32 %v402, %v581
      %v583 = vpop.f32.mrb[0].mxu0
      %v584 = vpop.f32.mrb[0].mxu0
      %v585 = vadd.f32 %v405, %v584
      %v586 = vpop.f32.mrb[0].mxu0
      %587 = vmatprep.mubr.bf16.mxu0 0
      %588 = vmatmul.mubr.bf16.gmra.mrb[0].mxu0 %v521
      %v589 = vpop.f32.mrb[0].mxu0
      %v590 = vadd.f32 %v410, %v589
      %v591 = vpop.f32.mrb[0].mxu0
      %v592 = vpop.f32.mrb[0].mxu0
      %v593 = vadd.f32 %v413, %v592
      %v594 = vpop.f32.mrb[0].mxu0
      %595 = vmatprep.mubr.bf16.mxu0 0
      %596 = vmatmul.mubr.bf16.gmra.mrb[0].mxu0 %v524
      %v597 = vpop.f32.mrb[0].mxu0
      %v598 = vadd.f32 %v418, %v597
      %v599 = vpop.f32.mrb[0].mxu0
      %v600 = vpop.f32.mrb[0].mxu0
      %v601 = vadd.f32 %v421, %v600
      %v602 = vpop.f32.mrb[0].mxu0
      %603 = vmatprep.mubr.bf16.mxu0 0
      %604 = vmatmul.mubr.bf16.gmra.mrb[0].mxu0 %v527
      %v605 = vpop.f32.mrb[0].mxu0
      %v606 = vadd.f32 %v426, %v605
      %v607 = vpop.f32.mrb[0].mxu0
      %v608 = vpop.f32.mrb[0].mxu0
      %v609 = vadd.f32 %v429, %v608
      %v610 = vpop.f32.mrb[0].mxu0
      %611 = vmatprep.mubr.bf16.mxu0 0
      %612 = vmatmul.mubr.bf16.gmra.mrb[0].mxu0 %v530
      %v613 = vpop.f32.mrb[0].mxu0
      %v614 = vadd.f32 %v434, %v613
      %v615 = vpop.f32.mrb[0].mxu0
      %v616 = vpop.f32.mrb[0].mxu0
      %v617 = vadd.f32 %v437, %v616
      %v618 = vpop.f32.mrb[0].mxu0
      %619 = vmatprep.mubr.bf16.mxu0 0
      %620 = vmatmul.mubr.bf16.gmra.mrb[0].mxu0 %v533
      %v621 = vpop.f32.mrb[0].mxu0
      %v622 = vadd.f32 %v442, %v621
      %v623 = vpop.f32.mrb[0].mxu0
      %v624 = vpop.f32.mrb[0].mxu0
      %v625 = vadd.f32 %v445, %v624
      %v626 = vpop.f32.mrb[0].mxu0
      %627 = vmatprep.mubr.bf16.mxu0 0
      %628 = vmatmul.mubr.bf16.gmra.mrb[0].mxu0 %v536
      %v629 = vpop.f32.mrb[0].mxu0
      %v630 = vadd.f32 %v450, %v629
      %v631 = vpop.f32.mrb[0].mxu0
      %v632 = vpop.f32.mrb[0].mxu0
      %v633 = vadd.f32 %v453, %v632
      %v634 = vpop.f32.mrb[0].mxu0
      %635 = vmatprep.mubr.bf16.mxu0 0
      %636 = vmatmul.mubr.bf16.gmra.mrb[0].mxu0 %v539
      %v637 = vpop.f32.mrb[0].mxu0
      %v638 = vadd.f32 %v458, %v637
      %v639 = vpop.f32.mrb[0].mxu0
      %v640 = vpop.f32.mrb[0].mxu0
      %v641 = vadd.f32 %v461, %v640
      %v642 = vpop.f32.mrb[0].mxu0
      %643 = vmatprep.mubr.bf16.mxu0 0
      %644 = vmatmul.mubr.bf16.gmra.mrb[0].mxu0 %v542
      %v645 = vpop.f32.mrb[0].mxu0
      %v646 = vadd.f32 %v466, %v645
      %v647 = vpop.f32.mrb[0].mxu0
      %v648 = vpop.f32.mrb[0].mxu0
      %v649 = vadd.f32 %v469, %v648
      %v650 = vpop.f32.mrb[0].mxu0
      %651 = vdwg.mxu0
      %v652 = vld [vmem:[%s234] sm:$0xf]
      %v653 = vld [vmem:[%s234 + $0x4] sm:$0xf]
      %v654 = vld [vmem:[%s234 + $0x8] sm:$0xf]
      %v655 = vld [vmem:[%s234 + $0xc] sm:$0xf]
      %v656 = vld [vmem:[%s234 + $0x10] sm:$0xf]
      %v657 = vld [vmem:[%s234 + $0x14] sm:$0xf]
      %v658 = vld [vmem:[%s234 + $0x18] sm:$0xf]
      %v659 = vld [vmem:[%s234 + $0x1c] sm:$0xf]
      %v660 = vld [vmem:[%s234 + $0x20] sm:$0xf]
      %v661 = vld [vmem:[%s234 + $0x24] sm:$0xf]
      %v662 = vld [vmem:[%s234 + $0x28] sm:$0xf]
      %v663 = vld [vmem:[%s234 + $0x2c] sm:$0xf]
      %v664 = vld [vmem:[%s234 + $0x30] sm:$0xf]
      %v665 = vld [vmem:[%s234 + $0x34] sm:$0xf]
      %v666 = vld [vmem:[%s234 + $0x38] sm:$0xf]
      %v667 = vld [vmem:[%s234 + $0x3c] sm:$0xf]
      %v668 = vld [vmem:[%s234 + $0x40] sm:$0xf]
      %v669 = vld [vmem:[%s234 + $0x44] sm:$0xf]
      %v670 = vld [vmem:[%s234 + $0x48] sm:$0x1]
      %s671 = scalar_lea.vmem %s2, 4
      %v672 = vld [vmem:[%s671] sm:$0x3]
      %v692 = vunpack.c.l.b16 %v652
      %v693 = vunpack.c.l.b16 %v653
      %v694 = vunpack.c.l.b16 %v654
      %v695 = vunpack.c.l.b16 %v655
      %v696 = vunpack.c.l.b16 %v656
      %v697 = vunpack.c.l.b16 %v657
      %v698 = vunpack.c.l.b16 %v658
      %v699 = vunpack.c.l.b16 %v659
      %v700 = vunpack.c.l.b16 %v660
      %v701 = vunpack.c.l.b16 %v661
      %v702 = vunpack.c.l.b16 %v662
      %v703 = vunpack.c.l.b16 %v663
      %v704 = vunpack.c.l.b16 %v664
      %v705 = vunpack.c.l.b16 %v665
      %v706 = vunpack.c.l.b16 %v666
      %v707 = vunpack.c.l.b16 %v667
      %v708 = vunpack.c.l.b16 %v668
      %v709 = vunpack.c.l.b16 %v669
      %v710 = vunpack.c.l.b16 %v670
      %v711 = vpack.c.b16 %v693, %v692
      %v712 = vpack.c.b16 %v695, %v694
      %v713 = vpack.c.b16 %v697, %v696
      %v714 = vpack.c.b16 %v699, %v698
      %v715 = vpack.c.b16 %v701, %v700
      %v716 = vpack.c.b16 %v703, %v702
      %v717 = vpack.c.b16 %v705, %v704
      %v718 = vpack.c.b16 %v707, %v706
      %v719 = vpack.c.b16 %v709, %v708
      %v720 = vpack.c.b16 %v710, %v710
      %vm721 = vsmask.f32 7424
      %v723 = vshrl.u32 %v711, 16
      %v725 = vshll.u32 %v711, 16
      %v727 = vrot.slane %v725, 1
      %v728 = vor.u32 %v723, %v727
      %v730 = vshll.u32 %v712, 16
      %v732 = vrot.slane %v730, 1
      %v733 = vsel %vm721, %v728, %v732
      %v734 = vshrl.u32 %v712, 16
      %v736 = vor.u32 %v734, %v732
      %v738 = vshll.u32 %v713, 16
      %v740 = vrot.slane %v738, 1
      %v741 = vsel %vm721, %v736, %v740
      %v742 = vshrl.u32 %v713, 16
      %v744 = vor.u32 %v742, %v740
      %v746 = vshll.u32 %v714, 16
      %v748 = vrot.slane %v746, 1
      %v749 = vsel %vm721, %v744, %v748
      %v750 = vshrl.u32 %v714, 16
      %v752 = vor.u32 %v750, %v748
      %v754 = vshll.u32 %v715, 16
      %v756 = vrot.slane %v754, 1
      %v757 = vsel %vm721, %v752, %v756
      %v758 = vshrl.u32 %v715, 16
      %v760 = vor.u32 %v758, %v756
      %v762 = vshll.u32 %v716, 16
      %v764 = vrot.slane %v762, 1
      %v765 = vsel %vm721, %v760, %v764
      %v766 = vshrl.u32 %v716, 16
      %v768 = vor.u32 %v766, %v764
      %v770 = vshll.u32 %v717, 16
      %v772 = vrot.slane %v770, 1
      %v773 = vsel %vm721, %v768, %v772
      %v774 = vshrl.u32 %v717, 16
      %v776 = vor.u32 %v774, %v772
      %v778 = vshll.u32 %v718, 16
      %v780 = vrot.slane %v778, 1
      %v781 = vsel %vm721, %v776, %v780
      %v782 = vshrl.u32 %v718, 16
      %v784 = vor.u32 %v782, %v780
      %v786 = vshll.u32 %v719, 16
      %v788 = vrot.slane %v786, 1
      %v789 = vsel %vm721, %v784, %v788
      %v790 = vshrl.u32 %v719, 16
      %v792 = vor.u32 %v790, %v788
      %v794 = vshll.u32 %v720, 16
      %v796 = vrot.slane %v794, 1
      %v797 = vsel %vm721, %v792, %v796
      %v799 = vsel %vm332, %v733, 0
      %v802 = vsel %vm332, %v741, 0
      %v805 = vsel %vm332, %v749, 0
      %v808 = vsel %vm332, %v757, 0
      %v811 = vsel %vm332, %v765, 0
      %v814 = vsel %vm332, %v773, 0
      %v817 = vsel %vm332, %v781, 0
      %v820 = vsel %vm332, %v789, 0
      %v823 = vsel %vm332, %v797, 0
      %v826 = vand.u32 %v672, %v363
      %828 = vmatprep.subr.bf16.mxu0 0
      %829 = vmatpush1.bf16.msra.mxu0 %v826
      %830 = vmatprep.subr.bf16.mxu0 0
      %831 = vmatpush1.bf16.msra.mxu0 0
      %832 = vmatprep.subr.bf16.mxu0 0
      %833 = vmatpush1.bf16.msra.mxu0 0
      %834 = vmatprep.subr.bf16.mxu0 0
      %835 = vmatpush1.bf16.msra.mxu0 0
      %836 = vmatprep.subr.bf16.mxu0 0
      %837 = vmatpush1.bf16.msra.mxu0 0
      %838 = vmatprep.subr.bf16.mxu0 0
      %839 = vmatpush1.bf16.msra.mxu0 0
      %840 = vmatprep.subr.bf16.mxu0 0
      %841 = vmatpush1.bf16.msra.mxu0 0
      %842 = vmatprep.subr.bf16.mxu0 0
      %843 = vmatpush1.bf16.msra.mxu0 0
      %844 = vmatprep.subr.bf16.mxu0 0
      %845 = vmatpush1.bf16.msra.mxu0 0
      %846 = vmatprep.subr.bf16.mxu0 0
      %847 = vmatpush1.bf16.msra.mxu0 0
      %848 = vmatprep.subr.bf16.mxu0 0
      %849 = vmatpush1.bf16.msra.mxu0 0
      %850 = vmatprep.subr.bf16.mxu0 0
      %851 = vmatpush1.bf16.msra.mxu0 0
      %852 = vmatprep.subr.bf16.mxu0 0
      %853 = vmatpush1.bf16.msra.mxu0 0
      %854 = vmatprep.subr.bf16.mxu0 0
      %855 = vmatpush1.bf16.msra.mxu0 0
      %856 = vmatprep.subr.bf16.mxu0 0
      %857 = vmatpush1.bf16.msra.mxu0 0
      %858 = vmatprep.subr.bf16.mxu0 0
      %859 = vmatpush1.bf16.msra.mxu0 0
      %860 = vmatprep.mubr.bf16.mxu0 0
      %861 = vmatmul.mubr.bf16.gmra.mrb[0].mxu0 %v799
      %v862 = vpop.f32.mrb[0].mxu0
      %v863 = vadd.f32 0.0, %v862
      %v864 = vpop.f32.mrb[0].mxu0
      %v865 = vpop.f32.mrb[0].mxu0
      %v866 = vadd.f32 0.0, %v865
      %v867 = vpop.f32.mrb[0].mxu0
      %868 = vmatprep.mubr.bf16.mxu0 0
      %869 = vmatmul.mubr.bf16.gmra.mrb[0].mxu0 %v802
      %v870 = vpop.f32.mrb[0].mxu0
      %v871 = vadd.f32 0.0, %v870
      %v872 = vpop.f32.mrb[0].mxu0
      %v873 = vpop.f32.mrb[0].mxu0
      %v874 = vadd.f32 0.0, %v873
      %v875 = vpop.f32.mrb[0].mxu0
      %876 = vmatprep.mubr.bf16.mxu0 0
      %877 = vmatmul.mubr.bf16.gmra.mrb[0].mxu0 %v805
      %v878 = vpop.f32.mrb[0].mxu0
      %v879 = vadd.f32 0.0, %v878
      %v880 = vpop.f32.mrb[0].mxu0
      %v881 = vpop.f32.mrb[0].mxu0
      %v882 = vadd.f32 0.0, %v881
      %v883 = vpop.f32.mrb[0].mxu0
      %884 = vmatprep.mubr.bf16.mxu0 0
      %885 = vmatmul.mubr.bf16.gmra.mrb[0].mxu0 %v808
      %v886 = vpop.f32.mrb[0].mxu0
      %v887 = vadd.f32 0.0, %v886
      %v888 = vpop.f32.mrb[0].mxu0
      %v889 = vpop.f32.mrb[0].mxu0
      %v890 = vadd.f32 0.0, %v889
      %v891 = vpop.f32.mrb[0].mxu0
      %892 = vmatprep.mubr.bf16.mxu0 0
      %893 = vmatmul.mubr.bf16.gmra.mrb[0].mxu0 %v811
      %v894 = vpop.f32.mrb[0].mxu0
      %v895 = vadd.f32 0.0, %v894
      %v896 = vpop.f32.mrb[0].mxu0
      %v897 = vpop.f32.mrb[0].mxu0
      %v898 = vadd.f32 0.0, %v897
      %v899 = vpop.f32.mrb[0].mxu0
      %900 = vmatprep.mubr.bf16.mxu0 0
      %901 = vmatmul.mubr.bf16.gmra.mrb[0].mxu0 %v814
      %v902 = vpop.f32.mrb[0].mxu0
      %v903 = vadd.f32 0.0, %v902
      %v904 = vpop.f32.mrb[0].mxu0
      %v905 = vpop.f32.mrb[0].mxu0
      %v906 = vadd.f32 0.0, %v905
      %v907 = vpop.f32.mrb[0].mxu0
      %908 = vmatprep.mubr.bf16.mxu0 0
      %909 = vmatmul.mubr.bf16.gmra.mrb[0].mxu0 %v817
      %v910 = vpop.f32.mrb[0].mxu0
      %v911 = vadd.f32 0.0, %v910
      %v912 = vpop.f32.mrb[0].mxu0
      %v913 = vpop.f32.mrb[0].mxu0
      %v914 = vadd.f32 0.0, %v913
      %v915 = vpop.f32.mrb[0].mxu0
      %916 = vmatprep.mubr.bf16.mxu0 0
      %917 = vmatmul.mubr.bf16.gmra.mrb[0].mxu0 %v820
      %v918 = vpop.f32.mrb[0].mxu0
      %v919 = vadd.f32 0.0, %v918
      %v920 = vpop.f32.mrb[0].mxu0
      %v921 = vpop.f32.mrb[0].mxu0
      %v922 = vadd.f32 0.0, %v921
      %v923 = vpop.f32.mrb[0].mxu0
      %924 = vmatprep.mubr.bf16.mxu0 0
      %925 = vmatmul.mubr.bf16.gmra.mrb[0].mxu0 %v823
      %v926 = vpop.f32.mrb[0].mxu0
      %v927 = vadd.f32 0.0, %v926
      %v928 = vpop.f32.mrb[0].mxu0
      %v929 = vpop.f32.mrb[0].mxu0
      %v930 = vadd.f32 0.0, %v929
      %v931 = vpop.f32.mrb[0].mxu0
      %932 = vdwg.mxu0
      %v933 = vadd.f32 %v582, %v863
      %v934 = vadd.f32 %v585, %v866
      %v935 = vadd.f32 %v590, %v871
      %v936 = vadd.f32 %v593, %v874
      %v937 = vadd.f32 %v598, %v879
      %v938 = vadd.f32 %v601, %v882
      %v939 = vadd.f32 %v606, %v887
      %v940 = vadd.f32 %v609, %v890
      %v941 = vadd.f32 %v614, %v895
      %v942 = vadd.f32 %v617, %v898
      %v943 = vadd.f32 %v622, %v903
      %v944 = vadd.f32 %v625, %v906
      %v945 = vadd.f32 %v630, %v911
      %v946 = vadd.f32 %v633, %v914
      %v947 = vadd.f32 %v638, %v919
      %v948 = vadd.f32 %v641, %v922
      %v949 = vadd.f32 %v646, %v927
      %v950 = vadd.f32 %v649, %v930
      %v951 = vld [vmem:[%s234 + $0x4] sm:$0xf]
      %v952 = vld [vmem:[%s234 + $0x8] sm:$0xf]
      %v953 = vld [vmem:[%s234 + $0xc] sm:$0xf]
      %v954 = vld [vmem:[%s234 + $0x10] sm:$0xf]
      %v955 = vld [vmem:[%s234 + $0x14] sm:$0xf]
      %v956 = vld [vmem:[%s234 + $0x18] sm:$0xf]
      %v957 = vld [vmem:[%s234 + $0x1c] sm:$0xf]
      %v958 = vld [vmem:[%s234 + $0x20] sm:$0xf]
      %v959 = vld [vmem:[%s234 + $0x24] sm:$0xf]
      %v960 = vld [vmem:[%s234 + $0x28] sm:$0xf]
      %v961 = vld [vmem:[%s234 + $0x2c] sm:$0xf]
      %v962 = vld [vmem:[%s234 + $0x30] sm:$0xf]
      %v963 = vld [vmem:[%s234 + $0x34] sm:$0xf]
      %v964 = vld [vmem:[%s234 + $0x38] sm:$0xf]
      %v965 = vld [vmem:[%s234 + $0x3c] sm:$0xf]
      %v966 = vld [vmem:[%s234 + $0x40] sm:$0xf]
      %v967 = vld [vmem:[%s234 + $0x44] sm:$0xf]
      %v968 = vld [vmem:[%s234 + $0x48] sm:$0xf]
      %v969 = vld [vmem:[%s234 + $0x4c] sm:$0x1]
      %s970 = scalar_lea.vmem %s2, 6
      %v971 = vld [vmem:[%s970] sm:$0x3]
      %v991 = vunpack.c.l.b16 %v951
      %v992 = vunpack.c.l.b16 %v952
      %v993 = vunpack.c.l.b16 %v953
      %v994 = vunpack.c.l.b16 %v954
      %v995 = vunpack.c.l.b16 %v955
      %v996 = vunpack.c.l.b16 %v956
      %v997 = vunpack.c.l.b16 %v957
      %v998 = vunpack.c.l.b16 %v958
      %v999 = vunpack.c.l.b16 %v959
      %v1000 = vunpack.c.l.b16 %v960
      %v1001 = vunpack.c.l.b16 %v961
      %v1002 = vunpack.c.l.b16 %v962
      %v1003 = vunpack.c.l.b16 %v963
      %v1004 = vunpack.c.l.b16 %v964
      %v1005 = vunpack.c.l.b16 %v965
      %v1006 = vunpack.c.l.b16 %v966
      %v1007 = vunpack.c.l.b16 %v967
      %v1008 = vunpack.c.l.b16 %v968
      %v1009 = vunpack.c.l.b16 %v969
      %v1010 = vpack.c.b16 %v992, %v991
      %v1011 = vpack.c.b16 %v994, %v993
      %v1012 = vpack.c.b16 %v996, %v995
      %v1013 = vpack.c.b16 %v998, %v997
      %v1014 = vpack.c.b16 %v1000, %v999
      %v1015 = vpack.c.b16 %v1002, %v1001
      %v1016 = vpack.c.b16 %v1004, %v1003
      %v1017 = vpack.c.b16 %v1006, %v1005
      %v1018 = vpack.c.b16 %v1008, %v1007
      %v1019 = vpack.c.b16 %v1009, %v1009
      %v1021 = vshrl.u32 %v1010, 16
      %v1023 = vshll.u32 %v1010, 16
      %v1025 = vrot.slane %v1023, 1
      %v1026 = vor.u32 %v1021, %v1025
      %v1028 = vshll.u32 %v1011, 16
      %v1030 = vrot.slane %v1028, 1
      %v1031 = vsel %vm721, %v1026, %v1030
      %v1032 = vshrl.u32 %v1011, 16
      %v1034 = vor.u32 %v1032, %v1030
      %v1036 = vshll.u32 %v1012, 16
      %v1038 = vrot.slane %v1036, 1
      %v1039 = vsel %vm721, %v1034, %v1038
      %v1040 = vshrl.u32 %v1012, 16
      %v1042 = vor.u32 %v1040, %v1038
      %v1044 = vshll.u32 %v1013, 16
      %v1046 = vrot.slane %v1044, 1
      %v1047 = vsel %vm721, %v1042, %v1046
      %v1048 = vshrl.u32 %v1013, 16
      %v1050 = vor.u32 %v1048, %v1046
      %v1052 = vshll.u32 %v1014, 16
      %v1054 = vrot.slane %v1052, 1
      %v1055 = vsel %vm721, %v1050, %v1054
      %v1056 = vshrl.u32 %v1014, 16
      %v1058 = vor.u32 %v1056, %v1054
      %v1060 = vshll.u32 %v1015, 16
      %v1062 = vrot.slane %v1060, 1
      %v1063 = vsel %vm721, %v1058, %v1062
      %v1064 = vshrl.u32 %v1015, 16
      %v1066 = vor.u32 %v1064, %v1062
      %v1068 = vshll.u32 %v1016, 16
      %v1070 = vrot.slane %v1068, 1
      %v1071 = vsel %vm721, %v1066, %v1070
      %v1072 = vshrl.u32 %v1016, 16
      %v1074 = vor.u32 %v1072, %v1070
      %v1076 = vshll.u32 %v1017, 16
      %v1078 = vrot.slane %v1076, 1
      %v1079 = vsel %vm721, %v1074, %v1078
      %v1080 = vshrl.u32 %v1017, 16
      %v1082 = vor.u32 %v1080, %v1078
      %v1084 = vshll.u32 %v1018, 16
      %v1086 = vrot.slane %v1084, 1
      %v1087 = vsel %vm721, %v1082, %v1086
      %v1088 = vshrl.u32 %v1018, 16
      %v1090 = vor.u32 %v1088, %v1086
      %v1092 = vshll.u32 %v1019, 16
      %v1094 = vrot.slane %v1092, 1
      %v1095 = vsel %vm721, %v1090, %v1094
      %v1097 = vsel %vm332, %v1031, 0
      %v1100 = vsel %vm332, %v1039, 0
      %v1103 = vsel %vm332, %v1047, 0
      %v1106 = vsel %vm332, %v1055, 0
      %v1109 = vsel %vm332, %v1063, 0
      %v1112 = vsel %vm332, %v1071, 0
      %v1115 = vsel %vm332, %v1079, 0
      %v1118 = vsel %vm332, %v1087, 0
      %v1121 = vsel %vm332, %v1095, 0
      %v1124 = vand.u32 %v971, %v363
      %1126 = vmatprep.subr.bf16.mxu0 0
      %1127 = vmatpush1.bf16.msra.mxu0 %v1124
      %1128 = vmatprep.subr.bf16.mxu0 0
      %1129 = vmatpush1.bf16.msra.mxu0 0
      %1130 = vmatprep.subr.bf16.mxu0 0
      %1131 = vmatpush1.bf16.msra.mxu0 0
      %1132 = vmatprep.subr.bf16.mxu0 0
      %1133 = vmatpush1.bf16.msra.mxu0 0
      %1134 = vmatprep.subr.bf16.mxu0 0
      %1135 = vmatpush1.bf16.msra.mxu0 0
      %1136 = vmatprep.subr.bf16.mxu0 0
      %1137 = vmatpush1.bf16.msra.mxu0 0
      %1138 = vmatprep.subr.bf16.mxu0 0
      %1139 = vmatpush1.bf16.msra.mxu0 0
      %1140 = vmatprep.subr.bf16.mxu0 0
      %1141 = vmatpush1.bf16.msra.mxu0 0
      %1142 = vmatprep.subr.bf16.mxu0 0
      %1143 = vmatpush1.bf16.msra.mxu0 0
      %1144 = vmatprep.subr.bf16.mxu0 0
      %1145 = vmatpush1.bf16.msra.mxu0 0
      %1146 = vmatprep.subr.bf16.mxu0 0
      %1147 = vmatpush1.bf16.msra.mxu0 0
      %1148 = vmatprep.subr.bf16.mxu0 0
      %1149 = vmatpush1.bf16.msra.mxu0 0
      %1150 = vmatprep.subr.bf16.mxu0 0
      %1151 = vmatpush1.bf16.msra.mxu0 0
      %1152 = vmatprep.subr.bf16.mxu0 0
      %1153 = vmatpush1.bf16.msra.mxu0 0
      %1154 = vmatprep.subr.bf16.mxu0 0
      %1155 = vmatpush1.bf16.msra.mxu0 0
      %1156 = vmatprep.subr.bf16.mxu0 0
      %1157 = vmatpush1.bf16.msra.mxu0 0
      %1158 = vmatprep.mubr.bf16.mxu0 0
      %1159 = vmatmul.mubr.bf16.gmra.mrb[0].mxu0 %v1097
      %v1160 = vpop.f32.mrb[0].mxu0
      %v1161 = vadd.f32 0.0, %v1160
      %v1162 = vpop.f32.mrb[0].mxu0
      %v1163 = vpop.f32.mrb[0].mxu0
      %v1164 = vadd.f32 0.0, %v1163
      %v1165 = vpop.f32.mrb[0].mxu0
      %1166 = vmatprep.mubr.bf16.mxu0 0
      %1167 = vmatmul.mubr.bf16.gmra.mrb[0].mxu0 %v1100
      %v1168 = vpop.f32.mrb[0].mxu0
      %v1169 = vadd.f32 0.0, %v1168
      %v1170 = vpop.f32.mrb[0].mxu0
      %v1171 = vpop.f32.mrb[0].mxu0
      %v1172 = vadd.f32 0.0, %v1171
      %v1173 = vpop.f32.mrb[0].mxu0
      %1174 = vmatprep.mubr.bf16.mxu0 0
      %1175 = vmatmul.mubr.bf16.gmra.mrb[0].mxu0 %v1103
      %v1176 = vpop.f32.mrb[0].mxu0
      %v1177 = vadd.f32 0.0, %v1176
      %v1178 = vpop.f32.mrb[0].mxu0
      %v1179 = vpop.f32.mrb[0].mxu0
      %v1180 = vadd.f32 0.0, %v1179
      %v1181 = vpop.f32.mrb[0].mxu0
      %1182 = vmatprep.mubr.bf16.mxu0 0
      %1183 = vmatmul.mubr.bf16.gmra.mrb[0].mxu0 %v1106
      %v1184 = vpop.f32.mrb[0].mxu0
      %v1185 = vadd.f32 0.0, %v1184
      %v1186 = vpop.f32.mrb[0].mxu0
      %v1187 = vpop.f32.mrb[0].mxu0
      %v1188 = vadd.f32 0.0, %v1187
      %v1189 = vpop.f32.mrb[0].mxu0
      %1190 = vmatprep.mubr.bf16.mxu0 0
      %1191 = vmatmul.mubr.bf16.gmra.mrb[0].mxu0 %v1109
      %v1192 = vpop.f32.mrb[0].mxu0
      %v1193 = vadd.f32 0.0, %v1192
      %v1194 = vpop.f32.mrb[0].mxu0
      %v1195 = vpop.f32.mrb[0].mxu0
      %v1196 = vadd.f32 0.0, %v1195
      %v1197 = vpop.f32.mrb[0].mxu0
      %1198 = vmatprep.mubr.bf16.mxu0 0
      %1199 = vmatmul.mubr.bf16.gmra.mrb[0].mxu0 %v1112
      %v1200 = vpop.f32.mrb[0].mxu0
      %v1201 = vadd.f32 0.0, %v1200
      %v1202 = vpop.f32.mrb[0].mxu0
      %v1203 = vpop.f32.mrb[0].mxu0
      %v1204 = vadd.f32 0.0, %v1203
      %v1205 = vpop.f32.mrb[0].mxu0
      %1206 = vmatprep.mubr.bf16.mxu0 0
      %1207 = vmatmul.mubr.bf16.gmra.mrb[0].mxu0 %v1115
      %v1208 = vpop.f32.mrb[0].mxu0
      %v1209 = vadd.f32 0.0, %v1208
      %v1210 = vpop.f32.mrb[0].mxu0
      %v1211 = vpop.f32.mrb[0].mxu0
      %v1212 = vadd.f32 0.0, %v1211
      %v1213 = vpop.f32.mrb[0].mxu0
      %1214 = vmatprep.mubr.bf16.mxu0 0
      %1215 = vmatmul.mubr.bf16.gmra.mrb[0].mxu0 %v1118
      %v1216 = vpop.f32.mrb[0].mxu0
      %v1217 = vadd.f32 0.0, %v1216
      %v1218 = vpop.f32.mrb[0].mxu0
      %v1219 = vpop.f32.mrb[0].mxu0
      %v1220 = vadd.f32 0.0, %v1219
      %v1221 = vpop.f32.mrb[0].mxu0
      %1222 = vmatprep.mubr.bf16.mxu0 0
      %1223 = vmatmul.mubr.bf16.gmra.mrb[0].mxu0 %v1121
      %v1224 = vpop.f32.mrb[0].mxu0
      %v1225 = vadd.f32 0.0, %v1224
      %v1226 = vpop.f32.mrb[0].mxu0
      %v1227 = vpop.f32.mrb[0].mxu0
      %v1228 = vadd.f32 0.0, %v1227
      %v1229 = vpop.f32.mrb[0].mxu0
      %1230 = vdwg.mxu0
      %v1231 = vadd.f32 %v933, %v1161
      %v1232 = vadd.f32 %v934, %v1164
      %v1233 = vadd.f32 %v935, %v1169
      %v1234 = vadd.f32 %v936, %v1172
      %v1235 = vadd.f32 %v937, %v1177
      %v1236 = vadd.f32 %v938, %v1180
      %v1237 = vadd.f32 %v939, %v1185
      %v1238 = vadd.f32 %v940, %v1188
      %v1239 = vadd.f32 %v941, %v1193
      %v1240 = vadd.f32 %v942, %v1196
      %v1241 = vadd.f32 %v943, %v1201
      %v1242 = vadd.f32 %v944, %v1204
      %v1243 = vadd.f32 %v945, %v1209
      %v1244 = vadd.f32 %v946, %v1212
      %v1245 = vadd.f32 %v947, %v1217
      %v1246 = vadd.f32 %v948, %v1220
      %v1247 = vadd.f32 %v949, %v1225
      %v1248 = vadd.f32 %v950, %v1228
      %v1249 = vld [vmem:[%s239 + $0x4] sm:$0xf]
      %v1250 = vld [vmem:[%s239 + $0x8] sm:$0xf]
      %v1251 = vld [vmem:[%s239 + $0xc] sm:$0xf]
      %v1252 = vld [vmem:[%s239 + $0x10] sm:$0xf]
      %v1253 = vld [vmem:[%s239 + $0x14] sm:$0xf]
      %v1254 = vld [vmem:[%s239 + $0x18] sm:$0xf]
      %v1255 = vld [vmem:[%s239 + $0x1c] sm:$0xf]
      %v1256 = vld [vmem:[%s239 + $0x20] sm:$0xf]
      %v1257 = vld [vmem:[%s239 + $0x24] sm:$0xf]
      %v1258 = vld [vmem:[%s239 + $0x28] sm:$0xf]
      %v1259 = vld [vmem:[%s239 + $0x2c] sm:$0xf]
      %v1260 = vld [vmem:[%s239 + $0x30] sm:$0xf]
      %v1261 = vld [vmem:[%s239 + $0x34] sm:$0xf]
      %v1262 = vld [vmem:[%s239 + $0x38] sm:$0xf]
      %v1263 = vld [vmem:[%s239 + $0x3c] sm:$0xf]
      %v1264 = vld [vmem:[%s239 + $0x40] sm:$0xf]
      %v1265 = vld [vmem:[%s239 + $0x44] sm:$0xf]
      %v1266 = vld [vmem:[%s239 + $0x48] sm:$0xf]
      %v1267 = vld [vmem:[%s239 + $0x4c] sm:$0x1]
      %s1268 = scalar_lea.vmem %s2, 8
      %v1269 = vld [vmem:[%s1268] sm:$0x3]
      %v1289 = vunpack.c.l.b16 %v1249
      %v1290 = vunpack.c.l.b16 %v1250
      %v1291 = vunpack.c.l.b16 %v1251
      %v1292 = vunpack.c.l.b16 %v1252
      %v1293 = vunpack.c.l.b16 %v1253
      %v1294 = vunpack.c.l.b16 %v1254
      %v1295 = vunpack.c.l.b16 %v1255
      %v1296 = vunpack.c.l.b16 %v1256
      %v1297 = vunpack.c.l.b16 %v1257
      %v1298 = vunpack.c.l.b16 %v1258
      %v1299 = vunpack.c.l.b16 %v1259
      %v1300 = vunpack.c.l.b16 %v1260
      %v1301 = vunpack.c.l.b16 %v1261
      %v1302 = vunpack.c.l.b16 %v1262
      %v1303 = vunpack.c.l.b16 %v1263
      %v1304 = vunpack.c.l.b16 %v1264
      %v1305 = vunpack.c.l.b16 %v1265
      %v1306 = vunpack.c.l.b16 %v1266
      %v1307 = vunpack.c.l.b16 %v1267
      %v1308 = vpack.c.b16 %v1290, %v1289
      %v1309 = vpack.c.b16 %v1292, %v1291
      %v1310 = vpack.c.b16 %v1294, %v1293
      %v1311 = vpack.c.b16 %v1296, %v1295
      %v1312 = vpack.c.b16 %v1298, %v1297
      %v1313 = vpack.c.b16 %v1300, %v1299
      %v1314 = vpack.c.b16 %v1302, %v1301
      %v1315 = vpack.c.b16 %v1304, %v1303
      %v1316 = vpack.c.b16 %v1306, %v1305
      %v1317 = vpack.c.b16 %v1307, %v1307
      %v1319 = vshrl.u32 %v1308, 16
      %v1321 = vshll.u32 %v1308, 16
      %v1323 = vrot.slane %v1321, 1
      %v1324 = vor.u32 %v1319, %v1323
      %v1326 = vshll.u32 %v1309, 16
      %v1328 = vrot.slane %v1326, 1
      %v1329 = vsel %vm721, %v1324, %v1328
      %v1330 = vshrl.u32 %v1309, 16
      %v1332 = vor.u32 %v1330, %v1328
      %v1334 = vshll.u32 %v1310, 16
      %v1336 = vrot.slane %v1334, 1
      %v1337 = vsel %vm721, %v1332, %v1336
      %v1338 = vshrl.u32 %v1310, 16
      %v1340 = vor.u32 %v1338, %v1336
      %v1342 = vshll.u32 %v1311, 16
      %v1344 = vrot.slane %v1342, 1
      %v1345 = vsel %vm721, %v1340, %v1344
      %v1346 = vshrl.u32 %v1311, 16
      %v1348 = vor.u32 %v1346, %v1344
      %v1350 = vshll.u32 %v1312, 16
      %v1352 = vrot.slane %v1350, 1
      %v1353 = vsel %vm721, %v1348, %v1352
      %v1354 = vshrl.u32 %v1312, 16
      %v1356 = vor.u32 %v1354, %v1352
      %v1358 = vshll.u32 %v1313, 16
      %v1360 = vrot.slane %v1358, 1
      %v1361 = vsel %vm721, %v1356, %v1360
      %v1362 = vshrl.u32 %v1313, 16
      %v1364 = vor.u32 %v1362, %v1360
      %v1366 = vshll.u32 %v1314, 16
      %v1368 = vrot.slane %v1366, 1
      %v1369 = vsel %vm721, %v1364, %v1368
      %v1370 = vshrl.u32 %v1314, 16
      %v1372 = vor.u32 %v1370, %v1368
      %v1374 = vshll.u32 %v1315, 16
      %v1376 = vrot.slane %v1374, 1
      %v1377 = vsel %vm721, %v1372, %v1376
      %v1378 = vshrl.u32 %v1315, 16
      %v1380 = vor.u32 %v1378, %v1376
      %v1382 = vshll.u32 %v1316, 16
      %v1384 = vrot.slane %v1382, 1
      %v1385 = vsel %vm721, %v1380, %v1384
      %v1386 = vshrl.u32 %v1316, 16
      %v1388 = vor.u32 %v1386, %v1384
      %v1390 = vshll.u32 %v1317, 16
      %v1392 = vrot.slane %v1390, 1
      %v1393 = vsel %vm721, %v1388, %v1392
      %v1395 = vsel %vm332, %v1329, 0
      %v1398 = vsel %vm332, %v1337, 0
      %v1401 = vsel %vm332, %v1345, 0
      %v1404 = vsel %vm332, %v1353, 0
      %v1407 = vsel %vm332, %v1361, 0
      %v1410 = vsel %vm332, %v1369, 0
      %v1413 = vsel %vm332, %v1377, 0
      %v1416 = vsel %vm332, %v1385, 0
      %v1419 = vsel %vm332, %v1393, 0
      %v1422 = vand.u32 %v1269, %v363
      %1424 = vmatprep.subr.bf16.mxu0 0
      %1425 = vmatpush1.bf16.msra.mxu0 %v1422
      %1426 = vmatprep.subr.bf16.mxu0 0
      %1427 = vmatpush1.bf16.msra.mxu0 0
      %1428 = vmatprep.subr.bf16.mxu0 0
      %1429 = vmatpush1.bf16.msra.mxu0 0
      %1430 = vmatprep.subr.bf16.mxu0 0
      %1431 = vmatpush1.bf16.msra.mxu0 0
      %1432 = vmatprep.subr.bf16.mxu0 0
      %1433 = vmatpush1.bf16.msra.mxu0 0
      %1434 = vmatprep.subr.bf16.mxu0 0
      %1435 = vmatpush1.bf16.msra.mxu0 0
      %1436 = vmatprep.subr.bf16.mxu0 0
      %1437 = vmatpush1.bf16.msra.mxu0 0
      %1438 = vmatprep.subr.bf16.mxu0 0
      %1439 = vmatpush1.bf16.msra.mxu0 0
      %1440 = vmatprep.subr.bf16.mxu0 0
      %1441 = vmatpush1.bf16.msra.mxu0 0
      %1442 = vmatprep.subr.bf16.mxu0 0
      %1443 = vmatpush1.bf16.msra.mxu0 0
      %1444 = vmatprep.subr.bf16.mxu0 0
      %1445 = vmatpush1.bf16.msra.mxu0 0
      %1446 = vmatprep.subr.bf16.mxu0 0
      %1447 = vmatpush1.bf16.msra.mxu0 0
      %1448 = vmatprep.subr.bf16.mxu0 0
      %1449 = vmatpush1.bf16.msra.mxu0 0
      %1450 = vmatprep.subr.bf16.mxu0 0
      %1451 = vmatpush1.bf16.msra.mxu0 0
      %1452 = vmatprep.subr.bf16.mxu0 0
      %1453 = vmatpush1.bf16.msra.mxu0 0
      %1454 = vmatprep.subr.bf16.mxu0 0
      %1455 = vmatpush1.bf16.msra.mxu0 0
      %1456 = vmatprep.mubr.bf16.mxu0 0
      %1457 = vmatmul.mubr.bf16.gmra.mrb[0].mxu0 %v1395
      %v1458 = vpop.f32.mrb[0].mxu0
      %v1459 = vadd.f32 0.0, %v1458
      %v1460 = vpop.f32.mrb[0].mxu0
      %v1461 = vpop.f32.mrb[0].mxu0
      %v1462 = vadd.f32 0.0, %v1461
      %v1463 = vpop.f32.mrb[0].mxu0
      %1464 = vmatprep.mubr.bf16.mxu0 0
      %1465 = vmatmul.mubr.bf16.gmra.mrb[0].mxu0 %v1398
      %v1466 = vpop.f32.mrb[0].mxu0
      %v1467 = vadd.f32 0.0, %v1466
      %v1468 = vpop.f32.mrb[0].mxu0
      %v1469 = vpop.f32.mrb[0].mxu0
      %v1470 = vadd.f32 0.0, %v1469
      %v1471 = vpop.f32.mrb[0].mxu0
      %1472 = vmatprep.mubr.bf16.mxu0 0
      %1473 = vmatmul.mubr.bf16.gmra.mrb[0].mxu0 %v1401
      %v1474 = vpop.f32.mrb[0].mxu0
      %v1475 = vadd.f32 0.0, %v1474
      %v1476 = vpop.f32.mrb[0].mxu0
      %v1477 = vpop.f32.mrb[0].mxu0
      %v1478 = vadd.f32 0.0, %v1477
      %v1479 = vpop.f32.mrb[0].mxu0
      %1480 = vmatprep.mubr.bf16.mxu0 0
      %1481 = vmatmul.mubr.bf16.gmra.mrb[0].mxu0 %v1404
      %v1482 = vpop.f32.mrb[0].mxu0
      %v1483 = vadd.f32 0.0, %v1482
      %v1484 = vpop.f32.mrb[0].mxu0
      %v1485 = vpop.f32.mrb[0].mxu0
      %v1486 = vadd.f32 0.0, %v1485
      %v1487 = vpop.f32.mrb[0].mxu0
      %1488 = vmatprep.mubr.bf16.mxu0 0
      %1489 = vmatmul.mubr.bf16.gmra.mrb[0].mxu0 %v1407
      %v1490 = vpop.f32.mrb[0].mxu0
      %v1491 = vadd.f32 0.0, %v1490
      %v1492 = vpop.f32.mrb[0].mxu0
      %v1493 = vpop.f32.mrb[0].mxu0
      %v1494 = vadd.f32 0.0, %v1493
      %v1495 = vpop.f32.mrb[0].mxu0
      %1496 = vmatprep.mubr.bf16.mxu0 0
      %1497 = vmatmul.mubr.bf16.gmra.mrb[0].mxu0 %v1410
      %v1498 = vpop.f32.mrb[0].mxu0
      %v1499 = vadd.f32 0.0, %v1498
      %v1500 = vpop.f32.mrb[0].mxu0
      %v1501 = vpop.f32.mrb[0].mxu0
      %v1502 = vadd.f32 0.0, %v1501
      %v1503 = vpop.f32.mrb[0].mxu0
      %1504 = vmatprep.mubr.bf16.mxu0 0
      %1505 = vmatmul.mubr.bf16.gmra.mrb[0].mxu0 %v1413
      %v1506 = vpop.f32.mrb[0].mxu0
      %v1507 = vadd.f32 0.0, %v1506
      %v1508 = vpop.f32.mrb[0].mxu0
      %v1509 = vpop.f32.mrb[0].mxu0
      %v1510 = vadd.f32 0.0, %v1509
      %v1511 = vpop.f32.mrb[0].mxu0
      %1512 = vmatprep.mubr.bf16.mxu0 0
      %1513 = vmatmul.mubr.bf16.gmra.mrb[0].mxu0 %v1416
      %v1514 = vpop.f32.mrb[0].mxu0
      %v1515 = vadd.f32 0.0, %v1514
      %v1516 = vpop.f32.mrb[0].mxu0
      %v1517 = vpop.f32.mrb[0].mxu0
      %v1518 = vadd.f32 0.0, %v1517
      %v1519 = vpop.f32.mrb[0].mxu0
      %1520 = vmatprep.mubr.bf16.mxu0 0
      %1521 = vmatmul.mubr.bf16.gmra.mrb[0].mxu0 %v1419
      %v1522 = vpop.f32.mrb[0].mxu0
      %v1523 = vadd.f32 0.0, %v1522
      %v1524 = vpop.f32.mrb[0].mxu0
      %v1525 = vpop.f32.mrb[0].mxu0
      %v1526 = vadd.f32 0.0, %v1525
      %v1527 = vpop.f32.mrb[0].mxu0
      %1528 = vdwg.mxu0
      %v1529 = vadd.f32 %v1231, %v1459
      %v1530 = vadd.f32 %v1232, %v1462
      %v1531 = vadd.f32 %v1233, %v1467
      %v1532 = vadd.f32 %v1234, %v1470
      %v1533 = vadd.f32 %v1235, %v1475
      %v1534 = vadd.f32 %v1236, %v1478
      %v1535 = vadd.f32 %v1237, %v1483
      %v1536 = vadd.f32 %v1238, %v1486
      %v1537 = vadd.f32 %v1239, %v1491
      %v1538 = vadd.f32 %v1240, %v1494
      %v1539 = vadd.f32 %v1241, %v1499
      %v1540 = vadd.f32 %v1242, %v1502
      %v1541 = vadd.f32 %v1243, %v1507
      %v1542 = vadd.f32 %v1244, %v1510
      %v1543 = vadd.f32 %v1245, %v1515
      %v1544 = vadd.f32 %v1246, %v1518
      %v1545 = vadd.f32 %v1247, %v1523
      %v1546 = vadd.f32 %v1248, %v1526
      %v1547 = vld [vmem:[%s234 + $0x4] sm:$0xe]
      %s1548 = scalar_lea.vmem %s2, 10
      %v1549 = vld [vmem:[%s1548] sm:$0x3]
      %v1551 = vunpack.c.l.b16 %v1547
      %v1552 = vpack.c.b16 %v992, %v1551
      %vm1553 = vcmask 1046528
      %v1554 = vrot.slane %v1552, 1
      %v1555 = vrot.slane %v1011, 1
      %v1556 = vsel %vm1553, %v1554, %v1555
      %v1557 = vrot.slane %v1012, 1
      %v1558 = vsel %vm1553, %v1555, %v1557
      %v1559 = vrot.slane %v1013, 1
      %v1560 = vsel %vm1553, %v1557, %v1559
      %v1561 = vrot.slane %v1014, 1
      %v1562 = vsel %vm1553, %v1559, %v1561
      %v1563 = vrot.slane %v1015, 1
      %v1564 = vsel %vm1553, %v1561, %v1563
      %v1565 = vrot.slane %v1016, 1
      %v1566 = vsel %vm1553, %v1563, %v1565
      %v1567 = vrot.slane %v1017, 1
      %v1568 = vsel %vm1553, %v1565, %v1567
      %v1569 = vrot.slane %v1018, 1
      %v1570 = vsel %vm1553, %v1567, %v1569
      %v1571 = vrot.slane %v1019, 1
      %v1572 = vsel %vm1553, %v1569, %v1571
      %v1574 = vsel %vm332, %v1556, 0
      %v1577 = vsel %vm332, %v1558, 0
      %v1580 = vsel %vm332, %v1560, 0
      %v1583 = vsel %vm332, %v1562, 0
      %v1586 = vsel %vm332, %v1564, 0
      %v1589 = vsel %vm332, %v1566, 0
      %v1592 = vsel %vm332, %v1568, 0
      %v1595 = vsel %vm332, %v1570, 0
      %v1598 = vsel %vm332, %v1572, 0
      %v1601 = vand.u32 %v1549, %v363
      %1603 = vmatprep.subr.bf16.mxu0 0
      %1604 = vmatpush1.bf16.msra.mxu0 %v1601
      %1605 = vmatprep.subr.bf16.mxu0 0
      %1606 = vmatpush1.bf16.msra.mxu0 0
      %1607 = vmatprep.subr.bf16.mxu0 0
      %1608 = vmatpush1.bf16.msra.mxu0 0
      %1609 = vmatprep.subr.bf16.mxu0 0
      %1610 = vmatpush1.bf16.msra.mxu0 0
      %1611 = vmatprep.subr.bf16.mxu0 0
      %1612 = vmatpush1.bf16.msra.mxu0 0
      %1613 = vmatprep.subr.bf16.mxu0 0
      %1614 = vmatpush1.bf16.msra.mxu0 0
      %1615 = vmatprep.subr.bf16.mxu0 0
      %1616 = vmatpush1.bf16.msra.mxu0 0
      %1617 = vmatprep.subr.bf16.mxu0 0
      %1618 = vmatpush1.bf16.msra.mxu0 0
      %1619 = vmatprep.subr.bf16.mxu0 0
      %1620 = vmatpush1.bf16.msra.mxu0 0
      %1621 = vmatprep.subr.bf16.mxu0 0
      %1622 = vmatpush1.bf16.msra.mxu0 0
      %1623 = vmatprep.subr.bf16.mxu0 0
      %1624 = vmatpush1.bf16.msra.mxu0 0
      %1625 = vmatprep.subr.bf16.mxu0 0
      %1626 = vmatpush1.bf16.msra.mxu0 0
      %1627 = vmatprep.subr.bf16.mxu0 0
      %1628 = vmatpush1.bf16.msra.mxu0 0
      %1629 = vmatprep.subr.bf16.mxu0 0
      %1630 = vmatpush1.bf16.msra.mxu0 0
      %1631 = vmatprep.subr.bf16.mxu0 0
      %1632 = vmatpush1.bf16.msra.mxu0 0
      %1633 = vmatprep.subr.bf16.mxu0 0
      %1634 = vmatpush1.bf16.msra.mxu0 0
      %1635 = vmatprep.mubr.bf16.mxu0 0
      %1636 = vmatmul.mubr.bf16.gmra.mrb[0].mxu0 %v1574
      %v1637 = vpop.f32.mrb[0].mxu0
      %v1638 = vadd.f32 0.0, %v1637
      %v1639 = vpop.f32.mrb[0].mxu0
      %v1640 = vpop.f32.mrb[0].mxu0
      %v1641 = vadd.f32 0.0, %v1640
      %v1642 = vpop.f32.mrb[0].mxu0
      %1643 = vmatprep.mubr.bf16.mxu0 0
      %1644 = vmatmul.mubr.bf16.gmra.mrb[0].mxu0 %v1577
      %v1645 = vpop.f32.mrb[0].mxu0
      %v1646 = vadd.f32 0.0, %v1645
      %v1647 = vpop.f32.mrb[0].mxu0
      %v1648 = vpop.f32.mrb[0].mxu0
      %v1649 = vadd.f32 0.0, %v1648
      %v1650 = vpop.f32.mrb[0].mxu0
      %1651 = vmatprep.mubr.bf16.mxu0 0
      %1652 = vmatmul.mubr.bf16.gmra.mrb[0].mxu0 %v1580
      %v1653 = vpop.f32.mrb[0].mxu0
      %v1654 = vadd.f32 0.0, %v1653
      %v1655 = vpop.f32.mrb[0].mxu0
      %v1656 = vpop.f32.mrb[0].mxu0
      %v1657 = vadd.f32 0.0, %v1656
      %v1658 = vpop.f32.mrb[0].mxu0
      %1659 = vmatprep.mubr.bf16.mxu0 0
      %1660 = vmatmul.mubr.bf16.gmra.mrb[0].mxu0 %v1583
      %v1661 = vpop.f32.mrb[0].mxu0
      %v1662 = vadd.f32 0.0, %v1661
      %v1663 = vpop.f32.mrb[0].mxu0
      %v1664 = vpop.f32.mrb[0].mxu0
      %v1665 = vadd.f32 0.0, %v1664
      %v1666 = vpop.f32.mrb[0].mxu0
      %1667 = vmatprep.mubr.bf16.mxu0 0
      %1668 = vmatmul.mubr.bf16.gmra.mrb[0].mxu0 %v1586
      %v1669 = vpop.f32.mrb[0].mxu0
      %v1670 = vadd.f32 0.0, %v1669
      %v1671 = vpop.f32.mrb[0].mxu0
      %v1672 = vpop.f32.mrb[0].mxu0
      %v1673 = vadd.f32 0.0, %v1672
      %v1674 = vpop.f32.mrb[0].mxu0
      %1675 = vmatprep.mubr.bf16.mxu0 0
      %1676 = vmatmul.mubr.bf16.gmra.mrb[0].mxu0 %v1589
      %v1677 = vpop.f32.mrb[0].mxu0
      %v1678 = vadd.f32 0.0, %v1677
      %v1679 = vpop.f32.mrb[0].mxu0
      %v1680 = vpop.f32.mrb[0].mxu0
      %v1681 = vadd.f32 0.0, %v1680
      %v1682 = vpop.f32.mrb[0].mxu0
      %1683 = vmatprep.mubr.bf16.mxu0 0
      %1684 = vmatmul.mubr.bf16.gmra.mrb[0].mxu0 %v1592
      %v1685 = vpop.f32.mrb[0].mxu0
      %v1686 = vadd.f32 0.0, %v1685
      %v1687 = vpop.f32.mrb[0].mxu0
      %v1688 = vpop.f32.mrb[0].mxu0
      %v1689 = vadd.f32 0.0, %v1688
      %v1690 = vpop.f32.mrb[0].mxu0
      %1691 = vmatprep.mubr.bf16.mxu0 0
      %1692 = vmatmul.mubr.bf16.gmra.mrb[0].mxu0 %v1595
      %v1693 = vpop.f32.mrb[0].mxu0
      %v1694 = vadd.f32 0.0, %v1693
      %v1695 = vpop.f32.mrb[0].mxu0
      %v1696 = vpop.f32.mrb[0].mxu0
      %v1697 = vadd.f32 0.0, %v1696
      %v1698 = vpop.f32.mrb[0].mxu0
      %1699 = vmatprep.mubr.bf16.mxu0 0
      %1700 = vmatmul.mubr.bf16.gmra.mrb[0].mxu0 %v1598
      %v1701 = vpop.f32.mrb[0].mxu0
      %v1702 = vadd.f32 0.0, %v1701
      %v1703 = vpop.f32.mrb[0].mxu0
      %v1704 = vpop.f32.mrb[0].mxu0
      %v1705 = vadd.f32 0.0, %v1704
      %v1706 = vpop.f32.mrb[0].mxu0
      %1707 = vdwg.mxu0
      %v1708 = vadd.f32 %v1529, %v1638
      %v1709 = vadd.f32 %v1530, %v1641
      %v1710 = vadd.f32 %v1531, %v1646
      %v1711 = vadd.f32 %v1532, %v1649
      %v1712 = vadd.f32 %v1533, %v1654
      %v1713 = vadd.f32 %v1534, %v1657
      %v1714 = vadd.f32 %v1535, %v1662
      %v1715 = vadd.f32 %v1536, %v1665
      %v1716 = vadd.f32 %v1537, %v1670
      %v1717 = vadd.f32 %v1538, %v1673
      %v1718 = vadd.f32 %v1539, %v1678
      %v1719 = vadd.f32 %v1540, %v1681
      %v1720 = vadd.f32 %v1541, %v1686
      %v1721 = vadd.f32 %v1542, %v1689
      %v1722 = vadd.f32 %v1543, %v1694
      %v1723 = vadd.f32 %v1544, %v1697
      %v1724 = vadd.f32 %v1545, %v1702
      %v1725 = vadd.f32 %v1546, %v1705
      %v1726 = vld [vmem:[%s234 + $0x8] sm:$0xe]
      %v1727 = vld [vmem:[%s234 + $0xc] sm:$0xf]
      %v1728 = vld [vmem:[%s234 + $0x10] sm:$0xf]
      %v1729 = vld [vmem:[%s234 + $0x14] sm:$0xf]
      %v1730 = vld [vmem:[%s234 + $0x18] sm:$0xf]
      %v1731 = vld [vmem:[%s234 + $0x1c] sm:$0xf]
      %v1732 = vld [vmem:[%s234 + $0x20] sm:$0xf]
      %v1733 = vld [vmem:[%s234 + $0x24] sm:$0xf]
      %v1734 = vld [vmem:[%s234 + $0x28] sm:$0xf]
      %v1735 = vld [vmem:[%s234 + $0x2c] sm:$0xf]
      %v1736 = vld [vmem:[%s234 + $0x30] sm:$0xf]
      %v1737 = vld [vmem:[%s234 + $0x34] sm:$0xf]
      %v1738 = vld [vmem:[%s234 + $0x38] sm:$0xf]
      %v1739 = vld [vmem:[%s234 + $0x3c] sm:$0xf]
      %v1740 = vld [vmem:[%s234 + $0x40] sm:$0xf]
      %v1741 = vld [vmem:[%s234 + $0x44] sm:$0xf]
      %v1742 = vld [vmem:[%s234 + $0x48] sm:$0xf]
      %v1743 = vld [vmem:[%s234 + $0x4c] sm:$0xf]
      %v1744 = vld [vmem:[%s234 + $0x50] sm:$0x1]
      %s1745 = scalar_lea.vmem %s2, 12
      %v1746 = vld [vmem:[%s1745] sm:$0x3]
      %v1766 = vunpack.c.l.b16 %v1726
      %v1767 = vunpack.c.l.b16 %v1727
      %v1768 = vunpack.c.l.b16 %v1728
      %v1769 = vunpack.c.l.b16 %v1729
      %v1770 = vunpack.c.l.b16 %v1730
      %v1771 = vunpack.c.l.b16 %v1731
      %v1772 = vunpack.c.l.b16 %v1732
      %v1773 = vunpack.c.l.b16 %v1733
      %v1774 = vunpack.c.l.b16 %v1734
      %v1775 = vunpack.c.l.b16 %v1735
      %v1776 = vunpack.c.l.b16 %v1736
      %v1777 = vunpack.c.l.b16 %v1737
      %v1778 = vunpack.c.l.b16 %v1738
      %v1779 = vunpack.c.l.b16 %v1739
      %v1780 = vunpack.c.l.b16 %v1740
      %v1781 = vunpack.c.l.b16 %v1741
      %v1782 = vunpack.c.l.b16 %v1742
      %v1783 = vunpack.c.l.b16 %v1743
      %v1784 = vunpack.c.l.b16 %v1744
      %v1785 = vpack.c.b16 %v1767, %v1766
      %v1786 = vpack.c.b16 %v1769, %v1768
      %v1787 = vpack.c.b16 %v1771, %v1770
      %v1788 = vpack.c.b16 %v1773, %v1772
      %v1789 = vpack.c.b16 %v1775, %v1774
      %v1790 = vpack.c.b16 %v1777, %v1776
      %v1791 = vpack.c.b16 %v1779, %v1778
      %v1792 = vpack.c.b16 %v1781, %v1780
      %v1793 = vpack.c.b16 %v1783, %v1782
      %v1794 = vpack.c.b16 %v1784, %v1784
      %v1795 = vrot.slane %v1785, 1
      %v1796 = vrot.slane %v1786, 1
      %v1797 = vsel %vm1553, %v1795, %v1796
      %v1798 = vrot.slane %v1787, 1
      %v1799 = vsel %vm1553, %v1796, %v1798
      %v1800 = vrot.slane %v1788, 1
      %v1801 = vsel %vm1553, %v1798, %v1800
      %v1802 = vrot.slane %v1789, 1
      %v1803 = vsel %vm1553, %v1800, %v1802
      %v1804 = vrot.slane %v1790, 1
      %v1805 = vsel %vm1553, %v1802, %v1804
      %v1806 = vrot.slane %v1791, 1
      %v1807 = vsel %vm1553, %v1804, %v1806
      %v1808 = vrot.slane %v1792, 1
      %v1809 = vsel %vm1553, %v1806, %v1808
      %v1810 = vrot.slane %v1793, 1
      %v1811 = vsel %vm1553, %v1808, %v1810
      %v1812 = vrot.slane %v1794, 1
      %v1813 = vsel %vm1553, %v1810, %v1812
      %v1815 = vsel %vm332, %v1797, 0
      %v1818 = vsel %vm332, %v1799, 0
      %v1821 = vsel %vm332, %v1801, 0
      %v1824 = vsel %vm332, %v1803, 0
      %v1827 = vsel %vm332, %v1805, 0
      %v1830 = vsel %vm332, %v1807, 0
      %v1833 = vsel %vm332, %v1809, 0
      %v1836 = vsel %vm332, %v1811, 0
      %v1839 = vsel %vm332, %v1813, 0
      %v1842 = vand.u32 %v1746, %v363
      %1844 = vmatprep.subr.bf16.mxu0 0
      %1845 = vmatpush1.bf16.msra.mxu0 %v1842
      %1846 = vmatprep.subr.bf16.mxu0 0
      %1847 = vmatpush1.bf16.msra.mxu0 0
      %1848 = vmatprep.subr.bf16.mxu0 0
      %1849 = vmatpush1.bf16.msra.mxu0 0
      %1850 = vmatprep.subr.bf16.mxu0 0
      %1851 = vmatpush1.bf16.msra.mxu0 0
      %1852 = vmatprep.subr.bf16.mxu0 0
      %1853 = vmatpush1.bf16.msra.mxu0 0
      %1854 = vmatprep.subr.bf16.mxu0 0
      %1855 = vmatpush1.bf16.msra.mxu0 0
      %1856 = vmatprep.subr.bf16.mxu0 0
      %1857 = vmatpush1.bf16.msra.mxu0 0
      %1858 = vmatprep.subr.bf16.mxu0 0
      %1859 = vmatpush1.bf16.msra.mxu0 0
      %1860 = vmatprep.subr.bf16.mxu0 0
      %1861 = vmatpush1.bf16.msra.mxu0 0
      %1862 = vmatprep.subr.bf16.mxu0 0
      %1863 = vmatpush1.bf16.msra.mxu0 0
      %1864 = vmatprep.subr.bf16.mxu0 0
      %1865 = vmatpush1.bf16.msra.mxu0 0
      %1866 = vmatprep.subr.bf16.mxu0 0
      %1867 = vmatpush1.bf16.msra.mxu0 0
      %1868 = vmatprep.subr.bf16.mxu0 0
      %1869 = vmatpush1.bf16.msra.mxu0 0
      %1870 = vmatprep.subr.bf16.mxu0 0
      %1871 = vmatpush1.bf16.msra.mxu0 0
      %1872 = vmatprep.subr.bf16.mxu0 0
      %1873 = vmatpush1.bf16.msra.mxu0 0
      %1874 = vmatprep.subr.bf16.mxu0 0
      %1875 = vmatpush1.bf16.msra.mxu0 0
      %1876 = vmatprep.mubr.bf16.mxu0 0
      %1877 = vmatmul.mubr.bf16.gmra.mrb[0].mxu0 %v1815
      %v1878 = vpop.f32.mrb[0].mxu0
      %v1879 = vadd.f32 0.0, %v1878
      %v1880 = vpop.f32.mrb[0].mxu0
      %v1881 = vpop.f32.mrb[0].mxu0
      %v1882 = vadd.f32 0.0, %v1881
      %v1883 = vpop.f32.mrb[0].mxu0
      %1884 = vmatprep.mubr.bf16.mxu0 0
      %1885 = vmatmul.mubr.bf16.gmra.mrb[0].mxu0 %v1818
      %v1886 = vpop.f32.mrb[0].mxu0
      %v1887 = vadd.f32 0.0, %v1886
      %v1888 = vpop.f32.mrb[0].mxu0
      %v1889 = vpop.f32.mrb[0].mxu0
      %v1890 = vadd.f32 0.0, %v1889
      %v1891 = vpop.f32.mrb[0].mxu0
      %1892 = vmatprep.mubr.bf16.mxu0 0
      %1893 = vmatmul.mubr.bf16.gmra.mrb[0].mxu0 %v1821
      %v1894 = vpop.f32.mrb[0].mxu0
      %v1895 = vadd.f32 0.0, %v1894
      %v1896 = vpop.f32.mrb[0].mxu0
      %v1897 = vpop.f32.mrb[0].mxu0
      %v1898 = vadd.f32 0.0, %v1897
      %v1899 = vpop.f32.mrb[0].mxu0
      %1900 = vmatprep.mubr.bf16.mxu0 0
      %1901 = vmatmul.mubr.bf16.gmra.mrb[0].mxu0 %v1824
      %v1902 = vpop.f32.mrb[0].mxu0
      %v1903 = vadd.f32 0.0, %v1902
      %v1904 = vpop.f32.mrb[0].mxu0
      %v1905 = vpop.f32.mrb[0].mxu0
      %v1906 = vadd.f32 0.0, %v1905
      %v1907 = vpop.f32.mrb[0].mxu0
      %1908 = vmatprep.mubr.bf16.mxu0 0
      %1909 = vmatmul.mubr.bf16.gmra.mrb[0].mxu0 %v1827
      %v1910 = vpop.f32.mrb[0].mxu0
      %v1911 = vadd.f32 0.0, %v1910
      %v1912 = vpop.f32.mrb[0].mxu0
      %v1913 = vpop.f32.mrb[0].mxu0
      %v1914 = vadd.f32 0.0, %v1913
      %v1915 = vpop.f32.mrb[0].mxu0
      %1916 = vmatprep.mubr.bf16.mxu0 0
      %1917 = vmatmul.mubr.bf16.gmra.mrb[0].mxu0 %v1830
      %v1918 = vpop.f32.mrb[0].mxu0
      %v1919 = vadd.f32 0.0, %v1918
      %v1920 = vpop.f32.mrb[0].mxu0
      %v1921 = vpop.f32.mrb[0].mxu0
      %v1922 = vadd.f32 0.0, %v1921
      %v1923 = vpop.f32.mrb[0].mxu0
      %1924 = vmatprep.mubr.bf16.mxu0 0
      %1925 = vmatmul.mubr.bf16.gmra.mrb[0].mxu0 %v1833
      %v1926 = vpop.f32.mrb[0].mxu0
      %v1927 = vadd.f32 0.0, %v1926
      %v1928 = vpop.f32.mrb[0].mxu0
      %v1929 = vpop.f32.mrb[0].mxu0
      %v1930 = vadd.f32 0.0, %v1929
      %v1931 = vpop.f32.mrb[0].mxu0
      %1932 = vmatprep.mubr.bf16.mxu0 0
      %1933 = vmatmul.mubr.bf16.gmra.mrb[0].mxu0 %v1836
      %v1934 = vpop.f32.mrb[0].mxu0
      %v1935 = vadd.f32 0.0, %v1934
      %v1936 = vpop.f32.mrb[0].mxu0
      %v1937 = vpop.f32.mrb[0].mxu0
      %v1938 = vadd.f32 0.0, %v1937
      %v1939 = vpop.f32.mrb[0].mxu0
      %1940 = vmatprep.mubr.bf16.mxu0 0
      %1941 = vmatmul.mubr.bf16.gmra.mrb[0].mxu0 %v1839
      %v1942 = vpop.f32.mrb[0].mxu0
      %v1943 = vadd.f32 0.0, %v1942
      %v1944 = vpop.f32.mrb[0].mxu0
      %v1945 = vpop.f32.mrb[0].mxu0
      %v1946 = vadd.f32 0.0, %v1945
      %v1947 = vpop.f32.mrb[0].mxu0
      %1948 = vdwg.mxu0
      %v1949 = vadd.f32 %v1708, %v1879
      %v1950 = vadd.f32 %v1709, %v1882
      %v1951 = vadd.f32 %v1710, %v1887
      %v1952 = vadd.f32 %v1711, %v1890
      %v1953 = vadd.f32 %v1712, %v1895
      %v1954 = vadd.f32 %v1713, %v1898
      %v1955 = vadd.f32 %v1714, %v1903
      %v1956 = vadd.f32 %v1715, %v1906
      %v1957 = vadd.f32 %v1716, %v1911
      %v1958 = vadd.f32 %v1717, %v1914
      %v1959 = vadd.f32 %v1718, %v1919
      %v1960 = vadd.f32 %v1719, %v1922
      %v1961 = vadd.f32 %v1720, %v1927
      %v1962 = vadd.f32 %v1721, %v1930
      %v1963 = vadd.f32 %v1722, %v1935
      %v1964 = vadd.f32 %v1723, %v1938
      %v1965 = vadd.f32 %v1724, %v1943
      %v1966 = vadd.f32 %v1725, %v1946
      %v1967 = vld [vmem:[%s239 + $0x8] sm:$0xe]
      %v1968 = vld [vmem:[%s239 + $0xc] sm:$0xf]
      %v1969 = vld [vmem:[%s239 + $0x10] sm:$0xf]
      %v1970 = vld [vmem:[%s239 + $0x14] sm:$0xf]
      %v1971 = vld [vmem:[%s239 + $0x18] sm:$0xf]
      %v1972 = vld [vmem:[%s239 + $0x1c] sm:$0xf]
      %v1973 = vld [vmem:[%s239 + $0x20] sm:$0xf]
      %v1974 = vld [vmem:[%s239 + $0x24] sm:$0xf]
      %v1975 = vld [vmem:[%s239 + $0x28] sm:$0xf]
      %v1976 = vld [vmem:[%s239 + $0x2c] sm:$0xf]
      %v1977 = vld [vmem:[%s239 + $0x30] sm:$0xf]
      %v1978 = vld [vmem:[%s239 + $0x34] sm:$0xf]
      %v1979 = vld [vmem:[%s239 + $0x38] sm:$0xf]
      %v1980 = vld [vmem:[%s239 + $0x3c] sm:$0xf]
      %v1981 = vld [vmem:[%s239 + $0x40] sm:$0xf]
      %v1982 = vld [vmem:[%s239 + $0x44] sm:$0xf]
      %v1983 = vld [vmem:[%s239 + $0x48] sm:$0xf]
      %v1984 = vld [vmem:[%s239 + $0x4c] sm:$0xf]
      %v1985 = vld [vmem:[%s239 + $0x50] sm:$0x1]
      %s1986 = scalar_lea.vmem %s2, 14
      %v1987 = vld [vmem:[%s1986] sm:$0x3]
      %v2007 = vunpack.c.l.b16 %v1967
      %v2008 = vunpack.c.l.b16 %v1968
      %v2009 = vunpack.c.l.b16 %v1969
      %v2010 = vunpack.c.l.b16 %v1970
      %v2011 = vunpack.c.l.b16 %v1971
      %v2012 = vunpack.c.l.b16 %v1972
      %v2013 = vunpack.c.l.b16 %v1973
      %v2014 = vunpack.c.l.b16 %v1974
      %v2015 = vunpack.c.l.b16 %v1975
      %v2016 = vunpack.c.l.b16 %v1976
      %v2017 = vunpack.c.l.b16 %v1977
      %v2018 = vunpack.c.l.b16 %v1978
      %v2019 = vunpack.c.l.b16 %v1979
      %v2020 = vunpack.c.l.b16 %v1980
      %v2021 = vunpack.c.l.b16 %v1981
      %v2022 = vunpack.c.l.b16 %v1982
      %v2023 = vunpack.c.l.b16 %v1983
      %v2024 = vunpack.c.l.b16 %v1984
      %v2025 = vunpack.c.l.b16 %v1985
      %v2026 = vpack.c.b16 %v2008, %v2007
      %v2027 = vpack.c.b16 %v2010, %v2009
      %v2028 = vpack.c.b16 %v2012, %v2011
      %v2029 = vpack.c.b16 %v2014, %v2013
      %v2030 = vpack.c.b16 %v2016, %v2015
      %v2031 = vpack.c.b16 %v2018, %v2017
      %v2032 = vpack.c.b16 %v2020, %v2019
      %v2033 = vpack.c.b16 %v2022, %v2021
      %v2034 = vpack.c.b16 %v2024, %v2023
      %v2035 = vpack.c.b16 %v2025, %v2025
      %v2036 = vrot.slane %v2026, 1
      %v2037 = vrot.slane %v2027, 1
      %v2038 = vsel %vm1553, %v2036, %v2037
      %v2039 = vrot.slane %v2028, 1
      %v2040 = vsel %vm1553, %v2037, %v2039
      %v2041 = vrot.slane %v2029, 1
      %v2042 = vsel %vm1553, %v2039, %v2041
      %v2043 = vrot.slane %v2030, 1
      %v2044 = vsel %vm1553, %v2041, %v2043
      %v2045 = vrot.slane %v2031, 1
      %v2046 = vsel %vm1553, %v2043, %v2045
      %v2047 = vrot.slane %v2032, 1
      %v2048 = vsel %vm1553, %v2045, %v2047
      %v2049 = vrot.slane %v2033, 1
      %v2050 = vsel %vm1553, %v2047, %v2049
      %v2051 = vrot.slane %v2034, 1
      %v2052 = vsel %vm1553, %v2049, %v2051
      %v2053 = vrot.slane %v2035, 1
      %v2054 = vsel %vm1553, %v2051, %v2053
      %v2056 = vsel %vm332, %v2038, 0
      %v2059 = vsel %vm332, %v2040, 0
      %v2062 = vsel %vm332, %v2042, 0
      %v2065 = vsel %vm332, %v2044, 0
      %v2068 = vsel %vm332, %v2046, 0
      %v2071 = vsel %vm332, %v2048, 0
      %v2074 = vsel %vm332, %v2050, 0
      %v2077 = vsel %vm332, %v2052, 0
      %v2080 = vsel %vm332, %v2054, 0
      %v2083 = vand.u32 %v1987, %v363
      %2085 = vmatprep.subr.bf16.mxu0 0
      %2086 = vmatpush1.bf16.msra.mxu0 %v2083
      %2087 = vmatprep.subr.bf16.mxu0 0
      %2088 = vmatpush1.bf16.msra.mxu0 0
      %2089 = vmatprep.subr.bf16.mxu0 0
      %2090 = vmatpush1.bf16.msra.mxu0 0
      %2091 = vmatprep.subr.bf16.mxu0 0
      %2092 = vmatpush1.bf16.msra.mxu0 0
      %2093 = vmatprep.subr.bf16.mxu0 0
      %2094 = vmatpush1.bf16.msra.mxu0 0
      %2095 = vmatprep.subr.bf16.mxu0 0
      %2096 = vmatpush1.bf16.msra.mxu0 0
      %2097 = vmatprep.subr.bf16.mxu0 0
      %2098 = vmatpush1.bf16.msra.mxu0 0
      %2099 = vmatprep.subr.bf16.mxu0 0
      %2100 = vmatpush1.bf16.msra.mxu0 0
      %2101 = vmatprep.subr.bf16.mxu0 0
      %2102 = vmatpush1.bf16.msra.mxu0 0
      %2103 = vmatprep.subr.bf16.mxu0 0
      %2104 = vmatpush1.bf16.msra.mxu0 0
      %2105 = vmatprep.subr.bf16.mxu0 0
      %2106 = vmatpush1.bf16.msra.mxu0 0
      %2107 = vmatprep.subr.bf16.mxu0 0
      %2108 = vmatpush1.bf16.msra.mxu0 0
      %2109 = vmatprep.subr.bf16.mxu0 0
      %2110 = vmatpush1.bf16.msra.mxu0 0
      %2111 = vmatprep.subr.bf16.mxu0 0
      %2112 = vmatpush1.bf16.msra.mxu0 0
      %2113 = vmatprep.subr.bf16.mxu0 0
      %2114 = vmatpush1.bf16.msra.mxu0 0
      %2115 = vmatprep.subr.bf16.mxu0 0
      %2116 = vmatpush1.bf16.msra.mxu0 0
      %2117 = vmatprep.mubr.bf16.mxu0 0
      %2118 = vmatmul.mubr.bf16.gmra.mrb[0].mxu0 %v2056
      %v2119 = vpop.f32.mrb[0].mxu0
      %v2120 = vadd.f32 0.0, %v2119
      %v2121 = vpop.f32.mrb[0].mxu0
      %v2122 = vpop.f32.mrb[0].mxu0
      %v2123 = vadd.f32 0.0, %v2122
      %v2124 = vpop.f32.mrb[0].mxu0
      %2125 = vmatprep.mubr.bf16.mxu0 0
      %2126 = vmatmul.mubr.bf16.gmra.mrb[0].mxu0 %v2059
      %v2127 = vpop.f32.mrb[0].mxu0
      %v2128 = vadd.f32 0.0, %v2127
      %v2129 = vpop.f32.mrb[0].mxu0
      %v2130 = vpop.f32.mrb[0].mxu0
      %v2131 = vadd.f32 0.0, %v2130
      %v2132 = vpop.f32.mrb[0].mxu0
      %2133 = vmatprep.mubr.bf16.mxu0 0
      %2134 = vmatmul.mubr.bf16.gmra.mrb[0].mxu0 %v2062
      %v2135 = vpop.f32.mrb[0].mxu0
      %v2136 = vadd.f32 0.0, %v2135
      %v2137 = vpop.f32.mrb[0].mxu0
      %v2138 = vpop.f32.mrb[0].mxu0
      %v2139 = vadd.f32 0.0, %v2138
      %v2140 = vpop.f32.mrb[0].mxu0
      %2141 = vmatprep.mubr.bf16.mxu0 0
      %2142 = vmatmul.mubr.bf16.gmra.mrb[0].mxu0 %v2065
      %v2143 = vpop.f32.mrb[0].mxu0
      %v2144 = vadd.f32 0.0, %v2143
      %v2145 = vpop.f32.mrb[0].mxu0
      %v2146 = vpop.f32.mrb[0].mxu0
      %v2147 = vadd.f32 0.0, %v2146
      %v2148 = vpop.f32.mrb[0].mxu0
      %2149 = vmatprep.mubr.bf16.mxu0 0
      %2150 = vmatmul.mubr.bf16.gmra.mrb[0].mxu0 %v2068
      %v2151 = vpop.f32.mrb[0].mxu0
      %v2152 = vadd.f32 0.0, %v2151
      %v2153 = vpop.f32.mrb[0].mxu0
      %v2154 = vpop.f32.mrb[0].mxu0
      %v2155 = vadd.f32 0.0, %v2154
      %v2156 = vpop.f32.mrb[0].mxu0
      %2157 = vmatprep.mubr.bf16.mxu0 0
      %2158 = vmatmul.mubr.bf16.gmra.mrb[0].mxu0 %v2071
      %v2159 = vpop.f32.mrb[0].mxu0
      %v2160 = vadd.f32 0.0, %v2159
      %v2161 = vpop.f32.mrb[0].mxu0
      %v2162 = vpop.f32.mrb[0].mxu0
      %v2163 = vadd.f32 0.0, %v2162
      %v2164 = vpop.f32.mrb[0].mxu0
      %2165 = vmatprep.mubr.bf16.mxu0 0
      %2166 = vmatmul.mubr.bf16.gmra.mrb[0].mxu0 %v2074
      %v2167 = vpop.f32.mrb[0].mxu0
      %v2168 = vadd.f32 0.0, %v2167
      %v2169 = vpop.f32.mrb[0].mxu0
      %v2170 = vpop.f32.mrb[0].mxu0
      %v2171 = vadd.f32 0.0, %v2170
      %v2172 = vpop.f32.mrb[0].mxu0
      %2173 = vmatprep.mubr.bf16.mxu0 0
      %2174 = vmatmul.mubr.bf16.gmra.mrb[0].mxu0 %v2077
      %v2175 = vpop.f32.mrb[0].mxu0
      %v2176 = vadd.f32 0.0, %v2175
      %v2177 = vpop.f32.mrb[0].mxu0
      %v2178 = vpop.f32.mrb[0].mxu0
      %v2179 = vadd.f32 0.0, %v2178
      %v2180 = vpop.f32.mrb[0].mxu0
      %2181 = vmatprep.mubr.bf16.mxu0 0
      %2182 = vmatmul.mubr.bf16.gmra.mrb[0].mxu0 %v2080
      %v2183 = vpop.f32.mrb[0].mxu0
      %v2184 = vadd.f32 0.0, %v2183
      %v2185 = vpop.f32.mrb[0].mxu0
      %v2186 = vpop.f32.mrb[0].mxu0
      %v2187 = vadd.f32 0.0, %v2186
      %v2188 = vpop.f32.mrb[0].mxu0
      %2189 = vdwg.mxu0
      %v2190 = vadd.f32 %v1949, %v2120
      %v2191 = vadd.f32 %v1950, %v2123
      %v2192 = vadd.f32 %v1951, %v2128
      %v2193 = vadd.f32 %v1952, %v2131
      %v2194 = vadd.f32 %v1953, %v2136
      %v2195 = vadd.f32 %v1954, %v2139
      %v2196 = vadd.f32 %v1955, %v2144
      %v2197 = vadd.f32 %v1956, %v2147
      %v2198 = vadd.f32 %v1957, %v2152
      %v2199 = vadd.f32 %v1958, %v2155
      %v2200 = vadd.f32 %v1959, %v2160
      %v2201 = vadd.f32 %v1960, %v2163
      %v2202 = vadd.f32 %v1961, %v2168
      %v2203 = vadd.f32 %v1962, %v2171
      %v2204 = vadd.f32 %v1963, %v2176
      %v2205 = vadd.f32 %v1964, %v2179
      %v2206 = vadd.f32 %v1965, %v2184
      %v2207 = vadd.f32 %v1966, %v2187
      %v2208 = vld [vmem:[%s234 + $0x50] sm:$0x3]
      %s2209 = scalar_lea.vmem %s2, 16
      %v2210 = vld [vmem:[%s2209] sm:$0x3]
      %v2212 = vunpack.c.l.b16 %v2208
      %v2213 = vpack.c.b16 %v2212, %v2212
      %vm2214 = vsmask.f32 6400
      %v2216 = vshrl.u32 %v1785, 16
      %v2218 = vrot.slane %v2216, 1
      %v2219 = vshll.u32 %v1785, 16
      %v2221 = vrot.slane %v2219, 2
      %v2222 = vor.u32 %v2218, %v2221
      %v2224 = vshrl.u32 %v1786, 16
      %v2226 = vrot.slane %v2224, 1
      %v2227 = vshll.u32 %v1786, 16
      %v2229 = vrot.slane %v2227, 2
      %v2230 = vor.u32 %v2226, %v2229
      %v2231 = vsel %vm2214, %v2222, %v2230
      %v2233 = vshrl.u32 %v1787, 16
      %v2235 = vrot.slane %v2233, 1
      %v2236 = vshll.u32 %v1787, 16
      %v2238 = vrot.slane %v2236, 2
      %v2239 = vor.u32 %v2235, %v2238
      %v2240 = vsel %vm2214, %v2230, %v2239
      %v2242 = vshrl.u32 %v1788, 16
      %v2244 = vrot.slane %v2242, 1
      %v2245 = vshll.u32 %v1788, 16
      %v2247 = vrot.slane %v2245, 2
      %v2248 = vor.u32 %v2244, %v2247
      %v2249 = vsel %vm2214, %v2239, %v2248
      %v2251 = vshrl.u32 %v1789, 16
      %v2253 = vrot.slane %v2251, 1
      %v2254 = vshll.u32 %v1789, 16
      %v2256 = vrot.slane %v2254, 2
      %v2257 = vor.u32 %v2253, %v2256
      %v2258 = vsel %vm2214, %v2248, %v2257
      %v2260 = vshrl.u32 %v1790, 16
      %v2262 = vrot.slane %v2260, 1
      %v2263 = vshll.u32 %v1790, 16
      %v2265 = vrot.slane %v2263, 2
      %v2266 = vor.u32 %v2262, %v2265
      %v2267 = vsel %vm2214, %v2257, %v2266
      %v2269 = vshrl.u32 %v1791, 16
      %v2271 = vrot.slane %v2269, 1
      %v2272 = vshll.u32 %v1791, 16
      %v2274 = vrot.slane %v2272, 2
      %v2275 = vor.u32 %v2271, %v2274
      %v2276 = vsel %vm2214, %v2266, %v2275
      %v2278 = vshrl.u32 %v1792, 16
      %v2280 = vrot.slane %v2278, 1
      %v2281 = vshll.u32 %v1792, 16
      %v2283 = vrot.slane %v2281, 2
      %v2284 = vor.u32 %v2280, %v2283
      %v2285 = vsel %vm2214, %v2275, %v2284
      %v2287 = vshrl.u32 %v1793, 16
      %v2289 = vrot.slane %v2287, 1
      %v2290 = vshll.u32 %v1793, 16
      %v2292 = vrot.slane %v2290, 2
      %v2293 = vor.u32 %v2289, %v2292
      %v2294 = vsel %vm2214, %v2284, %v2293
      %v2296 = vshrl.u32 %v2213, 16
      %v2298 = vrot.slane %v2296, 1
      %v2299 = vshll.u32 %v2213, 16
      %v2301 = vrot.slane %v2299, 2
      %v2302 = vor.u32 %v2298, %v2301
      %v2303 = vsel %vm2214, %v2293, %v2302
      %v2305 = vsel %vm332, %v2231, 0
      %v2308 = vsel %vm332, %v2240, 0
      %v2311 = vsel %vm332, %v2249, 0
      %v2314 = vsel %vm332, %v2258, 0
      %v2317 = vsel %vm332, %v2267, 0
      %v2320 = vsel %vm332, %v2276, 0
      %v2323 = vsel %vm332, %v2285, 0
      %v2326 = vsel %vm332, %v2294, 0
      %v2329 = vsel %vm332, %v2303, 0
      %v2332 = vand.u32 %v2210, %v363
      %2334 = vmatprep.subr.bf16.mxu0 0
      %2335 = vmatpush1.bf16.msra.mxu0 %v2332
      %2336 = vmatprep.subr.bf16.mxu0 0
      %2337 = vmatpush1.bf16.msra.mxu0 0
      %2338 = vmatprep.subr.bf16.mxu0 0
      %2339 = vmatpush1.bf16.msra.mxu0 0
      %2340 = vmatprep.subr.bf16.mxu0 0
      %2341 = vmatpush1.bf16.msra.mxu0 0
      %2342 = vmatprep.subr.bf16.mxu0 0
      %2343 = vmatpush1.bf16.msra.mxu0 0
      %2344 = vmatprep.subr.bf16.mxu0 0
      %2345 = vmatpush1.bf16.msra.mxu0 0
      %2346 = vmatprep.subr.bf16.mxu0 0
      %2347 = vmatpush1.bf16.msra.mxu0 0
      %2348 = vmatprep.subr.bf16.mxu0 0
      %2349 = vmatpush1.bf16.msra.mxu0 0
      %2350 = vmatprep.subr.bf16.mxu0 0
      %2351 = vmatpush1.bf16.msra.mxu0 0
      %2352 = vmatprep.subr.bf16.mxu0 0
      %2353 = vmatpush1.bf16.msra.mxu0 0
      %2354 = vmatprep.subr.bf16.mxu0 0
      %2355 = vmatpush1.bf16.msra.mxu0 0
      %2356 = vmatprep.subr.bf16.mxu0 0
      %2357 = vmatpush1.bf16.msra.mxu0 0
      %2358 = vmatprep.subr.bf16.mxu0 0
      %2359 = vmatpush1.bf16.msra.mxu0 0
      %2360 = vmatprep.subr.bf16.mxu0 0
      %2361 = vmatpush1.bf16.msra.mxu0 0
      %2362 = vmatprep.subr.bf16.mxu0 0
      %2363 = vmatpush1.bf16.msra.mxu0 0
      %2364 = vmatprep.subr.bf16.mxu0 0
      %2365 = vmatpush1.bf16.msra.mxu0 0
      %2366 = vmatprep.mubr.bf16.mxu0 0
      %2367 = vmatmul.mubr.bf16.gmra.mrb[0].mxu0 %v2305
      %v2368 = vpop.f32.mrb[0].mxu0
      %v2369 = vadd.f32 0.0, %v2368
      %v2370 = vpop.f32.mrb[0].mxu0
      %v2371 = vpop.f32.mrb[0].mxu0
      %v2372 = vadd.f32 0.0, %v2371
      %v2373 = vpop.f32.mrb[0].mxu0
      %2374 = vmatprep.mubr.bf16.mxu0 0
      %2375 = vmatmul.mubr.bf16.gmra.mrb[0].mxu0 %v2308
      %v2376 = vpop.f32.mrb[0].mxu0
      %v2377 = vadd.f32 0.0, %v2376
      %v2378 = vpop.f32.mrb[0].mxu0
      %v2379 = vpop.f32.mrb[0].mxu0
      %v2380 = vadd.f32 0.0, %v2379
      %v2381 = vpop.f32.mrb[0].mxu0
      %2382 = vmatprep.mubr.bf16.mxu0 0
      %2383 = vmatmul.mubr.bf16.gmra.mrb[0].mxu0 %v2311
      %v2384 = vpop.f32.mrb[0].mxu0
      %v2385 = vadd.f32 0.0, %v2384
      %v2386 = vpop.f32.mrb[0].mxu0
      %v2387 = vpop.f32.mrb[0].mxu0
      %v2388 = vadd.f32 0.0, %v2387
      %v2389 = vpop.f32.mrb[0].mxu0
      %2390 = vmatprep.mubr.bf16.mxu0 0
      %2391 = vmatmul.mubr.bf16.gmra.mrb[0].mxu0 %v2314
      %v2392 = vpop.f32.mrb[0].mxu0
      %v2393 = vadd.f32 0.0, %v2392
      %v2394 = vpop.f32.mrb[0].mxu0
      %v2395 = vpop.f32.mrb[0].mxu0
      %v2396 = vadd.f32 0.0, %v2395
      %v2397 = vpop.f32.mrb[0].mxu0
      %2398 = vmatprep.mubr.bf16.mxu0 0
      %2399 = vmatmul.mubr.bf16.gmra.mrb[0].mxu0 %v2317
      %v2400 = vpop.f32.mrb[0].mxu0
      %v2401 = vadd.f32 0.0, %v2400
      %v2402 = vpop.f32.mrb[0].mxu0
      %v2403 = vpop.f32.mrb[0].mxu0
      %v2404 = vadd.f32 0.0, %v2403
      %v2405 = vpop.f32.mrb[0].mxu0
      %2406 = vmatprep.mubr.bf16.mxu0 0
      %2407 = vmatmul.mubr.bf16.gmra.mrb[0].mxu0 %v2320
      %v2408 = vpop.f32.mrb[0].mxu0
      %v2409 = vadd.f32 0.0, %v2408
      %v2410 = vpop.f32.mrb[0].mxu0
      %v2411 = vpop.f32.mrb[0].mxu0
      %v2412 = vadd.f32 0.0, %v2411
      %v2413 = vpop.f32.mrb[0].mxu0
      %2414 = vmatprep.mubr.bf16.mxu0 0
      %2415 = vmatmul.mubr.bf16.gmra.mrb[0].mxu0 %v2323
      %v2416 = vpop.f32.mrb[0].mxu0
      %v2417 = vadd.f32 0.0, %v2416
      %v2418 = vpop.f32.mrb[0].mxu0
      %v2419 = vpop.f32.mrb[0].mxu0
      %v2420 = vadd.f32 0.0, %v2419
      %v2421 = vpop.f32.mrb[0].mxu0
      %2422 = vmatprep.mubr.bf16.mxu0 0
      %2423 = vmatmul.mubr.bf16.gmra.mrb[0].mxu0 %v2326
      %v2424 = vpop.f32.mrb[0].mxu0
      %v2425 = vadd.f32 0.0, %v2424
      %v2426 = vpop.f32.mrb[0].mxu0
      %v2427 = vpop.f32.mrb[0].mxu0
      %v2428 = vadd.f32 0.0, %v2427
      %v2429 = vpop.f32.mrb[0].mxu0
      %2430 = vmatprep.mubr.bf16.mxu0 0
      %2431 = vmatmul.mubr.bf16.gmra.mrb[0].mxu0 %v2329
      %v2432 = vpop.f32.mrb[0].mxu0
      %v2433 = vadd.f32 0.0, %v2432
      %v2434 = vpop.f32.mrb[0].mxu0
      %v2435 = vpop.f32.mrb[0].mxu0
      %v2436 = vadd.f32 0.0, %v2435
      %v2437 = vpop.f32.mrb[0].mxu0
      %2438 = vdwg.mxu0
      %v2439 = vadd.f32 %v2190, %v2369
      %v2440 = vadd.f32 %v2191, %v2372
      %v2441 = vadd.f32 %v2192, %v2377
      %v2442 = vadd.f32 %v2193, %v2380
      %v2443 = vadd.f32 %v2194, %v2385
      %v2444 = vadd.f32 %v2195, %v2388
      %v2445 = vadd.f32 %v2196, %v2393
      %v2446 = vadd.f32 %v2197, %v2396
      %v2447 = vadd.f32 %v2198, %v2401
      %v2448 = vadd.f32 %v2199, %v2404
      %v2449 = vadd.f32 %v2200, %v2409
      %v2450 = vadd.f32 %v2201, %v2412
      %v2451 = vadd.f32 %v2202, %v2417
      %v2452 = vadd.f32 %v2203, %v2420
      %v2453 = vadd.f32 %v2204, %v2425
      %v2454 = vadd.f32 %v2205, %v2428
      %v2455 = vadd.f32 %v2206, %v2433
      %v2456 = vadd.f32 %v2207, %v2436
      %v2458 = vlaneseq
      %v2459 = vshrl.u32 %v2458, 7
      %v2460 = vsub.s32 0, %v2459
      %v2461 = vrot.slane %v246, %v2460
      %v2463 = vmul.f32 %v2439, %v2461
      %v2464 = vmul.f32 %v2440, %v2461
      %v2465 = vmul.f32 %v2441, %v2461
      %v2466 = vmul.f32 %v2442, %v2461
      %v2467 = vmul.f32 %v2443, %v2461
      %v2468 = vmul.f32 %v2444, %v2461
      %v2469 = vmul.f32 %v2445, %v2461
      %v2470 = vmul.f32 %v2446, %v2461
      %v2471 = vmul.f32 %v2447, %v2461
      %v2472 = vmul.f32 %v2448, %v2461
      %v2473 = vmul.f32 %v2449, %v2461
      %v2474 = vmul.f32 %v2450, %v2461
      %v2475 = vmul.f32 %v2451, %v2461
      %v2476 = vmul.f32 %v2452, %v2461
      %v2477 = vmul.f32 %v2453, %v2461
      %v2478 = vmul.f32 %v2454, %v2461
      %v2479 = vmul.f32 %v2455, %v2461
      %v2480 = vmul.f32 %v2456, %v2461
      %v2482 = vlaneseq
      %v2483 = vshrl.u32 %v2482, 7
      %v2484 = vsub.s32 0, %v2483
      %v2485 = vrot.slane %v247, %v2484
      %v2487 = vadd.f32 %v2463, %v2485
      %v2488 = vadd.f32 %v2464, %v2485
      %v2489 = vadd.f32 %v2465, %v2485
      %v2490 = vadd.f32 %v2466, %v2485
      %v2491 = vadd.f32 %v2467, %v2485
      %v2492 = vadd.f32 %v2468, %v2485
      %v2493 = vadd.f32 %v2469, %v2485
      %v2494 = vadd.f32 %v2470, %v2485
      %v2495 = vadd.f32 %v2471, %v2485
      %v2496 = vadd.f32 %v2472, %v2485
      %v2497 = vadd.f32 %v2473, %v2485
      %v2498 = vadd.f32 %v2474, %v2485
      %v2499 = vadd.f32 %v2475, %v2485
      %v2500 = vadd.f32 %v2476, %v2485
      %v2501 = vadd.f32 %v2477, %v2485
      %v2502 = vadd.f32 %v2478, %v2485
      %v2503 = vadd.f32 %v2479, %v2485
      %v2504 = vadd.f32 %v2480, %v2485
      %v2505 = vmax.f32 %v2487, 0.0
      %v2506 = vmax.f32 %v2488, 0.0
      %v2507 = vmax.f32 %v2489, 0.0
      %v2508 = vmax.f32 %v2490, 0.0
      %v2509 = vmax.f32 %v2491, 0.0
      %v2510 = vmax.f32 %v2492, 0.0
      %v2511 = vmax.f32 %v2493, 0.0
      %v2512 = vmax.f32 %v2494, 0.0
      %v2513 = vmax.f32 %v2495, 0.0
      %v2514 = vmax.f32 %v2496, 0.0
      %v2515 = vmax.f32 %v2497, 0.0
      %v2516 = vmax.f32 %v2498, 0.0
      %v2517 = vmax.f32 %v2499, 0.0
      %v2518 = vmax.f32 %v2500, 0.0
      %v2519 = vmax.f32 %v2501, 0.0
      %v2520 = vmax.f32 %v2502, 0.0
      %v2521 = vmax.f32 %v2503, 0.0
      %v2522 = vmax.f32 %v2504, 0.0
      %2523 = vmatprep.subr.bf16.mxu0 0
      %2524 = vmatpush1.bf16.msra.mxu0 %v365
      %2525 = vmatprep.subr.bf16.mxu0 0
      %2526 = vmatpush1.bf16.msra.mxu0 0
      %2527 = vmatprep.subr.bf16.mxu0 0
      %2528 = vmatpush1.bf16.msra.mxu0 0
      %2529 = vmatprep.subr.bf16.mxu0 0
      %2530 = vmatpush1.bf16.msra.mxu0 0
      %2531 = vmatprep.subr.bf16.mxu0 0
      %2532 = vmatpush1.bf16.msra.mxu0 0
      %2533 = vmatprep.subr.bf16.mxu0 0
      %2534 = vmatpush1.bf16.msra.mxu0 0
      %2535 = vmatprep.subr.bf16.mxu0 0
      %2536 = vmatpush1.bf16.msra.mxu0 0
      %2537 = vmatprep.subr.bf16.mxu0 0
      %2538 = vmatpush1.bf16.msra.mxu0 0
      %2539 = vmatprep.subr.bf16.mxu0 0
      %2540 = vmatpush1.bf16.msra.mxu0 0
      %2541 = vmatprep.subr.bf16.mxu0 0
      %2542 = vmatpush1.bf16.msra.mxu0 0
      %2543 = vmatprep.subr.bf16.mxu0 0
      %2544 = vmatpush1.bf16.msra.mxu0 0
      %2545 = vmatprep.subr.bf16.mxu0 0
      %2546 = vmatpush1.bf16.msra.mxu0 0
      %2547 = vmatprep.subr.bf16.mxu0 0
      %2548 = vmatpush1.bf16.msra.mxu0 0
      %2549 = vmatprep.subr.bf16.mxu0 0
      %2550 = vmatpush1.bf16.msra.mxu0 0
      %2551 = vmatprep.subr.bf16.mxu0 0
      %2552 = vmatpush1.bf16.msra.mxu0 0
      %2553 = vmatprep.subr.bf16.mxu0 0
      %2554 = vmatpush1.bf16.msra.mxu0 0
      %2555 = vmatprep.mubr.bf16.mxu0 0
      %2556 = vmatmul.mubr.bf16.gmra.mrb[0].mxu0 %v799
      %v2557 = vpop.f32.mrb[0].mxu0
      %v2558 = vadd.f32 0.0, %v2557
      %v2559 = vpop.f32.mrb[0].mxu0
      %v2560 = vpop.f32.mrb[0].mxu0
      %v2561 = vadd.f32 0.0, %v2560
      %v2562 = vpop.f32.mrb[0].mxu0
      %2563 = vmatprep.mubr.bf16.mxu0 0
      %2564 = vmatmul.mubr.bf16.gmra.mrb[0].mxu0 %v802
      %v2565 = vpop.f32.mrb[0].mxu0
      %v2566 = vadd.f32 0.0, %v2565
      %v2567 = vpop.f32.mrb[0].mxu0
      %v2568 = vpop.f32.mrb[0].mxu0
      %v2569 = vadd.f32 0.0, %v2568
      %v2570 = vpop.f32.mrb[0].mxu0
      %2571 = vmatprep.mubr.bf16.mxu0 0
      %2572 = vmatmul.mubr.bf16.gmra.mrb[0].mxu0 %v805
      %v2573 = vpop.f32.mrb[0].mxu0
      %v2574 = vadd.f32 0.0, %v2573
      %v2575 = vpop.f32.mrb[0].mxu0
      %v2576 = vpop.f32.mrb[0].mxu0
      %v2577 = vadd.f32 0.0, %v2576
      %v2578 = vpop.f32.mrb[0].mxu0
      %2579 = vmatprep.mubr.bf16.mxu0 0
      %2580 = vmatmul.mubr.bf16.gmra.mrb[0].mxu0 %v808
      %v2581 = vpop.f32.mrb[0].mxu0
      %v2582 = vadd.f32 0.0, %v2581
      %v2583 = vpop.f32.mrb[0].mxu0
      %v2584 = vpop.f32.mrb[0].mxu0
      %v2585 = vadd.f32 0.0, %v2584
      %v2586 = vpop.f32.mrb[0].mxu0
      %2587 = vmatprep.mubr.bf16.mxu0 0
      %2588 = vmatmul.mubr.bf16.gmra.mrb[0].mxu0 %v811
      %v2589 = vpop.f32.mrb[0].mxu0
      %v2590 = vadd.f32 0.0, %v2589
      %v2591 = vpop.f32.mrb[0].mxu0
      %v2592 = vpop.f32.mrb[0].mxu0
      %v2593 = vadd.f32 0.0, %v2592
      %v2594 = vpop.f32.mrb[0].mxu0
      %2595 = vmatprep.mubr.bf16.mxu0 0
      %2596 = vmatmul.mubr.bf16.gmra.mrb[0].mxu0 %v814
      %v2597 = vpop.f32.mrb[0].mxu0
      %v2598 = vadd.f32 0.0, %v2597
      %v2599 = vpop.f32.mrb[0].mxu0
      %v2600 = vpop.f32.mrb[0].mxu0
      %v2601 = vadd.f32 0.0, %v2600
      %v2602 = vpop.f32.mrb[0].mxu0
      %2603 = vmatprep.mubr.bf16.mxu0 0
      %2604 = vmatmul.mubr.bf16.gmra.mrb[0].mxu0 %v817
      %v2605 = vpop.f32.mrb[0].mxu0
      %v2606 = vadd.f32 0.0, %v2605
      %v2607 = vpop.f32.mrb[0].mxu0
      %v2608 = vpop.f32.mrb[0].mxu0
      %v2609 = vadd.f32 0.0, %v2608
      %v2610 = vpop.f32.mrb[0].mxu0
      %2611 = vmatprep.mubr.bf16.mxu0 0
      %2612 = vmatmul.mubr.bf16.gmra.mrb[0].mxu0 %v820
      %v2613 = vpop.f32.mrb[0].mxu0
      %v2614 = vadd.f32 0.0, %v2613
      %v2615 = vpop.f32.mrb[0].mxu0
      %v2616 = vpop.f32.mrb[0].mxu0
      %v2617 = vadd.f32 0.0, %v2616
      %v2618 = vpop.f32.mrb[0].mxu0
      %2619 = vmatprep.mubr.bf16.mxu0 0
      %2620 = vmatmul.mubr.bf16.gmra.mrb[0].mxu0 %v823
      %v2621 = vpop.f32.mrb[0].mxu0
      %v2622 = vadd.f32 0.0, %v2621
      %v2623 = vpop.f32.mrb[0].mxu0
      %v2624 = vpop.f32.mrb[0].mxu0
      %v2625 = vadd.f32 0.0, %v2624
      %v2626 = vpop.f32.mrb[0].mxu0
      %2627 = vdwg.mxu0
      %2628 = vmatprep.subr.bf16.mxu0 0
      %2629 = vmatpush1.bf16.msra.mxu0 %v545
      %2630 = vmatprep.subr.bf16.mxu0 0
      %2631 = vmatpush1.bf16.msra.mxu0 0
      %2632 = vmatprep.subr.bf16.mxu0 0
      %2633 = vmatpush1.bf16.msra.mxu0 0
      %2634 = vmatprep.subr.bf16.mxu0 0
      %2635 = vmatpush1.bf16.msra.mxu0 0
      %2636 = vmatprep.subr.bf16.mxu0 0
      %2637 = vmatpush1.bf16.msra.mxu0 0
      %2638 = vmatprep.subr.bf16.mxu0 0
      %2639 = vmatpush1.bf16.msra.mxu0 0
      %2640 = vmatprep.subr.bf16.mxu0 0
      %2641 = vmatpush1.bf16.msra.mxu0 0
      %2642 = vmatprep.subr.bf16.mxu0 0
      %2643 = vmatpush1.bf16.msra.mxu0 0
      %2644 = vmatprep.subr.bf16.mxu0 0
      %2645 = vmatpush1.bf16.msra.mxu0 0
      %2646 = vmatprep.subr.bf16.mxu0 0
      %2647 = vmatpush1.bf16.msra.mxu0 0
      %2648 = vmatprep.subr.bf16.mxu0 0
      %2649 = vmatpush1.bf16.msra.mxu0 0
      %2650 = vmatprep.subr.bf16.mxu0 0
      %2651 = vmatpush1.bf16.msra.mxu0 0
      %2652 = vmatprep.subr.bf16.mxu0 0
      %2653 = vmatpush1.bf16.msra.mxu0 0
      %2654 = vmatprep.subr.bf16.mxu0 0
      %2655 = vmatpush1.bf16.msra.mxu0 0
      %2656 = vmatprep.subr.bf16.mxu0 0
      %2657 = vmatpush1.bf16.msra.mxu0 0
      %2658 = vmatprep.subr.bf16.mxu0 0
      %2659 = vmatpush1.bf16.msra.mxu0 0
      %2660 = vmatprep.mubr.bf16.mxu0 0
      %2661 = vmatmul.mubr.bf16.gmra.mrb[0].mxu0 %v334
      %v2662 = vpop.f32.mrb[0].mxu0
      %v2663 = vadd.f32 %v2558, %v2662
      %v2664 = vpop.f32.mrb[0].mxu0
      %v2665 = vpop.f32.mrb[0].mxu0
      %v2666 = vadd.f32 %v2561, %v2665
      %v2667 = vpop.f32.mrb[0].mxu0
      %2668 = vmatprep.mubr.bf16.mxu0 0
      %2669 = vmatmul.mubr.bf16.gmra.mrb[0].mxu0 %v337
      %v2670 = vpop.f32.mrb[0].mxu0
      %v2671 = vadd.f32 %v2566, %v2670
      %v2672 = vpop.f32.mrb[0].mxu0
      %v2673 = vpop.f32.mrb[0].mxu0
      %v2674 = vadd.f32 %v2569, %v2673
      %v2675 = vpop.f32.mrb[0].mxu0
      %2676 = vmatprep.mubr.bf16.mxu0 0
      %2677 = vmatmul.mubr.bf16.gmra.mrb[0].mxu0 %v340
      %v2678 = vpop.f32.mrb[0].mxu0
      %v2679 = vadd.f32 %v2574, %v2678
      %v2680 = vpop.f32.mrb[0].mxu0
      %v2681 = vpop.f32.mrb[0].mxu0
      %v2682 = vadd.f32 %v2577, %v2681
      %v2683 = vpop.f32.mrb[0].mxu0
      %2684 = vmatprep.mubr.bf16.mxu0 0
      %2685 = vmatmul.mubr.bf16.gmra.mrb[0].mxu0 %v343
      %v2686 = vpop.f32.mrb[0].mxu0
      %v2687 = vadd.f32 %v2582, %v2686
      %v2688 = vpop.f32.mrb[0].mxu0
      %v2689 = vpop.f32.mrb[0].mxu0
      %v2690 = vadd.f32 %v2585, %v2689
      %v2691 = vpop.f32.mrb[0].mxu0
      %2692 = vmatprep.mubr.bf16.mxu0 0
      %2693 = vmatmul.mubr.bf16.gmra.mrb[0].mxu0 %v346
      %v2694 = vpop.f32.mrb[0].mxu0
      %v2695 = vadd.f32 %v2590, %v2694
      %v2696 = vpop.f32.mrb[0].mxu0
      %v2697 = vpop.f32.mrb[0].mxu0
      %v2698 = vadd.f32 %v2593, %v2697
      %v2699 = vpop.f32.mrb[0].mxu0
      %2700 = vmatprep.mubr.bf16.mxu0 0
      %2701 = vmatmul.mubr.bf16.gmra.mrb[0].mxu0 %v349
      %v2702 = vpop.f32.mrb[0].mxu0
      %v2703 = vadd.f32 %v2598, %v2702
      %v2704 = vpop.f32.mrb[0].mxu0
      %v2705 = vpop.f32.mrb[0].mxu0
      %v2706 = vadd.f32 %v2601, %v2705
      %v2707 = vpop.f32.mrb[0].mxu0
      %2708 = vmatprep.mubr.bf16.mxu0 0
      %2709 = vmatmul.mubr.bf16.gmra.mrb[0].mxu0 %v352
      %v2710 = vpop.f32.mrb[0].mxu0
      %v2711 = vadd.f32 %v2606, %v2710
      %v2712 = vpop.f32.mrb[0].mxu0
      %v2713 = vpop.f32.mrb[0].mxu0
      %v2714 = vadd.f32 %v2609, %v2713
      %v2715 = vpop.f32.mrb[0].mxu0
      %2716 = vmatprep.mubr.bf16.mxu0 0
      %2717 = vmatmul.mubr.bf16.gmra.mrb[0].mxu0 %v355
      %v2718 = vpop.f32.mrb[0].mxu0
      %v2719 = vadd.f32 %v2614, %v2718
      %v2720 = vpop.f32.mrb[0].mxu0
      %v2721 = vpop.f32.mrb[0].mxu0
      %v2722 = vadd.f32 %v2617, %v2721
      %v2723 = vpop.f32.mrb[0].mxu0
      %2724 = vmatprep.mubr.bf16.mxu0 0
      %2725 = vmatmul.mubr.bf16.gmra.mrb[0].mxu0 %v358
      %v2726 = vpop.f32.mrb[0].mxu0
      %v2727 = vadd.f32 %v2622, %v2726
      %v2728 = vpop.f32.mrb[0].mxu0
      %v2729 = vpop.f32.mrb[0].mxu0
      %v2730 = vadd.f32 %v2625, %v2729
      %v2731 = vpop.f32.mrb[0].mxu0
      %2732 = vdwg.mxu0
      %v2733 = vld [vmem:[%s239] sm:$0xf]
      %v2734 = vld [vmem:[%s239 + $0x4] sm:$0xf]
      %v2735 = vld [vmem:[%s239 + $0x8] sm:$0xf]
      %v2736 = vld [vmem:[%s239 + $0xc] sm:$0xf]
      %v2737 = vld [vmem:[%s239 + $0x10] sm:$0xf]
      %v2738 = vld [vmem:[%s239 + $0x14] sm:$0xf]
      %v2739 = vld [vmem:[%s239 + $0x18] sm:$0xf]
      %v2740 = vld [vmem:[%s239 + $0x1c] sm:$0xf]
      %v2741 = vld [vmem:[%s239 + $0x20] sm:$0xf]
      %v2742 = vld [vmem:[%s239 + $0x24] sm:$0xf]
      %v2743 = vld [vmem:[%s239 + $0x28] sm:$0xf]
      %v2744 = vld [vmem:[%s239 + $0x2c] sm:$0xf]
      %v2745 = vld [vmem:[%s239 + $0x30] sm:$0xf]
      %v2746 = vld [vmem:[%s239 + $0x34] sm:$0xf]
      %v2747 = vld [vmem:[%s239 + $0x38] sm:$0xf]
      %v2748 = vld [vmem:[%s239 + $0x3c] sm:$0xf]
      %v2749 = vld [vmem:[%s239 + $0x40] sm:$0xf]
      %v2750 = vld [vmem:[%s239 + $0x44] sm:$0xf]
      %v2751 = vld [vmem:[%s239 + $0x48] sm:$0x1]
      %v2771 = vunpack.c.l.b16 %v2733
      %v2772 = vunpack.c.l.b16 %v2734
      %v2773 = vunpack.c.l.b16 %v2735
      %v2774 = vunpack.c.l.b16 %v2736
      %v2775 = vunpack.c.l.b16 %v2737
      %v2776 = vunpack.c.l.b16 %v2738
      %v2777 = vunpack.c.l.b16 %v2739
      %v2778 = vunpack.c.l.b16 %v2740
      %v2779 = vunpack.c.l.b16 %v2741
      %v2780 = vunpack.c.l.b16 %v2742
      %v2781 = vunpack.c.l.b16 %v2743
      %v2782 = vunpack.c.l.b16 %v2744
      %v2783 = vunpack.c.l.b16 %v2745
      %v2784 = vunpack.c.l.b16 %v2746
      %v2785 = vunpack.c.l.b16 %v2747
      %v2786 = vunpack.c.l.b16 %v2748
      %v2787 = vunpack.c.l.b16 %v2749
      %v2788 = vunpack.c.l.b16 %v2750
      %v2789 = vunpack.c.l.b16 %v2751
      %v2790 = vpack.c.b16 %v2772, %v2771
      %v2791 = vpack.c.b16 %v2774, %v2773
      %v2792 = vpack.c.b16 %v2776, %v2775
      %v2793 = vpack.c.b16 %v2778, %v2777
      %v2794 = vpack.c.b16 %v2780, %v2779
      %v2795 = vpack.c.b16 %v2782, %v2781
      %v2796 = vpack.c.b16 %v2784, %v2783
      %v2797 = vpack.c.b16 %v2786, %v2785
      %v2798 = vpack.c.b16 %v2788, %v2787
      %v2799 = vpack.c.b16 %v2789, %v2789
      %v2801 = vshrl.u32 %v2790, 16
      %v2803 = vshll.u32 %v2790, 16
      %v2805 = vrot.slane %v2803, 1
      %v2806 = vor.u32 %v2801, %v2805
      %v2808 = vshll.u32 %v2791, 16
      %v2810 = vrot.slane %v2808, 1
      %v2811 = vsel %vm721, %v2806, %v2810
      %v2812 = vshrl.u32 %v2791, 16
      %v2814 = vor.u32 %v2812, %v2810
      %v2816 = vshll.u32 %v2792, 16
      %v2818 = vrot.slane %v2816, 1
      %v2819 = vsel %vm721, %v2814, %v2818
      %v2820 = vshrl.u32 %v2792, 16
      %v2822 = vor.u32 %v2820, %v2818
      %v2824 = vshll.u32 %v2793, 16
      %v2826 = vrot.slane %v2824, 1
      %v2827 = vsel %vm721, %v2822, %v2826
      %v2828 = vshrl.u32 %v2793, 16
      %v2830 = vor.u32 %v2828, %v2826
      %v2832 = vshll.u32 %v2794, 16
      %v2834 = vrot.slane %v2832, 1
      %v2835 = vsel %vm721, %v2830, %v2834
      %v2836 = vshrl.u32 %v2794, 16
      %v2838 = vor.u32 %v2836, %v2834
      %v2840 = vshll.u32 %v2795, 16
      %v2842 = vrot.slane %v2840, 1
      %v2843 = vsel %vm721, %v2838, %v2842
      %v2844 = vshrl.u32 %v2795, 16
      %v2846 = vor.u32 %v2844, %v2842
      %v2848 = vshll.u32 %v2796, 16
      %v2850 = vrot.slane %v2848, 1
      %v2851 = vsel %vm721, %v2846, %v2850
      %v2852 = vshrl.u32 %v2796, 16
      %v2854 = vor.u32 %v2852, %v2850
      %v2856 = vshll.u32 %v2797, 16
      %v2858 = vrot.slane %v2856, 1
      %v2859 = vsel %vm721, %v2854, %v2858
      %v2860 = vshrl.u32 %v2797, 16
      %v2862 = vor.u32 %v2860, %v2858
      %v2864 = vshll.u32 %v2798, 16
      %v2866 = vrot.slane %v2864, 1
      %v2867 = vsel %vm721, %v2862, %v2866
      %v2868 = vshrl.u32 %v2798, 16
      %v2870 = vor.u32 %v2868, %v2866
      %v2872 = vshll.u32 %v2799, 16
      %v2874 = vrot.slane %v2872, 1
      %v2875 = vsel %vm721, %v2870, %v2874
      %v2877 = vsel %vm332, %v2811, 0
      %v2880 = vsel %vm332, %v2819, 0
      %v2883 = vsel %vm332, %v2827, 0
      %v2886 = vsel %vm332, %v2835, 0
      %v2889 = vsel %vm332, %v2843, 0
      %v2892 = vsel %vm332, %v2851, 0
      %v2895 = vsel %vm332, %v2859, 0
      %v2898 = vsel %vm332, %v2867, 0
      %v2901 = vsel %vm332, %v2875, 0
      %2903 = vmatprep.subr.bf16.mxu0 0
      %2904 = vmatpush1.bf16.msra.mxu0 %v826
      %2905 = vmatprep.subr.bf16.mxu0 0
      %2906 = vmatpush1.bf16.msra.mxu0 0
      %2907 = vmatprep.subr.bf16.mxu0 0
      %2908 = vmatpush1.bf16.msra.mxu0 0
      %2909 = vmatprep.subr.bf16.mxu0 0
      %2910 = vmatpush1.bf16.msra.mxu0 0
      %2911 = vmatprep.subr.bf16.mxu0 0
      %2912 = vmatpush1.bf16.msra.mxu0 0
      %2913 = vmatprep.subr.bf16.mxu0 0
      %2914 = vmatpush1.bf16.msra.mxu0 0
      %2915 = vmatprep.subr.bf16.mxu0 0
      %2916 = vmatpush1.bf16.msra.mxu0 0
      %2917 = vmatprep.subr.bf16.mxu0 0
      %2918 = vmatpush1.bf16.msra.mxu0 0
      %2919 = vmatprep.subr.bf16.mxu0 0
      %2920 = vmatpush1.bf16.msra.mxu0 0
      %2921 = vmatprep.subr.bf16.mxu0 0
      %2922 = vmatpush1.bf16.msra.mxu0 0
      %2923 = vmatprep.subr.bf16.mxu0 0
      %2924 = vmatpush1.bf16.msra.mxu0 0
      %2925 = vmatprep.subr.bf16.mxu0 0
      %2926 = vmatpush1.bf16.msra.mxu0 0
      %2927 = vmatprep.subr.bf16.mxu0 0
      %2928 = vmatpush1.bf16.msra.mxu0 0
      %2929 = vmatprep.subr.bf16.mxu0 0
      %2930 = vmatpush1.bf16.msra.mxu0 0
      %2931 = vmatprep.subr.bf16.mxu0 0
      %2932 = vmatpush1.bf16.msra.mxu0 0
      %2933 = vmatprep.subr.bf16.mxu0 0
      %2934 = vmatpush1.bf16.msra.mxu0 0
      %2935 = vmatprep.mubr.bf16.mxu0 0
      %2936 = vmatmul.mubr.bf16.gmra.mrb[0].mxu0 %v2877
      %v2937 = vpop.f32.mrb[0].mxu0
      %v2938 = vadd.f32 0.0, %v2937
      %v2939 = vpop.f32.mrb[0].mxu0
      %v2940 = vpop.f32.mrb[0].mxu0
      %v2941 = vadd.f32 0.0, %v2940
      %v2942 = vpop.f32.mrb[0].mxu0
      %2943 = vmatprep.mubr.bf16.mxu0 0
      %2944 = vmatmul.mubr.bf16.gmra.mrb[0].mxu0 %v2880
      %v2945 = vpop.f32.mrb[0].mxu0
      %v2946 = vadd.f32 0.0, %v2945
      %v2947 = vpop.f32.mrb[0].mxu0
      %v2948 = vpop.f32.mrb[0].mxu0
      %v2949 = vadd.f32 0.0, %v2948
      %v2950 = vpop.f32.mrb[0].mxu0
      %2951 = vmatprep.mubr.bf16.mxu0 0
      %2952 = vmatmul.mubr.bf16.gmra.mrb[0].mxu0 %v2883
      %v2953 = vpop.f32.mrb[0].mxu0
      %v2954 = vadd.f32 0.0, %v2953
      %v2955 = vpop.f32.mrb[0].mxu0
      %v2956 = vpop.f32.mrb[0].mxu0
      %v2957 = vadd.f32 0.0, %v2956
      %v2958 = vpop.f32.mrb[0].mxu0
      %2959 = vmatprep.mubr.bf16.mxu0 0
      %2960 = vmatmul.mubr.bf16.gmra.mrb[0].mxu0 %v2886
      %v2961 = vpop.f32.mrb[0].mxu0
      %v2962 = vadd.f32 0.0, %v2961
      %v2963 = vpop.f32.mrb[0].mxu0
      %v2964 = vpop.f32.mrb[0].mxu0
      %v2965 = vadd.f32 0.0, %v2964
      %v2966 = vpop.f32.mrb[0].mxu0
      %2967 = vmatprep.mubr.bf16.mxu0 0
      %2968 = vmatmul.mubr.bf16.gmra.mrb[0].mxu0 %v2889
      %v2969 = vpop.f32.mrb[0].mxu0
      %v2970 = vadd.f32 0.0, %v2969
      %v2971 = vpop.f32.mrb[0].mxu0
      %v2972 = vpop.f32.mrb[0].mxu0
      %v2973 = vadd.f32 0.0, %v2972
      %v2974 = vpop.f32.mrb[0].mxu0
      %2975 = vmatprep.mubr.bf16.mxu0 0
      %2976 = vmatmul.mubr.bf16.gmra.mrb[0].mxu0 %v2892
      %v2977 = vpop.f32.mrb[0].mxu0
      %v2978 = vadd.f32 0.0, %v2977
      %v2979 = vpop.f32.mrb[0].mxu0
      %v2980 = vpop.f32.mrb[0].mxu0
      %v2981 = vadd.f32 0.0, %v2980
      %v2982 = vpop.f32.mrb[0].mxu0
      %2983 = vmatprep.mubr.bf16.mxu0 0
      %2984 = vmatmul.mubr.bf16.gmra.mrb[0].mxu0 %v2895
      %v2985 = vpop.f32.mrb[0].mxu0
      %v2986 = vadd.f32 0.0, %v2985
      %v2987 = vpop.f32.mrb[0].mxu0
      %v2988 = vpop.f32.mrb[0].mxu0
      %v2989 = vadd.f32 0.0, %v2988
      %v2990 = vpop.f32.mrb[0].mxu0
      %2991 = vmatprep.mubr.bf16.mxu0 0
      %2992 = vmatmul.mubr.bf16.gmra.mrb[0].mxu0 %v2898
      %v2993 = vpop.f32.mrb[0].mxu0
      %v2994 = vadd.f32 0.0, %v2993
      %v2995 = vpop.f32.mrb[0].mxu0
      %v2996 = vpop.f32.mrb[0].mxu0
      %v2997 = vadd.f32 0.0, %v2996
      %v2998 = vpop.f32.mrb[0].mxu0
      %2999 = vmatprep.mubr.bf16.mxu0 0
      %3000 = vmatmul.mubr.bf16.gmra.mrb[0].mxu0 %v2901
      %v3001 = vpop.f32.mrb[0].mxu0
      %v3002 = vadd.f32 0.0, %v3001
      %v3003 = vpop.f32.mrb[0].mxu0
      %v3004 = vpop.f32.mrb[0].mxu0
      %v3005 = vadd.f32 0.0, %v3004
      %v3006 = vpop.f32.mrb[0].mxu0
      %3007 = vdwg.mxu0
      %v3008 = vadd.f32 %v2663, %v2938
      %v3009 = vadd.f32 %v2666, %v2941
      %v3010 = vadd.f32 %v2671, %v2946
      %v3011 = vadd.f32 %v2674, %v2949
      %v3012 = vadd.f32 %v2679, %v2954
      %v3013 = vadd.f32 %v2682, %v2957
      %v3014 = vadd.f32 %v2687, %v2962
      %v3015 = vadd.f32 %v2690, %v2965
      %v3016 = vadd.f32 %v2695, %v2970
      %v3017 = vadd.f32 %v2698, %v2973
      %v3018 = vadd.f32 %v2703, %v2978
      %v3019 = vadd.f32 %v2706, %v2981
      %v3020 = vadd.f32 %v2711, %v2986
      %v3021 = vadd.f32 %v2714, %v2989
      %v3022 = vadd.f32 %v2719, %v2994
      %v3023 = vadd.f32 %v2722, %v2997
      %v3024 = vadd.f32 %v2727, %v3002
      %v3025 = vadd.f32 %v2730, %v3005
      %3026 = vmatprep.subr.bf16.mxu0 0
      %3027 = vmatpush1.bf16.msra.mxu0 %v1124
      %3028 = vmatprep.subr.bf16.mxu0 0
      %3029 = vmatpush1.bf16.msra.mxu0 0
      %3030 = vmatprep.subr.bf16.mxu0 0
      %3031 = vmatpush1.bf16.msra.mxu0 0
      %3032 = vmatprep.subr.bf16.mxu0 0
      %3033 = vmatpush1.bf16.msra.mxu0 0
      %3034 = vmatprep.subr.bf16.mxu0 0
      %3035 = vmatpush1.bf16.msra.mxu0 0
      %3036 = vmatprep.subr.bf16.mxu0 0
      %3037 = vmatpush1.bf16.msra.mxu0 0
      %3038 = vmatprep.subr.bf16.mxu0 0
      %3039 = vmatpush1.bf16.msra.mxu0 0
      %3040 = vmatprep.subr.bf16.mxu0 0
      %3041 = vmatpush1.bf16.msra.mxu0 0
      %3042 = vmatprep.subr.bf16.mxu0 0
      %3043 = vmatpush1.bf16.msra.mxu0 0
      %3044 = vmatprep.subr.bf16.mxu0 0
      %3045 = vmatpush1.bf16.msra.mxu0 0
      %3046 = vmatprep.subr.bf16.mxu0 0
      %3047 = vmatpush1.bf16.msra.mxu0 0
      %3048 = vmatprep.subr.bf16.mxu0 0
      %3049 = vmatpush1.bf16.msra.mxu0 0
      %3050 = vmatprep.subr.bf16.mxu0 0
      %3051 = vmatpush1.bf16.msra.mxu0 0
      %3052 = vmatprep.subr.bf16.mxu0 0
      %3053 = vmatpush1.bf16.msra.mxu0 0
      %3054 = vmatprep.subr.bf16.mxu0 0
      %3055 = vmatpush1.bf16.msra.mxu0 0
      %3056 = vmatprep.subr.bf16.mxu0 0
      %3057 = vmatpush1.bf16.msra.mxu0 0
      %3058 = vmatprep.mubr.bf16.mxu0 0
      %3059 = vmatmul.mubr.bf16.gmra.mrb[0].mxu0 %v1395
      %v3060 = vpop.f32.mrb[0].mxu0
      %v3061 = vadd.f32 0.0, %v3060
      %v3062 = vpop.f32.mrb[0].mxu0
      %v3063 = vpop.f32.mrb[0].mxu0
      %v3064 = vadd.f32 0.0, %v3063
      %v3065 = vpop.f32.mrb[0].mxu0
      %3066 = vmatprep.mubr.bf16.mxu0 0
      %3067 = vmatmul.mubr.bf16.gmra.mrb[0].mxu0 %v1398
      %v3068 = vpop.f32.mrb[0].mxu0
      %v3069 = vadd.f32 0.0, %v3068
      %v3070 = vpop.f32.mrb[0].mxu0
      %v3071 = vpop.f32.mrb[0].mxu0
      %v3072 = vadd.f32 0.0, %v3071
      %v3073 = vpop.f32.mrb[0].mxu0
      %3074 = vmatprep.mubr.bf16.mxu0 0
      %3075 = vmatmul.mubr.bf16.gmra.mrb[0].mxu0 %v1401
      %v3076 = vpop.f32.mrb[0].mxu0
      %v3077 = vadd.f32 0.0, %v3076
      %v3078 = vpop.f32.mrb[0].mxu0
      %v3079 = vpop.f32.mrb[0].mxu0
      %v3080 = vadd.f32 0.0, %v3079
      %v3081 = vpop.f32.mrb[0].mxu0
      %3082 = vmatprep.mubr.bf16.mxu0 0
      %3083 = vmatmul.mubr.bf16.gmra.mrb[0].mxu0 %v1404
      %v3084 = vpop.f32.mrb[0].mxu0
      %v3085 = vadd.f32 0.0, %v3084
      %v3086 = vpop.f32.mrb[0].mxu0
      %v3087 = vpop.f32.mrb[0].mxu0
      %v3088 = vadd.f32 0.0, %v3087
      %v3089 = vpop.f32.mrb[0].mxu0
      %3090 = vmatprep.mubr.bf16.mxu0 0
      %3091 = vmatmul.mubr.bf16.gmra.mrb[0].mxu0 %v1407
      %v3092 = vpop.f32.mrb[0].mxu0
      %v3093 = vadd.f32 0.0, %v3092
      %v3094 = vpop.f32.mrb[0].mxu0
      %v3095 = vpop.f32.mrb[0].mxu0
      %v3096 = vadd.f32 0.0, %v3095
      %v3097 = vpop.f32.mrb[0].mxu0
      %3098 = vmatprep.mubr.bf16.mxu0 0
      %3099 = vmatmul.mubr.bf16.gmra.mrb[0].mxu0 %v1410
      %v3100 = vpop.f32.mrb[0].mxu0
      %v3101 = vadd.f32 0.0, %v3100
      %v3102 = vpop.f32.mrb[0].mxu0
      %v3103 = vpop.f32.mrb[0].mxu0
      %v3104 = vadd.f32 0.0, %v3103
      %v3105 = vpop.f32.mrb[0].mxu0
      %3106 = vmatprep.mubr.bf16.mxu0 0
      %3107 = vmatmul.mubr.bf16.gmra.mrb[0].mxu0 %v1413
      %v3108 = vpop.f32.mrb[0].mxu0
      %v3109 = vadd.f32 0.0, %v3108
      %v3110 = vpop.f32.mrb[0].mxu0
      %v3111 = vpop.f32.mrb[0].mxu0
      %v3112 = vadd.f32 0.0, %v3111
      %v3113 = vpop.f32.mrb[0].mxu0
      %3114 = vmatprep.mubr.bf16.mxu0 0
      %3115 = vmatmul.mubr.bf16.gmra.mrb[0].mxu0 %v1416
      %v3116 = vpop.f32.mrb[0].mxu0
      %v3117 = vadd.f32 0.0, %v3116
      %v3118 = vpop.f32.mrb[0].mxu0
      %v3119 = vpop.f32.mrb[0].mxu0
      %v3120 = vadd.f32 0.0, %v3119
      %v3121 = vpop.f32.mrb[0].mxu0
      %3122 = vmatprep.mubr.bf16.mxu0 0
      %3123 = vmatmul.mubr.bf16.gmra.mrb[0].mxu0 %v1419
      %v3124 = vpop.f32.mrb[0].mxu0
      %v3125 = vadd.f32 0.0, %v3124
      %v3126 = vpop.f32.mrb[0].mxu0
      %v3127 = vpop.f32.mrb[0].mxu0
      %v3128 = vadd.f32 0.0, %v3127
      %v3129 = vpop.f32.mrb[0].mxu0
      %3130 = vdwg.mxu0
      %v3131 = vadd.f32 %v3008, %v3061
      %v3132 = vadd.f32 %v3009, %v3064
      %v3133 = vadd.f32 %v3010, %v3069
      %v3134 = vadd.f32 %v3011, %v3072
      %v3135 = vadd.f32 %v3012, %v3077
      %v3136 = vadd.f32 %v3013, %v3080
      %v3137 = vadd.f32 %v3014, %v3085
      %v3138 = vadd.f32 %v3015, %v3088
      %v3139 = vadd.f32 %v3016, %v3093
      %v3140 = vadd.f32 %v3017, %v3096
      %v3141 = vadd.f32 %v3018, %v3101
      %v3142 = vadd.f32 %v3019, %v3104
      %v3143 = vadd.f32 %v3020, %v3109
      %v3144 = vadd.f32 %v3021, %v3112
      %v3145 = vadd.f32 %v3022, %v3117
      %v3146 = vadd.f32 %v3023, %v3120
      %v3147 = vadd.f32 %v3024, %v3125
      %v3148 = vadd.f32 %v3025, %v3128
      %3149 = vmatprep.subr.bf16.mxu0 0
      %3150 = vmatpush1.bf16.msra.mxu0 %v1422
      %3151 = vmatprep.subr.bf16.mxu0 0
      %3152 = vmatpush1.bf16.msra.mxu0 0
      %3153 = vmatprep.subr.bf16.mxu0 0
      %3154 = vmatpush1.bf16.msra.mxu0 0
      %3155 = vmatprep.subr.bf16.mxu0 0
      %3156 = vmatpush1.bf16.msra.mxu0 0
      %3157 = vmatprep.subr.bf16.mxu0 0
      %3158 = vmatpush1.bf16.msra.mxu0 0
      %3159 = vmatprep.subr.bf16.mxu0 0
      %3160 = vmatpush1.bf16.msra.mxu0 0
      %3161 = vmatprep.subr.bf16.mxu0 0
      %3162 = vmatpush1.bf16.msra.mxu0 0
      %3163 = vmatprep.subr.bf16.mxu0 0
      %3164 = vmatpush1.bf16.msra.mxu0 0
      %3165 = vmatprep.subr.bf16.mxu0 0
      %3166 = vmatpush1.bf16.msra.mxu0 0
      %3167 = vmatprep.subr.bf16.mxu0 0
      %3168 = vmatpush1.bf16.msra.mxu0 0
      %3169 = vmatprep.subr.bf16.mxu0 0
      %3170 = vmatpush1.bf16.msra.mxu0 0
      %3171 = vmatprep.subr.bf16.mxu0 0
      %3172 = vmatpush1.bf16.msra.mxu0 0
      %3173 = vmatprep.subr.bf16.mxu0 0
      %3174 = vmatpush1.bf16.msra.mxu0 0
      %3175 = vmatprep.subr.bf16.mxu0 0
      %3176 = vmatpush1.bf16.msra.mxu0 0
      %3177 = vmatprep.subr.bf16.mxu0 0
      %3178 = vmatpush1.bf16.msra.mxu0 0
      %3179 = vmatprep.subr.bf16.mxu0 0
      %3180 = vmatpush1.bf16.msra.mxu0 0
      %3181 = vmatprep.mubr.bf16.mxu0 0
      %3182 = vmatmul.mubr.bf16.gmra.mrb[0].mxu0 %v1574
      %v3183 = vpop.f32.mrb[0].mxu0
      %v3184 = vadd.f32 0.0, %v3183
      %v3185 = vpop.f32.mrb[0].mxu0
      %v3186 = vpop.f32.mrb[0].mxu0
      %v3187 = vadd.f32 0.0, %v3186
      %v3188 = vpop.f32.mrb[0].mxu0
      %3189 = vmatprep.mubr.bf16.mxu0 0
      %3190 = vmatmul.mubr.bf16.gmra.mrb[0].mxu0 %v1577
      %v3191 = vpop.f32.mrb[0].mxu0
      %v3192 = vadd.f32 0.0, %v3191
      %v3193 = vpop.f32.mrb[0].mxu0
      %v3194 = vpop.f32.mrb[0].mxu0
      %v3195 = vadd.f32 0.0, %v3194
      %v3196 = vpop.f32.mrb[0].mxu0
      %3197 = vmatprep.mubr.bf16.mxu0 0
      %3198 = vmatmul.mubr.bf16.gmra.mrb[0].mxu0 %v1580
      %v3199 = vpop.f32.mrb[0].mxu0
      %v3200 = vadd.f32 0.0, %v3199
      %v3201 = vpop.f32.mrb[0].mxu0
      %v3202 = vpop.f32.mrb[0].mxu0
      %v3203 = vadd.f32 0.0, %v3202
      %v3204 = vpop.f32.mrb[0].mxu0
      %3205 = vmatprep.mubr.bf16.mxu0 0
      %3206 = vmatmul.mubr.bf16.gmra.mrb[0].mxu0 %v1583
      %v3207 = vpop.f32.mrb[0].mxu0
      %v3208 = vadd.f32 0.0, %v3207
      %v3209 = vpop.f32.mrb[0].mxu0
      %v3210 = vpop.f32.mrb[0].mxu0
      %v3211 = vadd.f32 0.0, %v3210
      %v3212 = vpop.f32.mrb[0].mxu0
      %3213 = vmatprep.mubr.bf16.mxu0 0
      %3214 = vmatmul.mubr.bf16.gmra.mrb[0].mxu0 %v1586
      %v3215 = vpop.f32.mrb[0].mxu0
      %v3216 = vadd.f32 0.0, %v3215
      %v3217 = vpop.f32.mrb[0].mxu0
      %v3218 = vpop.f32.mrb[0].mxu0
      %v3219 = vadd.f32 0.0, %v3218
      %v3220 = vpop.f32.mrb[0].mxu0
      %3221 = vmatprep.mubr.bf16.mxu0 0
      %3222 = vmatmul.mubr.bf16.gmra.mrb[0].mxu0 %v1589
      %v3223 = vpop.f32.mrb[0].mxu0
      %v3224 = vadd.f32 0.0, %v3223
      %v3225 = vpop.f32.mrb[0].mxu0
      %v3226 = vpop.f32.mrb[0].mxu0
      %v3227 = vadd.f32 0.0, %v3226
      %v3228 = vpop.f32.mrb[0].mxu0
      %3229 = vmatprep.mubr.bf16.mxu0 0
      %3230 = vmatmul.mubr.bf16.gmra.mrb[0].mxu0 %v1592
      %v3231 = vpop.f32.mrb[0].mxu0
      %v3232 = vadd.f32 0.0, %v3231
      %v3233 = vpop.f32.mrb[0].mxu0
      %v3234 = vpop.f32.mrb[0].mxu0
      %v3235 = vadd.f32 0.0, %v3234
      %v3236 = vpop.f32.mrb[0].mxu0
      %3237 = vmatprep.mubr.bf16.mxu0 0
      %3238 = vmatmul.mubr.bf16.gmra.mrb[0].mxu0 %v1595
      %v3239 = vpop.f32.mrb[0].mxu0
      %v3240 = vadd.f32 0.0, %v3239
      %v3241 = vpop.f32.mrb[0].mxu0
      %v3242 = vpop.f32.mrb[0].mxu0
      %v3243 = vadd.f32 0.0, %v3242
      %v3244 = vpop.f32.mrb[0].mxu0
      %3245 = vmatprep.mubr.bf16.mxu0 0
      %3246 = vmatmul.mubr.bf16.gmra.mrb[0].mxu0 %v1598
      %v3247 = vpop.f32.mrb[0].mxu0
      %v3248 = vadd.f32 0.0, %v3247
      %v3249 = vpop.f32.mrb[0].mxu0
      %v3250 = vpop.f32.mrb[0].mxu0
      %v3251 = vadd.f32 0.0, %v3250
      %v3252 = vpop.f32.mrb[0].mxu0
      %3253 = vdwg.mxu0
      %v3254 = vadd.f32 %v3131, %v3184
      %v3255 = vadd.f32 %v3132, %v3187
      %v3256 = vadd.f32 %v3133, %v3192
      %v3257 = vadd.f32 %v3134, %v3195
      %v3258 = vadd.f32 %v3135, %v3200
      %v3259 = vadd.f32 %v3136, %v3203
      %v3260 = vadd.f32 %v3137, %v3208
      %v3261 = vadd.f32 %v3138, %v3211
      %v3262 = vadd.f32 %v3139, %v3216
      %v3263 = vadd.f32 %v3140, %v3219
      %v3264 = vadd.f32 %v3141, %v3224
      %v3265 = vadd.f32 %v3142, %v3227
      %v3266 = vadd.f32 %v3143, %v3232
      %v3267 = vadd.f32 %v3144, %v3235
      %v3268 = vadd.f32 %v3145, %v3240
      %v3269 = vadd.f32 %v3146, %v3243
      %v3270 = vadd.f32 %v3147, %v3248
      %v3271 = vadd.f32 %v3148, %v3251
      %v3272 = vld [vmem:[%s239 + $0x4] sm:$0xe]
      %v3274 = vunpack.c.l.b16 %v3272
      %v3275 = vpack.c.b16 %v1290, %v3274
      %v3276 = vrot.slane %v3275, 1
      %v3277 = vrot.slane %v1309, 1
      %v3278 = vsel %vm1553, %v3276, %v3277
      %v3279 = vrot.slane %v1310, 1
      %v3280 = vsel %vm1553, %v3277, %v3279
      %v3281 = vrot.slane %v1311, 1
      %v3282 = vsel %vm1553, %v3279, %v3281
      %v3283 = vrot.slane %v1312, 1
      %v3284 = vsel %vm1553, %v3281, %v3283
      %v3285 = vrot.slane %v1313, 1
      %v3286 = vsel %vm1553, %v3283, %v3285
      %v3287 = vrot.slane %v1314, 1
      %v3288 = vsel %vm1553, %v3285, %v3287
      %v3289 = vrot.slane %v1315, 1
      %v3290 = vsel %vm1553, %v3287, %v3289
      %v3291 = vrot.slane %v1316, 1
      %v3292 = vsel %vm1553, %v3289, %v3291
      %v3293 = vrot.slane %v1317, 1
      %v3294 = vsel %vm1553, %v3291, %v3293
      %v3296 = vsel %vm332, %v3278, 0
      %v3299 = vsel %vm332, %v3280, 0
      %v3302 = vsel %vm332, %v3282, 0
      %v3305 = vsel %vm332, %v3284, 0
      %v3308 = vsel %vm332, %v3286, 0
      %v3311 = vsel %vm332, %v3288, 0
      %v3314 = vsel %vm332, %v3290, 0
      %v3317 = vsel %vm332, %v3292, 0
      %v3320 = vsel %vm332, %v3294, 0
      %3322 = vmatprep.subr.bf16.mxu0 0
      %3323 = vmatpush1.bf16.msra.mxu0 %v1601
      %3324 = vmatprep.subr.bf16.mxu0 0
      %3325 = vmatpush1.bf16.msra.mxu0 0
      %3326 = vmatprep.subr.bf16.mxu0 0
      %3327 = vmatpush1.bf16.msra.mxu0 0
      %3328 = vmatprep.subr.bf16.mxu0 0
      %3329 = vmatpush1.bf16.msra.mxu0 0
      %3330 = vmatprep.subr.bf16.mxu0 0
      %3331 = vmatpush1.bf16.msra.mxu0 0
      %3332 = vmatprep.subr.bf16.mxu0 0
      %3333 = vmatpush1.bf16.msra.mxu0 0
      %3334 = vmatprep.subr.bf16.mxu0 0
      %3335 = vmatpush1.bf16.msra.mxu0 0
      %3336 = vmatprep.subr.bf16.mxu0 0
      %3337 = vmatpush1.bf16.msra.mxu0 0
      %3338 = vmatprep.subr.bf16.mxu0 0
      %3339 = vmatpush1.bf16.msra.mxu0 0
      %3340 = vmatprep.subr.bf16.mxu0 0
      %3341 = vmatpush1.bf16.msra.mxu0 0
      %3342 = vmatprep.subr.bf16.mxu0 0
      %3343 = vmatpush1.bf16.msra.mxu0 0
      %3344 = vmatprep.subr.bf16.mxu0 0
      %3345 = vmatpush1.bf16.msra.mxu0 0
      %3346 = vmatprep.subr.bf16.mxu0 0
      %3347 = vmatpush1.bf16.msra.mxu0 0
      %3348 = vmatprep.subr.bf16.mxu0 0
      %3349 = vmatpush1.bf16.msra.mxu0 0
      %3350 = vmatprep.subr.bf16.mxu0 0
      %3351 = vmatpush1.bf16.msra.mxu0 0
      %3352 = vmatprep.subr.bf16.mxu0 0
      %3353 = vmatpush1.bf16.msra.mxu0 0
      %3354 = vmatprep.mubr.bf16.mxu0 0
      %3355 = vmatmul.mubr.bf16.gmra.mrb[0].mxu0 %v3296
      %v3356 = vpop.f32.mrb[0].mxu0
      %v3357 = vadd.f32 0.0, %v3356
      %v3358 = vpop.f32.mrb[0].mxu0
      %v3359 = vpop.f32.mrb[0].mxu0
      %v3360 = vadd.f32 0.0, %v3359
      %v3361 = vpop.f32.mrb[0].mxu0
      %3362 = vmatprep.mubr.bf16.mxu0 0
      %3363 = vmatmul.mubr.bf16.gmra.mrb[0].mxu0 %v3299
      %v3364 = vpop.f32.mrb[0].mxu0
      %v3365 = vadd.f32 0.0, %v3364
      %v3366 = vpop.f32.mrb[0].mxu0
      %v3367 = vpop.f32.mrb[0].mxu0
      %v3368 = vadd.f32 0.0, %v3367
      %v3369 = vpop.f32.mrb[0].mxu0
      %3370 = vmatprep.mubr.bf16.mxu0 0
      %3371 = vmatmul.mubr.bf16.gmra.mrb[0].mxu0 %v3302
      %v3372 = vpop.f32.mrb[0].mxu0
      %v3373 = vadd.f32 0.0, %v3372
      %v3374 = vpop.f32.mrb[0].mxu0
      %v3375 = vpop.f32.mrb[0].mxu0
      %v3376 = vadd.f32 0.0, %v3375
      %v3377 = vpop.f32.mrb[0].mxu0
      %3378 = vmatprep.mubr.bf16.mxu0 0
      %3379 = vmatmul.mubr.bf16.gmra.mrb[0].mxu0 %v3305
      %v3380 = vpop.f32.mrb[0].mxu0
      %v3381 = vadd.f32 0.0, %v3380
      %v3382 = vpop.f32.mrb[0].mxu0
      %v3383 = vpop.f32.mrb[0].mxu0
      %v3384 = vadd.f32 0.0, %v3383
      %v3385 = vpop.f32.mrb[0].mxu0
      %3386 = vmatprep.mubr.bf16.mxu0 0
      %3387 = vmatmul.mubr.bf16.gmra.mrb[0].mxu0 %v3308
      %v3388 = vpop.f32.mrb[0].mxu0
      %v3389 = vadd.f32 0.0, %v3388
      %v3390 = vpop.f32.mrb[0].mxu0
      %v3391 = vpop.f32.mrb[0].mxu0
      %v3392 = vadd.f32 0.0, %v3391
      %v3393 = vpop.f32.mrb[0].mxu0
      %3394 = vmatprep.mubr.bf16.mxu0 0
      %3395 = vmatmul.mubr.bf16.gmra.mrb[0].mxu0 %v3311
      %v3396 = vpop.f32.mrb[0].mxu0
      %v3397 = vadd.f32 0.0, %v3396
      %v3398 = vpop.f32.mrb[0].mxu0
      %v3399 = vpop.f32.mrb[0].mxu0
      %v3400 = vadd.f32 0.0, %v3399
      %v3401 = vpop.f32.mrb[0].mxu0
      %3402 = vmatprep.mubr.bf16.mxu0 0
      %3403 = vmatmul.mubr.bf16.gmra.mrb[0].mxu0 %v3314
      %v3404 = vpop.f32.mrb[0].mxu0
      %v3405 = vadd.f32 0.0, %v3404
      %v3406 = vpop.f32.mrb[0].mxu0
      %v3407 = vpop.f32.mrb[0].mxu0
      %v3408 = vadd.f32 0.0, %v3407
      %v3409 = vpop.f32.mrb[0].mxu0
      %3410 = vmatprep.mubr.bf16.mxu0 0
      %3411 = vmatmul.mubr.bf16.gmra.mrb[0].mxu0 %v3317
      %v3412 = vpop.f32.mrb[0].mxu0
      %v3413 = vadd.f32 0.0, %v3412
      %v3414 = vpop.f32.mrb[0].mxu0
      %v3415 = vpop.f32.mrb[0].mxu0
      %v3416 = vadd.f32 0.0, %v3415
      %v3417 = vpop.f32.mrb[0].mxu0
      %3418 = vmatprep.mubr.bf16.mxu0 0
      %3419 = vmatmul.mubr.bf16.gmra.mrb[0].mxu0 %v3320
      %v3420 = vpop.f32.mrb[0].mxu0
      %v3421 = vadd.f32 0.0, %v3420
      %v3422 = vpop.f32.mrb[0].mxu0
      %v3423 = vpop.f32.mrb[0].mxu0
      %v3424 = vadd.f32 0.0, %v3423
      %v3425 = vpop.f32.mrb[0].mxu0
      %3426 = vdwg.mxu0
      %v3427 = vadd.f32 %v3254, %v3357
      %v3428 = vadd.f32 %v3255, %v3360
      %v3429 = vadd.f32 %v3256, %v3365
      %v3430 = vadd.f32 %v3257, %v3368
      %v3431 = vadd.f32 %v3258, %v3373
      %v3432 = vadd.f32 %v3259, %v3376
      %v3433 = vadd.f32 %v3260, %v3381
      %v3434 = vadd.f32 %v3261, %v3384
      %v3435 = vadd.f32 %v3262, %v3389
      %v3436 = vadd.f32 %v3263, %v3392
      %v3437 = vadd.f32 %v3264, %v3397
      %v3438 = vadd.f32 %v3265, %v3400
      %v3439 = vadd.f32 %v3266, %v3405
      %v3440 = vadd.f32 %v3267, %v3408
      %v3441 = vadd.f32 %v3268, %v3413
      %v3442 = vadd.f32 %v3269, %v3416
      %v3443 = vadd.f32 %v3270, %v3421
      %v3444 = vadd.f32 %v3271, %v3424
      %3445 = vmatprep.subr.bf16.mxu0 0
      %3446 = vmatpush1.bf16.msra.mxu0 %v1842
      %3447 = vmatprep.subr.bf16.mxu0 0
      %3448 = vmatpush1.bf16.msra.mxu0 0
      %3449 = vmatprep.subr.bf16.mxu0 0
      %3450 = vmatpush1.bf16.msra.mxu0 0
      %3451 = vmatprep.subr.bf16.mxu0 0
      %3452 = vmatpush1.bf16.msra.mxu0 0
      %3453 = vmatprep.subr.bf16.mxu0 0
      %3454 = vmatpush1.bf16.msra.mxu0 0
      %3455 = vmatprep.subr.bf16.mxu0 0
      %3456 = vmatpush1.bf16.msra.mxu0 0
      %3457 = vmatprep.subr.bf16.mxu0 0
      %3458 = vmatpush1.bf16.msra.mxu0 0
      %3459 = vmatprep.subr.bf16.mxu0 0
      %3460 = vmatpush1.bf16.msra.mxu0 0
      %3461 = vmatprep.subr.bf16.mxu0 0
      %3462 = vmatpush1.bf16.msra.mxu0 0
      %3463 = vmatprep.subr.bf16.mxu0 0
      %3464 = vmatpush1.bf16.msra.mxu0 0
      %3465 = vmatprep.subr.bf16.mxu0 0
      %3466 = vmatpush1.bf16.msra.mxu0 0
      %3467 = vmatprep.subr.bf16.mxu0 0
      %3468 = vmatpush1.bf16.msra.mxu0 0
      %3469 = vmatprep.subr.bf16.mxu0 0
      %3470 = vmatpush1.bf16.msra.mxu0 0
      %3471 = vmatprep.subr.bf16.mxu0 0
      %3472 = vmatpush1.bf16.msra.mxu0 0
      %3473 = vmatprep.subr.bf16.mxu0 0
      %3474 = vmatpush1.bf16.msra.mxu0 0
      %3475 = vmatprep.subr.bf16.mxu0 0
      %3476 = vmatpush1.bf16.msra.mxu0 0
      %3477 = vmatprep.mubr.bf16.mxu0 0
      %3478 = vmatmul.mubr.bf16.gmra.mrb[0].mxu0 %v2056
      %v3479 = vpop.f32.mrb[0].mxu0
      %v3480 = vadd.f32 0.0, %v3479
      %v3481 = vpop.f32.mrb[0].mxu0
      %v3482 = vpop.f32.mrb[0].mxu0
      %v3483 = vadd.f32 0.0, %v3482
      %v3484 = vpop.f32.mrb[0].mxu0
      %3485 = vmatprep.mubr.bf16.mxu0 0
      %3486 = vmatmul.mubr.bf16.gmra.mrb[0].mxu0 %v2059
      %v3487 = vpop.f32.mrb[0].mxu0
      %v3488 = vadd.f32 0.0, %v3487
      %v3489 = vpop.f32.mrb[0].mxu0
      %v3490 = vpop.f32.mrb[0].mxu0
      %v3491 = vadd.f32 0.0, %v3490
      %v3492 = vpop.f32.mrb[0].mxu0
      %3493 = vmatprep.mubr.bf16.mxu0 0
      %3494 = vmatmul.mubr.bf16.gmra.mrb[0].mxu0 %v2062
      %v3495 = vpop.f32.mrb[0].mxu0
      %v3496 = vadd.f32 0.0, %v3495
      %v3497 = vpop.f32.mrb[0].mxu0
      %v3498 = vpop.f32.mrb[0].mxu0
      %v3499 = vadd.f32 0.0, %v3498
      %v3500 = vpop.f32.mrb[0].mxu0
      %3501 = vmatprep.mubr.bf16.mxu0 0
      %3502 = vmatmul.mubr.bf16.gmra.mrb[0].mxu0 %v2065
      %v3503 = vpop.f32.mrb[0].mxu0
      %v3504 = vadd.f32 0.0, %v3503
      %v3505 = vpop.f32.mrb[0].mxu0
      %v3506 = vpop.f32.mrb[0].mxu0
      %v3507 = vadd.f32 0.0, %v3506
      %v3508 = vpop.f32.mrb[0].mxu0
      %3509 = vmatprep.mubr.bf16.mxu0 0
      %3510 = vmatmul.mubr.bf16.gmra.mrb[0].mxu0 %v2068
      %v3511 = vpop.f32.mrb[0].mxu0
      %v3512 = vadd.f32 0.0, %v3511
      %v3513 = vpop.f32.mrb[0].mxu0
      %v3514 = vpop.f32.mrb[0].mxu0
      %v3515 = vadd.f32 0.0, %v3514
      %v3516 = vpop.f32.mrb[0].mxu0
      %3517 = vmatprep.mubr.bf16.mxu0 0
      %3518 = vmatmul.mubr.bf16.gmra.mrb[0].mxu0 %v2071
      %v3519 = vpop.f32.mrb[0].mxu0
      %v3520 = vadd.f32 0.0, %v3519
      %v3521 = vpop.f32.mrb[0].mxu0
      %v3522 = vpop.f32.mrb[0].mxu0
      %v3523 = vadd.f32 0.0, %v3522
      %v3524 = vpop.f32.mrb[0].mxu0
      %3525 = vmatprep.mubr.bf16.mxu0 0
      %3526 = vmatmul.mubr.bf16.gmra.mrb[0].mxu0 %v2074
      %v3527 = vpop.f32.mrb[0].mxu0
      %v3528 = vadd.f32 0.0, %v3527
      %v3529 = vpop.f32.mrb[0].mxu0
      %v3530 = vpop.f32.mrb[0].mxu0
      %v3531 = vadd.f32 0.0, %v3530
      %v3532 = vpop.f32.mrb[0].mxu0
      %3533 = vmatprep.mubr.bf16.mxu0 0
      %3534 = vmatmul.mubr.bf16.gmra.mrb[0].mxu0 %v2077
      %v3535 = vpop.f32.mrb[0].mxu0
      %v3536 = vadd.f32 0.0, %v3535
      %v3537 = vpop.f32.mrb[0].mxu0
      %v3538 = vpop.f32.mrb[0].mxu0
      %v3539 = vadd.f32 0.0, %v3538
      %v3540 = vpop.f32.mrb[0].mxu0
      %3541 = vmatprep.mubr.bf16.mxu0 0
      %3542 = vmatmul.mubr.bf16.gmra.mrb[0].mxu0 %v2080
      %v3543 = vpop.f32.mrb[0].mxu0
      %v3544 = vadd.f32 0.0, %v3543
      %v3545 = vpop.f32.mrb[0].mxu0
      %v3546 = vpop.f32.mrb[0].mxu0
      %v3547 = vadd.f32 0.0, %v3546
      %v3548 = vpop.f32.mrb[0].mxu0
      %3549 = vdwg.mxu0
      %v3550 = vadd.f32 %v3427, %v3480
      %v3551 = vadd.f32 %v3428, %v3483
      %v3552 = vadd.f32 %v3429, %v3488
      %v3553 = vadd.f32 %v3430, %v3491
      %v3554 = vadd.f32 %v3431, %v3496
      %v3555 = vadd.f32 %v3432, %v3499
      %v3556 = vadd.f32 %v3433, %v3504
      %v3557 = vadd.f32 %v3434, %v3507
      %v3558 = vadd.f32 %v3435, %v3512
      %v3559 = vadd.f32 %v3436, %v3515
      %v3560 = vadd.f32 %v3437, %v3520
      %v3561 = vadd.f32 %v3438, %v3523
      %v3562 = vadd.f32 %v3439, %v3528
      %v3563 = vadd.f32 %v3440, %v3531
      %v3564 = vadd.f32 %v3441, %v3536
      %v3565 = vadd.f32 %v3442, %v3539
      %v3566 = vadd.f32 %v3443, %v3544
      %v3567 = vadd.f32 %v3444, %v3547
      %3568 = vmatprep.subr.bf16.mxu0 0
      %3569 = vmatpush1.bf16.msra.mxu0 %v2083
      %3570 = vmatprep.subr.bf16.mxu0 0
      %3571 = vmatpush1.bf16.msra.mxu0 0
      %3572 = vmatprep.subr.bf16.mxu0 0
      %3573 = vmatpush1.bf16.msra.mxu0 0
      %3574 = vmatprep.subr.bf16.mxu0 0
      %3575 = vmatpush1.bf16.msra.mxu0 0
      %3576 = vmatprep.subr.bf16.mxu0 0
      %3577 = vmatpush1.bf16.msra.mxu0 0
      %3578 = vmatprep.subr.bf16.mxu0 0
      %3579 = vmatpush1.bf16.msra.mxu0 0
      %3580 = vmatprep.subr.bf16.mxu0 0
      %3581 = vmatpush1.bf16.msra.mxu0 0
      %3582 = vmatprep.subr.bf16.mxu0 0
      %3583 = vmatpush1.bf16.msra.mxu0 0
      %3584 = vmatprep.subr.bf16.mxu0 0
      %3585 = vmatpush1.bf16.msra.mxu0 0
      %3586 = vmatprep.subr.bf16.mxu0 0
      %3587 = vmatpush1.bf16.msra.mxu0 0
      %3588 = vmatprep.subr.bf16.mxu0 0
      %3589 = vmatpush1.bf16.msra.mxu0 0
      %3590 = vmatprep.subr.bf16.mxu0 0
      %3591 = vmatpush1.bf16.msra.mxu0 0
      %3592 = vmatprep.subr.bf16.mxu0 0
      %3593 = vmatpush1.bf16.msra.mxu0 0
      %3594 = vmatprep.subr.bf16.mxu0 0
      %3595 = vmatpush1.bf16.msra.mxu0 0
      %3596 = vmatprep.subr.bf16.mxu0 0
      %3597 = vmatpush1.bf16.msra.mxu0 0
      %3598 = vmatprep.subr.bf16.mxu0 0
      %3599 = vmatpush1.bf16.msra.mxu0 0
      %3600 = vmatprep.mubr.bf16.mxu0 0
      %3601 = vmatmul.mubr.bf16.gmra.mrb[0].mxu0 %v2305
      %v3602 = vpop.f32.mrb[0].mxu0
      %v3603 = vadd.f32 0.0, %v3602
      %v3604 = vpop.f32.mrb[0].mxu0
      %v3605 = vpop.f32.mrb[0].mxu0
      %v3606 = vadd.f32 0.0, %v3605
      %v3607 = vpop.f32.mrb[0].mxu0
      %3608 = vmatprep.mubr.bf16.mxu0 0
      %3609 = vmatmul.mubr.bf16.gmra.mrb[0].mxu0 %v2308
      %v3610 = vpop.f32.mrb[0].mxu0
      %v3611 = vadd.f32 0.0, %v3610
      %v3612 = vpop.f32.mrb[0].mxu0
      %v3613 = vpop.f32.mrb[0].mxu0
      %v3614 = vadd.f32 0.0, %v3613
      %v3615 = vpop.f32.mrb[0].mxu0
      %3616 = vmatprep.mubr.bf16.mxu0 0
      %3617 = vmatmul.mubr.bf16.gmra.mrb[0].mxu0 %v2311
      %v3618 = vpop.f32.mrb[0].mxu0
      %v3619 = vadd.f32 0.0, %v3618
      %v3620 = vpop.f32.mrb[0].mxu0
      %v3621 = vpop.f32.mrb[0].mxu0
      %v3622 = vadd.f32 0.0, %v3621
      %v3623 = vpop.f32.mrb[0].mxu0
      %3624 = vmatprep.mubr.bf16.mxu0 0
      %3625 = vmatmul.mubr.bf16.gmra.mrb[0].mxu0 %v2314
      %v3626 = vpop.f32.mrb[0].mxu0
      %v3627 = vadd.f32 0.0, %v3626
      %v3628 = vpop.f32.mrb[0].mxu0
      %v3629 = vpop.f32.mrb[0].mxu0
      %v3630 = vadd.f32 0.0, %v3629
      %v3631 = vpop.f32.mrb[0].mxu0
      %3632 = vmatprep.mubr.bf16.mxu0 0
      %3633 = vmatmul.mubr.bf16.gmra.mrb[0].mxu0 %v2317
      %v3634 = vpop.f32.mrb[0].mxu0
      %v3635 = vadd.f32 0.0, %v3634
      %v3636 = vpop.f32.mrb[0].mxu0
      %v3637 = vpop.f32.mrb[0].mxu0
      %v3638 = vadd.f32 0.0, %v3637
      %v3639 = vpop.f32.mrb[0].mxu0
      %3640 = vmatprep.mubr.bf16.mxu0 0
      %3641 = vmatmul.mubr.bf16.gmra.mrb[0].mxu0 %v2320
      %v3642 = vpop.f32.mrb[0].mxu0
      %v3643 = vadd.f32 0.0, %v3642
      %v3644 = vpop.f32.mrb[0].mxu0
      %v3645 = vpop.f32.mrb[0].mxu0
      %v3646 = vadd.f32 0.0, %v3645
      %v3647 = vpop.f32.mrb[0].mxu0
      %3648 = vmatprep.mubr.bf16.mxu0 0
      %3649 = vmatmul.mubr.bf16.gmra.mrb[0].mxu0 %v2323
      %v3650 = vpop.f32.mrb[0].mxu0
      %v3651 = vadd.f32 0.0, %v3650
      %v3652 = vpop.f32.mrb[0].mxu0
      %v3653 = vpop.f32.mrb[0].mxu0
      %v3654 = vadd.f32 0.0, %v3653
      %v3655 = vpop.f32.mrb[0].mxu0
      %3656 = vmatprep.mubr.bf16.mxu0 0
      %3657 = vmatmul.mubr.bf16.gmra.mrb[0].mxu0 %v2326
      %v3658 = vpop.f32.mrb[0].mxu0
      %v3659 = vadd.f32 0.0, %v3658
      %v3660 = vpop.f32.mrb[0].mxu0
      %v3661 = vpop.f32.mrb[0].mxu0
      %v3662 = vadd.f32 0.0, %v3661
      %v3663 = vpop.f32.mrb[0].mxu0
      %3664 = vmatprep.mubr.bf16.mxu0 0
      %3665 = vmatmul.mubr.bf16.gmra.mrb[0].mxu0 %v2329
      %v3666 = vpop.f32.mrb[0].mxu0
      %v3667 = vadd.f32 0.0, %v3666
      %v3668 = vpop.f32.mrb[0].mxu0
      %v3669 = vpop.f32.mrb[0].mxu0
      %v3670 = vadd.f32 0.0, %v3669
      %v3671 = vpop.f32.mrb[0].mxu0
      %3672 = vdwg.mxu0
      %v3673 = vadd.f32 %v3550, %v3603
      %v3674 = vadd.f32 %v3551, %v3606
      %v3675 = vadd.f32 %v3552, %v3611
      %v3676 = vadd.f32 %v3553, %v3614
      %v3677 = vadd.f32 %v3554, %v3619
      %v3678 = vadd.f32 %v3555, %v3622
      %v3679 = vadd.f32 %v3556, %v3627
      %v3680 = vadd.f32 %v3557, %v3630
      %v3681 = vadd.f32 %v3558, %v3635
      %v3682 = vadd.f32 %v3559, %v3638
      %v3683 = vadd.f32 %v3560, %v3643
      %v3684 = vadd.f32 %v3561, %v3646
      %v3685 = vadd.f32 %v3562, %v3651
      %v3686 = vadd.f32 %v3563, %v3654
      %v3687 = vadd.f32 %v3564, %v3659
      %v3688 = vadd.f32 %v3565, %v3662
      %v3689 = vadd.f32 %v3566, %v3667
      %v3690 = vadd.f32 %v3567, %v3670
      %v3691 = vld [vmem:[%s239 + $0x50] sm:$0x3]
      %v3693 = vunpack.c.l.b16 %v3691
      %v3694 = vpack.c.b16 %v3693, %v3693
      %v3696 = vshrl.u32 %v2026, 16
      %v3698 = vrot.slane %v3696, 1
      %v3699 = vshll.u32 %v2026, 16
      %v3701 = vrot.slane %v3699, 2
      %v3702 = vor.u32 %v3698, %v3701
      %v3704 = vshrl.u32 %v2027, 16
      %v3706 = vrot.slane %v3704, 1
      %v3707 = vshll.u32 %v2027, 16
      %v3709 = vrot.slane %v3707, 2
      %v3710 = vor.u32 %v3706, %v3709
      %v3711 = vsel %vm2214, %v3702, %v3710
      %v3713 = vshrl.u32 %v2028, 16
      %v3715 = vrot.slane %v3713, 1
      %v3716 = vshll.u32 %v2028, 16
      %v3718 = vrot.slane %v3716, 2
      %v3719 = vor.u32 %v3715, %v3718
      %v3720 = vsel %vm2214, %v3710, %v3719
      %v3722 = vshrl.u32 %v2029, 16
      %v3724 = vrot.slane %v3722, 1
      %v3725 = vshll.u32 %v2029, 16
      %v3727 = vrot.slane %v3725, 2
      %v3728 = vor.u32 %v3724, %v3727
      %v3729 = vsel %vm2214, %v3719, %v3728
      %v3731 = vshrl.u32 %v2030, 16
      %v3733 = vrot.slane %v3731, 1
      %v3734 = vshll.u32 %v2030, 16
      %v3736 = vrot.slane %v3734, 2
      %v3737 = vor.u32 %v3733, %v3736
      %v3738 = vsel %vm2214, %v3728, %v3737
      %v3740 = vshrl.u32 %v2031, 16
      %v3742 = vrot.slane %v3740, 1
      %v3743 = vshll.u32 %v2031, 16
      %v3745 = vrot.slane %v3743, 2
      %v3746 = vor.u32 %v3742, %v3745
      %v3747 = vsel %vm2214, %v3737, %v3746
      %v3749 = vshrl.u32 %v2032, 16
      %v3751 = vrot.slane %v3749, 1
      %v3752 = vshll.u32 %v2032, 16
      %v3754 = vrot.slane %v3752, 2
      %v3755 = vor.u32 %v3751, %v3754
      %v3756 = vsel %vm2214, %v3746, %v3755
      %v3758 = vshrl.u32 %v2033, 16
      %v3760 = vrot.slane %v3758, 1
      %v3761 = vshll.u32 %v2033, 16
      %v3763 = vrot.slane %v3761, 2
      %v3764 = vor.u32 %v3760, %v3763
      %v3765 = vsel %vm2214, %v3755, %v3764
      %v3767 = vshrl.u32 %v2034, 16
      %v3769 = vrot.slane %v3767, 1
      %v3770 = vshll.u32 %v2034, 16
      %v3772 = vrot.slane %v3770, 2
      %v3773 = vor.u32 %v3769, %v3772
      %v3774 = vsel %vm2214, %v3764, %v3773
      %v3776 = vshrl.u32 %v3694, 16
      %v3778 = vrot.slane %v3776, 1
      %v3779 = vshll.u32 %v3694, 16
      %v3781 = vrot.slane %v3779, 2
      %v3782 = vor.u32 %v3778, %v3781
      %v3783 = vsel %vm2214, %v3773, %v3782
      %v3785 = vsel %vm332, %v3711, 0
      %v3788 = vsel %vm332, %v3720, 0
      %v3791 = vsel %vm332, %v3729, 0
      %v3794 = vsel %vm332, %v3738, 0
      %v3797 = vsel %vm332, %v3747, 0
      %v3800 = vsel %vm332, %v3756, 0
      %v3803 = vsel %vm332, %v3765, 0
      %v3806 = vsel %vm332, %v3774, 0
      %v3809 = vsel %vm332, %v3783, 0
      %3811 = vmatprep.subr.bf16.mxu0 0
      %3812 = vmatpush1.bf16.msra.mxu0 %v2332
      %3813 = vmatprep.subr.bf16.mxu0 0
      %3814 = vmatpush1.bf16.msra.mxu0 0
      %3815 = vmatprep.subr.bf16.mxu0 0
      %3816 = vmatpush1.bf16.msra.mxu0 0
      %3817 = vmatprep.subr.bf16.mxu0 0
      %3818 = vmatpush1.bf16.msra.mxu0 0
      %3819 = vmatprep.subr.bf16.mxu0 0
      %3820 = vmatpush1.bf16.msra.mxu0 0
      %3821 = vmatprep.subr.bf16.mxu0 0
      %3822 = vmatpush1.bf16.msra.mxu0 0
      %3823 = vmatprep.subr.bf16.mxu0 0
      %3824 = vmatpush1.bf16.msra.mxu0 0
      %3825 = vmatprep.subr.bf16.mxu0 0
      %3826 = vmatpush1.bf16.msra.mxu0 0
      %3827 = vmatprep.subr.bf16.mxu0 0
      %3828 = vmatpush1.bf16.msra.mxu0 0
      %3829 = vmatprep.subr.bf16.mxu0 0
      %3830 = vmatpush1.bf16.msra.mxu0 0
      %3831 = vmatprep.subr.bf16.mxu0 0
      %3832 = vmatpush1.bf16.msra.mxu0 0
      %3833 = vmatprep.subr.bf16.mxu0 0
      %3834 = vmatpush1.bf16.msra.mxu0 0
      %3835 = vmatprep.subr.bf16.mxu0 0
      %3836 = vmatpush1.bf16.msra.mxu0 0
      %3837 = vmatprep.subr.bf16.mxu0 0
      %3838 = vmatpush1.bf16.msra.mxu0 0
      %3839 = vmatprep.subr.bf16.mxu0 0
      %3840 = vmatpush1.bf16.msra.mxu0 0
      %3841 = vmatprep.subr.bf16.mxu0 0
      %3842 = vmatpush1.bf16.msra.mxu0 0
      %3843 = vmatprep.mubr.bf16.mxu0 0
      %3844 = vmatmul.mubr.bf16.gmra.mrb[0].mxu0 %v3785
      %v3845 = vpop.f32.mrb[0].mxu0
      %v3846 = vadd.f32 0.0, %v3845
      %v3847 = vpop.f32.mrb[0].mxu0
      %v3848 = vpop.f32.mrb[0].mxu0
      %v3849 = vadd.f32 0.0, %v3848
      %v3850 = vpop.f32.mrb[0].mxu0
      %3851 = vmatprep.mubr.bf16.mxu0 0
      %3852 = vmatmul.mubr.bf16.gmra.mrb[0].mxu0 %v3788
      %v3853 = vpop.f32.mrb[0].mxu0
      %v3854 = vadd.f32 0.0, %v3853
      %v3855 = vpop.f32.mrb[0].mxu0
      %v3856 = vpop.f32.mrb[0].mxu0
      %v3857 = vadd.f32 0.0, %v3856
      %v3858 = vpop.f32.mrb[0].mxu0
      %3859 = vmatprep.mubr.bf16.mxu0 0
      %3860 = vmatmul.mubr.bf16.gmra.mrb[0].mxu0 %v3791
      %v3861 = vpop.f32.mrb[0].mxu0
      %v3862 = vadd.f32 0.0, %v3861
      %v3863 = vpop.f32.mrb[0].mxu0
      %v3864 = vpop.f32.mrb[0].mxu0
      %v3865 = vadd.f32 0.0, %v3864
      %v3866 = vpop.f32.mrb[0].mxu0
      %3867 = vmatprep.mubr.bf16.mxu0 0
      %3868 = vmatmul.mubr.bf16.gmra.mrb[0].mxu0 %v3794
      %v3869 = vpop.f32.mrb[0].mxu0
      %v3870 = vadd.f32 0.0, %v3869
      %v3871 = vpop.f32.mrb[0].mxu0
      %v3872 = vpop.f32.mrb[0].mxu0
      %v3873 = vadd.f32 0.0, %v3872
      %v3874 = vpop.f32.mrb[0].mxu0
      %3875 = vmatprep.mubr.bf16.mxu0 0
      %3876 = vmatmul.mubr.bf16.gmra.mrb[0].mxu0 %v3797
      %v3877 = vpop.f32.mrb[0].mxu0
      %v3878 = vadd.f32 0.0, %v3877
      %v3879 = vpop.f32.mrb[0].mxu0
      %v3880 = vpop.f32.mrb[0].mxu0
      %v3881 = vadd.f32 0.0, %v3880
      %v3882 = vpop.f32.mrb[0].mxu0
      %3883 = vmatprep.mubr.bf16.mxu0 0
      %3884 = vmatmul.mubr.bf16.gmra.mrb[0].mxu0 %v3800
      %v3885 = vpop.f32.mrb[0].mxu0
      %v3886 = vadd.f32 0.0, %v3885
      %v3887 = vpop.f32.mrb[0].mxu0
      %v3888 = vpop.f32.mrb[0].mxu0
      %v3889 = vadd.f32 0.0, %v3888
      %v3890 = vpop.f32.mrb[0].mxu0
      %3891 = vmatprep.mubr.bf16.mxu0 0
      %3892 = vmatmul.mubr.bf16.gmra.mrb[0].mxu0 %v3803
      %v3893 = vpop.f32.mrb[0].mxu0
      %v3894 = vadd.f32 0.0, %v3893
      %v3895 = vpop.f32.mrb[0].mxu0
      %v3896 = vpop.f32.mrb[0].mxu0
      %v3897 = vadd.f32 0.0, %v3896
      %v3898 = vpop.f32.mrb[0].mxu0
      %3899 = vmatprep.mubr.bf16.mxu0 0
      %3900 = vmatmul.mubr.bf16.gmra.mrb[0].mxu0 %v3806
      %v3901 = vpop.f32.mrb[0].mxu0
      %v3902 = vadd.f32 0.0, %v3901
      %v3903 = vpop.f32.mrb[0].mxu0
      %v3904 = vpop.f32.mrb[0].mxu0
      %v3905 = vadd.f32 0.0, %v3904
      %v3906 = vpop.f32.mrb[0].mxu0
      %3907 = vmatprep.mubr.bf16.mxu0 0
      %3908 = vmatmul.mubr.bf16.gmra.mrb[0].mxu0 %v3809
      %v3909 = vpop.f32.mrb[0].mxu0
      %v3910 = vadd.f32 0.0, %v3909
      %v3911 = vpop.f32.mrb[0].mxu0
      %v3912 = vpop.f32.mrb[0].mxu0
      %v3913 = vadd.f32 0.0, %v3912
      %v3914 = vpop.f32.mrb[0].mxu0
      %3915 = vdwg.mxu0
      %v3916 = vadd.f32 %v3673, %v3846
      %v3917 = vadd.f32 %v3674, %v3849
      %v3918 = vadd.f32 %v3675, %v3854
      %v3919 = vadd.f32 %v3676, %v3857
      %v3920 = vadd.f32 %v3677, %v3862
      %v3921 = vadd.f32 %v3678, %v3865
      %v3922 = vadd.f32 %v3679, %v3870
      %v3923 = vadd.f32 %v3680, %v3873
      %v3924 = vadd.f32 %v3681, %v3878
      %v3925 = vadd.f32 %v3682, %v3881
      %v3926 = vadd.f32 %v3683, %v3886
      %v3927 = vadd.f32 %v3684, %v3889
      %v3928 = vadd.f32 %v3685, %v3894
      %v3929 = vadd.f32 %v3686, %v3897
      %v3930 = vadd.f32 %v3687, %v3902
      %v3931 = vadd.f32 %v3688, %v3905
      %v3932 = vadd.f32 %v3689, %v3910
      %v3933 = vadd.f32 %v3690, %v3913
      %v3934 = vmul.f32 %v3916, %v2461
      %v3935 = vmul.f32 %v3917, %v2461
      %v3936 = vmul.f32 %v3918, %v2461
      %v3937 = vmul.f32 %v3919, %v2461
      %v3938 = vmul.f32 %v3920, %v2461
      %v3939 = vmul.f32 %v3921, %v2461
      %v3940 = vmul.f32 %v3922, %v2461
      %v3941 = vmul.f32 %v3923, %v2461
      %v3942 = vmul.f32 %v3924, %v2461
      %v3943 = vmul.f32 %v3925, %v2461
      %v3944 = vmul.f32 %v3926, %v2461
      %v3945 = vmul.f32 %v3927, %v2461
      %v3946 = vmul.f32 %v3928, %v2461
      %v3947 = vmul.f32 %v3929, %v2461
      %v3948 = vmul.f32 %v3930, %v2461
      %v3949 = vmul.f32 %v3931, %v2461
      %v3950 = vmul.f32 %v3932, %v2461
      %v3951 = vmul.f32 %v3933, %v2461
      %v3952 = vadd.f32 %v3934, %v2485
      %v3953 = vadd.f32 %v3935, %v2485
      %v3954 = vadd.f32 %v3936, %v2485
      %v3955 = vadd.f32 %v3937, %v2485
      %v3956 = vadd.f32 %v3938, %v2485
      %v3957 = vadd.f32 %v3939, %v2485
      %v3958 = vadd.f32 %v3940, %v2485
      %v3959 = vadd.f32 %v3941, %v2485
      %v3960 = vadd.f32 %v3942, %v2485
      %v3961 = vadd.f32 %v3943, %v2485
      %v3962 = vadd.f32 %v3944, %v2485
      %v3963 = vadd.f32 %v3945, %v2485
      %v3964 = vadd.f32 %v3946, %v2485
      %v3965 = vadd.f32 %v3947, %v2485
      %v3966 = vadd.f32 %v3948, %v2485
      %v3967 = vadd.f32 %v3949, %v2485
      %v3968 = vadd.f32 %v3950, %v2485
      %v3969 = vadd.f32 %v3951, %v2485
      %v3970 = vmax.f32 %v3952, 0.0
      %v3971 = vmax.f32 %v3953, 0.0
      %v3972 = vmax.f32 %v3954, 0.0
      %v3973 = vmax.f32 %v3955, 0.0
      %v3974 = vmax.f32 %v3956, 0.0
      %v3975 = vmax.f32 %v3957, 0.0
      %v3976 = vmax.f32 %v3958, 0.0
      %v3977 = vmax.f32 %v3959, 0.0
      %v3978 = vmax.f32 %v3960, 0.0
      %v3979 = vmax.f32 %v3961, 0.0
      %v3980 = vmax.f32 %v3962, 0.0
      %v3981 = vmax.f32 %v3963, 0.0
      %v3982 = vmax.f32 %v3964, 0.0
      %v3983 = vmax.f32 %v3965, 0.0
      %v3984 = vmax.f32 %v3966, 0.0
      %v3985 = vmax.f32 %v3967, 0.0
      %v3986 = vmax.f32 %v3968, 0.0
      %v3987 = vmax.f32 %v3969, 0.0
      %v3988 = vmax.f32 %v2505, %v3970
      %v3989 = vmax.f32 %v2506, %v3971
      %v3990 = vmax.f32 %v2507, %v3972
      %v3991 = vmax.f32 %v2508, %v3973
      %v3992 = vmax.f32 %v2509, %v3974
      %v3993 = vmax.f32 %v2510, %v3975
      %v3994 = vmax.f32 %v2511, %v3976
      %v3995 = vmax.f32 %v2512, %v3977
      %v3996 = vmax.f32 %v2513, %v3978
      %v3997 = vmax.f32 %v2514, %v3979
      %v3998 = vmax.f32 %v2515, %v3980
      %v3999 = vmax.f32 %v2516, %v3981
      %v4000 = vmax.f32 %v2517, %v3982
      %v4001 = vmax.f32 %v2518, %v3983
      %v4002 = vmax.f32 %v2519, %v3984
      %v4003 = vmax.f32 %v2520, %v3985
      %v4004 = vmax.f32 %v2521, %v3986
      %v4005 = vmax.f32 %v2522, %v3987
      %vm4006 = vcmask 261120
      %4007 = vst.msk [vmem:[%s244] sm:$0xff] %vm4006, %v3988
      %4008 = vst.msk [vmem:[%s244 + $0x8] sm:$0xff] %vm4006, %v3989
      %4009 = vst.msk [vmem:[%s244 + $0x10] sm:$0xff] %vm4006, %v3990
      %4010 = vst.msk [vmem:[%s244 + $0x18] sm:$0xff] %vm4006, %v3991
      %4011 = vst.msk [vmem:[%s244 + $0x20] sm:$0xff] %vm4006, %v3992
      %4012 = vst.msk [vmem:[%s244 + $0x28] sm:$0xff] %vm4006, %v3993
      %4013 = vst.msk [vmem:[%s244 + $0x30] sm:$0xff] %vm4006, %v3994
      %4014 = vst.msk [vmem:[%s244 + $0x38] sm:$0xff] %vm4006, %v3995
      %4015 = vst.msk [vmem:[%s244 + $0x40] sm:$0xff] %vm4006, %v3996
      %4016 = vst.msk [vmem:[%s244 + $0x48] sm:$0xff] %vm4006, %v3997
      %4017 = vst.msk [vmem:[%s244 + $0x50] sm:$0xff] %vm4006, %v3998
      %4018 = vst.msk [vmem:[%s244 + $0x58] sm:$0xff] %vm4006, %v3999
      %4019 = vst.msk [vmem:[%s244 + $0x60] sm:$0xff] %vm4006, %v4000
      %4020 = vst.msk [vmem:[%s244 + $0x68] sm:$0xff] %vm4006, %v4001
      %4021 = vst.msk [vmem:[%s244 + $0x70] sm:$0xff] %vm4006, %v4002
      %4022 = vst.msk [vmem:[%s244 + $0x78] sm:$0xff] %vm4006, %v4003
      %4023 = vst.msk [vmem:[%s244 + $0x80] sm:$0xff] %vm4006, %v4004
      %4024 = vst.msk [vmem:[%s244 + $0x88] sm:$0xff] %vm4006, %v4005
      %p4025 = scmp.lt.s32.totalorder %s16, 19
      %s4026 = scalar_select %p4025, %s16, 19
      %s4027 = smul.addr %s4026, 18
      %s4028 = smul.addr %s4027, 8
      %s4029 = scalar_lea.vmem %s5, %s4028
      // Predicated region
      $region41: #{_lambda_.8} parent=39 // pred_check
        %p4030 = pneg %p149
      $region42: #{_lambda_.8} parent=39 // pred_check_branch
        %4032 = sbr.rel (%p4030) target = $region44
      $region43: #{_lambda_.8} parent=39 // pred_region
        _
      $region44: #{_lambda_.8} parent=39 // pred_fallthru
        _
    $region40: #{_lambda_.8} parent=5 // pred_fallthru
      _
    %p4033 = scmp.le.s32.totalorder 2, %s11
    // Predicated region
    $region45: #{_lambda_.8} parent=5 // pred_check
      %p4034 = pneg %p4033
    $region46: #{_lambda_.8} parent=5 // pred_check_branch
      %4036 = sbr.rel (%p4034) target = $region48
    $region47: #{_lambda_.8} parent=5 // pred_region
      %s4037 = ssub.s32 %s11, 2
      // Predicated region
      $region49: #{_lambda_.8} parent=47 // pred_check
        %p4038 = pneg %p155
      $region50: #{_lambda_.8} parent=47 // pred_check_branch
        %4040 = sbr.rel (%p4038) target = $region52
      $region51: #{_lambda_.8} parent=47 // pred_region
        %p4041 = scmp.lt.s32.totalorder %s17, 19
        %s4042 = scalar_select %p4041, %s17, 19
        %s4043 = smul.addr %s4042, 18
        %s4044 = smul.addr %s4043, 8
        %s4045 = scalar_lea.vmem %s5, %s4044
      $region52: #{_lambda_.8} parent=47 // pred_fallthru
        _
    $region48: #{_lambda_.8} parent=5 // pred_fallthru
      _
  $region6: #{_lambda_.8} parent=0 // loop_footer
    %s15 = sadd.s32 1, %s11
  $region7: #{_lambda_.8} parent=0 // loop_footer_branch
    %10 = sbr.rel target = $region3
  $region8: #{_lambda_.8} parent=0 // loop_exit
    _

// kernel: _lambda_.9
$region0: #{_lambda_.9}
  #allocation0 [shape = 'u32[]', space=smem, size = 0x4, offset = 0x4, fixed_abs, tag = 'smem constant byte address 0x4 - core index']
  #allocation1 [shape = 'u32[144,128]{1,0:T(1,128)}', space=vmem, size = 0x12000, scoped, tag = 'internal scratch']
  %s0 = inlined_call_operand.vmem [shape: bf16[20,58,32], index: 0, kind: input, shape index: {}]
  %s1 = inlined_call_operand.vmem [shape: bf16[20,58,32], index: 1, kind: input, shape index: {}]
  %s2 = inlined_call_operand.vmem [shape: bf16[9,32,32], index: 2, kind: input, shape index: {}]
  %s3 = inlined_call_operand.vmem [shape: f32[1,32], index: 3, kind: input, shape index: {}]
  %s4 = inlined_call_operand.vmem [shape: f32[1,32], index: 4, kind: input, shape index: {}]
  %s5 = inlined_call_operand.vmem [shape: f32[20,40,32], index: 5, kind: output, shape index: {}]
  %s6 = sld [smem:[#allocation0]]
  $region53: #{_lambda_.9} parent=0
    _
  %s8 = ssub.s32 1, %s6
  %s9 = scalar_select 0, %s8, %s6
  loop: start=0, step=1, limit=22
  $region2: #{_lambda_.9} parent=0 // loop_pre_header
    _
  $region3: #{_lambda_.9} parent=0 // loop_header
    %s11 = sphi 0, %s15
    %p12 = scmp.ge.s32.totalorder %s11, 22
    %s21 = sphi 0, %s23
    %s24 = sphi 0, %s21
    %s25 = sphi 0, %s24
    %s41 = sphi 0, %s25
    %s47 = sphi 0, %s49
    %s50 = sphi 0, %s47
    %s51 = sphi 0, %s50
    %s67 = sphi 0, %s51
    %s71 = sphi 0, %s71
    %s73 = sphi 0, %s71
    %s74 = sphi 0, %s73
    %s88 = sphi 0, %s74
    %s92 = sphi 0, %s92
    %s94 = sphi 0, %s92
    %s95 = sphi 0, %s94
    %s109 = sphi 0, %s95
    %s113 = sphi 0, %s113
    %s115 = sphi 0, %s113
    %s116 = sphi 0, %s115
    %s130 = sphi 0, %s116
    %s136 = sphi 0, %s138
    %s139 = sphi 0, %s136
    %s140 = sphi 0, %s139
    %s156 = sphi 0, %s140
  $region4: #{_lambda_.9} parent=0 // loop_header_branch
    %14 = sbr.rel (%p12) target = $region8
  $region5: #{_lambda_.9} parent=0 // loop_body
    %s16 = ssub.s32 %s11, 1
    %s17 = ssub.s32 %s11, 2
    %s18 = sadd.s32 %s11, 1
    %s19 = ssub.s32 %s11, %s18
    %p20 = scmp.eq.s32.totalorder %s19, 0
    %s22 = sadd.s32 %s21, 1
    %s23 = scalar_select %p20, %s21, %s22
    %p26 = pneg %p20
    %p27 = scmp.eq.s32.totalorder %s11, 19
    %p28 = por %p26, %p27
    %p29 = scmp.ne.s32.totalorder %s21, %s24
    %p30 = scmp.eq.s32.totalorder %s11, 0
    %p31 = por %p29, %p30
    %p32 = scmp.ne.s32.totalorder %s21, %s24
    %p33 = scmp.eq.s32.totalorder %s16, 19
    %p34 = por %p32, %p33
    %p35 = scmp.ne.s32.totalorder %s24, %s25
    %p36 = scmp.eq.s32.totalorder %s16, 0
    %p37 = por %p35, %p36
    %p38 = scmp.ne.s32.totalorder %s24, %s25
    %p39 = scmp.eq.s32.totalorder %s17, 19
    %p40 = por %p38, %p39
    %p42 = scmp.ne.s32.totalorder %s25, %s41
    %p43 = scmp.eq.s32.totalorder %s17, 0
    %p44 = por %p42, %p43
    %s45 = ssub.s32 %s11, %s18
    %p46 = scmp.eq.s32.totalorder %s45, 0
    %s48 = sadd.s32 %s47, 1
    %s49 = scalar_select %p46, %s47, %s48
    %p52 = pneg %p46
    %p53 = scmp.eq.s32.totalorder %s11, 19
    %p54 = por %p52, %p53
    %p55 = scmp.ne.s32.totalorder %s47, %s50
    %p56 = scmp.eq.s32.totalorder %s11, 0
    %p57 = por %p55, %p56
    %p58 = scmp.ne.s32.totalorder %s47, %s50
    %p59 = scmp.eq.s32.totalorder %s16, 19
    %p60 = por %p58, %p59
    %p61 = scmp.ne.s32.totalorder %s50, %s51
    %p62 = scmp.eq.s32.totalorder %s16, 0
    %p63 = por %p61, %p62
    %p64 = scmp.ne.s32.totalorder %s50, %s51
    %p65 = scmp.eq.s32.totalorder %s17, 19
    %p66 = por %p64, %p65
    %p68 = scmp.ne.s32.totalorder %s51, %s67
    %p69 = scmp.eq.s32.totalorder %s17, 0
    %p70 = por %p68, %p69
    %s72 = sadd.s32 %s71, 1
    %p75 = scmp.eq.s32.totalorder %s11, 19
    %p76 = scmp.ne.s32.totalorder %s71, %s73
    %p77 = scmp.eq.s32.totalorder %s11, 0
    %p78 = por %p76, %p77
    %p79 = scmp.ne.s32.totalorder %s71, %s73
    %p80 = scmp.eq.s32.totalorder %s16, 19
    %p81 = por %p79, %p80
    %p82 = scmp.ne.s32.totalorder %s73, %s74
    %p83 = scmp.eq.s32.totalorder %s16, 0
    %p84 = por %p82, %p83
    %p85 = scmp.ne.s32.totalorder %s73, %s74
    %p86 = scmp.eq.s32.totalorder %s17, 19
    %p87 = por %p85, %p86
    %p89 = scmp.ne.s32.totalorder %s74, %s88
    %p90 = scmp.eq.s32.totalorder %s17, 0
    %p91 = por %p89, %p90
    %s93 = sadd.s32 %s92, 1
    %p96 = scmp.eq.s32.totalorder %s11, 19
    %p97 = scmp.ne.s32.totalorder %s92, %s94
    %p98 = scmp.eq.s32.totalorder %s11, 0
    %p99 = por %p97, %p98
    %p100 = scmp.ne.s32.totalorder %s92, %s94
    %p101 = scmp.eq.s32.totalorder %s16, 19
    %p102 = por %p100, %p101
    %p103 = scmp.ne.s32.totalorder %s94, %s95
    %p104 = scmp.eq.s32.totalorder %s16, 0
    %p105 = por %p103, %p104
    %p106 = scmp.ne.s32.totalorder %s94, %s95
    %p107 = scmp.eq.s32.totalorder %s17, 19
    %p108 = por %p106, %p107
    %p110 = scmp.ne.s32.totalorder %s95, %s109
    %p111 = scmp.eq.s32.totalorder %s17, 0
    %p112 = por %p110, %p111
    %s114 = sadd.s32 %s113, 1
    %p117 = scmp.eq.s32.totalorder %s11, 19
    %p118 = scmp.ne.s32.totalorder %s113, %s115
    %p119 = scmp.eq.s32.totalorder %s11, 0
    %p120 = por %p118, %p119
    %p121 = scmp.ne.s32.totalorder %s113, %s115
    %p122 = scmp.eq.s32.totalorder %s16, 19
    %p123 = por %p121, %p122
    %p124 = scmp.ne.s32.totalorder %s115, %s116
    %p125 = scmp.eq.s32.totalorder %s16, 0
    %p126 = por %p124, %p125
    %p127 = scmp.ne.s32.totalorder %s115, %s116
    %p128 = scmp.eq.s32.totalorder %s17, 19
    %p129 = por %p127, %p128
    %p131 = scmp.ne.s32.totalorder %s116, %s130
    %p132 = scmp.eq.s32.totalorder %s17, 0
    %p133 = por %p131, %p132
    %s134 = ssub.s32 %s11, %s18
    %p135 = scmp.eq.s32.totalorder %s134, 0
    %s137 = sadd.s32 %s136, 1
    %s138 = scalar_select %p135, %s136, %s137
    %p141 = pneg %p135
    %p142 = scmp.eq.s32.totalorder %s11, 19
    %p143 = por %p141, %p142
    %p144 = scmp.ne.s32.totalorder %s136, %s139
    %p145 = scmp.eq.s32.totalorder %s11, 0
    %p146 = por %p144, %p145
    %p147 = scmp.ne.s32.totalorder %s136, %s139
    %p148 = scmp.eq.s32.totalorder %s16, 19
    %p149 = por %p147, %p148
    %p150 = scmp.ne.s32.totalorder %s139, %s140
    %p151 = scmp.eq.s32.totalorder %s16, 0
    %p152 = por %p150, %p151
    %p153 = scmp.ne.s32.totalorder %s139, %s140
    %p154 = scmp.eq.s32.totalorder %s17, 19
    %p155 = por %p153, %p154
    %p157 = scmp.ne.s32.totalorder %s140, %s156
    %p158 = scmp.eq.s32.totalorder %s17, 0
    %p159 = por %p157, %p158
    %p160 = scmp.le.s32.totalorder 1, %s11
    %p161 = scmp.lt.s32.totalorder %s11, 21
    %p162 = pnand %p160, %p161
    %p163 = pneg %p162
    // Predicated region
    $region9: #{_lambda_.9} parent=5 // pred_check
      _
    $region10: #{_lambda_.9} parent=5 // pred_check_branch
      %165 = sbr.rel (%p162) target = $region12
    $region11: #{_lambda_.9} parent=5 // pred_region
      %s166 = ssub.s32 %s11, 1
      // Predicated region
      $region13: #{_lambda_.9} parent=11 // pred_check
        %p167 = pneg %p84
      $region14: #{_lambda_.9} parent=11 // pred_check_branch
        %169 = sbr.rel (%p167) target = $region16
      $region15: #{_lambda_.9} parent=11 // pred_region
        _
      $region16: #{_lambda_.9} parent=11 // pred_fallthru
        _
      // Predicated region
      $region17: #{_lambda_.9} parent=11 // pred_check
        %p170 = pneg %p105
      $region18: #{_lambda_.9} parent=11 // pred_check_branch
        %172 = sbr.rel (%p170) target = $region20
      $region19: #{_lambda_.9} parent=11 // pred_region
        _
      $region20: #{_lambda_.9} parent=11 // pred_fallthru
        _
      // Predicated region
      $region21: #{_lambda_.9} parent=11 // pred_check
        %p173 = pneg %p126
      $region22: #{_lambda_.9} parent=11 // pred_check_branch
        %175 = sbr.rel (%p173) target = $region24
      $region23: #{_lambda_.9} parent=11 // pred_region
        _
      $region24: #{_lambda_.9} parent=11 // pred_fallthru
        _
    $region12: #{_lambda_.9} parent=5 // pred_fallthru
      _
    %p176 = scmp.lt.s32.totalorder %s11, 20
    // Predicated region
    $region25: #{_lambda_.9} parent=5 // pred_check
      %p177 = pneg %p176
    $region26: #{_lambda_.9} parent=5 // pred_check_branch
      %179 = sbr.rel (%p177) target = $region28
    $region27: #{_lambda_.9} parent=5 // pred_region
      // Predicated region
      $region29: #{_lambda_.9} parent=27 // pred_check
        %p180 = pneg %p31
      $region30: #{_lambda_.9} parent=27 // pred_check_branch
        %182 = sbr.rel (%p180) target = $region32
      $region31: #{_lambda_.9} parent=27 // pred_region
        %p183 = scmp.lt.s32.totalorder %s11, 19
        %s184 = scalar_select %p183, %s11, 19
        %s185 = smul.addr %s184, 8
        %s186 = smul.addr %s185, 4
        %s187 = scalar_lea.vmem %s0, %s186
      $region32: #{_lambda_.9} parent=27 // pred_fallthru
        _
      // Predicated region
      $region33: #{_lambda_.9} parent=27 // pred_check
        %p188 = pneg %p57
      $region34: #{_lambda_.9} parent=27 // pred_check_branch
        %190 = sbr.rel (%p188) target = $region36
      $region35: #{_lambda_.9} parent=27 // pred_region
        %p191 = scmp.lt.s32.totalorder %s11, 19
        %s192 = scalar_select %p191, %s11, 19
        %s193 = smul.addr %s192, 8
        %s194 = smul.addr %s193, 4
        %s195 = scalar_lea.vmem %s1, %s194
      $region36: #{_lambda_.9} parent=27 // pred_fallthru
        _
    $region28: #{_lambda_.9} parent=5 // pred_fallthru
      _
    %p196 = scmp.le.s32.totalorder 1, %s11
    %p197 = scmp.lt.s32.totalorder %s11, 21
    %p198 = pnand %p196, %p197
    %p199 = pneg %p198
    // Predicated region
    $region37: #{_lambda_.9} parent=5 // pred_check
      _
    $region38: #{_lambda_.9} parent=5 // pred_check_branch
      %201 = sbr.rel (%p198) target = $region40
    $region39: #{_lambda_.9} parent=5 // pred_region
      %s202 = ssub.s32 %s11, 1
      %p203 = scmp.lt.s32.totalorder %s16, 19
      %s204 = scalar_select %p203, %s16, 19
      %s205 = smul.addr %s204, 8
      %s206 = smul.addr %s205, 4
      %s207 = scalar_lea.vmem %s0, %s206
      %p208 = pneg %p37
      %p209 = pneg %p34
      %p210 = scmp.lt.s32.totalorder %s16, 19
      %s211 = scalar_select %p210, %s16, 19
      %s212 = smul.addr %s211, 8
      %s213 = smul.addr %s212, 4
      %s214 = scalar_lea.vmem %s1, %s213
      %p215 = pneg %p63
      %p216 = pneg %p60
      %p217 = pneg %p84
      %p218 = pneg %p81
      %p219 = pneg %p105
      %p220 = pneg %p102
      %p221 = pneg %p126
      %p222 = pneg %p123
      %p223 = pneg %p152
      %p224 = pneg %p149
      %p225 = scmp.lt.s32.totalorder %s16, 19
      %s226 = scalar_select %p225, %s16, 19
      %s227 = smul.addr %s226, 5
      %s228 = smul.addr %s227, 8
      %s229 = scalar_lea.vmem %s5, %s228
      %p230 = scmp.lt.s32.totalorder %s16, 19
      %s231 = scalar_select %p230, %s16, 19
      %s232 = smul.addr %s231, 8
      %s233 = smul.addr %s232, 4
      %s234 = scalar_lea.vmem %s0, %s233
      %p235 = scmp.lt.s32.totalorder %s16, 19
      %s236 = scalar_select %p235, %s16, 19
      %s237 = smul.addr %s236, 8
      %s238 = smul.addr %s237, 4
      %s239 = scalar_lea.vmem %s1, %s238
      %p240 = scmp.lt.s32.totalorder %s16, 19
      %s241 = scalar_select %p240, %s16, 19
      %s242 = smul.addr %s241, 5
      %s243 = smul.addr %s242, 8
      %s244 = scalar_lea.vmem %s5, %s243
      %v246 = vld [vmem:[%s3] sm:$0x1]
      %v247 = vld [vmem:[%s4] sm:$0x1]
      %v248 = vld [vmem:[%s234] sm:$0xf]
      %v249 = vld [vmem:[%s234 + $0x4] sm:$0xf]
      %v250 = vld [vmem:[%s234 + $0x8] sm:$0xf]
      %v251 = vld [vmem:[%s234 + $0xc] sm:$0xf]
      %v252 = vld [vmem:[%s234 + $0x10] sm:$0xf]
      %v253 = vld [vmem:[%s2] sm:$0xf]
      %v254 = vld [vmem:[%s2 + $0x4] sm:$0xf]
      %v255 = vld [vmem:[%s2 + $0x8] sm:$0xf]
      %v256 = vld [vmem:[%s2 + $0xc] sm:$0xf]
      %v257 = vld [vmem:[%s239] sm:$0xf]
      %v258 = vld [vmem:[%s239 + $0x4] sm:$0xf]
      %v259 = vld [vmem:[%s239 + $0x8] sm:$0xf]
      %v260 = vld [vmem:[%s239 + $0xc] sm:$0xf]
      %v261 = vld [vmem:[%s239 + $0x10] sm:$0xf]
      %s262 = scalar_lea.vmem %s2, 16
      %v263 = vld [vmem:[%s262] sm:$0xf]
      %v264 = vld [vmem:[%s262 + $0x4] sm:$0xf]
      %v265 = vld [vmem:[%s262 + $0x8] sm:$0xf]
      %v266 = vld [vmem:[%s262 + $0xc] sm:$0xf]
      %v272 = vunpack.c.l.b16 %v257
      %v273 = vunpack.c.l.b16 %v258
      %v274 = vunpack.c.l.b16 %v259
      %v275 = vunpack.c.l.b16 %v260
      %v276 = vunpack.c.l.b16 %v261
      %v277 = vpack.c.b16 %v273, %v272
      %v278 = vpack.c.b16 %v275, %v274
      %v279 = vpack.c.b16 %v276, %v276
      %v284 = vunpack.c.l.b16 %v263
      %v285 = vunpack.c.l.b16 %v264
      %v286 = vunpack.c.l.b16 %v265
      %v287 = vunpack.c.l.b16 %v266
      %v288 = vpack.c.b16 %v285, %v284
      %v289 = vpack.c.b16 %v287, %v286
      %vm292 = vcmask 261120
      %v294 = vsel %vm292, %v277, 0
      %v297 = vsel %vm292, %v278, 0
      %v300 = vsel %vm292, %v279, 0
      %302 = vmatprep.subr.bf16.mxu0 0
      %303 = vmatpush1.bf16.msra.mxu0 %v288
      %304 = vmatprep.subr.bf16.mxu0 0
      %305 = vmatpush1.bf16.msra.mxu0 %v289
      %306 = vmatprep.subr.bf16.mxu0 0
      %307 = vmatpush1.bf16.msra.mxu0 0
      %308 = vmatprep.subr.bf16.mxu0 0
      %309 = vmatpush1.bf16.msra.mxu0 0
      %310 = vmatprep.subr.bf16.mxu0 0
      %311 = vmatpush1.bf16.msra.mxu0 0
      %312 = vmatprep.subr.bf16.mxu0 0
      %313 = vmatpush1.bf16.msra.mxu0 0
      %314 = vmatprep.subr.bf16.mxu0 0
      %315 = vmatpush1.bf16.msra.mxu0 0
      %316 = vmatprep.subr.bf16.mxu0 0
      %317 = vmatpush1.bf16.msra.mxu0 0
      %318 = vmatprep.subr.bf16.mxu0 0
      %319 = vmatpush1.bf16.msra.mxu0 0
      %320 = vmatprep.subr.bf16.mxu0 0
      %321 = vmatpush1.bf16.msra.mxu0 0
      %322 = vmatprep.subr.bf16.mxu0 0
      %323 = vmatpush1.bf16.msra.mxu0 0
      %324 = vmatprep.subr.bf16.mxu0 0
      %325 = vmatpush1.bf16.msra.mxu0 0
      %326 = vmatprep.subr.bf16.mxu0 0
      %327 = vmatpush1.bf16.msra.mxu0 0
      %328 = vmatprep.subr.bf16.mxu0 0
      %329 = vmatpush1.bf16.msra.mxu0 0
      %330 = vmatprep.subr.bf16.mxu0 0
      %331 = vmatpush1.bf16.msra.mxu0 0
      %332 = vmatprep.subr.bf16.mxu0 0
      %333 = vmatpush1.bf16.msra.mxu0 0
      %334 = vmatprep.mubr.bf16.mxu0 0
      %335 = vmatmul.mubr.bf16.gmra.mrb[0].mxu0 %v294
      %v336 = vpop.f32.mrb[0].mxu0
      %v337 = vadd.f32 0.0, %v336
      %v338 = vpop.f32.mrb[0].mxu0
      %v339 = vpop.f32.mrb[0].mxu0
      %v340 = vadd.f32 0.0, %v339
      %v341 = vpop.f32.mrb[0].mxu0
      %342 = vmatprep.mubr.bf16.mxu0 0
      %343 = vmatmul.mubr.bf16.gmra.mrb[0].mxu0 %v297
      %v344 = vpop.f32.mrb[0].mxu0
      %v345 = vadd.f32 0.0, %v344
      %v346 = vpop.f32.mrb[0].mxu0
      %v347 = vpop.f32.mrb[0].mxu0
      %v348 = vadd.f32 0.0, %v347
      %v349 = vpop.f32.mrb[0].mxu0
      %350 = vmatprep.mubr.bf16.mxu0 0
      %351 = vmatmul.mubr.bf16.gmra.mrb[0].mxu0 %v300
      %v352 = vpop.f32.mrb[0].mxu0
      %v353 = vadd.f32 0.0, %v352
      %v354 = vpop.f32.mrb[0].mxu0
      %v355 = vpop.f32.mrb[0].mxu0
      %v356 = vpop.f32.mrb[0].mxu0
      %357 = vdwg.mxu0
      %v363 = vunpack.c.l.b16 %v248
      %v364 = vunpack.c.l.b16 %v249
      %v365 = vunpack.c.l.b16 %v250
      %v366 = vunpack.c.l.b16 %v251
      %v367 = vunpack.c.l.b16 %v252
      %v368 = vpack.c.b16 %v364, %v363
      %v369 = vpack.c.b16 %v366, %v365
      %v370 = vpack.c.b16 %v367, %v367
      %v375 = vunpack.c.l.b16 %v253
      %v376 = vunpack.c.l.b16 %v254
      %v377 = vunpack.c.l.b16 %v255
      %v378 = vunpack.c.l.b16 %v256
      %v379 = vpack.c.b16 %v376, %v375
      %v380 = vpack.c.b16 %v378, %v377
      %v384 = vsel %vm292, %v368, 0
      %v387 = vsel %vm292, %v369, 0
      %v390 = vsel %vm292, %v370, 0
      %392 = vmatprep.subr.bf16.mxu0 0
      %393 = vmatpush1.bf16.msra.mxu0 %v379
      %394 = vmatprep.subr.bf16.mxu0 0
      %395 = vmatpush1.bf16.msra.mxu0 %v380
      %396 = vmatprep.subr.bf16.mxu0 0
      %397 = vmatpush1.bf16.msra.mxu0 0
      %398 = vmatprep.subr.bf16.mxu0 0
      %399 = vmatpush1.bf16.msra.mxu0 0
      %400 = vmatprep.subr.bf16.mxu0 0
      %401 = vmatpush1.bf16.msra.mxu0 0
      %402 = vmatprep.subr.bf16.mxu0 0
      %403 = vmatpush1.bf16.msra.mxu0 0
      %404 = vmatprep.subr.bf16.mxu0 0
      %405 = vmatpush1.bf16.msra.mxu0 0
      %406 = vmatprep.subr.bf16.mxu0 0
      %407 = vmatpush1.bf16.msra.mxu0 0
      %408 = vmatprep.subr.bf16.mxu0 0
      %409 = vmatpush1.bf16.msra.mxu0 0
      %410 = vmatprep.subr.bf16.mxu0 0
      %411 = vmatpush1.bf16.msra.mxu0 0
      %412 = vmatprep.subr.bf16.mxu0 0
      %413 = vmatpush1.bf16.msra.mxu0 0
      %414 = vmatprep.subr.bf16.mxu0 0
      %415 = vmatpush1.bf16.msra.mxu0 0
      %416 = vmatprep.subr.bf16.mxu0 0
      %417 = vmatpush1.bf16.msra.mxu0 0
      %418 = vmatprep.subr.bf16.mxu0 0
      %419 = vmatpush1.bf16.msra.mxu0 0
      %420 = vmatprep.subr.bf16.mxu0 0
      %421 = vmatpush1.bf16.msra.mxu0 0
      %422 = vmatprep.subr.bf16.mxu0 0
      %423 = vmatpush1.bf16.msra.mxu0 0
      %424 = vmatprep.mubr.bf16.mxu0 0
      %425 = vmatmul.mubr.bf16.gmra.mrb[0].mxu0 %v384
      %v426 = vpop.f32.mrb[0].mxu0
      %v427 = vadd.f32 %v337, %v426
      %v428 = vpop.f32.mrb[0].mxu0
      %v429 = vpop.f32.mrb[0].mxu0
      %v430 = vadd.f32 %v340, %v429
      %v431 = vpop.f32.mrb[0].mxu0
      %432 = vmatprep.mubr.bf16.mxu0 0
      %433 = vmatmul.mubr.bf16.gmra.mrb[0].mxu0 %v387
      %v434 = vpop.f32.mrb[0].mxu0
      %v435 = vadd.f32 %v345, %v434
      %v436 = vpop.f32.mrb[0].mxu0
      %v437 = vpop.f32.mrb[0].mxu0
      %v438 = vadd.f32 %v348, %v437
      %v439 = vpop.f32.mrb[0].mxu0
      %440 = vmatprep.mubr.bf16.mxu0 0
      %441 = vmatmul.mubr.bf16.gmra.mrb[0].mxu0 %v390
      %v442 = vpop.f32.mrb[0].mxu0
      %v443 = vadd.f32 %v353, %v442
      %v444 = vpop.f32.mrb[0].mxu0
      %v445 = vpop.f32.mrb[0].mxu0
      %v446 = vpop.f32.mrb[0].mxu0
      %447 = vdwg.mxu0
      %v448 = vld [vmem:[%s234] sm:$0xf]
      %v449 = vld [vmem:[%s234 + $0x4] sm:$0xf]
      %v450 = vld [vmem:[%s234 + $0x8] sm:$0xf]
      %v451 = vld [vmem:[%s234 + $0xc] sm:$0xf]
      %v452 = vld [vmem:[%s234 + $0x10] sm:$0xf]
      %v453 = vld [vmem:[%s234 + $0x14] sm:$0x1]
      %s454 = scalar_lea.vmem %s2, 32
      %v455 = vld [vmem:[%s454] sm:$0xf]
      %v456 = vld [vmem:[%s454 + $0x4] sm:$0xf]
      %v457 = vld [vmem:[%s454 + $0x8] sm:$0xf]
      %v458 = vld [vmem:[%s454 + $0xc] sm:$0xf]
      %v465 = vunpack.c.l.b16 %v448
      %v466 = vunpack.c.l.b16 %v449
      %v467 = vunpack.c.l.b16 %v450
      %v468 = vunpack.c.l.b16 %v451
      %v469 = vunpack.c.l.b16 %v452
      %v470 = vunpack.c.l.b16 %v453
      %v471 = vpack.c.b16 %v466, %v465
      %v472 = vpack.c.b16 %v468, %v467
      %v473 = vpack.c.b16 %v470, %v469
      %vm474 = vsmask.f32 7424
      %v476 = vshrl.u32 %v471, 16
      %v478 = vshll.u32 %v471, 16
      %v480 = vrot.slane %v478, 1
      %v481 = vor.u32 %v476, %v480
      %v483 = vshll.u32 %v472, 16
      %v485 = vrot.slane %v483, 1
      %v486 = vsel %vm474, %v481, %v485
      %v487 = vshrl.u32 %v472, 16
      %v489 = vor.u32 %v487, %v485
      %v491 = vshll.u32 %v473, 16
      %v493 = vrot.slane %v491, 1
      %v494 = vsel %vm474, %v489, %v493
      %v495 = vshrl.u32 %v473, 16
      %v497 = vor.u32 %v495, %v493
      %v502 = vunpack.c.l.b16 %v455
      %v503 = vunpack.c.l.b16 %v456
      %v504 = vunpack.c.l.b16 %v457
      %v505 = vunpack.c.l.b16 %v458
      %v506 = vpack.c.b16 %v503, %v502
      %v507 = vpack.c.b16 %v505, %v504
      %v511 = vsel %vm292, %v486, 0
      %v514 = vsel %vm292, %v494, 0
      %v517 = vsel %vm292, %v497, 0
      %519 = vmatprep.subr.bf16.mxu0 0
      %520 = vmatpush1.bf16.msra.mxu0 %v506
      %521 = vmatprep.subr.bf16.mxu0 0
      %522 = vmatpush1.bf16.msra.mxu0 %v507
      %523 = vmatprep.subr.bf16.mxu0 0
      %524 = vmatpush1.bf16.msra.mxu0 0
      %525 = vmatprep.subr.bf16.mxu0 0
      %526 = vmatpush1.bf16.msra.mxu0 0
      %527 = vmatprep.subr.bf16.mxu0 0
      %528 = vmatpush1.bf16.msra.mxu0 0
      %529 = vmatprep.subr.bf16.mxu0 0
      %530 = vmatpush1.bf16.msra.mxu0 0
      %531 = vmatprep.subr.bf16.mxu0 0
      %532 = vmatpush1.bf16.msra.mxu0 0
      %533 = vmatprep.subr.bf16.mxu0 0
      %534 = vmatpush1.bf16.msra.mxu0 0
      %535 = vmatprep.subr.bf16.mxu0 0
      %536 = vmatpush1.bf16.msra.mxu0 0
      %537 = vmatprep.subr.bf16.mxu0 0
      %538 = vmatpush1.bf16.msra.mxu0 0
      %539 = vmatprep.subr.bf16.mxu0 0
      %540 = vmatpush1.bf16.msra.mxu0 0
      %541 = vmatprep.subr.bf16.mxu0 0
      %542 = vmatpush1.bf16.msra.mxu0 0
      %543 = vmatprep.subr.bf16.mxu0 0
      %544 = vmatpush1.bf16.msra.mxu0 0
      %545 = vmatprep.subr.bf16.mxu0 0
      %546 = vmatpush1.bf16.msra.mxu0 0
      %547 = vmatprep.subr.bf16.mxu0 0
      %548 = vmatpush1.bf16.msra.mxu0 0
      %549 = vmatprep.subr.bf16.mxu0 0
      %550 = vmatpush1.bf16.msra.mxu0 0
      %551 = vmatprep.mubr.bf16.mxu0 0
      %552 = vmatmul.mubr.bf16.gmra.mrb[0].mxu0 %v511
      %v553 = vpop.f32.mrb[0].mxu0
      %v554 = vadd.f32 0.0, %v553
      %v555 = vpop.f32.mrb[0].mxu0
      %v556 = vpop.f32.mrb[0].mxu0
      %v557 = vadd.f32 0.0, %v556
      %v558 = vpop.f32.mrb[0].mxu0
      %559 = vmatprep.mubr.bf16.mxu0 0
      %560 = vmatmul.mubr.bf16.gmra.mrb[0].mxu0 %v514
      %v561 = vpop.f32.mrb[0].mxu0
      %v562 = vadd.f32 0.0, %v561
      %v563 = vpop.f32.mrb[0].mxu0
      %v564 = vpop.f32.mrb[0].mxu0
      %v565 = vadd.f32 0.0, %v564
      %v566 = vpop.f32.mrb[0].mxu0
      %567 = vmatprep.mubr.bf16.mxu0 0
      %568 = vmatmul.mubr.bf16.gmra.mrb[0].mxu0 %v517
      %v569 = vpop.f32.mrb[0].mxu0
      %v570 = vadd.f32 0.0, %v569
      %v571 = vpop.f32.mrb[0].mxu0
      %v572 = vpop.f32.mrb[0].mxu0
      %v573 = vpop.f32.mrb[0].mxu0
      %574 = vdwg.mxu0
      %v575 = vadd.f32 %v427, %v554
      %v576 = vadd.f32 %v430, %v557
      %v577 = vadd.f32 %v435, %v562
      %v578 = vadd.f32 %v438, %v565
      %v579 = vadd.f32 %v443, %v570
      %v580 = vld [vmem:[%s234] sm:$0xc]
      %v581 = vld [vmem:[%s234 + $0x14] sm:$0x7]
      %s582 = scalar_lea.vmem %s2, 48
      %v583 = vld [vmem:[%s582] sm:$0xf]
      %v584 = vld [vmem:[%s582 + $0x4] sm:$0xf]
      %v585 = vld [vmem:[%s582 + $0x8] sm:$0xf]
      %v586 = vld [vmem:[%s582 + $0xc] sm:$0xf]
      %v589 = vunpack.c.l.b16 %v580
      %v590 = vunpack.c.l.b16 %v581
      %v591 = vpack.c.b16 %v466, %v589
      %v592 = vpack.c.b16 %v590, %v469
      %vm593 = vsmask.f32 5376
      %v595 = vshrl.u32 %v591, 16
      %v597 = vrot.slane %v595, 2
      %v598 = vshll.u32 %v591, 16
      %v600 = vrot.slane %v598, 3
      %v601 = vor.u32 %v597, %v600
      %v602 = vrot.slane %v487, 2
      %v603 = vrot.slane %v483, 3
      %v604 = vor.u32 %v602, %v603
      %v605 = vsel %vm593, %v601, %v604
      %v607 = vshrl.u32 %v592, 16
      %v609 = vrot.slane %v607, 2
      %v610 = vshll.u32 %v592, 16
      %v612 = vrot.slane %v610, 3
      %v613 = vor.u32 %v609, %v612
      %v614 = vsel %vm593, %v604, %v613
      %v619 = vunpack.c.l.b16 %v583
      %v620 = vunpack.c.l.b16 %v584
      %v621 = vunpack.c.l.b16 %v585
      %v622 = vunpack.c.l.b16 %v586
      %v623 = vpack.c.b16 %v620, %v619
      %v624 = vpack.c.b16 %v622, %v621
      %v628 = vsel %vm292, %v605, 0
      %v631 = vsel %vm292, %v614, 0
      %v634 = vsel %vm292, %v613, 0
      %636 = vmatprep.subr.bf16.mxu0 0
      %637 = vmatpush1.bf16.msra.mxu0 %v623
      %638 = vmatprep.subr.bf16.mxu0 0
      %639 = vmatpush1.bf16.msra.mxu0 %v624
      %640 = vmatprep.subr.bf16.mxu0 0
      %641 = vmatpush1.bf16.msra.mxu0 0
      %642 = vmatprep.subr.bf16.mxu0 0
      %643 = vmatpush1.bf16.msra.mxu0 0
      %644 = vmatprep.subr.bf16.mxu0 0
      %645 = vmatpush1.bf16.msra.mxu0 0
      %646 = vmatprep.subr.bf16.mxu0 0
      %647 = vmatpush1.bf16.msra.mxu0 0
      %648 = vmatprep.subr.bf16.mxu0 0
      %649 = vmatpush1.bf16.msra.mxu0 0
      %650 = vmatprep.subr.bf16.mxu0 0
      %651 = vmatpush1.bf16.msra.mxu0 0
      %652 = vmatprep.subr.bf16.mxu0 0
      %653 = vmatpush1.bf16.msra.mxu0 0
      %654 = vmatprep.subr.bf16.mxu0 0
      %655 = vmatpush1.bf16.msra.mxu0 0
      %656 = vmatprep.subr.bf16.mxu0 0
      %657 = vmatpush1.bf16.msra.mxu0 0
      %658 = vmatprep.subr.bf16.mxu0 0
      %659 = vmatpush1.bf16.msra.mxu0 0
      %660 = vmatprep.subr.bf16.mxu0 0
      %661 = vmatpush1.bf16.msra.mxu0 0
      %662 = vmatprep.subr.bf16.mxu0 0
      %663 = vmatpush1.bf16.msra.mxu0 0
      %664 = vmatprep.subr.bf16.mxu0 0
      %665 = vmatpush1.bf16.msra.mxu0 0
      %666 = vmatprep.subr.bf16.mxu0 0
      %667 = vmatpush1.bf16.msra.mxu0 0
      %668 = vmatprep.mubr.bf16.mxu0 0
      %669 = vmatmul.mubr.bf16.gmra.mrb[0].mxu0 %v628
      %v670 = vpop.f32.mrb[0].mxu0
      %v671 = vadd.f32 0.0, %v670
      %v672 = vpop.f32.mrb[0].mxu0
      %v673 = vpop.f32.mrb[0].mxu0
      %v674 = vadd.f32 0.0, %v673
      %v675 = vpop.f32.mrb[0].mxu0
      %676 = vmatprep.mubr.bf16.mxu0 0
      %677 = vmatmul.mubr.bf16.gmra.mrb[0].mxu0 %v631
      %v678 = vpop.f32.mrb[0].mxu0
      %v679 = vadd.f32 0.0, %v678
      %v680 = vpop.f32.mrb[0].mxu0
      %v681 = vpop.f32.mrb[0].mxu0
      %v682 = vadd.f32 0.0, %v681
      %v683 = vpop.f32.mrb[0].mxu0
      %684 = vmatprep.mubr.bf16.mxu0 0
      %685 = vmatmul.mubr.bf16.gmra.mrb[0].mxu0 %v634
      %v686 = vpop.f32.mrb[0].mxu0
      %v687 = vadd.f32 0.0, %v686
      %v688 = vpop.f32.mrb[0].mxu0
      %v689 = vpop.f32.mrb[0].mxu0
      %v690 = vpop.f32.mrb[0].mxu0
      %691 = vdwg.mxu0
      %v692 = vadd.f32 %v575, %v671
      %v693 = vadd.f32 %v576, %v674
      %v694 = vadd.f32 %v577, %v679
      %v695 = vadd.f32 %v578, %v682
      %v696 = vadd.f32 %v579, %v687
      %v697 = vld [vmem:[%s239] sm:$0xc]
      %v698 = vld [vmem:[%s239 + $0x4] sm:$0xf]
      %v699 = vld [vmem:[%s239 + $0x8] sm:$0xf]
      %v700 = vld [vmem:[%s239 + $0xc] sm:$0xf]
      %v701 = vld [vmem:[%s239 + $0x10] sm:$0xf]
      %v702 = vld [vmem:[%s239 + $0x14] sm:$0x7]
      %s703 = scalar_lea.vmem %s2, 64
      %v704 = vld [vmem:[%s703] sm:$0xf]
      %v705 = vld [vmem:[%s703 + $0x4] sm:$0xf]
      %v706 = vld [vmem:[%s703 + $0x8] sm:$0xf]
      %v707 = vld [vmem:[%s703 + $0xc] sm:$0xf]
      %v714 = vunpack.c.l.b16 %v697
      %v715 = vunpack.c.l.b16 %v698
      %v716 = vunpack.c.l.b16 %v699
      %v717 = vunpack.c.l.b16 %v700
      %v718 = vunpack.c.l.b16 %v701
      %v719 = vunpack.c.l.b16 %v702
      %v720 = vpack.c.b16 %v715, %v714
      %v721 = vpack.c.b16 %v717, %v716
      %v722 = vpack.c.b16 %v719, %v718
      %v724 = vshrl.u32 %v720, 16
      %v726 = vrot.slane %v724, 2
      %v727 = vshll.u32 %v720, 16
      %v729 = vrot.slane %v727, 3
      %v730 = vor.u32 %v726, %v729
      %v732 = vshrl.u32 %v721, 16
      %v734 = vrot.slane %v732, 2
      %v735 = vshll.u32 %v721, 16
      %v737 = vrot.slane %v735, 3
      %v738 = vor.u32 %v734, %v737
      %v739 = vsel %vm593, %v730, %v738
      %v741 = vshrl.u32 %v722, 16
      %v743 = vrot.slane %v741, 2
      %v744 = vshll.u32 %v722, 16
      %v746 = vrot.slane %v744, 3
      %v747 = vor.u32 %v743, %v746
      %v748 = vsel %vm593, %v738, %v747
      %v753 = vunpack.c.l.b16 %v704
      %v754 = vunpack.c.l.b16 %v705
      %v755 = vunpack.c.l.b16 %v706
      %v756 = vunpack.c.l.b16 %v707
      %v757 = vpack.c.b16 %v754, %v753
      %v758 = vpack.c.b16 %v756, %v755
      %v762 = vsel %vm292, %v739, 0
      %v765 = vsel %vm292, %v748, 0
      %v768 = vsel %vm292, %v747, 0
      %770 = vmatprep.subr.bf16.mxu0 0
      %771 = vmatpush1.bf16.msra.mxu0 %v757
      %772 = vmatprep.subr.bf16.mxu0 0
      %773 = vmatpush1.bf16.msra.mxu0 %v758
      %774 = vmatprep.subr.bf16.mxu0 0
      %775 = vmatpush1.bf16.msra.mxu0 0
      %776 = vmatprep.subr.bf16.mxu0 0
      %777 = vmatpush1.bf16.msra.mxu0 0
      %778 = vmatprep.subr.bf16.mxu0 0
      %779 = vmatpush1.bf16.msra.mxu0 0
      %780 = vmatprep.subr.bf16.mxu0 0
      %781 = vmatpush1.bf16.msra.mxu0 0
      %782 = vmatprep.subr.bf16.mxu0 0
      %783 = vmatpush1.bf16.msra.mxu0 0
      %784 = vmatprep.subr.bf16.mxu0 0
      %785 = vmatpush1.bf16.msra.mxu0 0
      %786 = vmatprep.subr.bf16.mxu0 0
      %787 = vmatpush1.bf16.msra.mxu0 0
      %788 = vmatprep.subr.bf16.mxu0 0
      %789 = vmatpush1.bf16.msra.mxu0 0
      %790 = vmatprep.subr.bf16.mxu0 0
      %791 = vmatpush1.bf16.msra.mxu0 0
      %792 = vmatprep.subr.bf16.mxu0 0
      %793 = vmatpush1.bf16.msra.mxu0 0
      %794 = vmatprep.subr.bf16.mxu0 0
      %795 = vmatpush1.bf16.msra.mxu0 0
      %796 = vmatprep.subr.bf16.mxu0 0
      %797 = vmatpush1.bf16.msra.mxu0 0
      %798 = vmatprep.subr.bf16.mxu0 0
      %799 = vmatpush1.bf16.msra.mxu0 0
      %800 = vmatprep.subr.bf16.mxu0 0
      %801 = vmatpush1.bf16.msra.mxu0 0
      %802 = vmatprep.mubr.bf16.mxu0 0
      %803 = vmatmul.mubr.bf16.gmra.mrb[0].mxu0 %v762
      %v804 = vpop.f32.mrb[0].mxu0
      %v805 = vadd.f32 0.0, %v804
      %v806 = vpop.f32.mrb[0].mxu0
      %v807 = vpop.f32.mrb[0].mxu0
      %v808 = vadd.f32 0.0, %v807
      %v809 = vpop.f32.mrb[0].mxu0
      %810 = vmatprep.mubr.bf16.mxu0 0
      %811 = vmatmul.mubr.bf16.gmra.mrb[0].mxu0 %v765
      %v812 = vpop.f32.mrb[0].mxu0
      %v813 = vadd.f32 0.0, %v812
      %v814 = vpop.f32.mrb[0].mxu0
      %v815 = vpop.f32.mrb[0].mxu0
      %v816 = vadd.f32 0.0, %v815
      %v817 = vpop.f32.mrb[0].mxu0
      %818 = vmatprep.mubr.bf16.mxu0 0
      %819 = vmatmul.mubr.bf16.gmra.mrb[0].mxu0 %v768
      %v820 = vpop.f32.mrb[0].mxu0
      %v821 = vadd.f32 0.0, %v820
      %v822 = vpop.f32.mrb[0].mxu0
      %v823 = vpop.f32.mrb[0].mxu0
      %v824 = vpop.f32.mrb[0].mxu0
      %825 = vdwg.mxu0
      %v826 = vadd.f32 %v692, %v805
      %v827 = vadd.f32 %v693, %v808
      %v828 = vadd.f32 %v694, %v813
      %v829 = vadd.f32 %v695, %v816
      %v830 = vadd.f32 %v696, %v821
      %v831 = vld [vmem:[%s234] sm:$0x8]
      %s832 = scalar_lea.vmem %s2, 80
      %v833 = vld [vmem:[%s832] sm:$0xf]
      %v834 = vld [vmem:[%s832 + $0x4] sm:$0xf]
      %v835 = vld [vmem:[%s832 + $0x8] sm:$0xf]
      %v836 = vld [vmem:[%s832 + $0xc] sm:$0xf]
      %v838 = vunpack.c.l.b16 %v831
      %v839 = vpack.c.b16 %v466, %v838
      %vm840 = vcmask 1044480
      %v841 = vrot.slane %v839, 3
      %v842 = vrot.slane %v472, 3
      %v843 = vsel %vm840, %v841, %v842
      %v844 = vrot.slane %v592, 3
      %v845 = vsel %vm840, %v842, %v844
      %v850 = vunpack.c.l.b16 %v833
      %v851 = vunpack.c.l.b16 %v834
      %v852 = vunpack.c.l.b16 %v835
      %v853 = vunpack.c.l.b16 %v836
      %v854 = vpack.c.b16 %v851, %v850
      %v855 = vpack.c.b16 %v853, %v852
      %v859 = vsel %vm292, %v843, 0
      %v862 = vsel %vm292, %v845, 0
      %v865 = vsel %vm292, %v844, 0
      %867 = vmatprep.subr.bf16.mxu0 0
      %868 = vmatpush1.bf16.msra.mxu0 %v854
      %869 = vmatprep.subr.bf16.mxu0 0
      %870 = vmatpush1.bf16.msra.mxu0 %v855
      %871 = vmatprep.subr.bf16.mxu0 0
      %872 = vmatpush1.bf16.msra.mxu0 0
      %873 = vmatprep.subr.bf16.mxu0 0
      %874 = vmatpush1.bf16.msra.mxu0 0
      %875 = vmatprep.subr.bf16.mxu0 0
      %876 = vmatpush1.bf16.msra.mxu0 0
      %877 = vmatprep.subr.bf16.mxu0 0
      %878 = vmatpush1.bf16.msra.mxu0 0
      %879 = vmatprep.subr.bf16.mxu0 0
      %880 = vmatpush1.bf16.msra.mxu0 0
      %881 = vmatprep.subr.bf16.mxu0 0
      %882 = vmatpush1.bf16.msra.mxu0 0
      %883 = vmatprep.subr.bf16.mxu0 0
      %884 = vmatpush1.bf16.msra.mxu0 0
      %885 = vmatprep.subr.bf16.mxu0 0
      %886 = vmatpush1.bf16.msra.mxu0 0
      %887 = vmatprep.subr.bf16.mxu0 0
      %888 = vmatpush1.bf16.msra.mxu0 0
      %889 = vmatprep.subr.bf16.mxu0 0
      %890 = vmatpush1.bf16.msra.mxu0 0
      %891 = vmatprep.subr.bf16.mxu0 0
      %892 = vmatpush1.bf16.msra.mxu0 0
      %893 = vmatprep.subr.bf16.mxu0 0
      %894 = vmatpush1.bf16.msra.mxu0 0
      %895 = vmatprep.subr.bf16.mxu0 0
      %896 = vmatpush1.bf16.msra.mxu0 0
      %897 = vmatprep.subr.bf16.mxu0 0
      %898 = vmatpush1.bf16.msra.mxu0 0
      %899 = vmatprep.mubr.bf16.mxu0 0
      %900 = vmatmul.mubr.bf16.gmra.mrb[0].mxu0 %v859
      %v901 = vpop.f32.mrb[0].mxu0
      %v902 = vadd.f32 0.0, %v901
      %v903 = vpop.f32.mrb[0].mxu0
      %v904 = vpop.f32.mrb[0].mxu0
      %v905 = vadd.f32 0.0, %v904
      %v906 = vpop.f32.mrb[0].mxu0
      %907 = vmatprep.mubr.bf16.mxu0 0
      %908 = vmatmul.mubr.bf16.gmra.mrb[0].mxu0 %v862
      %v909 = vpop.f32.mrb[0].mxu0
      %v910 = vadd.f32 0.0, %v909
      %v911 = vpop.f32.mrb[0].mxu0
      %v912 = vpop.f32.mrb[0].mxu0
      %v913 = vadd.f32 0.0, %v912
      %v914 = vpop.f32.mrb[0].mxu0
      %915 = vmatprep.mubr.bf16.mxu0 0
      %916 = vmatmul.mubr.bf16.gmra.mrb[0].mxu0 %v865
      %v917 = vpop.f32.mrb[0].mxu0
      %v918 = vadd.f32 0.0, %v917
      %v919 = vpop.f32.mrb[0].mxu0
      %v920 = vpop.f32.mrb[0].mxu0
      %v921 = vpop.f32.mrb[0].mxu0
      %922 = vdwg.mxu0
      %v923 = vadd.f32 %v826, %v902
      %v924 = vadd.f32 %v827, %v905
      %v925 = vadd.f32 %v828, %v910
      %v926 = vadd.f32 %v829, %v913
      %v927 = vadd.f32 %v830, %v918
      %v928 = vld [vmem:[%s234 + $0x4] sm:$0xe]
      %v929 = vld [vmem:[%s234 + $0x8] sm:$0xf]
      %v930 = vld [vmem:[%s234 + $0xc] sm:$0xf]
      %v931 = vld [vmem:[%s234 + $0x10] sm:$0xf]
      %v932 = vld [vmem:[%s234 + $0x14] sm:$0xf]
      %v933 = vld [vmem:[%s234 + $0x18] sm:$0x1]
      %s934 = scalar_lea.vmem %s2, 96
      %v935 = vld [vmem:[%s934] sm:$0xf]
      %v936 = vld [vmem:[%s934 + $0x4] sm:$0xf]
      %v937 = vld [vmem:[%s934 + $0x8] sm:$0xf]
      %v938 = vld [vmem:[%s934 + $0xc] sm:$0xf]
      %v945 = vunpack.c.l.b16 %v928
      %v946 = vunpack.c.l.b16 %v929
      %v947 = vunpack.c.l.b16 %v930
      %v948 = vunpack.c.l.b16 %v931
      %v949 = vunpack.c.l.b16 %v932
      %v950 = vunpack.c.l.b16 %v933
      %v951 = vpack.c.b16 %v946, %v945
      %v952 = vpack.c.b16 %v948, %v947
      %v953 = vpack.c.b16 %v950, %v949
      %vm954 = vcmask 1046528
      %v955 = vrot.slane %v951, 1
      %v956 = vrot.slane %v952, 1
      %v957 = vsel %vm954, %v955, %v956
      %v958 = vrot.slane %v953, 1
      %v959 = vsel %vm954, %v956, %v958
      %v964 = vunpack.c.l.b16 %v935
      %v965 = vunpack.c.l.b16 %v936
      %v966 = vunpack.c.l.b16 %v937
      %v967 = vunpack.c.l.b16 %v938
      %v968 = vpack.c.b16 %v965, %v964
      %v969 = vpack.c.b16 %v967, %v966
      %v973 = vsel %vm292, %v957, 0
      %v976 = vsel %vm292, %v959, 0
      %v979 = vsel %vm292, %v958, 0
      %981 = vmatprep.subr.bf16.mxu0 0
      %982 = vmatpush1.bf16.msra.mxu0 %v968
      %983 = vmatprep.subr.bf16.mxu0 0
      %984 = vmatpush1.bf16.msra.mxu0 %v969
      %985 = vmatprep.subr.bf16.mxu0 0
      %986 = vmatpush1.bf16.msra.mxu0 0
      %987 = vmatprep.subr.bf16.mxu0 0
      %988 = vmatpush1.bf16.msra.mxu0 0
      %989 = vmatprep.subr.bf16.mxu0 0
      %990 = vmatpush1.bf16.msra.mxu0 0
      %991 = vmatprep.subr.bf16.mxu0 0
      %992 = vmatpush1.bf16.msra.mxu0 0
      %993 = vmatprep.subr.bf16.mxu0 0
      %994 = vmatpush1.bf16.msra.mxu0 0
      %995 = vmatprep.subr.bf16.mxu0 0
      %996 = vmatpush1.bf16.msra.mxu0 0
      %997 = vmatprep.subr.bf16.mxu0 0
      %998 = vmatpush1.bf16.msra.mxu0 0
      %999 = vmatprep.subr.bf16.mxu0 0
      %1000 = vmatpush1.bf16.msra.mxu0 0
      %1001 = vmatprep.subr.bf16.mxu0 0
      %1002 = vmatpush1.bf16.msra.mxu0 0
      %1003 = vmatprep.subr.bf16.mxu0 0
      %1004 = vmatpush1.bf16.msra.mxu0 0
      %1005 = vmatprep.subr.bf16.mxu0 0
      %1006 = vmatpush1.bf16.msra.mxu0 0
      %1007 = vmatprep.subr.bf16.mxu0 0
      %1008 = vmatpush1.bf16.msra.mxu0 0
      %1009 = vmatprep.subr.bf16.mxu0 0
      %1010 = vmatpush1.bf16.msra.mxu0 0
      %1011 = vmatprep.subr.bf16.mxu0 0
      %1012 = vmatpush1.bf16.msra.mxu0 0
      %1013 = vmatprep.mubr.bf16.mxu0 0
      %1014 = vmatmul.mubr.bf16.gmra.mrb[0].mxu0 %v973
      %v1015 = vpop.f32.mrb[0].mxu0
      %v1016 = vadd.f32 0.0, %v1015
      %v1017 = vpop.f32.mrb[0].mxu0
      %v1018 = vpop.f32.mrb[0].mxu0
      %v1019 = vadd.f32 0.0, %v1018
      %v1020 = vpop.f32.mrb[0].mxu0
      %1021 = vmatprep.mubr.bf16.mxu0 0
      %1022 = vmatmul.mubr.bf16.gmra.mrb[0].mxu0 %v976
      %v1023 = vpop.f32.mrb[0].mxu0
      %v1024 = vadd.f32 0.0, %v1023
      %v1025 = vpop.f32.mrb[0].mxu0
      %v1026 = vpop.f32.mrb[0].mxu0
      %v1027 = vadd.f32 0.0, %v1026
      %v1028 = vpop.f32.mrb[0].mxu0
      %1029 = vmatprep.mubr.bf16.mxu0 0
      %1030 = vmatmul.mubr.bf16.gmra.mrb[0].mxu0 %v979
      %v1031 = vpop.f32.mrb[0].mxu0
      %v1032 = vadd.f32 0.0, %v1031
      %v1033 = vpop.f32.mrb[0].mxu0
      %v1034 = vpop.f32.mrb[0].mxu0
      %v1035 = vpop.f32.mrb[0].mxu0
      %1036 = vdwg.mxu0
      %v1037 = vadd.f32 %v923, %v1016
      %v1038 = vadd.f32 %v924, %v1019
      %v1039 = vadd.f32 %v925, %v1024
      %v1040 = vadd.f32 %v926, %v1027
      %v1041 = vadd.f32 %v927, %v1032
      %v1042 = vld [vmem:[%s239 + $0x4] sm:$0xe]
      %v1043 = vld [vmem:[%s239 + $0x8] sm:$0xf]
      %v1044 = vld [vmem:[%s239 + $0xc] sm:$0xf]
      %v1045 = vld [vmem:[%s239 + $0x10] sm:$0xf]
      %v1046 = vld [vmem:[%s239 + $0x14] sm:$0xf]
      %v1047 = vld [vmem:[%s239 + $0x18] sm:$0x1]
      %s1048 = scalar_lea.vmem %s2, 112
      %v1049 = vld [vmem:[%s1048] sm:$0xf]
      %v1050 = vld [vmem:[%s1048 + $0x4] sm:$0xf]
      %v1051 = vld [vmem:[%s1048 + $0x8] sm:$0xf]
      %v1052 = vld [vmem:[%s1048 + $0xc] sm:$0xf]
      %v1059 = vunpack.c.l.b16 %v1042
      %v1060 = vunpack.c.l.b16 %v1043
      %v1061 = vunpack.c.l.b16 %v1044
      %v1062 = vunpack.c.l.b16 %v1045
      %v1063 = vunpack.c.l.b16 %v1046
      %v1064 = vunpack.c.l.b16 %v1047
      %v1065 = vpack.c.b16 %v1060, %v1059
      %v1066 = vpack.c.b16 %v1062, %v1061
      %v1067 = vpack.c.b16 %v1064, %v1063
      %v1068 = vrot.slane %v1065, 1
      %v1069 = vrot.slane %v1066, 1
      %v1070 = vsel %vm954, %v1068, %v1069
      %v1071 = vrot.slane %v1067, 1
      %v1072 = vsel %vm954, %v1069, %v1071
      %v1077 = vunpack.c.l.b16 %v1049
      %v1078 = vunpack.c.l.b16 %v1050
      %v1079 = vunpack.c.l.b16 %v1051
      %v1080 = vunpack.c.l.b16 %v1052
      %v1081 = vpack.c.b16 %v1078, %v1077
      %v1082 = vpack.c.b16 %v1080, %v1079
      %v1086 = vsel %vm292, %v1070, 0
      %v1089 = vsel %vm292, %v1072, 0
      %v1092 = vsel %vm292, %v1071, 0
      %1094 = vmatprep.subr.bf16.mxu0 0
      %1095 = vmatpush1.bf16.msra.mxu0 %v1081
      %1096 = vmatprep.subr.bf16.mxu0 0
      %1097 = vmatpush1.bf16.msra.mxu0 %v1082
      %1098 = vmatprep.subr.bf16.mxu0 0
      %1099 = vmatpush1.bf16.msra.mxu0 0
      %1100 = vmatprep.subr.bf16.mxu0 0
      %1101 = vmatpush1.bf16.msra.mxu0 0
      %1102 = vmatprep.subr.bf16.mxu0 0
      %1103 = vmatpush1.bf16.msra.mxu0 0
      %1104 = vmatprep.subr.bf16.mxu0 0
      %1105 = vmatpush1.bf16.msra.mxu0 0
      %1106 = vmatprep.subr.bf16.mxu0 0
      %1107 = vmatpush1.bf16.msra.mxu0 0
      %1108 = vmatprep.subr.bf16.mxu0 0
      %1109 = vmatpush1.bf16.msra.mxu0 0
      %1110 = vmatprep.subr.bf16.mxu0 0
      %1111 = vmatpush1.bf16.msra.mxu0 0
      %1112 = vmatprep.subr.bf16.mxu0 0
      %1113 = vmatpush1.bf16.msra.mxu0 0
      %1114 = vmatprep.subr.bf16.mxu0 0
      %1115 = vmatpush1.bf16.msra.mxu0 0
      %1116 = vmatprep.subr.bf16.mxu0 0
      %1117 = vmatpush1.bf16.msra.mxu0 0
      %1118 = vmatprep.subr.bf16.mxu0 0
      %1119 = vmatpush1.bf16.msra.mxu0 0
      %1120 = vmatprep.subr.bf16.mxu0 0
      %1121 = vmatpush1.bf16.msra.mxu0 0
      %1122 = vmatprep.subr.bf16.mxu0 0
      %1123 = vmatpush1.bf16.msra.mxu0 0
      %1124 = vmatprep.subr.bf16.mxu0 0
      %1125 = vmatpush1.bf16.msra.mxu0 0
      %1126 = vmatprep.mubr.bf16.mxu0 0
      %1127 = vmatmul.mubr.bf16.gmra.mrb[0].mxu0 %v1086
      %v1128 = vpop.f32.mrb[0].mxu0
      %v1129 = vadd.f32 0.0, %v1128
      %v1130 = vpop.f32.mrb[0].mxu0
      %v1131 = vpop.f32.mrb[0].mxu0
      %v1132 = vadd.f32 0.0, %v1131
      %v1133 = vpop.f32.mrb[0].mxu0
      %1134 = vmatprep.mubr.bf16.mxu0 0
      %1135 = vmatmul.mubr.bf16.gmra.mrb[0].mxu0 %v1089
      %v1136 = vpop.f32.mrb[0].mxu0
      %v1137 = vadd.f32 0.0, %v1136
      %v1138 = vpop.f32.mrb[0].mxu0
      %v1139 = vpop.f32.mrb[0].mxu0
      %v1140 = vadd.f32 0.0, %v1139
      %v1141 = vpop.f32.mrb[0].mxu0
      %1142 = vmatprep.mubr.bf16.mxu0 0
      %1143 = vmatmul.mubr.bf16.gmra.mrb[0].mxu0 %v1092
      %v1144 = vpop.f32.mrb[0].mxu0
      %v1145 = vadd.f32 0.0, %v1144
      %v1146 = vpop.f32.mrb[0].mxu0
      %v1147 = vpop.f32.mrb[0].mxu0
      %v1148 = vpop.f32.mrb[0].mxu0
      %1149 = vdwg.mxu0
      %v1150 = vadd.f32 %v1037, %v1129
      %v1151 = vadd.f32 %v1038, %v1132
      %v1152 = vadd.f32 %v1039, %v1137
      %v1153 = vadd.f32 %v1040, %v1140
      %v1154 = vadd.f32 %v1041, %v1145
      %v1155 = vld [vmem:[%s234 + $0x18] sm:$0x3]
      %s1156 = scalar_lea.vmem %s2, 128
      %v1157 = vld [vmem:[%s1156] sm:$0xf]
      %v1158 = vld [vmem:[%s1156 + $0x4] sm:$0xf]
      %v1159 = vld [vmem:[%s1156 + $0x8] sm:$0xf]
      %v1160 = vld [vmem:[%s1156 + $0xc] sm:$0xf]
      %v1162 = vunpack.c.l.b16 %v1155
      %v1163 = vpack.c.b16 %v1162, %v949
      %vm1164 = vsmask.f32 6400
      %v1166 = vshrl.u32 %v951, 16
      %v1168 = vrot.slane %v1166, 1
      %v1169 = vshll.u32 %v951, 16
      %v1171 = vrot.slane %v1169, 2
      %v1172 = vor.u32 %v1168, %v1171
      %v1174 = vshrl.u32 %v952, 16
      %v1176 = vrot.slane %v1174, 1
      %v1177 = vshll.u32 %v952, 16
      %v1179 = vrot.slane %v1177, 2
      %v1180 = vor.u32 %v1176, %v1179
      %v1181 = vsel %vm1164, %v1172, %v1180
      %v1183 = vshrl.u32 %v1163, 16
      %v1185 = vrot.slane %v1183, 1
      %v1186 = vshll.u32 %v1163, 16
      %v1188 = vrot.slane %v1186, 2
      %v1189 = vor.u32 %v1185, %v1188
      %v1190 = vsel %vm1164, %v1180, %v1189
      %v1195 = vunpack.c.l.b16 %v1157
      %v1196 = vunpack.c.l.b16 %v1158
      %v1197 = vunpack.c.l.b16 %v1159
      %v1198 = vunpack.c.l.b16 %v1160
      %v1199 = vpack.c.b16 %v1196, %v1195
      %v1200 = vpack.c.b16 %v1198, %v1197
      %v1204 = vsel %vm292, %v1181, 0
      %v1207 = vsel %vm292, %v1190, 0
      %v1210 = vsel %vm292, %v1189, 0
      %1212 = vmatprep.subr.bf16.mxu0 0
      %1213 = vmatpush1.bf16.msra.mxu0 %v1199
      %1214 = vmatprep.subr.bf16.mxu0 0
      %1215 = vmatpush1.bf16.msra.mxu0 %v1200
      %1216 = vmatprep.subr.bf16.mxu0 0
      %1217 = vmatpush1.bf16.msra.mxu0 0
      %1218 = vmatprep.subr.bf16.mxu0 0
      %1219 = vmatpush1.bf16.msra.mxu0 0
      %1220 = vmatprep.subr.bf16.mxu0 0
      %1221 = vmatpush1.bf16.msra.mxu0 0
      %1222 = vmatprep.subr.bf16.mxu0 0
      %1223 = vmatpush1.bf16.msra.mxu0 0
      %1224 = vmatprep.subr.bf16.mxu0 0
      %1225 = vmatpush1.bf16.msra.mxu0 0
      %1226 = vmatprep.subr.bf16.mxu0 0
      %1227 = vmatpush1.bf16.msra.mxu0 0
      %1228 = vmatprep.subr.bf16.mxu0 0
      %1229 = vmatpush1.bf16.msra.mxu0 0
      %1230 = vmatprep.subr.bf16.mxu0 0
      %1231 = vmatpush1.bf16.msra.mxu0 0
      %1232 = vmatprep.subr.bf16.mxu0 0
      %1233 = vmatpush1.bf16.msra.mxu0 0
      %1234 = vmatprep.subr.bf16.mxu0 0
      %1235 = vmatpush1.bf16.msra.mxu0 0
      %1236 = vmatprep.subr.bf16.mxu0 0
      %1237 = vmatpush1.bf16.msra.mxu0 0
      %1238 = vmatprep.subr.bf16.mxu0 0
      %1239 = vmatpush1.bf16.msra.mxu0 0
      %1240 = vmatprep.subr.bf16.mxu0 0
      %1241 = vmatpush1.bf16.msra.mxu0 0
      %1242 = vmatprep.subr.bf16.mxu0 0
      %1243 = vmatpush1.bf16.msra.mxu0 0
      %1244 = vmatprep.mubr.bf16.mxu0 0
      %1245 = vmatmul.mubr.bf16.gmra.mrb[0].mxu0 %v1204
      %v1246 = vpop.f32.mrb[0].mxu0
      %v1247 = vadd.f32 0.0, %v1246
      %v1248 = vpop.f32.mrb[0].mxu0
      %v1249 = vpop.f32.mrb[0].mxu0
      %v1250 = vadd.f32 0.0, %v1249
      %v1251 = vpop.f32.mrb[0].mxu0
      %1252 = vmatprep.mubr.bf16.mxu0 0
      %1253 = vmatmul.mubr.bf16.gmra.mrb[0].mxu0 %v1207
      %v1254 = vpop.f32.mrb[0].mxu0
      %v1255 = vadd.f32 0.0, %v1254
      %v1256 = vpop.f32.mrb[0].mxu0
      %v1257 = vpop.f32.mrb[0].mxu0
      %v1258 = vadd.f32 0.0, %v1257
      %v1259 = vpop.f32.mrb[0].mxu0
      %1260 = vmatprep.mubr.bf16.mxu0 0
      %1261 = vmatmul.mubr.bf16.gmra.mrb[0].mxu0 %v1210
      %v1262 = vpop.f32.mrb[0].mxu0
      %v1263 = vadd.f32 0.0, %v1262
      %v1264 = vpop.f32.mrb[0].mxu0
      %v1265 = vpop.f32.mrb[0].mxu0
      %v1266 = vpop.f32.mrb[0].mxu0
      %1267 = vdwg.mxu0
      %v1268 = vadd.f32 %v1150, %v1247
      %v1269 = vadd.f32 %v1151, %v1250
      %v1270 = vadd.f32 %v1152, %v1255
      %v1271 = vadd.f32 %v1153, %v1258
      %v1272 = vadd.f32 %v1154, %v1263
      %v1274 = vlaneseq
      %v1275 = vshrl.u32 %v1274, 7
      %v1276 = vsub.s32 0, %v1275
      %v1277 = vrot.slane %v246, %v1276
      %v1279 = vmul.f32 %v1268, %v1277
      %v1280 = vmul.f32 %v1269, %v1277
      %v1281 = vmul.f32 %v1270, %v1277
      %v1282 = vmul.f32 %v1271, %v1277
      %v1283 = vmul.f32 %v1272, %v1277
      %v1285 = vlaneseq
      %v1286 = vshrl.u32 %v1285, 7
      %v1287 = vsub.s32 0, %v1286
      %v1288 = vrot.slane %v247, %v1287
      %v1290 = vadd.f32 %v1279, %v1288
      %v1291 = vadd.f32 %v1280, %v1288
      %v1292 = vadd.f32 %v1281, %v1288
      %v1293 = vadd.f32 %v1282, %v1288
      %v1294 = vadd.f32 %v1283, %v1288
      %v1295 = vmax.f32 %v1290, 0.0
      %v1296 = vmax.f32 %v1291, 0.0
      %v1297 = vmax.f32 %v1292, 0.0
      %v1298 = vmax.f32 %v1293, 0.0
      %v1299 = vmax.f32 %v1294, 0.0
      %1300 = vmatprep.subr.bf16.mxu0 0
      %1301 = vmatpush1.bf16.msra.mxu0 %v288
      %1302 = vmatprep.subr.bf16.mxu0 0
      %1303 = vmatpush1.bf16.msra.mxu0 %v289
      %1304 = vmatprep.subr.bf16.mxu0 0
      %1305 = vmatpush1.bf16.msra.mxu0 0
      %1306 = vmatprep.subr.bf16.mxu0 0
      %1307 = vmatpush1.bf16.msra.mxu0 0
      %1308 = vmatprep.subr.bf16.mxu0 0
      %1309 = vmatpush1.bf16.msra.mxu0 0
      %1310 = vmatprep.subr.bf16.mxu0 0
      %1311 = vmatpush1.bf16.msra.mxu0 0
      %1312 = vmatprep.subr.bf16.mxu0 0
      %1313 = vmatpush1.bf16.msra.mxu0 0
      %1314 = vmatprep.subr.bf16.mxu0 0
      %1315 = vmatpush1.bf16.msra.mxu0 0
      %1316 = vmatprep.subr.bf16.mxu0 0
      %1317 = vmatpush1.bf16.msra.mxu0 0
      %1318 = vmatprep.subr.bf16.mxu0 0
      %1319 = vmatpush1.bf16.msra.mxu0 0
      %1320 = vmatprep.subr.bf16.mxu0 0
      %1321 = vmatpush1.bf16.msra.mxu0 0
      %1322 = vmatprep.subr.bf16.mxu0 0
      %1323 = vmatpush1.bf16.msra.mxu0 0
      %1324 = vmatprep.subr.bf16.mxu0 0
      %1325 = vmatpush1.bf16.msra.mxu0 0
      %1326 = vmatprep.subr.bf16.mxu0 0
      %1327 = vmatpush1.bf16.msra.mxu0 0
      %1328 = vmatprep.subr.bf16.mxu0 0
      %1329 = vmatpush1.bf16.msra.mxu0 0
      %1330 = vmatprep.subr.bf16.mxu0 0
      %1331 = vmatpush1.bf16.msra.mxu0 0
      %1332 = vmatprep.mubr.bf16.mxu0 0
      %1333 = vmatmul.mubr.bf16.gmra.mrb[0].mxu0 %v511
      %v1334 = vpop.f32.mrb[0].mxu0
      %v1335 = vadd.f32 0.0, %v1334
      %v1336 = vpop.f32.mrb[0].mxu0
      %v1337 = vpop.f32.mrb[0].mxu0
      %v1338 = vadd.f32 0.0, %v1337
      %v1339 = vpop.f32.mrb[0].mxu0
      %1340 = vmatprep.mubr.bf16.mxu0 0
      %1341 = vmatmul.mubr.bf16.gmra.mrb[0].mxu0 %v514
      %v1342 = vpop.f32.mrb[0].mxu0
      %v1343 = vadd.f32 0.0, %v1342
      %v1344 = vpop.f32.mrb[0].mxu0
      %v1345 = vpop.f32.mrb[0].mxu0
      %v1346 = vadd.f32 0.0, %v1345
      %v1347 = vpop.f32.mrb[0].mxu0
      %1348 = vmatprep.mubr.bf16.mxu0 0
      %1349 = vmatmul.mubr.bf16.gmra.mrb[0].mxu0 %v517
      %v1350 = vpop.f32.mrb[0].mxu0
      %v1351 = vadd.f32 0.0, %v1350
      %v1352 = vpop.f32.mrb[0].mxu0
      %v1353 = vpop.f32.mrb[0].mxu0
      %v1354 = vpop.f32.mrb[0].mxu0
      %1355 = vdwg.mxu0
      %1356 = vmatprep.subr.bf16.mxu0 0
      %1357 = vmatpush1.bf16.msra.mxu0 %v379
      %1358 = vmatprep.subr.bf16.mxu0 0
      %1359 = vmatpush1.bf16.msra.mxu0 %v380
      %1360 = vmatprep.subr.bf16.mxu0 0
      %1361 = vmatpush1.bf16.msra.mxu0 0
      %1362 = vmatprep.subr.bf16.mxu0 0
      %1363 = vmatpush1.bf16.msra.mxu0 0
      %1364 = vmatprep.subr.bf16.mxu0 0
      %1365 = vmatpush1.bf16.msra.mxu0 0
      %1366 = vmatprep.subr.bf16.mxu0 0
      %1367 = vmatpush1.bf16.msra.mxu0 0
      %1368 = vmatprep.subr.bf16.mxu0 0
      %1369 = vmatpush1.bf16.msra.mxu0 0
      %1370 = vmatprep.subr.bf16.mxu0 0
      %1371 = vmatpush1.bf16.msra.mxu0 0
      %1372 = vmatprep.subr.bf16.mxu0 0
      %1373 = vmatpush1.bf16.msra.mxu0 0
      %1374 = vmatprep.subr.bf16.mxu0 0
      %1375 = vmatpush1.bf16.msra.mxu0 0
      %1376 = vmatprep.subr.bf16.mxu0 0
      %1377 = vmatpush1.bf16.msra.mxu0 0
      %1378 = vmatprep.subr.bf16.mxu0 0
      %1379 = vmatpush1.bf16.msra.mxu0 0
      %1380 = vmatprep.subr.bf16.mxu0 0
      %1381 = vmatpush1.bf16.msra.mxu0 0
      %1382 = vmatprep.subr.bf16.mxu0 0
      %1383 = vmatpush1.bf16.msra.mxu0 0
      %1384 = vmatprep.subr.bf16.mxu0 0
      %1385 = vmatpush1.bf16.msra.mxu0 0
      %1386 = vmatprep.subr.bf16.mxu0 0
      %1387 = vmatpush1.bf16.msra.mxu0 0
      %1388 = vmatprep.mubr.bf16.mxu0 0
      %1389 = vmatmul.mubr.bf16.gmra.mrb[0].mxu0 %v294
      %v1390 = vpop.f32.mrb[0].mxu0
      %v1391 = vadd.f32 %v1335, %v1390
      %v1392 = vpop.f32.mrb[0].mxu0
      %v1393 = vpop.f32.mrb[0].mxu0
      %v1394 = vadd.f32 %v1338, %v1393
      %v1395 = vpop.f32.mrb[0].mxu0
      %1396 = vmatprep.mubr.bf16.mxu0 0
      %1397 = vmatmul.mubr.bf16.gmra.mrb[0].mxu0 %v297
      %v1398 = vpop.f32.mrb[0].mxu0
      %v1399 = vadd.f32 %v1343, %v1398
      %v1400 = vpop.f32.mrb[0].mxu0
      %v1401 = vpop.f32.mrb[0].mxu0
      %v1402 = vadd.f32 %v1346, %v1401
      %v1403 = vpop.f32.mrb[0].mxu0
      %1404 = vmatprep.mubr.bf16.mxu0 0
      %1405 = vmatmul.mubr.bf16.gmra.mrb[0].mxu0 %v300
      %v1406 = vpop.f32.mrb[0].mxu0
      %v1407 = vadd.f32 %v1351, %v1406
      %v1408 = vpop.f32.mrb[0].mxu0
      %v1409 = vpop.f32.mrb[0].mxu0
      %v1410 = vpop.f32.mrb[0].mxu0
      %1411 = vdwg.mxu0
      %v1412 = vld [vmem:[%s239] sm:$0xf]
      %v1413 = vld [vmem:[%s239 + $0x14] sm:$0x1]
      %v1416 = vunpack.c.l.b16 %v1412
      %v1417 = vunpack.c.l.b16 %v1413
      %v1418 = vpack.c.b16 %v715, %v1416
      %v1419 = vpack.c.b16 %v1417, %v718
      %v1421 = vshrl.u32 %v1418, 16
      %v1423 = vshll.u32 %v1418, 16
      %v1425 = vrot.slane %v1423, 1
      %v1426 = vor.u32 %v1421, %v1425
      %v1427 = vrot.slane %v735, 1
      %v1428 = vsel %vm474, %v1426, %v1427
      %v1429 = vor.u32 %v732, %v1427
      %v1431 = vshll.u32 %v1419, 16
      %v1433 = vrot.slane %v1431, 1
      %v1434 = vsel %vm474, %v1429, %v1433
      %v1435 = vshrl.u32 %v1419, 16
      %v1437 = vor.u32 %v1435, %v1433
      %v1439 = vsel %vm292, %v1428, 0
      %v1442 = vsel %vm292, %v1434, 0
      %v1445 = vsel %vm292, %v1437, 0
      %1447 = vmatprep.subr.bf16.mxu0 0
      %1448 = vmatpush1.bf16.msra.mxu0 %v506
      %1449 = vmatprep.subr.bf16.mxu0 0
      %1450 = vmatpush1.bf16.msra.mxu0 %v507
      %1451 = vmatprep.subr.bf16.mxu0 0
      %1452 = vmatpush1.bf16.msra.mxu0 0
      %1453 = vmatprep.subr.bf16.mxu0 0
      %1454 = vmatpush1.bf16.msra.mxu0 0
      %1455 = vmatprep.subr.bf16.mxu0 0
      %1456 = vmatpush1.bf16.msra.mxu0 0
      %1457 = vmatprep.subr.bf16.mxu0 0
      %1458 = vmatpush1.bf16.msra.mxu0 0
      %1459 = vmatprep.subr.bf16.mxu0 0
      %1460 = vmatpush1.bf16.msra.mxu0 0
      %1461 = vmatprep.subr.bf16.mxu0 0
      %1462 = vmatpush1.bf16.msra.mxu0 0
      %1463 = vmatprep.subr.bf16.mxu0 0
      %1464 = vmatpush1.bf16.msra.mxu0 0
      %1465 = vmatprep.subr.bf16.mxu0 0
      %1466 = vmatpush1.bf16.msra.mxu0 0
      %1467 = vmatprep.subr.bf16.mxu0 0
      %1468 = vmatpush1.bf16.msra.mxu0 0
      %1469 = vmatprep.subr.bf16.mxu0 0
      %1470 = vmatpush1.bf16.msra.mxu0 0
      %1471 = vmatprep.subr.bf16.mxu0 0
      %1472 = vmatpush1.bf16.msra.mxu0 0
      %1473 = vmatprep.subr.bf16.mxu0 0
      %1474 = vmatpush1.bf16.msra.mxu0 0
      %1475 = vmatprep.subr.bf16.mxu0 0
      %1476 = vmatpush1.bf16.msra.mxu0 0
      %1477 = vmatprep.subr.bf16.mxu0 0
      %1478 = vmatpush1.bf16.msra.mxu0 0
      %1479 = vmatprep.mubr.bf16.mxu0 0
      %1480 = vmatmul.mubr.bf16.gmra.mrb[0].mxu0 %v1439
      %v1481 = vpop.f32.mrb[0].mxu0
      %v1482 = vadd.f32 0.0, %v1481
      %v1483 = vpop.f32.mrb[0].mxu0
      %v1484 = vpop.f32.mrb[0].mxu0
      %v1485 = vadd.f32 0.0, %v1484
      %v1486 = vpop.f32.mrb[0].mxu0
      %1487 = vmatprep.mubr.bf16.mxu0 0
      %1488 = vmatmul.mubr.bf16.gmra.mrb[0].mxu0 %v1442
      %v1489 = vpop.f32.mrb[0].mxu0
      %v1490 = vadd.f32 0.0, %v1489
      %v1491 = vpop.f32.mrb[0].mxu0
      %v1492 = vpop.f32.mrb[0].mxu0
      %v1493 = vadd.f32 0.0, %v1492
      %v1494 = vpop.f32.mrb[0].mxu0
      %1495 = vmatprep.mubr.bf16.mxu0 0
      %1496 = vmatmul.mubr.bf16.gmra.mrb[0].mxu0 %v1445
      %v1497 = vpop.f32.mrb[0].mxu0
      %v1498 = vadd.f32 0.0, %v1497
      %v1499 = vpop.f32.mrb[0].mxu0
      %v1500 = vpop.f32.mrb[0].mxu0
      %v1501 = vpop.f32.mrb[0].mxu0
      %1502 = vdwg.mxu0
      %v1503 = vadd.f32 %v1391, %v1482
      %v1504 = vadd.f32 %v1394, %v1485
      %v1505 = vadd.f32 %v1399, %v1490
      %v1506 = vadd.f32 %v1402, %v1493
      %v1507 = vadd.f32 %v1407, %v1498
      %1508 = vmatprep.subr.bf16.mxu0 0
      %1509 = vmatpush1.bf16.msra.mxu0 %v623
      %1510 = vmatprep.subr.bf16.mxu0 0
      %1511 = vmatpush1.bf16.msra.mxu0 %v624
      %1512 = vmatprep.subr.bf16.mxu0 0
      %1513 = vmatpush1.bf16.msra.mxu0 0
      %1514 = vmatprep.subr.bf16.mxu0 0
      %1515 = vmatpush1.bf16.msra.mxu0 0
      %1516 = vmatprep.subr.bf16.mxu0 0
      %1517 = vmatpush1.bf16.msra.mxu0 0
      %1518 = vmatprep.subr.bf16.mxu0 0
      %1519 = vmatpush1.bf16.msra.mxu0 0
      %1520 = vmatprep.subr.bf16.mxu0 0
      %1521 = vmatpush1.bf16.msra.mxu0 0
      %1522 = vmatprep.subr.bf16.mxu0 0
      %1523 = vmatpush1.bf16.msra.mxu0 0
      %1524 = vmatprep.subr.bf16.mxu0 0
      %1525 = vmatpush1.bf16.msra.mxu0 0
      %1526 = vmatprep.subr.bf16.mxu0 0
      %1527 = vmatpush1.bf16.msra.mxu0 0
      %1528 = vmatprep.subr.bf16.mxu0 0
      %1529 = vmatpush1.bf16.msra.mxu0 0
      %1530 = vmatprep.subr.bf16.mxu0 0
      %1531 = vmatpush1.bf16.msra.mxu0 0
      %1532 = vmatprep.subr.bf16.mxu0 0
      %1533 = vmatpush1.bf16.msra.mxu0 0
      %1534 = vmatprep.subr.bf16.mxu0 0
      %1535 = vmatpush1.bf16.msra.mxu0 0
      %1536 = vmatprep.subr.bf16.mxu0 0
      %1537 = vmatpush1.bf16.msra.mxu0 0
      %1538 = vmatprep.subr.bf16.mxu0 0
      %1539 = vmatpush1.bf16.msra.mxu0 0
      %1540 = vmatprep.mubr.bf16.mxu0 0
      %1541 = vmatmul.mubr.bf16.gmra.mrb[0].mxu0 %v762
      %v1542 = vpop.f32.mrb[0].mxu0
      %v1543 = vadd.f32 0.0, %v1542
      %v1544 = vpop.f32.mrb[0].mxu0
      %v1545 = vpop.f32.mrb[0].mxu0
      %v1546 = vadd.f32 0.0, %v1545
      %v1547 = vpop.f32.mrb[0].mxu0
      %1548 = vmatprep.mubr.bf16.mxu0 0
      %1549 = vmatmul.mubr.bf16.gmra.mrb[0].mxu0 %v765
      %v1550 = vpop.f32.mrb[0].mxu0
      %v1551 = vadd.f32 0.0, %v1550
      %v1552 = vpop.f32.mrb[0].mxu0
      %v1553 = vpop.f32.mrb[0].mxu0
      %v1554 = vadd.f32 0.0, %v1553
      %v1555 = vpop.f32.mrb[0].mxu0
      %1556 = vmatprep.mubr.bf16.mxu0 0
      %1557 = vmatmul.mubr.bf16.gmra.mrb[0].mxu0 %v768
      %v1558 = vpop.f32.mrb[0].mxu0
      %v1559 = vadd.f32 0.0, %v1558
      %v1560 = vpop.f32.mrb[0].mxu0
      %v1561 = vpop.f32.mrb[0].mxu0
      %v1562 = vpop.f32.mrb[0].mxu0
      %1563 = vdwg.mxu0
      %v1564 = vadd.f32 %v1503, %v1543
      %v1565 = vadd.f32 %v1504, %v1546
      %v1566 = vadd.f32 %v1505, %v1551
      %v1567 = vadd.f32 %v1506, %v1554
      %v1568 = vadd.f32 %v1507, %v1559
      %1569 = vmatprep.subr.bf16.mxu0 0
      %1570 = vmatpush1.bf16.msra.mxu0 %v757
      %1571 = vmatprep.subr.bf16.mxu0 0
      %1572 = vmatpush1.bf16.msra.mxu0 %v758
      %1573 = vmatprep.subr.bf16.mxu0 0
      %1574 = vmatpush1.bf16.msra.mxu0 0
      %1575 = vmatprep.subr.bf16.mxu0 0
      %1576 = vmatpush1.bf16.msra.mxu0 0
      %1577 = vmatprep.subr.bf16.mxu0 0
      %1578 = vmatpush1.bf16.msra.mxu0 0
      %1579 = vmatprep.subr.bf16.mxu0 0
      %1580 = vmatpush1.bf16.msra.mxu0 0
      %1581 = vmatprep.subr.bf16.mxu0 0
      %1582 = vmatpush1.bf16.msra.mxu0 0
      %1583 = vmatprep.subr.bf16.mxu0 0
      %1584 = vmatpush1.bf16.msra.mxu0 0
      %1585 = vmatprep.subr.bf16.mxu0 0
      %1586 = vmatpush1.bf16.msra.mxu0 0
      %1587 = vmatprep.subr.bf16.mxu0 0
      %1588 = vmatpush1.bf16.msra.mxu0 0
      %1589 = vmatprep.subr.bf16.mxu0 0
      %1590 = vmatpush1.bf16.msra.mxu0 0
      %1591 = vmatprep.subr.bf16.mxu0 0
      %1592 = vmatpush1.bf16.msra.mxu0 0
      %1593 = vmatprep.subr.bf16.mxu0 0
      %1594 = vmatpush1.bf16.msra.mxu0 0
      %1595 = vmatprep.subr.bf16.mxu0 0
      %1596 = vmatpush1.bf16.msra.mxu0 0
      %1597 = vmatprep.subr.bf16.mxu0 0
      %1598 = vmatpush1.bf16.msra.mxu0 0
      %1599 = vmatprep.subr.bf16.mxu0 0
      %1600 = vmatpush1.bf16.msra.mxu0 0
      %1601 = vmatprep.mubr.bf16.mxu0 0
      %1602 = vmatmul.mubr.bf16.gmra.mrb[0].mxu0 %v859
      %v1603 = vpop.f32.mrb[0].mxu0
      %v1604 = vadd.f32 0.0, %v1603
      %v1605 = vpop.f32.mrb[0].mxu0
      %v1606 = vpop.f32.mrb[0].mxu0
      %v1607 = vadd.f32 0.0, %v1606
      %v1608 = vpop.f32.mrb[0].mxu0
      %1609 = vmatprep.mubr.bf16.mxu0 0
      %1610 = vmatmul.mubr.bf16.gmra.mrb[0].mxu0 %v862
      %v1611 = vpop.f32.mrb[0].mxu0
      %v1612 = vadd.f32 0.0, %v1611
      %v1613 = vpop.f32.mrb[0].mxu0
      %v1614 = vpop.f32.mrb[0].mxu0
      %v1615 = vadd.f32 0.0, %v1614
      %v1616 = vpop.f32.mrb[0].mxu0
      %1617 = vmatprep.mubr.bf16.mxu0 0
      %1618 = vmatmul.mubr.bf16.gmra.mrb[0].mxu0 %v865
      %v1619 = vpop.f32.mrb[0].mxu0
      %v1620 = vadd.f32 0.0, %v1619
      %v1621 = vpop.f32.mrb[0].mxu0
      %v1622 = vpop.f32.mrb[0].mxu0
      %v1623 = vpop.f32.mrb[0].mxu0
      %1624 = vdwg.mxu0
      %v1625 = vadd.f32 %v1564, %v1604
      %v1626 = vadd.f32 %v1565, %v1607
      %v1627 = vadd.f32 %v1566, %v1612
      %v1628 = vadd.f32 %v1567, %v1615
      %v1629 = vadd.f32 %v1568, %v1620
      %v1630 = vld [vmem:[%s239] sm:$0x8]
      %v1632 = vunpack.c.l.b16 %v1630
      %v1633 = vpack.c.b16 %v715, %v1632
      %v1634 = vrot.slane %v1633, 3
      %v1635 = vrot.slane %v721, 3
      %v1636 = vsel %vm840, %v1634, %v1635
      %v1637 = vrot.slane %v722, 3
      %v1638 = vsel %vm840, %v1635, %v1637
      %v1640 = vsel %vm292, %v1636, 0
      %v1643 = vsel %vm292, %v1638, 0
      %v1646 = vsel %vm292, %v1637, 0
      %1648 = vmatprep.subr.bf16.mxu0 0
      %1649 = vmatpush1.bf16.msra.mxu0 %v854
      %1650 = vmatprep.subr.bf16.mxu0 0
      %1651 = vmatpush1.bf16.msra.mxu0 %v855
      %1652 = vmatprep.subr.bf16.mxu0 0
      %1653 = vmatpush1.bf16.msra.mxu0 0
      %1654 = vmatprep.subr.bf16.mxu0 0
      %1655 = vmatpush1.bf16.msra.mxu0 0
      %1656 = vmatprep.subr.bf16.mxu0 0
      %1657 = vmatpush1.bf16.msra.mxu0 0
      %1658 = vmatprep.subr.bf16.mxu0 0
      %1659 = vmatpush1.bf16.msra.mxu0 0
      %1660 = vmatprep.subr.bf16.mxu0 0
      %1661 = vmatpush1.bf16.msra.mxu0 0
      %1662 = vmatprep.subr.bf16.mxu0 0
      %1663 = vmatpush1.bf16.msra.mxu0 0
      %1664 = vmatprep.subr.bf16.mxu0 0
      %1665 = vmatpush1.bf16.msra.mxu0 0
      %1666 = vmatprep.subr.bf16.mxu0 0
      %1667 = vmatpush1.bf16.msra.mxu0 0
      %1668 = vmatprep.subr.bf16.mxu0 0
      %1669 = vmatpush1.bf16.msra.mxu0 0
      %1670 = vmatprep.subr.bf16.mxu0 0
      %1671 = vmatpush1.bf16.msra.mxu0 0
      %1672 = vmatprep.subr.bf16.mxu0 0
      %1673 = vmatpush1.bf16.msra.mxu0 0
      %1674 = vmatprep.subr.bf16.mxu0 0
      %1675 = vmatpush1.bf16.msra.mxu0 0
      %1676 = vmatprep.subr.bf16.mxu0 0
      %1677 = vmatpush1.bf16.msra.mxu0 0
      %1678 = vmatprep.subr.bf16.mxu0 0
      %1679 = vmatpush1.bf16.msra.mxu0 0
      %1680 = vmatprep.mubr.bf16.mxu0 0
      %1681 = vmatmul.mubr.bf16.gmra.mrb[0].mxu0 %v1640
      %v1682 = vpop.f32.mrb[0].mxu0
      %v1683 = vadd.f32 0.0, %v1682
      %v1684 = vpop.f32.mrb[0].mxu0
      %v1685 = vpop.f32.mrb[0].mxu0
      %v1686 = vadd.f32 0.0, %v1685
      %v1687 = vpop.f32.mrb[0].mxu0
      %1688 = vmatprep.mubr.bf16.mxu0 0
      %1689 = vmatmul.mubr.bf16.gmra.mrb[0].mxu0 %v1643
      %v1690 = vpop.f32.mrb[0].mxu0
      %v1691 = vadd.f32 0.0, %v1690
      %v1692 = vpop.f32.mrb[0].mxu0
      %v1693 = vpop.f32.mrb[0].mxu0
      %v1694 = vadd.f32 0.0, %v1693
      %v1695 = vpop.f32.mrb[0].mxu0
      %1696 = vmatprep.mubr.bf16.mxu0 0
      %1697 = vmatmul.mubr.bf16.gmra.mrb[0].mxu0 %v1646
      %v1698 = vpop.f32.mrb[0].mxu0
      %v1699 = vadd.f32 0.0, %v1698
      %v1700 = vpop.f32.mrb[0].mxu0
      %v1701 = vpop.f32.mrb[0].mxu0
      %v1702 = vpop.f32.mrb[0].mxu0
      %1703 = vdwg.mxu0
      %v1704 = vadd.f32 %v1625, %v1683
      %v1705 = vadd.f32 %v1626, %v1686
      %v1706 = vadd.f32 %v1627, %v1691
      %v1707 = vadd.f32 %v1628, %v1694
      %v1708 = vadd.f32 %v1629, %v1699
      %1709 = vmatprep.subr.bf16.mxu0 0
      %1710 = vmatpush1.bf16.msra.mxu0 %v968
      %1711 = vmatprep.subr.bf16.mxu0 0
      %1712 = vmatpush1.bf16.msra.mxu0 %v969
      %1713 = vmatprep.subr.bf16.mxu0 0
      %1714 = vmatpush1.bf16.msra.mxu0 0
      %1715 = vmatprep.subr.bf16.mxu0 0
      %1716 = vmatpush1.bf16.msra.mxu0 0
      %1717 = vmatprep.subr.bf16.mxu0 0
      %1718 = vmatpush1.bf16.msra.mxu0 0
      %1719 = vmatprep.subr.bf16.mxu0 0
      %1720 = vmatpush1.bf16.msra.mxu0 0
      %1721 = vmatprep.subr.bf16.mxu0 0
      %1722 = vmatpush1.bf16.msra.mxu0 0
      %1723 = vmatprep.subr.bf16.mxu0 0
      %1724 = vmatpush1.bf16.msra.mxu0 0
      %1725 = vmatprep.subr.bf16.mxu0 0
      %1726 = vmatpush1.bf16.msra.mxu0 0
      %1727 = vmatprep.subr.bf16.mxu0 0
      %1728 = vmatpush1.bf16.msra.mxu0 0
      %1729 = vmatprep.subr.bf16.mxu0 0
      %1730 = vmatpush1.bf16.msra.mxu0 0
      %1731 = vmatprep.subr.bf16.mxu0 0
      %1732 = vmatpush1.bf16.msra.mxu0 0
      %1733 = vmatprep.subr.bf16.mxu0 0
      %1734 = vmatpush1.bf16.msra.mxu0 0
      %1735 = vmatprep.subr.bf16.mxu0 0
      %1736 = vmatpush1.bf16.msra.mxu0 0
      %1737 = vmatprep.subr.bf16.mxu0 0
      %1738 = vmatpush1.bf16.msra.mxu0 0
      %1739 = vmatprep.subr.bf16.mxu0 0
      %1740 = vmatpush1.bf16.msra.mxu0 0
      %1741 = vmatprep.mubr.bf16.mxu0 0
      %1742 = vmatmul.mubr.bf16.gmra.mrb[0].mxu0 %v1086
      %v1743 = vpop.f32.mrb[0].mxu0
      %v1744 = vadd.f32 0.0, %v1743
      %v1745 = vpop.f32.mrb[0].mxu0
      %v1746 = vpop.f32.mrb[0].mxu0
      %v1747 = vadd.f32 0.0, %v1746
      %v1748 = vpop.f32.mrb[0].mxu0
      %1749 = vmatprep.mubr.bf16.mxu0 0
      %1750 = vmatmul.mubr.bf16.gmra.mrb[0].mxu0 %v1089
      %v1751 = vpop.f32.mrb[0].mxu0
      %v1752 = vadd.f32 0.0, %v1751
      %v1753 = vpop.f32.mrb[0].mxu0
      %v1754 = vpop.f32.mrb[0].mxu0
      %v1755 = vadd.f32 0.0, %v1754
      %v1756 = vpop.f32.mrb[0].mxu0
      %1757 = vmatprep.mubr.bf16.mxu0 0
      %1758 = vmatmul.mubr.bf16.gmra.mrb[0].mxu0 %v1092
      %v1759 = vpop.f32.mrb[0].mxu0
      %v1760 = vadd.f32 0.0, %v1759
      %v1761 = vpop.f32.mrb[0].mxu0
      %v1762 = vpop.f32.mrb[0].mxu0
      %v1763 = vpop.f32.mrb[0].mxu0
      %1764 = vdwg.mxu0
      %v1765 = vadd.f32 %v1704, %v1744
      %v1766 = vadd.f32 %v1705, %v1747
      %v1767 = vadd.f32 %v1706, %v1752
      %v1768 = vadd.f32 %v1707, %v1755
      %v1769 = vadd.f32 %v1708, %v1760
      %1770 = vmatprep.subr.bf16.mxu0 0
      %1771 = vmatpush1.bf16.msra.mxu0 %v1081
      %1772 = vmatprep.subr.bf16.mxu0 0
      %1773 = vmatpush1.bf16.msra.mxu0 %v1082
      %1774 = vmatprep.subr.bf16.mxu0 0
      %1775 = vmatpush1.bf16.msra.mxu0 0
      %1776 = vmatprep.subr.bf16.mxu0 0
      %1777 = vmatpush1.bf16.msra.mxu0 0
      %1778 = vmatprep.subr.bf16.mxu0 0
      %1779 = vmatpush1.bf16.msra.mxu0 0
      %1780 = vmatprep.subr.bf16.mxu0 0
      %1781 = vmatpush1.bf16.msra.mxu0 0
      %1782 = vmatprep.subr.bf16.mxu0 0
      %1783 = vmatpush1.bf16.msra.mxu0 0
      %1784 = vmatprep.subr.bf16.mxu0 0
      %1785 = vmatpush1.bf16.msra.mxu0 0
      %1786 = vmatprep.subr.bf16.mxu0 0
      %1787 = vmatpush1.bf16.msra.mxu0 0
      %1788 = vmatprep.subr.bf16.mxu0 0
      %1789 = vmatpush1.bf16.msra.mxu0 0
      %1790 = vmatprep.subr.bf16.mxu0 0
      %1791 = vmatpush1.bf16.msra.mxu0 0
      %1792 = vmatprep.subr.bf16.mxu0 0
      %1793 = vmatpush1.bf16.msra.mxu0 0
      %1794 = vmatprep.subr.bf16.mxu0 0
      %1795 = vmatpush1.bf16.msra.mxu0 0
      %1796 = vmatprep.subr.bf16.mxu0 0
      %1797 = vmatpush1.bf16.msra.mxu0 0
      %1798 = vmatprep.subr.bf16.mxu0 0
      %1799 = vmatpush1.bf16.msra.mxu0 0
      %1800 = vmatprep.subr.bf16.mxu0 0
      %1801 = vmatpush1.bf16.msra.mxu0 0
      %1802 = vmatprep.mubr.bf16.mxu0 0
      %1803 = vmatmul.mubr.bf16.gmra.mrb[0].mxu0 %v1204
      %v1804 = vpop.f32.mrb[0].mxu0
      %v1805 = vadd.f32 0.0, %v1804
      %v1806 = vpop.f32.mrb[0].mxu0
      %v1807 = vpop.f32.mrb[0].mxu0
      %v1808 = vadd.f32 0.0, %v1807
      %v1809 = vpop.f32.mrb[0].mxu0
      %1810 = vmatprep.mubr.bf16.mxu0 0
      %1811 = vmatmul.mubr.bf16.gmra.mrb[0].mxu0 %v1207
      %v1812 = vpop.f32.mrb[0].mxu0
      %v1813 = vadd.f32 0.0, %v1812
      %v1814 = vpop.f32.mrb[0].mxu0
      %v1815 = vpop.f32.mrb[0].mxu0
      %v1816 = vadd.f32 0.0, %v1815
      %v1817 = vpop.f32.mrb[0].mxu0
      %1818 = vmatprep.mubr.bf16.mxu0 0
      %1819 = vmatmul.mubr.bf16.gmra.mrb[0].mxu0 %v1210
      %v1820 = vpop.f32.mrb[0].mxu0
      %v1821 = vadd.f32 0.0, %v1820
      %v1822 = vpop.f32.mrb[0].mxu0
      %v1823 = vpop.f32.mrb[0].mxu0
      %v1824 = vpop.f32.mrb[0].mxu0
      %1825 = vdwg.mxu0
      %v1826 = vadd.f32 %v1765, %v1805
      %v1827 = vadd.f32 %v1766, %v1808
      %v1828 = vadd.f32 %v1767, %v1813
      %v1829 = vadd.f32 %v1768, %v1816
      %v1830 = vadd.f32 %v1769, %v1821
      %v1831 = vld [vmem:[%s239 + $0x18] sm:$0x3]
      %v1833 = vunpack.c.l.b16 %v1831
      %v1834 = vpack.c.b16 %v1833, %v1063
      %v1836 = vshrl.u32 %v1065, 16
      %v1838 = vrot.slane %v1836, 1
      %v1839 = vshll.u32 %v1065, 16
      %v1841 = vrot.slane %v1839, 2
      %v1842 = vor.u32 %v1838, %v1841
      %v1844 = vshrl.u32 %v1066, 16
      %v1846 = vrot.slane %v1844, 1
      %v1847 = vshll.u32 %v1066, 16
      %v1849 = vrot.slane %v1847, 2
      %v1850 = vor.u32 %v1846, %v1849
      %v1851 = vsel %vm1164, %v1842, %v1850
      %v1853 = vshrl.u32 %v1834, 16
      %v1855 = vrot.slane %v1853, 1
      %v1856 = vshll.u32 %v1834, 16
      %v1858 = vrot.slane %v1856, 2
      %v1859 = vor.u32 %v1855, %v1858
      %v1860 = vsel %vm1164, %v1850, %v1859
      %v1862 = vsel %vm292, %v1851, 0
      %v1865 = vsel %vm292, %v1860, 0
      %v1868 = vsel %vm292, %v1859, 0
      %1870 = vmatprep.subr.bf16.mxu0 0
      %1871 = vmatpush1.bf16.msra.mxu0 %v1199
      %1872 = vmatprep.subr.bf16.mxu0 0
      %1873 = vmatpush1.bf16.msra.mxu0 %v1200
      %1874 = vmatprep.subr.bf16.mxu0 0
      %1875 = vmatpush1.bf16.msra.mxu0 0
      %1876 = vmatprep.subr.bf16.mxu0 0
      %1877 = vmatpush1.bf16.msra.mxu0 0
      %1878 = vmatprep.subr.bf16.mxu0 0
      %1879 = vmatpush1.bf16.msra.mxu0 0
      %1880 = vmatprep.subr.bf16.mxu0 0
      %1881 = vmatpush1.bf16.msra.mxu0 0
      %1882 = vmatprep.subr.bf16.mxu0 0
      %1883 = vmatpush1.bf16.msra.mxu0 0
      %1884 = vmatprep.subr.bf16.mxu0 0
      %1885 = vmatpush1.bf16.msra.mxu0 0
      %1886 = vmatprep.subr.bf16.mxu0 0
      %1887 = vmatpush1.bf16.msra.mxu0 0
      %1888 = vmatprep.subr.bf16.mxu0 0
      %1889 = vmatpush1.bf16.msra.mxu0 0
      %1890 = vmatprep.subr.bf16.mxu0 0
      %1891 = vmatpush1.bf16.msra.mxu0 0
      %1892 = vmatprep.subr.bf16.mxu0 0
      %1893 = vmatpush1.bf16.msra.mxu0 0
      %1894 = vmatprep.subr.bf16.mxu0 0
      %1895 = vmatpush1.bf16.msra.mxu0 0
      %1896 = vmatprep.subr.bf16.mxu0 0
      %1897 = vmatpush1.bf16.msra.mxu0 0
      %1898 = vmatprep.subr.bf16.mxu0 0
      %1899 = vmatpush1.bf16.msra.mxu0 0
      %1900 = vmatprep.subr.bf16.mxu0 0
      %1901 = vmatpush1.bf16.msra.mxu0 0
      %1902 = vmatprep.mubr.bf16.mxu0 0
      %1903 = vmatmul.mubr.bf16.gmra.mrb[0].mxu0 %v1862
      %v1904 = vpop.f32.mrb[0].mxu0
      %v1905 = vadd.f32 0.0, %v1904
      %v1906 = vpop.f32.mrb[0].mxu0
      %v1907 = vpop.f32.mrb[0].mxu0
      %v1908 = vadd.f32 0.0, %v1907
      %v1909 = vpop.f32.mrb[0].mxu0
      %1910 = vmatprep.mubr.bf16.mxu0 0
      %1911 = vmatmul.mubr.bf16.gmra.mrb[0].mxu0 %v1865
      %v1912 = vpop.f32.mrb[0].mxu0
      %v1913 = vadd.f32 0.0, %v1912
      %v1914 = vpop.f32.mrb[0].mxu0
      %v1915 = vpop.f32.mrb[0].mxu0
      %v1916 = vadd.f32 0.0, %v1915
      %v1917 = vpop.f32.mrb[0].mxu0
      %1918 = vmatprep.mubr.bf16.mxu0 0
      %1919 = vmatmul.mubr.bf16.gmra.mrb[0].mxu0 %v1868
      %v1920 = vpop.f32.mrb[0].mxu0
      %v1921 = vadd.f32 0.0, %v1920
      %v1922 = vpop.f32.mrb[0].mxu0
      %v1923 = vpop.f32.mrb[0].mxu0
      %v1924 = vpop.f32.mrb[0].mxu0
      %1925 = vdwg.mxu0
      %v1926 = vadd.f32 %v1826, %v1905
      %v1927 = vadd.f32 %v1827, %v1908
      %v1928 = vadd.f32 %v1828, %v1913
      %v1929 = vadd.f32 %v1829, %v1916
      %v1930 = vadd.f32 %v1830, %v1921
      %v1931 = vmul.f32 %v1926, %v1277
      %v1932 = vmul.f32 %v1927, %v1277
      %v1933 = vmul.f32 %v1928, %v1277
      %v1934 = vmul.f32 %v1929, %v1277
      %v1935 = vmul.f32 %v1930, %v1277
      %v1936 = vadd.f32 %v1931, %v1288
      %v1937 = vadd.f32 %v1932, %v1288
      %v1938 = vadd.f32 %v1933, %v1288
      %v1939 = vadd.f32 %v1934, %v1288
      %v1940 = vadd.f32 %v1935, %v1288
      %v1941 = vmax.f32 %v1936, 0.0
      %v1942 = vmax.f32 %v1937, 0.0
      %v1943 = vmax.f32 %v1938, 0.0
      %v1944 = vmax.f32 %v1939, 0.0
      %v1945 = vmax.f32 %v1940, 0.0
      %v1946 = vmax.f32 %v1295, %v1941
      %v1947 = vmax.f32 %v1296, %v1942
      %v1948 = vmax.f32 %v1297, %v1943
      %v1949 = vmax.f32 %v1298, %v1944
      %v1950 = vmax.f32 %v1299, %v1945
      %1951 = vst.msk [vmem:[%s244] sm:$0xff] %vm292, %v1946
      %1952 = vst.msk [vmem:[%s244 + $0x8] sm:$0xff] %vm292, %v1947
      %1953 = vst.msk [vmem:[%s244 + $0x10] sm:$0xff] %vm292, %v1948
      %1954 = vst.msk [vmem:[%s244 + $0x18] sm:$0xff] %vm292, %v1949
      %1955 = vst.msk [vmem:[%s244 + $0x20] sm:$0xff] %vm292, %v1950
      %p1956 = scmp.lt.s32.totalorder %s16, 19
      %s1957 = scalar_select %p1956, %s16, 19
      %s1958 = smul.addr %s1957, 5
      %s1959 = smul.addr %s1958, 8
      %s1960 = scalar_lea.vmem %s5, %s1959
      // Predicated region
      $region41: #{_lambda_.9} parent=39 // pred_check
        %p1961 = pneg %p149
      $region42: #{_lambda_.9} parent=39 // pred_check_branch
        %1963 = sbr.rel (%p1961) target = $region44
      $region43: #{_lambda_.9} parent=39 // pred_region
        _
      $region44: #{_lambda_.9} parent=39 // pred_fallthru
        _
    $region40: #{_lambda_.9} parent=5 // pred_fallthru
      _
    %p1964 = scmp.le.s32.totalorder 2, %s11
    // Predicated region
    $region45: #{_lambda_.9} parent=5 // pred_check
      %p1965 = pneg %p1964
    $region46: #{_lambda_.9} parent=5 // pred_check_branch
      %1967 = sbr.rel (%p1965) target = $region48
    $region47: #{_lambda_.9} parent=5 // pred_region
      %s1968 = ssub.s32 %s11, 2
      // Predicated region
      $region49: #{_lambda_.9} parent=47 // pred_check
        %p1969 = pneg %p155
      $region50: #{_lambda_.9} parent=47 // pred_check_branch
        %1971 = sbr.rel (%p1969) target = $region52
      $region51: #{_lambda_.9} parent=47 // pred_region
        %p1972 = scmp.lt.s32.totalorder %s17, 19
        %s1973 = scalar_select %p1972, %s17, 19
        %s1974 = smul.addr %s1973, 5
        %s1975 = smul.addr %s1974, 8
        %s1976 = scalar_lea.vmem %s5, %s1975
      $region52: #{_lambda_.9} parent=47 // pred_fallthru
        _
    $region48: #{_lambda_.9} parent=5 // pred_fallthru
      _
  $region6: #{_lambda_.9} parent=0 // loop_footer
    %s15 = sadd.s32 1, %s11
  $region7: #{_lambda_.9} parent=0 // loop_footer_branch
    %10 = sbr.rel target = $region3
  $region8: #{_lambda_.9} parent=0 // loop_exit
    _

// kernel: _lambda_.10
$region0: #{_lambda_.10}
  #allocation0 [shape = 'u32[]', space=smem, size = 0x4, offset = 0x4, fixed_abs, tag = 'smem constant byte address 0x4 - core index']
  #allocation1 [shape = 'u32[144,128]{1,0:T(1,128)}', space=vmem, size = 0x12000, scoped, tag = 'internal scratch']
  %s0 = inlined_call_operand.vmem [shape: bf16[20,26,32], index: 0, kind: input, shape index: {}]
  %s1 = inlined_call_operand.vmem [shape: bf16[20,26,32], index: 1, kind: input, shape index: {}]
  %s2 = inlined_call_operand.vmem [shape: bf16[9,32,32], index: 2, kind: input, shape index: {}]
  %s3 = inlined_call_operand.vmem [shape: f32[1,32], index: 3, kind: input, shape index: {}]
  %s4 = inlined_call_operand.vmem [shape: f32[1,32], index: 4, kind: input, shape index: {}]
  %s5 = inlined_call_operand.vmem [shape: f32[20,12,32], index: 5, kind: output, shape index: {}]
  %s6 = sld [smem:[#allocation0]]
  $region53: #{_lambda_.10} parent=0
    _
  %s8 = ssub.s32 1, %s6
  %s9 = scalar_select 0, %s8, %s6
  loop: start=0, step=1, limit=22
  $region2: #{_lambda_.10} parent=0 // loop_pre_header
    _
  $region3: #{_lambda_.10} parent=0 // loop_header
    %s11 = sphi 0, %s15
    %p12 = scmp.ge.s32.totalorder %s11, 22
    %s21 = sphi 0, %s23
    %s24 = sphi 0, %s21
    %s25 = sphi 0, %s24
    %s41 = sphi 0, %s25
    %s47 = sphi 0, %s49
    %s50 = sphi 0, %s47
    %s51 = sphi 0, %s50
    %s67 = sphi 0, %s51
    %s71 = sphi 0, %s71
    %s73 = sphi 0, %s71
    %s74 = sphi 0, %s73
    %s88 = sphi 0, %s74
    %s92 = sphi 0, %s92
    %s94 = sphi 0, %s92
    %s95 = sphi 0, %s94
    %s109 = sphi 0, %s95
    %s113 = sphi 0, %s113
    %s115 = sphi 0, %s113
    %s116 = sphi 0, %s115
    %s130 = sphi 0, %s116
    %s136 = sphi 0, %s138
    %s139 = sphi 0, %s136
    %s140 = sphi 0, %s139
    %s156 = sphi 0, %s140
  $region4: #{_lambda_.10} parent=0 // loop_header_branch
    %14 = sbr.rel (%p12) target = $region8
  $region5: #{_lambda_.10} parent=0 // loop_body
    %s16 = ssub.s32 %s11, 1
    %s17 = ssub.s32 %s11, 2
    %s18 = sadd.s32 %s11, 1
    %s19 = ssub.s32 %s11, %s18
    %p20 = scmp.eq.s32.totalorder %s19, 0
    %s22 = sadd.s32 %s21, 1
    %s23 = scalar_select %p20, %s21, %s22
    %p26 = pneg %p20
    %p27 = scmp.eq.s32.totalorder %s11, 19
    %p28 = por %p26, %p27
    %p29 = scmp.ne.s32.totalorder %s21, %s24
    %p30 = scmp.eq.s32.totalorder %s11, 0
    %p31 = por %p29, %p30
    %p32 = scmp.ne.s32.totalorder %s21, %s24
    %p33 = scmp.eq.s32.totalorder %s16, 19
    %p34 = por %p32, %p33
    %p35 = scmp.ne.s32.totalorder %s24, %s25
    %p36 = scmp.eq.s32.totalorder %s16, 0
    %p37 = por %p35, %p36
    %p38 = scmp.ne.s32.totalorder %s24, %s25
    %p39 = scmp.eq.s32.totalorder %s17, 19
    %p40 = por %p38, %p39
    %p42 = scmp.ne.s32.totalorder %s25, %s41
    %p43 = scmp.eq.s32.totalorder %s17, 0
    %p44 = por %p42, %p43
    %s45 = ssub.s32 %s11, %s18
    %p46 = scmp.eq.s32.totalorder %s45, 0
    %s48 = sadd.s32 %s47, 1
    %s49 = scalar_select %p46, %s47, %s48
    %p52 = pneg %p46
    %p53 = scmp.eq.s32.totalorder %s11, 19
    %p54 = por %p52, %p53
    %p55 = scmp.ne.s32.totalorder %s47, %s50
    %p56 = scmp.eq.s32.totalorder %s11, 0
    %p57 = por %p55, %p56
    %p58 = scmp.ne.s32.totalorder %s47, %s50
    %p59 = scmp.eq.s32.totalorder %s16, 19
    %p60 = por %p58, %p59
    %p61 = scmp.ne.s32.totalorder %s50, %s51
    %p62 = scmp.eq.s32.totalorder %s16, 0
    %p63 = por %p61, %p62
    %p64 = scmp.ne.s32.totalorder %s50, %s51
    %p65 = scmp.eq.s32.totalorder %s17, 19
    %p66 = por %p64, %p65
    %p68 = scmp.ne.s32.totalorder %s51, %s67
    %p69 = scmp.eq.s32.totalorder %s17, 0
    %p70 = por %p68, %p69
    %s72 = sadd.s32 %s71, 1
    %p75 = scmp.eq.s32.totalorder %s11, 19
    %p76 = scmp.ne.s32.totalorder %s71, %s73
    %p77 = scmp.eq.s32.totalorder %s11, 0
    %p78 = por %p76, %p77
    %p79 = scmp.ne.s32.totalorder %s71, %s73
    %p80 = scmp.eq.s32.totalorder %s16, 19
    %p81 = por %p79, %p80
    %p82 = scmp.ne.s32.totalorder %s73, %s74
    %p83 = scmp.eq.s32.totalorder %s16, 0
    %p84 = por %p82, %p83
    %p85 = scmp.ne.s32.totalorder %s73, %s74
    %p86 = scmp.eq.s32.totalorder %s17, 19
    %p87 = por %p85, %p86
    %p89 = scmp.ne.s32.totalorder %s74, %s88
    %p90 = scmp.eq.s32.totalorder %s17, 0
    %p91 = por %p89, %p90
    %s93 = sadd.s32 %s92, 1
    %p96 = scmp.eq.s32.totalorder %s11, 19
    %p97 = scmp.ne.s32.totalorder %s92, %s94
    %p98 = scmp.eq.s32.totalorder %s11, 0
    %p99 = por %p97, %p98
    %p100 = scmp.ne.s32.totalorder %s92, %s94
    %p101 = scmp.eq.s32.totalorder %s16, 19
    %p102 = por %p100, %p101
    %p103 = scmp.ne.s32.totalorder %s94, %s95
    %p104 = scmp.eq.s32.totalorder %s16, 0
    %p105 = por %p103, %p104
    %p106 = scmp.ne.s32.totalorder %s94, %s95
    %p107 = scmp.eq.s32.totalorder %s17, 19
    %p108 = por %p106, %p107
    %p110 = scmp.ne.s32.totalorder %s95, %s109
    %p111 = scmp.eq.s32.totalorder %s17, 0
    %p112 = por %p110, %p111
    %s114 = sadd.s32 %s113, 1
    %p117 = scmp.eq.s32.totalorder %s11, 19
    %p118 = scmp.ne.s32.totalorder %s113, %s115
    %p119 = scmp.eq.s32.totalorder %s11, 0
    %p120 = por %p118, %p119
    %p121 = scmp.ne.s32.totalorder %s113, %s115
    %p122 = scmp.eq.s32.totalorder %s16, 19
    %p123 = por %p121, %p122
    %p124 = scmp.ne.s32.totalorder %s115, %s116
    %p125 = scmp.eq.s32.totalorder %s16, 0
    %p126 = por %p124, %p125
    %p127 = scmp.ne.s32.totalorder %s115, %s116
    %p128 = scmp.eq.s32.totalorder %s17, 19
    %p129 = por %p127, %p128
    %p131 = scmp.ne.s32.totalorder %s116, %s130
    %p132 = scmp.eq.s32.totalorder %s17, 0
    %p133 = por %p131, %p132
    %s134 = ssub.s32 %s11, %s18
    %p135 = scmp.eq.s32.totalorder %s134, 0
    %s137 = sadd.s32 %s136, 1
    %s138 = scalar_select %p135, %s136, %s137
    %p141 = pneg %p135
    %p142 = scmp.eq.s32.totalorder %s11, 19
    %p143 = por %p141, %p142
    %p144 = scmp.ne.s32.totalorder %s136, %s139
    %p145 = scmp.eq.s32.totalorder %s11, 0
    %p146 = por %p144, %p145
    %p147 = scmp.ne.s32.totalorder %s136, %s139
    %p148 = scmp.eq.s32.totalorder %s16, 19
    %p149 = por %p147, %p148
    %p150 = scmp.ne.s32.totalorder %s139, %s140
    %p151 = scmp.eq.s32.totalorder %s16, 0
    %p152 = por %p150, %p151
    %p153 = scmp.ne.s32.totalorder %s139, %s140
    %p154 = scmp.eq.s32.totalorder %s17, 19
    %p155 = por %p153, %p154
    %p157 = scmp.ne.s32.totalorder %s140, %s156
    %p158 = scmp.eq.s32.totalorder %s17, 0
    %p159 = por %p157, %p158
    %p160 = scmp.le.s32.totalorder 1, %s11
    %p161 = scmp.lt.s32.totalorder %s11, 21
    %p162 = pnand %p160, %p161
    %p163 = pneg %p162
    // Predicated region
    $region9: #{_lambda_.10} parent=5 // pred_check
      _
    $region10: #{_lambda_.10} parent=5 // pred_check_branch
      %165 = sbr.rel (%p162) target = $region12
    $region11: #{_lambda_.10} parent=5 // pred_region
      %s166 = ssub.s32 %s11, 1
      // Predicated region
      $region13: #{_lambda_.10} parent=11 // pred_check
        %p167 = pneg %p84
      $region14: #{_lambda_.10} parent=11 // pred_check_branch
        %169 = sbr.rel (%p167) target = $region16
      $region15: #{_lambda_.10} parent=11 // pred_region
        _
      $region16: #{_lambda_.10} parent=11 // pred_fallthru
        _
      // Predicated region
      $region17: #{_lambda_.10} parent=11 // pred_check
        %p170 = pneg %p105
      $region18: #{_lambda_.10} parent=11 // pred_check_branch
        %172 = sbr.rel (%p170) target = $region20
      $region19: #{_lambda_.10} parent=11 // pred_region
        _
      $region20: #{_lambda_.10} parent=11 // pred_fallthru
        _
      // Predicated region
      $region21: #{_lambda_.10} parent=11 // pred_check
        %p173 = pneg %p126
      $region22: #{_lambda_.10} parent=11 // pred_check_branch
        %175 = sbr.rel (%p173) target = $region24
      $region23: #{_lambda_.10} parent=11 // pred_region
        _
      $region24: #{_lambda_.10} parent=11 // pred_fallthru
        _
    $region12: #{_lambda_.10} parent=5 // pred_fallthru
      _
    %p176 = scmp.lt.s32.totalorder %s11, 20
    // Predicated region
    $region25: #{_lambda_.10} parent=5 // pred_check
      %p177 = pneg %p176
    $region26: #{_lambda_.10} parent=5 // pred_check_branch
      %179 = sbr.rel (%p177) target = $region28
    $region27: #{_lambda_.10} parent=5 // pred_region
      // Predicated region
      $region29: #{_lambda_.10} parent=27 // pred_check
        %p180 = pneg %p31
      $region30: #{_lambda_.10} parent=27 // pred_check_branch
        %182 = sbr.rel (%p180) target = $region32
      $region31: #{_lambda_.10} parent=27 // pred_region
        %p183 = scmp.lt.s32.totalorder %s11, 19
        %s184 = scalar_select %p183, %s11, 19
        %s185 = smul.addr %s184, 4
        %s186 = smul.addr %s185, 4
        %s187 = scalar_lea.vmem %s0, %s186
      $region32: #{_lambda_.10} parent=27 // pred_fallthru
        _
      // Predicated region
      $region33: #{_lambda_.10} parent=27 // pred_check
        %p188 = pneg %p57
      $region34: #{_lambda_.10} parent=27 // pred_check_branch
        %190 = sbr.rel (%p188) target = $region36
      $region35: #{_lambda_.10} parent=27 // pred_region
        %p191 = scmp.lt.s32.totalorder %s11, 19
        %s192 = scalar_select %p191, %s11, 19
        %s193 = smul.addr %s192, 4
        %s194 = smul.addr %s193, 4
        %s195 = scalar_lea.vmem %s1, %s194
      $region36: #{_lambda_.10} parent=27 // pred_fallthru
        _
    $region28: #{_lambda_.10} parent=5 // pred_fallthru
      _
    %p196 = scmp.le.s32.totalorder 1, %s11
    %p197 = scmp.lt.s32.totalorder %s11, 21
    %p198 = pnand %p196, %p197
    %p199 = pneg %p198
    // Predicated region
    $region37: #{_lambda_.10} parent=5 // pred_check
      _
    $region38: #{_lambda_.10} parent=5 // pred_check_branch
      %201 = sbr.rel (%p198) target = $region40
    $region39: #{_lambda_.10} parent=5 // pred_region
      %s202 = ssub.s32 %s11, 1
      %p203 = scmp.lt.s32.totalorder %s16, 19
      %s204 = scalar_select %p203, %s16, 19
      %s205 = smul.addr %s204, 4
      %s206 = smul.addr %s205, 4
      %s207 = scalar_lea.vmem %s0, %s206
      %p208 = pneg %p37
      %p209 = pneg %p34
      %p210 = scmp.lt.s32.totalorder %s16, 19
      %s211 = scalar_select %p210, %s16, 19
      %s212 = smul.addr %s211, 4
      %s213 = smul.addr %s212, 4
      %s214 = scalar_lea.vmem %s1, %s213
      %p215 = pneg %p63
      %p216 = pneg %p60
      %p217 = pneg %p84
      %p218 = pneg %p81
      %p219 = pneg %p105
      %p220 = pneg %p102
      %p221 = pneg %p126
      %p222 = pneg %p123
      %p223 = pneg %p152
      %p224 = pneg %p149
      %p225 = scmp.lt.s32.totalorder %s16, 19
      %s226 = scalar_select %p225, %s16, 19
      %s227 = smul.addr %s226, 2
      %s228 = smul.addr %s227, 8
      %s229 = scalar_lea.vmem %s5, %s228
      %p230 = scmp.lt.s32.totalorder %s16, 19
      %s231 = scalar_select %p230, %s16, 19
      %s232 = smul.addr %s231, 4
      %s233 = smul.addr %s232, 4
      %s234 = scalar_lea.vmem %s0, %s233
      %p235 = scmp.lt.s32.totalorder %s16, 19
      %s236 = scalar_select %p235, %s16, 19
      %s237 = smul.addr %s236, 4
      %s238 = smul.addr %s237, 4
      %s239 = scalar_lea.vmem %s1, %s238
      %p240 = scmp.lt.s32.totalorder %s16, 19
      %s241 = scalar_select %p240, %s16, 19
      %s242 = smul.addr %s241, 2
      %s243 = smul.addr %s242, 8
      %s244 = scalar_lea.vmem %s5, %s243
      %v246 = vld [vmem:[%s3] sm:$0x1]
      %v247 = vld [vmem:[%s4] sm:$0x1]
      %v248 = vld [vmem:[%s234] sm:$0xf]
      %v249 = vld [vmem:[%s234 + $0x4] sm:$0x3]
      %v250 = vld [vmem:[%s2] sm:$0xf]
      %v251 = vld [vmem:[%s2 + $0x4] sm:$0xf]
      %v252 = vld [vmem:[%s2 + $0x8] sm:$0xf]
      %v253 = vld [vmem:[%s2 + $0xc] sm:$0xf]
      %v254 = vld [vmem:[%s239] sm:$0xf]
      %v255 = vld [vmem:[%s239 + $0x4] sm:$0x3]
      %s256 = scalar_lea.vmem %s2, 16
      %v257 = vld [vmem:[%s256] sm:$0xf]
      %v258 = vld [vmem:[%s256 + $0x4] sm:$0xf]
      %v259 = vld [vmem:[%s256 + $0x8] sm:$0xf]
      %v260 = vld [vmem:[%s256 + $0xc] sm:$0xf]
      %v263 = vunpack.c.l.b16 %v254
      %v264 = vunpack.c.l.b16 %v255
      %v265 = vpack.c.b16 %v264, %v263
      %v270 = vunpack.c.l.b16 %v257
      %v271 = vunpack.c.l.b16 %v258
      %v272 = vunpack.c.l.b16 %v259
      %v273 = vunpack.c.l.b16 %v260
      %v274 = vpack.c.b16 %v271, %v270
      %v275 = vpack.c.b16 %v273, %v272
      %vm278 = vcmask 261120
      %v280 = vsel %vm278, %v265, 0
      %282 = vmatprep.subr.bf16.mxu0 0
      %283 = vmatpush1.bf16.msra.mxu0 %v274
      %284 = vmatprep.subr.bf16.mxu0 0
      %285 = vmatpush1.bf16.msra.mxu0 %v275
      %286 = vmatprep.subr.bf16.mxu0 0
      %287 = vmatpush1.bf16.msra.mxu0 0
      %288 = vmatprep.subr.bf16.mxu0 0
      %289 = vmatpush1.bf16.msra.mxu0 0
      %290 = vmatprep.subr.bf16.mxu0 0
      %291 = vmatpush1.bf16.msra.mxu0 0
      %292 = vmatprep.subr.bf16.mxu0 0
      %293 = vmatpush1.bf16.msra.mxu0 0
      %294 = vmatprep.subr.bf16.mxu0 0
      %295 = vmatpush1.bf16.msra.mxu0 0
      %296 = vmatprep.subr.bf16.mxu0 0
      %297 = vmatpush1.bf16.msra.mxu0 0
      %298 = vmatprep.subr.bf16.mxu0 0
      %299 = vmatpush1.bf16.msra.mxu0 0
      %300 = vmatprep.subr.bf16.mxu0 0
      %301 = vmatpush1.bf16.msra.mxu0 0
      %302 = vmatprep.subr.bf16.mxu0 0
      %303 = vmatpush1.bf16.msra.mxu0 0
      %304 = vmatprep.subr.bf16.mxu0 0
      %305 = vmatpush1.bf16.msra.mxu0 0
      %306 = vmatprep.subr.bf16.mxu0 0
      %307 = vmatpush1.bf16.msra.mxu0 0
      %308 = vmatprep.subr.bf16.mxu0 0
      %309 = vmatpush1.bf16.msra.mxu0 0
      %310 = vmatprep.subr.bf16.mxu0 0
      %311 = vmatpush1.bf16.msra.mxu0 0
      %312 = vmatprep.subr.bf16.mxu0 0
      %313 = vmatpush1.bf16.msra.mxu0 0
      %314 = vmatprep.mubr.bf16.mxu0 0
      %315 = vmatmul.mubr.bf16.gmra.mrb[0].mxu0 %v280
      %v316 = vpop.f32.mrb[0].mxu0
      %v317 = vadd.f32 0.0, %v316
      %v318 = vpop.f32.mrb[0].mxu0
      %v319 = vpop.f32.mrb[0].mxu0
      %v320 = vadd.f32 0.0, %v319
      %v321 = vpop.f32.mrb[0].mxu0
      %322 = vdwg.mxu0
      %v325 = vunpack.c.l.b16 %v248
      %v326 = vunpack.c.l.b16 %v249
      %v327 = vpack.c.b16 %v326, %v325
      %v332 = vunpack.c.l.b16 %v250
      %v333 = vunpack.c.l.b16 %v251
      %v334 = vunpack.c.l.b16 %v252
      %v335 = vunpack.c.l.b16 %v253
      %v336 = vpack.c.b16 %v333, %v332
      %v337 = vpack.c.b16 %v335, %v334
      %v341 = vsel %vm278, %v327, 0
      %343 = vmatprep.subr.bf16.mxu0 0
      %344 = vmatpush1.bf16.msra.mxu0 %v336
      %345 = vmatprep.subr.bf16.mxu0 0
      %346 = vmatpush1.bf16.msra.mxu0 %v337
      %347 = vmatprep.subr.bf16.mxu0 0
      %348 = vmatpush1.bf16.msra.mxu0 0
      %349 = vmatprep.subr.bf16.mxu0 0
      %350 = vmatpush1.bf16.msra.mxu0 0
      %351 = vmatprep.subr.bf16.mxu0 0
      %352 = vmatpush1.bf16.msra.mxu0 0
      %353 = vmatprep.subr.bf16.mxu0 0
      %354 = vmatpush1.bf16.msra.mxu0 0
      %355 = vmatprep.subr.bf16.mxu0 0
      %356 = vmatpush1.bf16.msra.mxu0 0
      %357 = vmatprep.subr.bf16.mxu0 0
      %358 = vmatpush1.bf16.msra.mxu0 0
      %359 = vmatprep.subr.bf16.mxu0 0
      %360 = vmatpush1.bf16.msra.mxu0 0
      %361 = vmatprep.subr.bf16.mxu0 0
      %362 = vmatpush1.bf16.msra.mxu0 0
      %363 = vmatprep.subr.bf16.mxu0 0
      %364 = vmatpush1.bf16.msra.mxu0 0
      %365 = vmatprep.subr.bf16.mxu0 0
      %366 = vmatpush1.bf16.msra.mxu0 0
      %367 = vmatprep.subr.bf16.mxu0 0
      %368 = vmatpush1.bf16.msra.mxu0 0
      %369 = vmatprep.subr.bf16.mxu0 0
      %370 = vmatpush1.bf16.msra.mxu0 0
      %371 = vmatprep.subr.bf16.mxu0 0
      %372 = vmatpush1.bf16.msra.mxu0 0
      %373 = vmatprep.subr.bf16.mxu0 0
      %374 = vmatpush1.bf16.msra.mxu0 0
      %375 = vmatprep.mubr.bf16.mxu0 0
      %376 = vmatmul.mubr.bf16.gmra.mrb[0].mxu0 %v341
      %v377 = vpop.f32.mrb[0].mxu0
      %v378 = vadd.f32 %v317, %v377
      %v379 = vpop.f32.mrb[0].mxu0
      %v380 = vpop.f32.mrb[0].mxu0
      %v381 = vadd.f32 %v320, %v380
      %v382 = vpop.f32.mrb[0].mxu0
      %383 = vdwg.mxu0
      %v384 = vld [vmem:[%s234 + $0x4] sm:$0x7]
      %s385 = scalar_lea.vmem %s2, 32
      %v386 = vld [vmem:[%s385] sm:$0xf]
      %v387 = vld [vmem:[%s385 + $0x4] sm:$0xf]
      %v388 = vld [vmem:[%s385 + $0x8] sm:$0xf]
      %v389 = vld [vmem:[%s385 + $0xc] sm:$0xf]
      %v391 = vunpack.c.l.b16 %v384
      %v392 = vpack.c.b16 %v391, %v325
      %v394 = vshrl.u32 %v392, 16
      %v396 = vshll.u32 %v392, 16
      %v398 = vrot.slane %v396, 1
      %v399 = vor.u32 %v394, %v398
      %v404 = vunpack.c.l.b16 %v386
      %v405 = vunpack.c.l.b16 %v387
      %v406 = vunpack.c.l.b16 %v388
      %v407 = vunpack.c.l.b16 %v389
      %v408 = vpack.c.b16 %v405, %v404
      %v409 = vpack.c.b16 %v407, %v406
      %v413 = vsel %vm278, %v399, 0
      %415 = vmatprep.subr.bf16.mxu0 0
      %416 = vmatpush1.bf16.msra.mxu0 %v408
      %417 = vmatprep.subr.bf16.mxu0 0
      %418 = vmatpush1.bf16.msra.mxu0 %v409
      %419 = vmatprep.subr.bf16.mxu0 0
      %420 = vmatpush1.bf16.msra.mxu0 0
      %421 = vmatprep.subr.bf16.mxu0 0
      %422 = vmatpush1.bf16.msra.mxu0 0
      %423 = vmatprep.subr.bf16.mxu0 0
      %424 = vmatpush1.bf16.msra.mxu0 0
      %425 = vmatprep.subr.bf16.mxu0 0
      %426 = vmatpush1.bf16.msra.mxu0 0
      %427 = vmatprep.subr.bf16.mxu0 0
      %428 = vmatpush1.bf16.msra.mxu0 0
      %429 = vmatprep.subr.bf16.mxu0 0
      %430 = vmatpush1.bf16.msra.mxu0 0
      %431 = vmatprep.subr.bf16.mxu0 0
      %432 = vmatpush1.bf16.msra.mxu0 0
      %433 = vmatprep.subr.bf16.mxu0 0
      %434 = vmatpush1.bf16.msra.mxu0 0
      %435 = vmatprep.subr.bf16.mxu0 0
      %436 = vmatpush1.bf16.msra.mxu0 0
      %437 = vmatprep.subr.bf16.mxu0 0
      %438 = vmatpush1.bf16.msra.mxu0 0
      %439 = vmatprep.subr.bf16.mxu0 0
      %440 = vmatpush1.bf16.msra.mxu0 0
      %441 = vmatprep.subr.bf16.mxu0 0
      %442 = vmatpush1.bf16.msra.mxu0 0
      %443 = vmatprep.subr.bf16.mxu0 0
      %444 = vmatpush1.bf16.msra.mxu0 0
      %445 = vmatprep.subr.bf16.mxu0 0
      %446 = vmatpush1.bf16.msra.mxu0 0
      %447 = vmatprep.mubr.bf16.mxu0 0
      %448 = vmatmul.mubr.bf16.gmra.mrb[0].mxu0 %v413
      %v449 = vpop.f32.mrb[0].mxu0
      %v450 = vadd.f32 0.0, %v449
      %v451 = vpop.f32.mrb[0].mxu0
      %v452 = vpop.f32.mrb[0].mxu0
      %v453 = vadd.f32 0.0, %v452
      %v454 = vpop.f32.mrb[0].mxu0
      %455 = vdwg.mxu0
      %v456 = vadd.f32 %v378, %v450
      %v457 = vadd.f32 %v381, %v453
      %v458 = vld [vmem:[%s234] sm:$0xe]
      %v459 = vld [vmem:[%s234 + $0x4] sm:$0xf]
      %s460 = scalar_lea.vmem %s2, 48
      %v461 = vld [vmem:[%s460] sm:$0xf]
      %v462 = vld [vmem:[%s460 + $0x4] sm:$0xf]
      %v463 = vld [vmem:[%s460 + $0x8] sm:$0xf]
      %v464 = vld [vmem:[%s460 + $0xc] sm:$0xf]
      %v467 = vunpack.c.l.b16 %v458
      %v468 = vunpack.c.l.b16 %v459
      %v469 = vpack.c.b16 %v468, %v467
      %v471 = vshrl.u32 %v469, 16
      %v473 = vrot.slane %v471, 1
      %v474 = vshll.u32 %v469, 16
      %v476 = vrot.slane %v474, 2
      %v477 = vor.u32 %v473, %v476
      %v482 = vunpack.c.l.b16 %v461
      %v483 = vunpack.c.l.b16 %v462
      %v484 = vunpack.c.l.b16 %v463
      %v485 = vunpack.c.l.b16 %v464
      %v486 = vpack.c.b16 %v483, %v482
      %v487 = vpack.c.b16 %v485, %v484
      %v491 = vsel %vm278, %v477, 0
      %493 = vmatprep.subr.bf16.mxu0 0
      %494 = vmatpush1.bf16.msra.mxu0 %v486
      %495 = vmatprep.subr.bf16.mxu0 0
      %496 = vmatpush1.bf16.msra.mxu0 %v487
      %497 = vmatprep.subr.bf16.mxu0 0
      %498 = vmatpush1.bf16.msra.mxu0 0
      %499 = vmatprep.subr.bf16.mxu0 0
      %500 = vmatpush1.bf16.msra.mxu0 0
      %501 = vmatprep.subr.bf16.mxu0 0
      %502 = vmatpush1.bf16.msra.mxu0 0
      %503 = vmatprep.subr.bf16.mxu0 0
      %504 = vmatpush1.bf16.msra.mxu0 0
      %505 = vmatprep.subr.bf16.mxu0 0
      %506 = vmatpush1.bf16.msra.mxu0 0
      %507 = vmatprep.subr.bf16.mxu0 0
      %508 = vmatpush1.bf16.msra.mxu0 0
      %509 = vmatprep.subr.bf16.mxu0 0
      %510 = vmatpush1.bf16.msra.mxu0 0
      %511 = vmatprep.subr.bf16.mxu0 0
      %512 = vmatpush1.bf16.msra.mxu0 0
      %513 = vmatprep.subr.bf16.mxu0 0
      %514 = vmatpush1.bf16.msra.mxu0 0
      %515 = vmatprep.subr.bf16.mxu0 0
      %516 = vmatpush1.bf16.msra.mxu0 0
      %517 = vmatprep.subr.bf16.mxu0 0
      %518 = vmatpush1.bf16.msra.mxu0 0
      %519 = vmatprep.subr.bf16.mxu0 0
      %520 = vmatpush1.bf16.msra.mxu0 0
      %521 = vmatprep.subr.bf16.mxu0 0
      %522 = vmatpush1.bf16.msra.mxu0 0
      %523 = vmatprep.subr.bf16.mxu0 0
      %524 = vmatpush1.bf16.msra.mxu0 0
      %525 = vmatprep.mubr.bf16.mxu0 0
      %526 = vmatmul.mubr.bf16.gmra.mrb[0].mxu0 %v491
      %v527 = vpop.f32.mrb[0].mxu0
      %v528 = vadd.f32 0.0, %v527
      %v529 = vpop.f32.mrb[0].mxu0
      %v530 = vpop.f32.mrb[0].mxu0
      %v531 = vadd.f32 0.0, %v530
      %v532 = vpop.f32.mrb[0].mxu0
      %533 = vdwg.mxu0
      %v534 = vadd.f32 %v456, %v528
      %v535 = vadd.f32 %v457, %v531
      %v536 = vld [vmem:[%s239] sm:$0xe]
      %v537 = vld [vmem:[%s239 + $0x4] sm:$0xf]
      %s538 = scalar_lea.vmem %s2, 64
      %v539 = vld [vmem:[%s538] sm:$0xf]
      %v540 = vld [vmem:[%s538 + $0x4] sm:$0xf]
      %v541 = vld [vmem:[%s538 + $0x8] sm:$0xf]
      %v542 = vld [vmem:[%s538 + $0xc] sm:$0xf]
      %v545 = vunpack.c.l.b16 %v536
      %v546 = vunpack.c.l.b16 %v537
      %v547 = vpack.c.b16 %v546, %v545
      %v549 = vshrl.u32 %v547, 16
      %v551 = vrot.slane %v549, 1
      %v552 = vshll.u32 %v547, 16
      %v554 = vrot.slane %v552, 2
      %v555 = vor.u32 %v551, %v554
      %v560 = vunpack.c.l.b16 %v539
      %v561 = vunpack.c.l.b16 %v540
      %v562 = vunpack.c.l.b16 %v541
      %v563 = vunpack.c.l.b16 %v542
      %v564 = vpack.c.b16 %v561, %v560
      %v565 = vpack.c.b16 %v563, %v562
      %v569 = vsel %vm278, %v555, 0
      %571 = vmatprep.subr.bf16.mxu0 0
      %572 = vmatpush1.bf16.msra.mxu0 %v564
      %573 = vmatprep.subr.bf16.mxu0 0
      %574 = vmatpush1.bf16.msra.mxu0 %v565
      %575 = vmatprep.subr.bf16.mxu0 0
      %576 = vmatpush1.bf16.msra.mxu0 0
      %577 = vmatprep.subr.bf16.mxu0 0
      %578 = vmatpush1.bf16.msra.mxu0 0
      %579 = vmatprep.subr.bf16.mxu0 0
      %580 = vmatpush1.bf16.msra.mxu0 0
      %581 = vmatprep.subr.bf16.mxu0 0
      %582 = vmatpush1.bf16.msra.mxu0 0
      %583 = vmatprep.subr.bf16.mxu0 0
      %584 = vmatpush1.bf16.msra.mxu0 0
      %585 = vmatprep.subr.bf16.mxu0 0
      %586 = vmatpush1.bf16.msra.mxu0 0
      %587 = vmatprep.subr.bf16.mxu0 0
      %588 = vmatpush1.bf16.msra.mxu0 0
      %589 = vmatprep.subr.bf16.mxu0 0
      %590 = vmatpush1.bf16.msra.mxu0 0
      %591 = vmatprep.subr.bf16.mxu0 0
      %592 = vmatpush1.bf16.msra.mxu0 0
      %593 = vmatprep.subr.bf16.mxu0 0
      %594 = vmatpush1.bf16.msra.mxu0 0
      %595 = vmatprep.subr.bf16.mxu0 0
      %596 = vmatpush1.bf16.msra.mxu0 0
      %597 = vmatprep.subr.bf16.mxu0 0
      %598 = vmatpush1.bf16.msra.mxu0 0
      %599 = vmatprep.subr.bf16.mxu0 0
      %600 = vmatpush1.bf16.msra.mxu0 0
      %601 = vmatprep.subr.bf16.mxu0 0
      %602 = vmatpush1.bf16.msra.mxu0 0
      %603 = vmatprep.mubr.bf16.mxu0 0
      %604 = vmatmul.mubr.bf16.gmra.mrb[0].mxu0 %v569
      %v605 = vpop.f32.mrb[0].mxu0
      %v606 = vadd.f32 0.0, %v605
      %v607 = vpop.f32.mrb[0].mxu0
      %v608 = vpop.f32.mrb[0].mxu0
      %v609 = vadd.f32 0.0, %v608
      %v610 = vpop.f32.mrb[0].mxu0
      %611 = vdwg.mxu0
      %v612 = vadd.f32 %v534, %v606
      %v613 = vadd.f32 %v535, %v609
      %v614 = vld [vmem:[%s234] sm:$0xc]
      %s615 = scalar_lea.vmem %s2, 80
      %v616 = vld [vmem:[%s615] sm:$0xf]
      %v617 = vld [vmem:[%s615 + $0x4] sm:$0xf]
      %v618 = vld [vmem:[%s615 + $0x8] sm:$0xf]
      %v619 = vld [vmem:[%s615 + $0xc] sm:$0xf]
      %v621 = vunpack.c.l.b16 %v614
      %v622 = vpack.c.b16 %v468, %v621
      %v623 = vrot.slane %v622, 2
      %v628 = vunpack.c.l.b16 %v616
      %v629 = vunpack.c.l.b16 %v617
      %v630 = vunpack.c.l.b16 %v618
      %v631 = vunpack.c.l.b16 %v619
      %v632 = vpack.c.b16 %v629, %v628
      %v633 = vpack.c.b16 %v631, %v630
      %v637 = vsel %vm278, %v623, 0
      %639 = vmatprep.subr.bf16.mxu0 0
      %640 = vmatpush1.bf16.msra.mxu0 %v632
      %641 = vmatprep.subr.bf16.mxu0 0
      %642 = vmatpush1.bf16.msra.mxu0 %v633
      %643 = vmatprep.subr.bf16.mxu0 0
      %644 = vmatpush1.bf16.msra.mxu0 0
      %645 = vmatprep.subr.bf16.mxu0 0
      %646 = vmatpush1.bf16.msra.mxu0 0
      %647 = vmatprep.subr.bf16.mxu0 0
      %648 = vmatpush1.bf16.msra.mxu0 0
      %649 = vmatprep.subr.bf16.mxu0 0
      %650 = vmatpush1.bf16.msra.mxu0 0
      %651 = vmatprep.subr.bf16.mxu0 0
      %652 = vmatpush1.bf16.msra.mxu0 0
      %653 = vmatprep.subr.bf16.mxu0 0
      %654 = vmatpush1.bf16.msra.mxu0 0
      %655 = vmatprep.subr.bf16.mxu0 0
      %656 = vmatpush1.bf16.msra.mxu0 0
      %657 = vmatprep.subr.bf16.mxu0 0
      %658 = vmatpush1.bf16.msra.mxu0 0
      %659 = vmatprep.subr.bf16.mxu0 0
      %660 = vmatpush1.bf16.msra.mxu0 0
      %661 = vmatprep.subr.bf16.mxu0 0
      %662 = vmatpush1.bf16.msra.mxu0 0
      %663 = vmatprep.subr.bf16.mxu0 0
      %664 = vmatpush1.bf16.msra.mxu0 0
      %665 = vmatprep.subr.bf16.mxu0 0
      %666 = vmatpush1.bf16.msra.mxu0 0
      %667 = vmatprep.subr.bf16.mxu0 0
      %668 = vmatpush1.bf16.msra.mxu0 0
      %669 = vmatprep.subr.bf16.mxu0 0
      %670 = vmatpush1.bf16.msra.mxu0 0
      %671 = vmatprep.mubr.bf16.mxu0 0
      %672 = vmatmul.mubr.bf16.gmra.mrb[0].mxu0 %v637
      %v673 = vpop.f32.mrb[0].mxu0
      %v674 = vadd.f32 0.0, %v673
      %v675 = vpop.f32.mrb[0].mxu0
      %v676 = vpop.f32.mrb[0].mxu0
      %v677 = vadd.f32 0.0, %v676
      %v678 = vpop.f32.mrb[0].mxu0
      %679 = vdwg.mxu0
      %v680 = vadd.f32 %v612, %v674
      %v681 = vadd.f32 %v613, %v677
      %v682 = vld [vmem:[%s234] sm:$0x8]
      %v683 = vld [vmem:[%s234 + $0x4] sm:$0xf]
      %v684 = vld [vmem:[%s234 + $0x8] sm:$0x1]
      %s685 = scalar_lea.vmem %s2, 96
      %v686 = vld [vmem:[%s685] sm:$0xf]
      %v687 = vld [vmem:[%s685 + $0x4] sm:$0xf]
      %v688 = vld [vmem:[%s685 + $0x8] sm:$0xf]
      %v689 = vld [vmem:[%s685 + $0xc] sm:$0xf]
      %v693 = vunpack.c.l.b16 %v682
      %v694 = vunpack.c.l.b16 %v683
      %v695 = vunpack.c.l.b16 %v684
      %v696 = vpack.c.b16 %v694, %v693
      %v697 = vpack.c.b16 %v695, %v695
      %vm698 = vcmask 1044480
      %v699 = vrot.slane %v696, 3
      %v700 = vrot.slane %v697, 3
      %v701 = vsel %vm698, %v699, %v700
      %v706 = vunpack.c.l.b16 %v686
      %v707 = vunpack.c.l.b16 %v687
      %v708 = vunpack.c.l.b16 %v688
      %v709 = vunpack.c.l.b16 %v689
      %v710 = vpack.c.b16 %v707, %v706
      %v711 = vpack.c.b16 %v709, %v708
      %v715 = vsel %vm278, %v701, 0
      %717 = vmatprep.subr.bf16.mxu0 0
      %718 = vmatpush1.bf16.msra.mxu0 %v710
      %719 = vmatprep.subr.bf16.mxu0 0
      %720 = vmatpush1.bf16.msra.mxu0 %v711
      %721 = vmatprep.subr.bf16.mxu0 0
      %722 = vmatpush1.bf16.msra.mxu0 0
      %723 = vmatprep.subr.bf16.mxu0 0
      %724 = vmatpush1.bf16.msra.mxu0 0
      %725 = vmatprep.subr.bf16.mxu0 0
      %726 = vmatpush1.bf16.msra.mxu0 0
      %727 = vmatprep.subr.bf16.mxu0 0
      %728 = vmatpush1.bf16.msra.mxu0 0
      %729 = vmatprep.subr.bf16.mxu0 0
      %730 = vmatpush1.bf16.msra.mxu0 0
      %731 = vmatprep.subr.bf16.mxu0 0
      %732 = vmatpush1.bf16.msra.mxu0 0
      %733 = vmatprep.subr.bf16.mxu0 0
      %734 = vmatpush1.bf16.msra.mxu0 0
      %735 = vmatprep.subr.bf16.mxu0 0
      %736 = vmatpush1.bf16.msra.mxu0 0
      %737 = vmatprep.subr.bf16.mxu0 0
      %738 = vmatpush1.bf16.msra.mxu0 0
      %739 = vmatprep.subr.bf16.mxu0 0
      %740 = vmatpush1.bf16.msra.mxu0 0
      %741 = vmatprep.subr.bf16.mxu0 0
      %742 = vmatpush1.bf16.msra.mxu0 0
      %743 = vmatprep.subr.bf16.mxu0 0
      %744 = vmatpush1.bf16.msra.mxu0 0
      %745 = vmatprep.subr.bf16.mxu0 0
      %746 = vmatpush1.bf16.msra.mxu0 0
      %747 = vmatprep.subr.bf16.mxu0 0
      %748 = vmatpush1.bf16.msra.mxu0 0
      %749 = vmatprep.mubr.bf16.mxu0 0
      %750 = vmatmul.mubr.bf16.gmra.mrb[0].mxu0 %v715
      %v751 = vpop.f32.mrb[0].mxu0
      %v752 = vadd.f32 0.0, %v751
      %v753 = vpop.f32.mrb[0].mxu0
      %v754 = vpop.f32.mrb[0].mxu0
      %v755 = vadd.f32 0.0, %v754
      %v756 = vpop.f32.mrb[0].mxu0
      %757 = vdwg.mxu0
      %v758 = vadd.f32 %v680, %v752
      %v759 = vadd.f32 %v681, %v755
      %v760 = vld [vmem:[%s239] sm:$0x8]
      %v761 = vld [vmem:[%s239 + $0x4] sm:$0xf]
      %v762 = vld [vmem:[%s239 + $0x8] sm:$0x1]
      %s763 = scalar_lea.vmem %s2, 112
      %v764 = vld [vmem:[%s763] sm:$0xf]
      %v765 = vld [vmem:[%s763 + $0x4] sm:$0xf]
      %v766 = vld [vmem:[%s763 + $0x8] sm:$0xf]
      %v767 = vld [vmem:[%s763 + $0xc] sm:$0xf]
      %v771 = vunpack.c.l.b16 %v760
      %v772 = vunpack.c.l.b16 %v761
      %v773 = vunpack.c.l.b16 %v762
      %v774 = vpack.c.b16 %v772, %v771
      %v775 = vpack.c.b16 %v773, %v773
      %v776 = vrot.slane %v774, 3
      %v777 = vrot.slane %v775, 3
      %v778 = vsel %vm698, %v776, %v777
      %v783 = vunpack.c.l.b16 %v764
      %v784 = vunpack.c.l.b16 %v765
      %v785 = vunpack.c.l.b16 %v766
      %v786 = vunpack.c.l.b16 %v767
      %v787 = vpack.c.b16 %v784, %v783
      %v788 = vpack.c.b16 %v786, %v785
      %v792 = vsel %vm278, %v778, 0
      %794 = vmatprep.subr.bf16.mxu0 0
      %795 = vmatpush1.bf16.msra.mxu0 %v787
      %796 = vmatprep.subr.bf16.mxu0 0
      %797 = vmatpush1.bf16.msra.mxu0 %v788
      %798 = vmatprep.subr.bf16.mxu0 0
      %799 = vmatpush1.bf16.msra.mxu0 0
      %800 = vmatprep.subr.bf16.mxu0 0
      %801 = vmatpush1.bf16.msra.mxu0 0
      %802 = vmatprep.subr.bf16.mxu0 0
      %803 = vmatpush1.bf16.msra.mxu0 0
      %804 = vmatprep.subr.bf16.mxu0 0
      %805 = vmatpush1.bf16.msra.mxu0 0
      %806 = vmatprep.subr.bf16.mxu0 0
      %807 = vmatpush1.bf16.msra.mxu0 0
      %808 = vmatprep.subr.bf16.mxu0 0
      %809 = vmatpush1.bf16.msra.mxu0 0
      %810 = vmatprep.subr.bf16.mxu0 0
      %811 = vmatpush1.bf16.msra.mxu0 0
      %812 = vmatprep.subr.bf16.mxu0 0
      %813 = vmatpush1.bf16.msra.mxu0 0
      %814 = vmatprep.subr.bf16.mxu0 0
      %815 = vmatpush1.bf16.msra.mxu0 0
      %816 = vmatprep.subr.bf16.mxu0 0
      %817 = vmatpush1.bf16.msra.mxu0 0
      %818 = vmatprep.subr.bf16.mxu0 0
      %819 = vmatpush1.bf16.msra.mxu0 0
      %820 = vmatprep.subr.bf16.mxu0 0
      %821 = vmatpush1.bf16.msra.mxu0 0
      %822 = vmatprep.subr.bf16.mxu0 0
      %823 = vmatpush1.bf16.msra.mxu0 0
      %824 = vmatprep.subr.bf16.mxu0 0
      %825 = vmatpush1.bf16.msra.mxu0 0
      %826 = vmatprep.mubr.bf16.mxu0 0
      %827 = vmatmul.mubr.bf16.gmra.mrb[0].mxu0 %v792
      %v828 = vpop.f32.mrb[0].mxu0
      %v829 = vadd.f32 0.0, %v828
      %v830 = vpop.f32.mrb[0].mxu0
      %v831 = vpop.f32.mrb[0].mxu0
      %v832 = vadd.f32 0.0, %v831
      %v833 = vpop.f32.mrb[0].mxu0
      %834 = vdwg.mxu0
      %v835 = vadd.f32 %v758, %v829
      %v836 = vadd.f32 %v759, %v832
      %v837 = vld [vmem:[%s234 + $0x8] sm:$0x3]
      %s838 = scalar_lea.vmem %s2, 128
      %v839 = vld [vmem:[%s838] sm:$0xf]
      %v840 = vld [vmem:[%s838 + $0x4] sm:$0xf]
      %v841 = vld [vmem:[%s838 + $0x8] sm:$0xf]
      %v842 = vld [vmem:[%s838 + $0xc] sm:$0xf]
      %v844 = vunpack.c.l.b16 %v837
      %v845 = vpack.c.b16 %v844, %v844
      %vm846 = vsmask.f32 4352
      %v848 = vshrl.u32 %v696, 16
      %v850 = vrot.slane %v848, 3
      %v851 = vshll.u32 %v696, 16
      %v853 = vrot.slane %v851, 4
      %v854 = vor.u32 %v850, %v853
      %v856 = vshrl.u32 %v845, 16
      %v858 = vrot.slane %v856, 3
      %v859 = vshll.u32 %v845, 16
      %v861 = vrot.slane %v859, 4
      %v862 = vor.u32 %v858, %v861
      %v863 = vsel %vm846, %v854, %v862
      %v868 = vunpack.c.l.b16 %v839
      %v869 = vunpack.c.l.b16 %v840
      %v870 = vunpack.c.l.b16 %v841
      %v871 = vunpack.c.l.b16 %v842
      %v872 = vpack.c.b16 %v869, %v868
      %v873 = vpack.c.b16 %v871, %v870
      %v877 = vsel %vm278, %v863, 0
      %879 = vmatprep.subr.bf16.mxu0 0
      %880 = vmatpush1.bf16.msra.mxu0 %v872
      %881 = vmatprep.subr.bf16.mxu0 0
      %882 = vmatpush1.bf16.msra.mxu0 %v873
      %883 = vmatprep.subr.bf16.mxu0 0
      %884 = vmatpush1.bf16.msra.mxu0 0
      %885 = vmatprep.subr.bf16.mxu0 0
      %886 = vmatpush1.bf16.msra.mxu0 0
      %887 = vmatprep.subr.bf16.mxu0 0
      %888 = vmatpush1.bf16.msra.mxu0 0
      %889 = vmatprep.subr.bf16.mxu0 0
      %890 = vmatpush1.bf16.msra.mxu0 0
      %891 = vmatprep.subr.bf16.mxu0 0
      %892 = vmatpush1.bf16.msra.mxu0 0
      %893 = vmatprep.subr.bf16.mxu0 0
      %894 = vmatpush1.bf16.msra.mxu0 0
      %895 = vmatprep.subr.bf16.mxu0 0
      %896 = vmatpush1.bf16.msra.mxu0 0
      %897 = vmatprep.subr.bf16.mxu0 0
      %898 = vmatpush1.bf16.msra.mxu0 0
      %899 = vmatprep.subr.bf16.mxu0 0
      %900 = vmatpush1.bf16.msra.mxu0 0
      %901 = vmatprep.subr.bf16.mxu0 0
      %902 = vmatpush1.bf16.msra.mxu0 0
      %903 = vmatprep.subr.bf16.mxu0 0
      %904 = vmatpush1.bf16.msra.mxu0 0
      %905 = vmatprep.subr.bf16.mxu0 0
      %906 = vmatpush1.bf16.msra.mxu0 0
      %907 = vmatprep.subr.bf16.mxu0 0
      %908 = vmatpush1.bf16.msra.mxu0 0
      %909 = vmatprep.subr.bf16.mxu0 0
      %910 = vmatpush1.bf16.msra.mxu0 0
      %911 = vmatprep.mubr.bf16.mxu0 0
      %912 = vmatmul.mubr.bf16.gmra.mrb[0].mxu0 %v877
      %v913 = vpop.f32.mrb[0].mxu0
      %v914 = vadd.f32 0.0, %v913
      %v915 = vpop.f32.mrb[0].mxu0
      %v916 = vpop.f32.mrb[0].mxu0
      %v917 = vadd.f32 0.0, %v916
      %v918 = vpop.f32.mrb[0].mxu0
      %919 = vdwg.mxu0
      %v920 = vadd.f32 %v835, %v914
      %v921 = vadd.f32 %v836, %v917
      %v923 = vlaneseq
      %v924 = vshrl.u32 %v923, 7
      %v925 = vsub.s32 0, %v924
      %v926 = vrot.slane %v246, %v925
      %v928 = vmul.f32 %v920, %v926
      %v929 = vmul.f32 %v921, %v926
      %v931 = vlaneseq
      %v932 = vshrl.u32 %v931, 7
      %v933 = vsub.s32 0, %v932
      %v934 = vrot.slane %v247, %v933
      %v936 = vadd.f32 %v928, %v934
      %v937 = vadd.f32 %v929, %v934
      %v938 = vmax.f32 %v936, 0.0
      %v939 = vmax.f32 %v937, 0.0
      %940 = vmatprep.subr.bf16.mxu0 0
      %941 = vmatpush1.bf16.msra.mxu0 %v274
      %942 = vmatprep.subr.bf16.mxu0 0
      %943 = vmatpush1.bf16.msra.mxu0 %v275
      %944 = vmatprep.subr.bf16.mxu0 0
      %945 = vmatpush1.bf16.msra.mxu0 0
      %946 = vmatprep.subr.bf16.mxu0 0
      %947 = vmatpush1.bf16.msra.mxu0 0
      %948 = vmatprep.subr.bf16.mxu0 0
      %949 = vmatpush1.bf16.msra.mxu0 0
      %950 = vmatprep.subr.bf16.mxu0 0
      %951 = vmatpush1.bf16.msra.mxu0 0
      %952 = vmatprep.subr.bf16.mxu0 0
      %953 = vmatpush1.bf16.msra.mxu0 0
      %954 = vmatprep.subr.bf16.mxu0 0
      %955 = vmatpush1.bf16.msra.mxu0 0
      %956 = vmatprep.subr.bf16.mxu0 0
      %957 = vmatpush1.bf16.msra.mxu0 0
      %958 = vmatprep.subr.bf16.mxu0 0
      %959 = vmatpush1.bf16.msra.mxu0 0
      %960 = vmatprep.subr.bf16.mxu0 0
      %961 = vmatpush1.bf16.msra.mxu0 0
      %962 = vmatprep.subr.bf16.mxu0 0
      %963 = vmatpush1.bf16.msra.mxu0 0
      %964 = vmatprep.subr.bf16.mxu0 0
      %965 = vmatpush1.bf16.msra.mxu0 0
      %966 = vmatprep.subr.bf16.mxu0 0
      %967 = vmatpush1.bf16.msra.mxu0 0
      %968 = vmatprep.subr.bf16.mxu0 0
      %969 = vmatpush1.bf16.msra.mxu0 0
      %970 = vmatprep.subr.bf16.mxu0 0
      %971 = vmatpush1.bf16.msra.mxu0 0
      %972 = vmatprep.mubr.bf16.mxu0 0
      %973 = vmatmul.mubr.bf16.gmra.mrb[0].mxu0 %v413
      %v974 = vpop.f32.mrb[0].mxu0
      %v975 = vadd.f32 0.0, %v974
      %v976 = vpop.f32.mrb[0].mxu0
      %v977 = vpop.f32.mrb[0].mxu0
      %v978 = vadd.f32 0.0, %v977
      %v979 = vpop.f32.mrb[0].mxu0
      %980 = vdwg.mxu0
      %981 = vmatprep.subr.bf16.mxu0 0
      %982 = vmatpush1.bf16.msra.mxu0 %v336
      %983 = vmatprep.subr.bf16.mxu0 0
      %984 = vmatpush1.bf16.msra.mxu0 %v337
      %985 = vmatprep.subr.bf16.mxu0 0
      %986 = vmatpush1.bf16.msra.mxu0 0
      %987 = vmatprep.subr.bf16.mxu0 0
      %988 = vmatpush1.bf16.msra.mxu0 0
      %989 = vmatprep.subr.bf16.mxu0 0
      %990 = vmatpush1.bf16.msra.mxu0 0
      %991 = vmatprep.subr.bf16.mxu0 0
      %992 = vmatpush1.bf16.msra.mxu0 0
      %993 = vmatprep.subr.bf16.mxu0 0
      %994 = vmatpush1.bf16.msra.mxu0 0
      %995 = vmatprep.subr.bf16.mxu0 0
      %996 = vmatpush1.bf16.msra.mxu0 0
      %997 = vmatprep.subr.bf16.mxu0 0
      %998 = vmatpush1.bf16.msra.mxu0 0
      %999 = vmatprep.subr.bf16.mxu0 0
      %1000 = vmatpush1.bf16.msra.mxu0 0
      %1001 = vmatprep.subr.bf16.mxu0 0
      %1002 = vmatpush1.bf16.msra.mxu0 0
      %1003 = vmatprep.subr.bf16.mxu0 0
      %1004 = vmatpush1.bf16.msra.mxu0 0
      %1005 = vmatprep.subr.bf16.mxu0 0
      %1006 = vmatpush1.bf16.msra.mxu0 0
      %1007 = vmatprep.subr.bf16.mxu0 0
      %1008 = vmatpush1.bf16.msra.mxu0 0
      %1009 = vmatprep.subr.bf16.mxu0 0
      %1010 = vmatpush1.bf16.msra.mxu0 0
      %1011 = vmatprep.subr.bf16.mxu0 0
      %1012 = vmatpush1.bf16.msra.mxu0 0
      %1013 = vmatprep.mubr.bf16.mxu0 0
      %1014 = vmatmul.mubr.bf16.gmra.mrb[0].mxu0 %v280
      %v1015 = vpop.f32.mrb[0].mxu0
      %v1016 = vadd.f32 %v975, %v1015
      %v1017 = vpop.f32.mrb[0].mxu0
      %v1018 = vpop.f32.mrb[0].mxu0
      %v1019 = vadd.f32 %v978, %v1018
      %v1020 = vpop.f32.mrb[0].mxu0
      %1021 = vdwg.mxu0
      %v1022 = vld [vmem:[%s239 + $0x4] sm:$0x7]
      %v1024 = vunpack.c.l.b16 %v1022
      %v1025 = vpack.c.b16 %v1024, %v263
      %v1027 = vshrl.u32 %v1025, 16
      %v1029 = vshll.u32 %v1025, 16
      %v1031 = vrot.slane %v1029, 1
      %v1032 = vor.u32 %v1027, %v1031
      %v1034 = vsel %vm278, %v1032, 0
      %1036 = vmatprep.subr.bf16.mxu0 0
      %1037 = vmatpush1.bf16.msra.mxu0 %v408
      %1038 = vmatprep.subr.bf16.mxu0 0
      %1039 = vmatpush1.bf16.msra.mxu0 %v409
      %1040 = vmatprep.subr.bf16.mxu0 0
      %1041 = vmatpush1.bf16.msra.mxu0 0
      %1042 = vmatprep.subr.bf16.mxu0 0
      %1043 = vmatpush1.bf16.msra.mxu0 0
      %1044 = vmatprep.subr.bf16.mxu0 0
      %1045 = vmatpush1.bf16.msra.mxu0 0
      %1046 = vmatprep.subr.bf16.mxu0 0
      %1047 = vmatpush1.bf16.msra.mxu0 0
      %1048 = vmatprep.subr.bf16.mxu0 0
      %1049 = vmatpush1.bf16.msra.mxu0 0
      %1050 = vmatprep.subr.bf16.mxu0 0
      %1051 = vmatpush1.bf16.msra.mxu0 0
      %1052 = vmatprep.subr.bf16.mxu0 0
      %1053 = vmatpush1.bf16.msra.mxu0 0
      %1054 = vmatprep.subr.bf16.mxu0 0
      %1055 = vmatpush1.bf16.msra.mxu0 0
      %1056 = vmatprep.subr.bf16.mxu0 0
      %1057 = vmatpush1.bf16.msra.mxu0 0
      %1058 = vmatprep.subr.bf16.mxu0 0
      %1059 = vmatpush1.bf16.msra.mxu0 0
      %1060 = vmatprep.subr.bf16.mxu0 0
      %1061 = vmatpush1.bf16.msra.mxu0 0
      %1062 = vmatprep.subr.bf16.mxu0 0
      %1063 = vmatpush1.bf16.msra.mxu0 0
      %1064 = vmatprep.subr.bf16.mxu0 0
      %1065 = vmatpush1.bf16.msra.mxu0 0
      %1066 = vmatprep.subr.bf16.mxu0 0
      %1067 = vmatpush1.bf16.msra.mxu0 0
      %1068 = vmatprep.mubr.bf16.mxu0 0
      %1069 = vmatmul.mubr.bf16.gmra.mrb[0].mxu0 %v1034
      %v1070 = vpop.f32.mrb[0].mxu0
      %v1071 = vadd.f32 0.0, %v1070
      %v1072 = vpop.f32.mrb[0].mxu0
      %v1073 = vpop.f32.mrb[0].mxu0
      %v1074 = vadd.f32 0.0, %v1073
      %v1075 = vpop.f32.mrb[0].mxu0
      %1076 = vdwg.mxu0
      %v1077 = vadd.f32 %v1016, %v1071
      %v1078 = vadd.f32 %v1019, %v1074
      %1079 = vmatprep.subr.bf16.mxu0 0
      %1080 = vmatpush1.bf16.msra.mxu0 %v486
      %1081 = vmatprep.subr.bf16.mxu0 0
      %1082 = vmatpush1.bf16.msra.mxu0 %v487
      %1083 = vmatprep.subr.bf16.mxu0 0
      %1084 = vmatpush1.bf16.msra.mxu0 0
      %1085 = vmatprep.subr.bf16.mxu0 0
      %1086 = vmatpush1.bf16.msra.mxu0 0
      %1087 = vmatprep.subr.bf16.mxu0 0
      %1088 = vmatpush1.bf16.msra.mxu0 0
      %1089 = vmatprep.subr.bf16.mxu0 0
      %1090 = vmatpush1.bf16.msra.mxu0 0
      %1091 = vmatprep.subr.bf16.mxu0 0
      %1092 = vmatpush1.bf16.msra.mxu0 0
      %1093 = vmatprep.subr.bf16.mxu0 0
      %1094 = vmatpush1.bf16.msra.mxu0 0
      %1095 = vmatprep.subr.bf16.mxu0 0
      %1096 = vmatpush1.bf16.msra.mxu0 0
      %1097 = vmatprep.subr.bf16.mxu0 0
      %1098 = vmatpush1.bf16.msra.mxu0 0
      %1099 = vmatprep.subr.bf16.mxu0 0
      %1100 = vmatpush1.bf16.msra.mxu0 0
      %1101 = vmatprep.subr.bf16.mxu0 0
      %1102 = vmatpush1.bf16.msra.mxu0 0
      %1103 = vmatprep.subr.bf16.mxu0 0
      %1104 = vmatpush1.bf16.msra.mxu0 0
      %1105 = vmatprep.subr.bf16.mxu0 0
      %1106 = vmatpush1.bf16.msra.mxu0 0
      %1107 = vmatprep.subr.bf16.mxu0 0
      %1108 = vmatpush1.bf16.msra.mxu0 0
      %1109 = vmatprep.subr.bf16.mxu0 0
      %1110 = vmatpush1.bf16.msra.mxu0 0
      %1111 = vmatprep.mubr.bf16.mxu0 0
      %1112 = vmatmul.mubr.bf16.gmra.mrb[0].mxu0 %v569
      %v1113 = vpop.f32.mrb[0].mxu0
      %v1114 = vadd.f32 0.0, %v1113
      %v1115 = vpop.f32.mrb[0].mxu0
      %v1116 = vpop.f32.mrb[0].mxu0
      %v1117 = vadd.f32 0.0, %v1116
      %v1118 = vpop.f32.mrb[0].mxu0
      %1119 = vdwg.mxu0
      %v1120 = vadd.f32 %v1077, %v1114
      %v1121 = vadd.f32 %v1078, %v1117
      %1122 = vmatprep.subr.bf16.mxu0 0
      %1123 = vmatpush1.bf16.msra.mxu0 %v564
      %1124 = vmatprep.subr.bf16.mxu0 0
      %1125 = vmatpush1.bf16.msra.mxu0 %v565
      %1126 = vmatprep.subr.bf16.mxu0 0
      %1127 = vmatpush1.bf16.msra.mxu0 0
      %1128 = vmatprep.subr.bf16.mxu0 0
      %1129 = vmatpush1.bf16.msra.mxu0 0
      %1130 = vmatprep.subr.bf16.mxu0 0
      %1131 = vmatpush1.bf16.msra.mxu0 0
      %1132 = vmatprep.subr.bf16.mxu0 0
      %1133 = vmatpush1.bf16.msra.mxu0 0
      %1134 = vmatprep.subr.bf16.mxu0 0
      %1135 = vmatpush1.bf16.msra.mxu0 0
      %1136 = vmatprep.subr.bf16.mxu0 0
      %1137 = vmatpush1.bf16.msra.mxu0 0
      %1138 = vmatprep.subr.bf16.mxu0 0
      %1139 = vmatpush1.bf16.msra.mxu0 0
      %1140 = vmatprep.subr.bf16.mxu0 0
      %1141 = vmatpush1.bf16.msra.mxu0 0
      %1142 = vmatprep.subr.bf16.mxu0 0
      %1143 = vmatpush1.bf16.msra.mxu0 0
      %1144 = vmatprep.subr.bf16.mxu0 0
      %1145 = vmatpush1.bf16.msra.mxu0 0
      %1146 = vmatprep.subr.bf16.mxu0 0
      %1147 = vmatpush1.bf16.msra.mxu0 0
      %1148 = vmatprep.subr.bf16.mxu0 0
      %1149 = vmatpush1.bf16.msra.mxu0 0
      %1150 = vmatprep.subr.bf16.mxu0 0
      %1151 = vmatpush1.bf16.msra.mxu0 0
      %1152 = vmatprep.subr.bf16.mxu0 0
      %1153 = vmatpush1.bf16.msra.mxu0 0
      %1154 = vmatprep.mubr.bf16.mxu0 0
      %1155 = vmatmul.mubr.bf16.gmra.mrb[0].mxu0 %v637
      %v1156 = vpop.f32.mrb[0].mxu0
      %v1157 = vadd.f32 0.0, %v1156
      %v1158 = vpop.f32.mrb[0].mxu0
      %v1159 = vpop.f32.mrb[0].mxu0
      %v1160 = vadd.f32 0.0, %v1159
      %v1161 = vpop.f32.mrb[0].mxu0
      %1162 = vdwg.mxu0
      %v1163 = vadd.f32 %v1120, %v1157
      %v1164 = vadd.f32 %v1121, %v1160
      %v1165 = vld [vmem:[%s239] sm:$0xc]
      %v1167 = vunpack.c.l.b16 %v1165
      %v1168 = vpack.c.b16 %v546, %v1167
      %v1169 = vrot.slane %v1168, 2
      %v1171 = vsel %vm278, %v1169, 0
      %1173 = vmatprep.subr.bf16.mxu0 0
      %1174 = vmatpush1.bf16.msra.mxu0 %v632
      %1175 = vmatprep.subr.bf16.mxu0 0
      %1176 = vmatpush1.bf16.msra.mxu0 %v633
      %1177 = vmatprep.subr.bf16.mxu0 0
      %1178 = vmatpush1.bf16.msra.mxu0 0
      %1179 = vmatprep.subr.bf16.mxu0 0
      %1180 = vmatpush1.bf16.msra.mxu0 0
      %1181 = vmatprep.subr.bf16.mxu0 0
      %1182 = vmatpush1.bf16.msra.mxu0 0
      %1183 = vmatprep.subr.bf16.mxu0 0
      %1184 = vmatpush1.bf16.msra.mxu0 0
      %1185 = vmatprep.subr.bf16.mxu0 0
      %1186 = vmatpush1.bf16.msra.mxu0 0
      %1187 = vmatprep.subr.bf16.mxu0 0
      %1188 = vmatpush1.bf16.msra.mxu0 0
      %1189 = vmatprep.subr.bf16.mxu0 0
      %1190 = vmatpush1.bf16.msra.mxu0 0
      %1191 = vmatprep.subr.bf16.mxu0 0
      %1192 = vmatpush1.bf16.msra.mxu0 0
      %1193 = vmatprep.subr.bf16.mxu0 0
      %1194 = vmatpush1.bf16.msra.mxu0 0
      %1195 = vmatprep.subr.bf16.mxu0 0
      %1196 = vmatpush1.bf16.msra.mxu0 0
      %1197 = vmatprep.subr.bf16.mxu0 0
      %1198 = vmatpush1.bf16.msra.mxu0 0
      %1199 = vmatprep.subr.bf16.mxu0 0
      %1200 = vmatpush1.bf16.msra.mxu0 0
      %1201 = vmatprep.subr.bf16.mxu0 0
      %1202 = vmatpush1.bf16.msra.mxu0 0
      %1203 = vmatprep.subr.bf16.mxu0 0
      %1204 = vmatpush1.bf16.msra.mxu0 0
      %1205 = vmatprep.mubr.bf16.mxu0 0
      %1206 = vmatmul.mubr.bf16.gmra.mrb[0].mxu0 %v1171
      %v1207 = vpop.f32.mrb[0].mxu0
      %v1208 = vadd.f32 0.0, %v1207
      %v1209 = vpop.f32.mrb[0].mxu0
      %v1210 = vpop.f32.mrb[0].mxu0
      %v1211 = vadd.f32 0.0, %v1210
      %v1212 = vpop.f32.mrb[0].mxu0
      %1213 = vdwg.mxu0
      %v1214 = vadd.f32 %v1163, %v1208
      %v1215 = vadd.f32 %v1164, %v1211
      %1216 = vmatprep.subr.bf16.mxu0 0
      %1217 = vmatpush1.bf16.msra.mxu0 %v710
      %1218 = vmatprep.subr.bf16.mxu0 0
      %1219 = vmatpush1.bf16.msra.mxu0 %v711
      %1220 = vmatprep.subr.bf16.mxu0 0
      %1221 = vmatpush1.bf16.msra.mxu0 0
      %1222 = vmatprep.subr.bf16.mxu0 0
      %1223 = vmatpush1.bf16.msra.mxu0 0
      %1224 = vmatprep.subr.bf16.mxu0 0
      %1225 = vmatpush1.bf16.msra.mxu0 0
      %1226 = vmatprep.subr.bf16.mxu0 0
      %1227 = vmatpush1.bf16.msra.mxu0 0
      %1228 = vmatprep.subr.bf16.mxu0 0
      %1229 = vmatpush1.bf16.msra.mxu0 0
      %1230 = vmatprep.subr.bf16.mxu0 0
      %1231 = vmatpush1.bf16.msra.mxu0 0
      %1232 = vmatprep.subr.bf16.mxu0 0
      %1233 = vmatpush1.bf16.msra.mxu0 0
      %1234 = vmatprep.subr.bf16.mxu0 0
      %1235 = vmatpush1.bf16.msra.mxu0 0
      %1236 = vmatprep.subr.bf16.mxu0 0
      %1237 = vmatpush1.bf16.msra.mxu0 0
      %1238 = vmatprep.subr.bf16.mxu0 0
      %1239 = vmatpush1.bf16.msra.mxu0 0
      %1240 = vmatprep.subr.bf16.mxu0 0
      %1241 = vmatpush1.bf16.msra.mxu0 0
      %1242 = vmatprep.subr.bf16.mxu0 0
      %1243 = vmatpush1.bf16.msra.mxu0 0
      %1244 = vmatprep.subr.bf16.mxu0 0
      %1245 = vmatpush1.bf16.msra.mxu0 0
      %1246 = vmatprep.subr.bf16.mxu0 0
      %1247 = vmatpush1.bf16.msra.mxu0 0
      %1248 = vmatprep.mubr.bf16.mxu0 0
      %1249 = vmatmul.mubr.bf16.gmra.mrb[0].mxu0 %v792
      %v1250 = vpop.f32.mrb[0].mxu0
      %v1251 = vadd.f32 0.0, %v1250
      %v1252 = vpop.f32.mrb[0].mxu0
      %v1253 = vpop.f32.mrb[0].mxu0
      %v1254 = vadd.f32 0.0, %v1253
      %v1255 = vpop.f32.mrb[0].mxu0
      %1256 = vdwg.mxu0
      %v1257 = vadd.f32 %v1214, %v1251
      %v1258 = vadd.f32 %v1215, %v1254
      %1259 = vmatprep.subr.bf16.mxu0 0
      %1260 = vmatpush1.bf16.msra.mxu0 %v787
      %1261 = vmatprep.subr.bf16.mxu0 0
      %1262 = vmatpush1.bf16.msra.mxu0 %v788
      %1263 = vmatprep.subr.bf16.mxu0 0
      %1264 = vmatpush1.bf16.msra.mxu0 0
      %1265 = vmatprep.subr.bf16.mxu0 0
      %1266 = vmatpush1.bf16.msra.mxu0 0
      %1267 = vmatprep.subr.bf16.mxu0 0
      %1268 = vmatpush1.bf16.msra.mxu0 0
      %1269 = vmatprep.subr.bf16.mxu0 0
      %1270 = vmatpush1.bf16.msra.mxu0 0
      %1271 = vmatprep.subr.bf16.mxu0 0
      %1272 = vmatpush1.bf16.msra.mxu0 0
      %1273 = vmatprep.subr.bf16.mxu0 0
      %1274 = vmatpush1.bf16.msra.mxu0 0
      %1275 = vmatprep.subr.bf16.mxu0 0
      %1276 = vmatpush1.bf16.msra.mxu0 0
      %1277 = vmatprep.subr.bf16.mxu0 0
      %1278 = vmatpush1.bf16.msra.mxu0 0
      %1279 = vmatprep.subr.bf16.mxu0 0
      %1280 = vmatpush1.bf16.msra.mxu0 0
      %1281 = vmatprep.subr.bf16.mxu0 0
      %1282 = vmatpush1.bf16.msra.mxu0 0
      %1283 = vmatprep.subr.bf16.mxu0 0
      %1284 = vmatpush1.bf16.msra.mxu0 0
      %1285 = vmatprep.subr.bf16.mxu0 0
      %1286 = vmatpush1.bf16.msra.mxu0 0
      %1287 = vmatprep.subr.bf16.mxu0 0
      %1288 = vmatpush1.bf16.msra.mxu0 0
      %1289 = vmatprep.subr.bf16.mxu0 0
      %1290 = vmatpush1.bf16.msra.mxu0 0
      %1291 = vmatprep.mubr.bf16.mxu0 0
      %1292 = vmatmul.mubr.bf16.gmra.mrb[0].mxu0 %v877
      %v1293 = vpop.f32.mrb[0].mxu0
      %v1294 = vadd.f32 0.0, %v1293
      %v1295 = vpop.f32.mrb[0].mxu0
      %v1296 = vpop.f32.mrb[0].mxu0
      %v1297 = vadd.f32 0.0, %v1296
      %v1298 = vpop.f32.mrb[0].mxu0
      %1299 = vdwg.mxu0
      %v1300 = vadd.f32 %v1257, %v1294
      %v1301 = vadd.f32 %v1258, %v1297
      %v1302 = vld [vmem:[%s239 + $0x8] sm:$0x3]
      %v1304 = vunpack.c.l.b16 %v1302
      %v1305 = vpack.c.b16 %v1304, %v1304
      %v1307 = vshrl.u32 %v774, 16
      %v1309 = vrot.slane %v1307, 3
      %v1310 = vshll.u32 %v774, 16
      %v1312 = vrot.slane %v1310, 4
      %v1313 = vor.u32 %v1309, %v1312
      %v1315 = vshrl.u32 %v1305, 16
      %v1317 = vrot.slane %v1315, 3
      %v1318 = vshll.u32 %v1305, 16
      %v1320 = vrot.slane %v1318, 4
      %v1321 = vor.u32 %v1317, %v1320
      %v1322 = vsel %vm846, %v1313, %v1321
      %v1324 = vsel %vm278, %v1322, 0
      %1326 = vmatprep.subr.bf16.mxu0 0
      %1327 = vmatpush1.bf16.msra.mxu0 %v872
      %1328 = vmatprep.subr.bf16.mxu0 0
      %1329 = vmatpush1.bf16.msra.mxu0 %v873
      %1330 = vmatprep.subr.bf16.mxu0 0
      %1331 = vmatpush1.bf16.msra.mxu0 0
      %1332 = vmatprep.subr.bf16.mxu0 0
      %1333 = vmatpush1.bf16.msra.mxu0 0
      %1334 = vmatprep.subr.bf16.mxu0 0
      %1335 = vmatpush1.bf16.msra.mxu0 0
      %1336 = vmatprep.subr.bf16.mxu0 0
      %1337 = vmatpush1.bf16.msra.mxu0 0
      %1338 = vmatprep.subr.bf16.mxu0 0
      %1339 = vmatpush1.bf16.msra.mxu0 0
      %1340 = vmatprep.subr.bf16.mxu0 0
      %1341 = vmatpush1.bf16.msra.mxu0 0
      %1342 = vmatprep.subr.bf16.mxu0 0
      %1343 = vmatpush1.bf16.msra.mxu0 0
      %1344 = vmatprep.subr.bf16.mxu0 0
      %1345 = vmatpush1.bf16.msra.mxu0 0
      %1346 = vmatprep.subr.bf16.mxu0 0
      %1347 = vmatpush1.bf16.msra.mxu0 0
      %1348 = vmatprep.subr.bf16.mxu0 0
      %1349 = vmatpush1.bf16.msra.mxu0 0
      %1350 = vmatprep.subr.bf16.mxu0 0
      %1351 = vmatpush1.bf16.msra.mxu0 0
      %1352 = vmatprep.subr.bf16.mxu0 0
      %1353 = vmatpush1.bf16.msra.mxu0 0
      %1354 = vmatprep.subr.bf16.mxu0 0
      %1355 = vmatpush1.bf16.msra.mxu0 0
      %1356 = vmatprep.subr.bf16.mxu0 0
      %1357 = vmatpush1.bf16.msra.mxu0 0
      %1358 = vmatprep.mubr.bf16.mxu0 0
      %1359 = vmatmul.mubr.bf16.gmra.mrb[0].mxu0 %v1324
      %v1360 = vpop.f32.mrb[0].mxu0
      %v1361 = vadd.f32 0.0, %v1360
      %v1362 = vpop.f32.mrb[0].mxu0
      %v1363 = vpop.f32.mrb[0].mxu0
      %v1364 = vadd.f32 0.0, %v1363
      %v1365 = vpop.f32.mrb[0].mxu0
      %1366 = vdwg.mxu0
      %v1367 = vadd.f32 %v1300, %v1361
      %v1368 = vadd.f32 %v1301, %v1364
      %v1369 = vmul.f32 %v1367, %v926
      %v1370 = vmul.f32 %v1368, %v926
      %v1371 = vadd.f32 %v1369, %v934
      %v1372 = vadd.f32 %v1370, %v934
      %v1373 = vmax.f32 %v1371, 0.0
      %v1374 = vmax.f32 %v1372, 0.0
      %v1375 = vmax.f32 %v938, %v1373
      %v1376 = vmax.f32 %v939, %v1374
      %1377 = vst.msk [vmem:[%s244] sm:$0xff] %vm278, %v1375
      %vm1378 = vcmask 257024
      %1379 = vst.msk [vmem:[%s244 + $0x8] sm:$0xf] %vm1378, %v1376
      %p1380 = scmp.lt.s32.totalorder %s16, 19
      %s1381 = scalar_select %p1380, %s16, 19
      %s1382 = smul.addr %s1381, 2
      %s1383 = smul.addr %s1382, 8
      %s1384 = scalar_lea.vmem %s5, %s1383
      // Predicated region
      $region41: #{_lambda_.10} parent=39 // pred_check
        %p1385 = pneg %p149
      $region42: #{_lambda_.10} parent=39 // pred_check_branch
        %1387 = sbr.rel (%p1385) target = $region44
      $region43: #{_lambda_.10} parent=39 // pred_region
        _
      $region44: #{_lambda_.10} parent=39 // pred_fallthru
        _
    $region40: #{_lambda_.10} parent=5 // pred_fallthru
      _
    %p1388 = scmp.le.s32.totalorder 2, %s11
    // Predicated region
    $region45: #{_lambda_.10} parent=5 // pred_check
      %p1389 = pneg %p1388
    $region46: #{_lambda_.10} parent=5 // pred_check_branch
      %1391 = sbr.rel (%p1389) target = $region48
    $region47: #{_lambda_.10} parent=5 // pred_region
      %s1392 = ssub.s32 %s11, 2
      // Predicated region
      $region49: #{_lambda_.10} parent=47 // pred_check
        %p1393 = pneg %p155
      $region50: #{_lambda_.10} parent=47 // pred_check_branch
        %1395 = sbr.rel (%p1393) target = $region52
      $region51: #{_lambda_.10} parent=47 // pred_region
        %p1396 = scmp.lt.s32.totalorder %s17, 19
        %s1397 = scalar_select %p1396, %s17, 19
        %s1398 = smul.addr %s1397, 2
        %s1399 = smul.addr %s1398, 8
        %s1400 = scalar_lea.vmem %s5, %s1399
      $region52: #{_lambda_.10} parent=47 // pred_fallthru
        _
    $region48: #{_lambda_.10} parent=5 // pred_fallthru
      _
  $region6: #{_lambda_.10} parent=0 // loop_footer
    %s15 = sadd.s32 1, %s11
  $region7: #{_lambda_.10} parent=0 // loop_footer_branch
    %10 = sbr.rel target = $region3
  $region8: #{_lambda_.10} parent=0 // loop_exit
    _

// kernel: _lambda_.12
$region0: #{_lambda_.12}
  #allocation0 [shape = 'u32[]', space=smem, size = 0x4, offset = 0x4, fixed_abs, tag = 'smem constant byte address 0x4 - core index']
  #allocation1 [shape = 'u32[144,128]{1,0:T(1,128)}', space=vmem, size = 0x12000, scoped, tag = 'internal scratch']
  #allocation2 [shape = 'f32[1,1]{1,0:T(1,128)S(1)}', space=vmem, size = 0x200, scoped, tag = 'scoped memory for _lambda_.12']
  %s0 = inlined_call_operand.vmem [shape: f32[5,64], index: 0, kind: input, shape index: {}]
  %s1 = inlined_call_operand.vmem [shape: f32[64,128], index: 1, kind: input, shape index: {}]
  %s2 = inlined_call_operand.vmem [shape: f32[1,128], index: 2, kind: input, shape index: {}]
  %s3 = inlined_call_operand.vmem [shape: f32[128,64], index: 3, kind: input, shape index: {}]
  %s4 = inlined_call_operand.vmem [shape: f32[1,64], index: 4, kind: input, shape index: {}]
  %s5 = inlined_call_operand.vmem [shape: f32[64,1], index: 5, kind: input, shape index: {}]
  %s6 = inlined_call_operand.<no memory space> [shape: f32[1,1], index: 6, kind: input, shape index: {}]
  %s7 = inlined_call_operand.vmem [shape: f32[5,1], index: 7, kind: output, shape index: {}]
  %s8 = sld [smem:[#allocation0]]
  $region38: #{_lambda_.12} parent=0
    _
  %s10 = ssub.s32 1, %s8
  %s11 = scalar_select 0, %s10, %s8
  %v12 = vstv %s6
  %13 = vst [vmem:[#allocation2] sm:$0x1] %v12
  // Predicated region
  $region2: #{_lambda_.12} parent=0 // pred_check
    _
  $region3: #{_lambda_.12} parent=0 // pred_check_branch
    %15 = sbr.rel (0) target = $region5
  $region4: #{_lambda_.12} parent=0 // pred_region
    _
  $region5: #{_lambda_.12} parent=0 // pred_fallthru
    _
  // Predicated region
  $region6: #{_lambda_.12} parent=0 // pred_check
    _
  $region7: #{_lambda_.12} parent=0 // pred_check_branch
    %17 = sbr.rel (0) target = $region9
  $region8: #{_lambda_.12} parent=0 // pred_region
    _
  $region9: #{_lambda_.12} parent=0 // pred_fallthru
    _
  // Predicated region
  $region10: #{_lambda_.12} parent=0 // pred_check
    _
  $region11: #{_lambda_.12} parent=0 // pred_check_branch
    %19 = sbr.rel (0) target = $region13
  $region12: #{_lambda_.12} parent=0 // pred_region
    _
  $region13: #{_lambda_.12} parent=0 // pred_fallthru
    _
  // Predicated region
  $region14: #{_lambda_.12} parent=0 // pred_check
    _
  $region15: #{_lambda_.12} parent=0 // pred_check_branch
    %21 = sbr.rel (0) target = $region17
  $region16: #{_lambda_.12} parent=0 // pred_region
    _
  $region17: #{_lambda_.12} parent=0 // pred_fallthru
    _
  // Predicated region
  $region18: #{_lambda_.12} parent=0 // pred_check
    _
  $region19: #{_lambda_.12} parent=0 // pred_check_branch
    %23 = sbr.rel (0) target = $region21
  $region20: #{_lambda_.12} parent=0 // pred_region
    _
  $region21: #{_lambda_.12} parent=0 // pred_fallthru
    _
  // Predicated region
  $region22: #{_lambda_.12} parent=0 // pred_check
    _
  $region23: #{_lambda_.12} parent=0 // pred_check_branch
    %25 = sbr.rel (0) target = $region25
  $region24: #{_lambda_.12} parent=0 // pred_region
    _
  $region25: #{_lambda_.12} parent=0 // pred_fallthru
    _
  // Predicated region
  $region26: #{_lambda_.12} parent=0 // pred_check
    _
  $region27: #{_lambda_.12} parent=0 // pred_check_branch
    %27 = sbr.rel (0) target = $region29
  $region28: #{_lambda_.12} parent=0 // pred_region
    _
  $region29: #{_lambda_.12} parent=0 // pred_fallthru
    _
  %v28 = vld [vmem:[%s0] sm:$0x1f]
  %v29 = vld [vmem:[%s1] sm:$0xff]
  %v30 = vld [vmem:[%s1 + $0x8] sm:$0xff]
  %v31 = vld [vmem:[%s1 + $0x10] sm:$0xff]
  %v32 = vld [vmem:[%s1 + $0x18] sm:$0xff]
  %v33 = vld [vmem:[%s1 + $0x20] sm:$0xff]
  %v34 = vld [vmem:[%s1 + $0x28] sm:$0xff]
  %v35 = vld [vmem:[%s1 + $0x30] sm:$0xff]
  %v36 = vld [vmem:[%s1 + $0x38] sm:$0xff]
  %v37 = vld [vmem:[%s2] sm:$0x1]
  %v39 = vlaneseq
  %v40 = vshrl.u32 %v39, 7
  %v41 = vsub.s32 0, %v40
  %v42 = vrot.slane %v37, %v41
  %vm44 = vcmask 523264
  %v46 = vsel %vm44, %v28, 0
  %48 = vmatprep.subr.mxu0 0.0
  %49 = vmatpush1.msra.mxu0 %v29
  %50 = vmatprep.subr.mxu0 0.0
  %51 = vmatpush1.msra.mxu0 %v30
  %52 = vmatprep.subr.mxu0 0.0
  %53 = vmatpush1.msra.mxu0 %v31
  %54 = vmatprep.subr.mxu0 0.0
  %55 = vmatpush1.msra.mxu0 %v32
  %56 = vmatprep.subr.mxu0 0.0
  %57 = vmatpush1.msra.mxu0 %v33
  %58 = vmatprep.subr.mxu0 0.0
  %59 = vmatpush1.msra.mxu0 %v34
  %60 = vmatprep.subr.mxu0 0.0
  %61 = vmatpush1.msra.mxu0 %v35
  %62 = vmatprep.subr.mxu0 0.0
  %63 = vmatpush1.msra.mxu0 %v36
  %64 = vmatprep.subr.mxu0 0.0
  %65 = vmatpush1.msra.mxu0 0.0
  %66 = vmatprep.subr.mxu0 0.0
  %67 = vmatpush1.msra.mxu0 0.0
  %68 = vmatprep.subr.mxu0 0.0
  %69 = vmatpush1.msra.mxu0 0.0
  %70 = vmatprep.subr.mxu0 0.0
  %71 = vmatpush1.msra.mxu0 0.0
  %72 = vmatprep.subr.mxu0 0.0
  %73 = vmatpush1.msra.mxu0 0.0
  %74 = vmatprep.subr.mxu0 0.0
  %75 = vmatpush1.msra.mxu0 0.0
  %76 = vmatprep.subr.mxu0 0.0
  %77 = vmatpush1.msra.mxu0 0.0
  %78 = vmatprep.subr.mxu0 0.0
  %79 = vmatpush1.msra.mxu0 0.0
  %80 = vmatprep.subr.mxu0 0.0
  %81 = vmatpush1.msra.mxu0 0.0
  %82 = vmatprep.subr.mxu0 0.0
  %83 = vmatpush1.msra.mxu0 0.0
  %84 = vmatprep.subr.mxu0 0.0
  %85 = vmatpush1.msra.mxu0 0.0
  %86 = vmatprep.subr.mxu0 0.0
  %87 = vmatpush1.msra.mxu0 0.0
  %88 = vmatprep.subr.mxu0 0.0
  %89 = vmatpush1.msra.mxu0 0.0
  %90 = vmatprep.subr.mxu0 0.0
  %91 = vmatpush1.msra.mxu0 0.0
  %92 = vmatprep.subr.mxu0 0.0
  %93 = vmatpush1.msra.mxu0 0.0
  %94 = vmatprep.subr.mxu0 0.0
  %95 = vmatpush1.msra.mxu0 0.0
  %96 = vmatprep.subr.mxu0 0.0
  %97 = vmatpush1.msra.mxu0 0.0
  %98 = vmatprep.subr.mxu0 0.0
  %99 = vmatpush1.msra.mxu0 0.0
  %100 = vmatprep.subr.mxu0 0.0
  %101 = vmatpush1.msra.mxu0 0.0
  %102 = vmatprep.subr.mxu0 0.0
  %103 = vmatpush1.msra.mxu0 0.0
  %104 = vmatprep.subr.mxu0 0.0
  %105 = vmatpush1.msra.mxu0 0.0
  %106 = vmatprep.subr.mxu0 0.0
  %107 = vmatpush1.msra.mxu0 0.0
  %108 = vmatprep.subr.mxu0 0.0
  %109 = vmatpush1.msra.mxu0 0.0
  %110 = vmatprep.subr.mxu0 0.0
  %111 = vmatpush1.msra.mxu0 0.0
  %112 = vmatprep.mubr.f32.mxu0 0.0
  %113 = vmatmul.mubr.f32.gmra.mrb[0].mxu0 %v46
  %v114 = vpop.f32.mrb[0].mxu0
  %v115 = vadd.f32 %v42, %v114
  %v116 = vpop.f32.mrb[0].mxu0
  %117 = vdwg.mxu0
  %v118 = vmax.f32 %v115, 0.0
  %v119 = vld [vmem:[%s3] sm:$0xff]
  %v120 = vld [vmem:[%s3 + $0x8] sm:$0xff]
  %v121 = vld [vmem:[%s3 + $0x10] sm:$0xff]
  %v122 = vld [vmem:[%s3 + $0x18] sm:$0xff]
  %v123 = vld [vmem:[%s3 + $0x20] sm:$0xff]
  %v124 = vld [vmem:[%s3 + $0x28] sm:$0xff]
  %v125 = vld [vmem:[%s3 + $0x30] sm:$0xff]
  %v126 = vld [vmem:[%s3 + $0x38] sm:$0xff]
  %v127 = vld [vmem:[%s3 + $0x40] sm:$0xff]
  %v128 = vld [vmem:[%s3 + $0x48] sm:$0xff]
  %v129 = vld [vmem:[%s3 + $0x50] sm:$0xff]
  %v130 = vld [vmem:[%s3 + $0x58] sm:$0xff]
  %v131 = vld [vmem:[%s3 + $0x60] sm:$0xff]
  %v132 = vld [vmem:[%s3 + $0x68] sm:$0xff]
  %v133 = vld [vmem:[%s3 + $0x70] sm:$0xff]
  %v134 = vld [vmem:[%s3 + $0x78] sm:$0xff]
  %v135 = vld [vmem:[%s4] sm:$0x1]
  %v137 = vlaneseq
  %v138 = vshrl.u32 %v137, 7
  %v139 = vsub.s32 0, %v138
  %v140 = vrot.slane %v135, %v139
  %142 = vmatprep.subr.mxu0 0.0
  %143 = vmatpush1.msra.mxu0 %v119
  %144 = vmatprep.subr.mxu0 0.0
  %145 = vmatpush1.msra.mxu0 %v120
  %146 = vmatprep.subr.mxu0 0.0
  %147 = vmatpush1.msra.mxu0 %v121
  %148 = vmatprep.subr.mxu0 0.0
  %149 = vmatpush1.msra.mxu0 %v122
  %150 = vmatprep.subr.mxu0 0.0
  %151 = vmatpush1.msra.mxu0 %v123
  %152 = vmatprep.subr.mxu0 0.0
  %153 = vmatpush1.msra.mxu0 %v124
  %154 = vmatprep.subr.mxu0 0.0
  %155 = vmatpush1.msra.mxu0 %v125
  %156 = vmatprep.subr.mxu0 0.0
  %157 = vmatpush1.msra.mxu0 %v126
  %158 = vmatprep.subr.mxu0 0.0
  %159 = vmatpush1.msra.mxu0 %v127
  %160 = vmatprep.subr.mxu0 0.0
  %161 = vmatpush1.msra.mxu0 %v128
  %162 = vmatprep.subr.mxu0 0.0
  %163 = vmatpush1.msra.mxu0 %v129
  %164 = vmatprep.subr.mxu0 0.0
  %165 = vmatpush1.msra.mxu0 %v130
  %166 = vmatprep.subr.mxu0 0.0
  %167 = vmatpush1.msra.mxu0 %v131
  %168 = vmatprep.subr.mxu0 0.0
  %169 = vmatpush1.msra.mxu0 %v132
  %170 = vmatprep.subr.mxu0 0.0
  %171 = vmatpush1.msra.mxu0 %v133
  %172 = vmatprep.subr.mxu0 0.0
  %173 = vmatpush1.msra.mxu0 %v134
  %174 = vmatprep.subr.mxu0 0.0
  %175 = vmatpush1.msra.mxu0 0.0
  %176 = vmatprep.subr.mxu0 0.0
  %177 = vmatpush1.msra.mxu0 0.0
  %178 = vmatprep.subr.mxu0 0.0
  %179 = vmatpush1.msra.mxu0 0.0
  %180 = vmatprep.subr.mxu0 0.0
  %181 = vmatpush1.msra.mxu0 0.0
  %182 = vmatprep.subr.mxu0 0.0
  %183 = vmatpush1.msra.mxu0 0.0
  %184 = vmatprep.subr.mxu0 0.0
  %185 = vmatpush1.msra.mxu0 0.0
  %186 = vmatprep.subr.mxu0 0.0
  %187 = vmatpush1.msra.mxu0 0.0
  %188 = vmatprep.subr.mxu0 0.0
  %189 = vmatpush1.msra.mxu0 0.0
  %190 = vmatprep.subr.mxu0 0.0
  %191 = vmatpush1.msra.mxu0 0.0
  %192 = vmatprep.subr.mxu0 0.0
  %193 = vmatpush1.msra.mxu0 0.0
  %194 = vmatprep.subr.mxu0 0.0
  %195 = vmatpush1.msra.mxu0 0.0
  %196 = vmatprep.subr.mxu0 0.0
  %197 = vmatpush1.msra.mxu0 0.0
  %198 = vmatprep.subr.mxu0 0.0
  %199 = vmatpush1.msra.mxu0 0.0
  %200 = vmatprep.subr.mxu0 0.0
  %201 = vmatpush1.msra.mxu0 0.0
  %202 = vmatprep.subr.mxu0 0.0
  %203 = vmatpush1.msra.mxu0 0.0
  %204 = vmatprep.subr.mxu0 0.0
  %205 = vmatpush1.msra.mxu0 0.0
  %206 = vmatprep.mubr.f32.mxu0 0.0
  %207 = vmatmul.mubr.f32.gmra.mrb[0].mxu0 %v118
  %v208 = vpop.f32.mrb[0].mxu0
  %v209 = vadd.f32 %v140, %v208
  %v210 = vpop.f32.mrb[0].mxu0
  %211 = vdwg.mxu0
  %v212 = vmax.f32 %v209, 0.0
  %v213 = vld [vmem:[%s5] sm:$0xff]
  %v214 = vld [vmem:[%s5 + $0x8] sm:$0xff]
  %v215 = vld [vmem:[%s5 + $0x10] sm:$0xff]
  %v216 = vld [vmem:[%s5 + $0x18] sm:$0xff]
  %v217 = vld [vmem:[%s5 + $0x20] sm:$0xff]
  %v218 = vld [vmem:[%s5 + $0x28] sm:$0xff]
  %v219 = vld [vmem:[%s5 + $0x30] sm:$0xff]
  %v220 = vld [vmem:[%s5 + $0x38] sm:$0xff]
  %v221 = vld [vmem:[#allocation2] sm:$0x1]
  %v223 = vlaneseq
  %v224 = vshrl.u32 %v223, 7
  %v225 = vsub.s32 0, %v224
  %v226 = vrot.slane %v221, %v225
  %v229 = vsel %vm44, %v212, 0
  %231 = vmatprep.subr.mxu0 0.0
  %232 = vmatpush1.msra.mxu0 %v213
  %233 = vmatprep.subr.mxu0 0.0
  %234 = vmatpush1.msra.mxu0 %v214
  %235 = vmatprep.subr.mxu0 0.0
  %236 = vmatpush1.msra.mxu0 %v215
  %237 = vmatprep.subr.mxu0 0.0
  %238 = vmatpush1.msra.mxu0 %v216
  %239 = vmatprep.subr.mxu0 0.0
  %240 = vmatpush1.msra.mxu0 %v217
  %241 = vmatprep.subr.mxu0 0.0
  %242 = vmatpush1.msra.mxu0 %v218
  %243 = vmatprep.subr.mxu0 0.0
  %244 = vmatpush1.msra.mxu0 %v219
  %245 = vmatprep.subr.mxu0 0.0
  %246 = vmatpush1.msra.mxu0 %v220
  %247 = vmatprep.subr.mxu0 0.0
  %248 = vmatpush1.msra.mxu0 0.0
  %249 = vmatprep.subr.mxu0 0.0
  %250 = vmatpush1.msra.mxu0 0.0
  %251 = vmatprep.subr.mxu0 0.0
  %252 = vmatpush1.msra.mxu0 0.0
  %253 = vmatprep.subr.mxu0 0.0
  %254 = vmatpush1.msra.mxu0 0.0
  %255 = vmatprep.subr.mxu0 0.0
  %256 = vmatpush1.msra.mxu0 0.0
  %257 = vmatprep.subr.mxu0 0.0
  %258 = vmatpush1.msra.mxu0 0.0
  %259 = vmatprep.subr.mxu0 0.0
  %260 = vmatpush1.msra.mxu0 0.0
  %261 = vmatprep.subr.mxu0 0.0
  %262 = vmatpush1.msra.mxu0 0.0
  %263 = vmatprep.subr.mxu0 0.0
  %264 = vmatpush1.msra.mxu0 0.0
  %265 = vmatprep.subr.mxu0 0.0
  %266 = vmatpush1.msra.mxu0 0.0
  %267 = vmatprep.subr.mxu0 0.0
  %268 = vmatpush1.msra.mxu0 0.0
  %269 = vmatprep.subr.mxu0 0.0
  %270 = vmatpush1.msra.mxu0 0.0
  %271 = vmatprep.subr.mxu0 0.0
  %272 = vmatpush1.msra.mxu0 0.0
  %273 = vmatprep.subr.mxu0 0.0
  %274 = vmatpush1.msra.mxu0 0.0
  %275 = vmatprep.subr.mxu0 0.0
  %276 = vmatpush1.msra.mxu0 0.0
  %277 = vmatprep.subr.mxu0 0.0
  %278 = vmatpush1.msra.mxu0 0.0
  %279 = vmatprep.subr.mxu0 0.0
  %280 = vmatpush1.msra.mxu0 0.0
  %281 = vmatprep.subr.mxu0 0.0
  %282 = vmatpush1.msra.mxu0 0.0
  %283 = vmatprep.subr.mxu0 0.0
  %284 = vmatpush1.msra.mxu0 0.0
  %285 = vmatprep.subr.mxu0 0.0
  %286 = vmatpush1.msra.mxu0 0.0
  %287 = vmatprep.subr.mxu0 0.0
  %288 = vmatpush1.msra.mxu0 0.0
  %289 = vmatprep.subr.mxu0 0.0
  %290 = vmatpush1.msra.mxu0 0.0
  %291 = vmatprep.subr.mxu0 0.0
  %292 = vmatpush1.msra.mxu0 0.0
  %293 = vmatprep.subr.mxu0 0.0
  %294 = vmatpush1.msra.mxu0 0.0
  %295 = vmatprep.mubr.f32.mxu0 0.0
  %296 = vmatmul.mubr.f32.gmra.mrb[0].mxu0 %v229
  %v297 = vpop.f32.mrb[0].mxu0
  %v298 = vadd.f32 %v226, %v297
  %v299 = vpop.f32.mrb[0].mxu0
  %300 = vdwg.mxu0
  %v301 = vsub.f32 0.0, %v298
  %v302 = vmul.f32 %v301, 1.442695
  %v303 = vpow.pop %v302
  %v304 = vadd.f32 %v303, 1.0
  %v305 = vrcp.pop %v304
  %vm306 = vcmask 4096
  %307 = vst.msk [vmem:[%s7] sm:$0x1f] %vm306, %v305
  // Predicated region
  $region30: #{_lambda_.12} parent=0 // pred_check
    _
  $region31: #{_lambda_.12} parent=0 // pred_check_branch
    %309 = sbr.rel (0) target = $region33
  $region32: #{_lambda_.12} parent=0 // pred_region
    _
  $region33: #{_lambda_.12} parent=0 // pred_fallthru
    _
  // Predicated region
  $region34: #{_lambda_.12} parent=0 // pred_check
    _
  $region35: #{_lambda_.12} parent=0 // pred_check_branch
    %311 = sbr.rel (0) target = $region37
  $region36: #{_lambda_.12} parent=0 // pred_region
    _
  $region37: #{_lambda_.12} parent=0 // pred_fallthru
    _

// kernel: _lambda_.11
$region0: #{_lambda_.11}
  #allocation0 [shape = 'u32[]', space=smem, size = 0x4, offset = 0x4, fixed_abs, tag = 'smem constant byte address 0x4 - core index']
  #allocation1 [shape = 'u32[144,128]{1,0:T(1,128)}', space=vmem, size = 0x12000, scoped, tag = 'internal scratch']
  %s0 = inlined_call_operand.vmem [shape: bf16[20,16,32], index: 0, kind: input, shape index: {}]
  %s1 = inlined_call_operand.vmem [shape: bf16[20,16,32], index: 1, kind: input, shape index: {}]
  %s2 = inlined_call_operand.vmem [shape: bf16[9,32,32], index: 2, kind: input, shape index: {}]
  %s3 = inlined_call_operand.vmem [shape: f32[1,32], index: 3, kind: input, shape index: {}]
  %s4 = inlined_call_operand.vmem [shape: f32[1,32], index: 4, kind: input, shape index: {}]
  %s5 = inlined_call_operand.vmem [shape: f32[20,4,32], index: 5, kind: output, shape index: {}]
  %s6 = sld [smem:[#allocation0]]
  $region53: #{_lambda_.11} parent=0
    _
  %s8 = ssub.s32 1, %s6
  %s9 = scalar_select 0, %s8, %s6
  loop: start=0, step=1, limit=22
  $region2: #{_lambda_.11} parent=0 // loop_pre_header
    _
  $region3: #{_lambda_.11} parent=0 // loop_header
    %s11 = sphi 0, %s15
    %p12 = scmp.ge.s32.totalorder %s11, 22
    %s21 = sphi 0, %s23
    %s24 = sphi 0, %s21
    %s25 = sphi 0, %s24
    %s41 = sphi 0, %s25
    %s47 = sphi 0, %s49
    %s50 = sphi 0, %s47
    %s51 = sphi 0, %s50
    %s67 = sphi 0, %s51
    %s71 = sphi 0, %s71
    %s73 = sphi 0, %s71
    %s74 = sphi 0, %s73
    %s88 = sphi 0, %s74
    %s92 = sphi 0, %s92
    %s94 = sphi 0, %s92
    %s95 = sphi 0, %s94
    %s109 = sphi 0, %s95
    %s113 = sphi 0, %s113
    %s115 = sphi 0, %s113
    %s116 = sphi 0, %s115
    %s130 = sphi 0, %s116
    %s136 = sphi 0, %s138
    %s139 = sphi 0, %s136
    %s140 = sphi 0, %s139
    %s156 = sphi 0, %s140
  $region4: #{_lambda_.11} parent=0 // loop_header_branch
    %14 = sbr.rel (%p12) target = $region8
  $region5: #{_lambda_.11} parent=0 // loop_body
    %s16 = ssub.s32 %s11, 1
    %s17 = ssub.s32 %s11, 2
    %s18 = sadd.s32 %s11, 1
    %s19 = ssub.s32 %s11, %s18
    %p20 = scmp.eq.s32.totalorder %s19, 0
    %s22 = sadd.s32 %s21, 1
    %s23 = scalar_select %p20, %s21, %s22
    %p26 = pneg %p20
    %p27 = scmp.eq.s32.totalorder %s11, 19
    %p28 = por %p26, %p27
    %p29 = scmp.ne.s32.totalorder %s21, %s24
    %p30 = scmp.eq.s32.totalorder %s11, 0
    %p31 = por %p29, %p30
    %p32 = scmp.ne.s32.totalorder %s21, %s24
    %p33 = scmp.eq.s32.totalorder %s16, 19
    %p34 = por %p32, %p33
    %p35 = scmp.ne.s32.totalorder %s24, %s25
    %p36 = scmp.eq.s32.totalorder %s16, 0
    %p37 = por %p35, %p36
    %p38 = scmp.ne.s32.totalorder %s24, %s25
    %p39 = scmp.eq.s32.totalorder %s17, 19
    %p40 = por %p38, %p39
    %p42 = scmp.ne.s32.totalorder %s25, %s41
    %p43 = scmp.eq.s32.totalorder %s17, 0
    %p44 = por %p42, %p43
    %s45 = ssub.s32 %s11, %s18
    %p46 = scmp.eq.s32.totalorder %s45, 0
    %s48 = sadd.s32 %s47, 1
    %s49 = scalar_select %p46, %s47, %s48
    %p52 = pneg %p46
    %p53 = scmp.eq.s32.totalorder %s11, 19
    %p54 = por %p52, %p53
    %p55 = scmp.ne.s32.totalorder %s47, %s50
    %p56 = scmp.eq.s32.totalorder %s11, 0
    %p57 = por %p55, %p56
    %p58 = scmp.ne.s32.totalorder %s47, %s50
    %p59 = scmp.eq.s32.totalorder %s16, 19
    %p60 = por %p58, %p59
    %p61 = scmp.ne.s32.totalorder %s50, %s51
    %p62 = scmp.eq.s32.totalorder %s16, 0
    %p63 = por %p61, %p62
    %p64 = scmp.ne.s32.totalorder %s50, %s51
    %p65 = scmp.eq.s32.totalorder %s17, 19
    %p66 = por %p64, %p65
    %p68 = scmp.ne.s32.totalorder %s51, %s67
    %p69 = scmp.eq.s32.totalorder %s17, 0
    %p70 = por %p68, %p69
    %s72 = sadd.s32 %s71, 1
    %p75 = scmp.eq.s32.totalorder %s11, 19
    %p76 = scmp.ne.s32.totalorder %s71, %s73
    %p77 = scmp.eq.s32.totalorder %s11, 0
    %p78 = por %p76, %p77
    %p79 = scmp.ne.s32.totalorder %s71, %s73
    %p80 = scmp.eq.s32.totalorder %s16, 19
    %p81 = por %p79, %p80
    %p82 = scmp.ne.s32.totalorder %s73, %s74
    %p83 = scmp.eq.s32.totalorder %s16, 0
    %p84 = por %p82, %p83
    %p85 = scmp.ne.s32.totalorder %s73, %s74
    %p86 = scmp.eq.s32.totalorder %s17, 19
    %p87 = por %p85, %p86
    %p89 = scmp.ne.s32.totalorder %s74, %s88
    %p90 = scmp.eq.s32.totalorder %s17, 0
    %p91 = por %p89, %p90
    %s93 = sadd.s32 %s92, 1
    %p96 = scmp.eq.s32.totalorder %s11, 19
    %p97 = scmp.ne.s32.totalorder %s92, %s94
    %p98 = scmp.eq.s32.totalorder %s11, 0
    %p99 = por %p97, %p98
    %p100 = scmp.ne.s32.totalorder %s92, %s94
    %p101 = scmp.eq.s32.totalorder %s16, 19
    %p102 = por %p100, %p101
    %p103 = scmp.ne.s32.totalorder %s94, %s95
    %p104 = scmp.eq.s32.totalorder %s16, 0
    %p105 = por %p103, %p104
    %p106 = scmp.ne.s32.totalorder %s94, %s95
    %p107 = scmp.eq.s32.totalorder %s17, 19
    %p108 = por %p106, %p107
    %p110 = scmp.ne.s32.totalorder %s95, %s109
    %p111 = scmp.eq.s32.totalorder %s17, 0
    %p112 = por %p110, %p111
    %s114 = sadd.s32 %s113, 1
    %p117 = scmp.eq.s32.totalorder %s11, 19
    %p118 = scmp.ne.s32.totalorder %s113, %s115
    %p119 = scmp.eq.s32.totalorder %s11, 0
    %p120 = por %p118, %p119
    %p121 = scmp.ne.s32.totalorder %s113, %s115
    %p122 = scmp.eq.s32.totalorder %s16, 19
    %p123 = por %p121, %p122
    %p124 = scmp.ne.s32.totalorder %s115, %s116
    %p125 = scmp.eq.s32.totalorder %s16, 0
    %p126 = por %p124, %p125
    %p127 = scmp.ne.s32.totalorder %s115, %s116
    %p128 = scmp.eq.s32.totalorder %s17, 19
    %p129 = por %p127, %p128
    %p131 = scmp.ne.s32.totalorder %s116, %s130
    %p132 = scmp.eq.s32.totalorder %s17, 0
    %p133 = por %p131, %p132
    %s134 = ssub.s32 %s11, %s18
    %p135 = scmp.eq.s32.totalorder %s134, 0
    %s137 = sadd.s32 %s136, 1
    %s138 = scalar_select %p135, %s136, %s137
    %p141 = pneg %p135
    %p142 = scmp.eq.s32.totalorder %s11, 19
    %p143 = por %p141, %p142
    %p144 = scmp.ne.s32.totalorder %s136, %s139
    %p145 = scmp.eq.s32.totalorder %s11, 0
    %p146 = por %p144, %p145
    %p147 = scmp.ne.s32.totalorder %s136, %s139
    %p148 = scmp.eq.s32.totalorder %s16, 19
    %p149 = por %p147, %p148
    %p150 = scmp.ne.s32.totalorder %s139, %s140
    %p151 = scmp.eq.s32.totalorder %s16, 0
    %p152 = por %p150, %p151
    %p153 = scmp.ne.s32.totalorder %s139, %s140
    %p154 = scmp.eq.s32.totalorder %s17, 19
    %p155 = por %p153, %p154
    %p157 = scmp.ne.s32.totalorder %s140, %s156
    %p158 = scmp.eq.s32.totalorder %s17, 0
    %p159 = por %p157, %p158
    %p160 = scmp.le.s32.totalorder 1, %s11
    %p161 = scmp.lt.s32.totalorder %s11, 21
    %p162 = pnand %p160, %p161
    %p163 = pneg %p162
    // Predicated region
    $region9: #{_lambda_.11} parent=5 // pred_check
      _
    $region10: #{_lambda_.11} parent=5 // pred_check_branch
      %165 = sbr.rel (%p162) target = $region12
    $region11: #{_lambda_.11} parent=5 // pred_region
      %s166 = ssub.s32 %s11, 1
      // Predicated region
      $region13: #{_lambda_.11} parent=11 // pred_check
        %p167 = pneg %p84
      $region14: #{_lambda_.11} parent=11 // pred_check_branch
        %169 = sbr.rel (%p167) target = $region16
      $region15: #{_lambda_.11} parent=11 // pred_region
        _
      $region16: #{_lambda_.11} parent=11 // pred_fallthru
        _
      // Predicated region
      $region17: #{_lambda_.11} parent=11 // pred_check
        %p170 = pneg %p105
      $region18: #{_lambda_.11} parent=11 // pred_check_branch
        %172 = sbr.rel (%p170) target = $region20
      $region19: #{_lambda_.11} parent=11 // pred_region
        _
      $region20: #{_lambda_.11} parent=11 // pred_fallthru
        _
      // Predicated region
      $region21: #{_lambda_.11} parent=11 // pred_check
        %p173 = pneg %p126
      $region22: #{_lambda_.11} parent=11 // pred_check_branch
        %175 = sbr.rel (%p173) target = $region24
      $region23: #{_lambda_.11} parent=11 // pred_region
        _
      $region24: #{_lambda_.11} parent=11 // pred_fallthru
        _
    $region12: #{_lambda_.11} parent=5 // pred_fallthru
      _
    %p176 = scmp.lt.s32.totalorder %s11, 20
    // Predicated region
    $region25: #{_lambda_.11} parent=5 // pred_check
      %p177 = pneg %p176
    $region26: #{_lambda_.11} parent=5 // pred_check_branch
      %179 = sbr.rel (%p177) target = $region28
    $region27: #{_lambda_.11} parent=5 // pred_region
      // Predicated region
      $region29: #{_lambda_.11} parent=27 // pred_check
        %p180 = pneg %p31
      $region30: #{_lambda_.11} parent=27 // pred_check_branch
        %182 = sbr.rel (%p180) target = $region32
      $region31: #{_lambda_.11} parent=27 // pred_region
        %p183 = scmp.lt.s32.totalorder %s11, 19
        %s184 = scalar_select %p183, %s11, 19
        %s185 = smul.addr %s184, 2
        %s186 = smul.addr %s185, 4
        %s187 = scalar_lea.vmem %s0, %s186
      $region32: #{_lambda_.11} parent=27 // pred_fallthru
        _
      // Predicated region
      $region33: #{_lambda_.11} parent=27 // pred_check
        %p188 = pneg %p57
      $region34: #{_lambda_.11} parent=27 // pred_check_branch
        %190 = sbr.rel (%p188) target = $region36
      $region35: #{_lambda_.11} parent=27 // pred_region
        %p191 = scmp.lt.s32.totalorder %s11, 19
        %s192 = scalar_select %p191, %s11, 19
        %s193 = smul.addr %s192, 2
        %s194 = smul.addr %s193, 4
        %s195 = scalar_lea.vmem %s1, %s194
      $region36: #{_lambda_.11} parent=27 // pred_fallthru
        _
    $region28: #{_lambda_.11} parent=5 // pred_fallthru
      _
    %p196 = scmp.le.s32.totalorder 1, %s11
    %p197 = scmp.lt.s32.totalorder %s11, 21
    %p198 = pnand %p196, %p197
    %p199 = pneg %p198
    // Predicated region
    $region37: #{_lambda_.11} parent=5 // pred_check
      _
    $region38: #{_lambda_.11} parent=5 // pred_check_branch
      %201 = sbr.rel (%p198) target = $region40
    $region39: #{_lambda_.11} parent=5 // pred_region
      %s202 = ssub.s32 %s11, 1
      %p203 = scmp.lt.s32.totalorder %s16, 19
      %s204 = scalar_select %p203, %s16, 19
      %s205 = smul.addr %s204, 2
      %s206 = smul.addr %s205, 4
      %s207 = scalar_lea.vmem %s0, %s206
      %p208 = pneg %p37
      %p209 = pneg %p34
      %p210 = scmp.lt.s32.totalorder %s16, 19
      %s211 = scalar_select %p210, %s16, 19
      %s212 = smul.addr %s211, 2
      %s213 = smul.addr %s212, 4
      %s214 = scalar_lea.vmem %s1, %s213
      %p215 = pneg %p63
      %p216 = pneg %p60
      %p217 = pneg %p84
      %p218 = pneg %p81
      %p219 = pneg %p105
      %p220 = pneg %p102
      %p221 = pneg %p126
      %p222 = pneg %p123
      %p223 = pneg %p152
      %p224 = pneg %p149
      %p225 = scmp.lt.s32.totalorder %s16, 19
      %s226 = scalar_select %p225, %s16, 19
      %s227 = smul.addr %s226, 4
      %s228 = scalar_lea.vmem %s5, %s227
      %p229 = scmp.lt.s32.totalorder %s16, 19
      %s230 = scalar_select %p229, %s16, 19
      %s231 = smul.addr %s230, 2
      %s232 = smul.addr %s231, 4
      %s233 = scalar_lea.vmem %s0, %s232
      %p234 = scmp.lt.s32.totalorder %s16, 19
      %s235 = scalar_select %p234, %s16, 19
      %s236 = smul.addr %s235, 2
      %s237 = smul.addr %s236, 4
      %s238 = scalar_lea.vmem %s1, %s237
      %p239 = scmp.lt.s32.totalorder %s16, 19
      %s240 = scalar_select %p239, %s16, 19
      %s241 = smul.addr %s240, 4
      %s242 = scalar_lea.vmem %s5, %s241
      %v244 = vld [vmem:[%s3] sm:$0x1]
      %v245 = vld [vmem:[%s4] sm:$0x1]
      %v246 = vld [vmem:[%s233] sm:$0x3]
      %v247 = vld [vmem:[%s2] sm:$0xf]
      %v248 = vld [vmem:[%s2 + $0x4] sm:$0xf]
      %v249 = vld [vmem:[%s2 + $0x8] sm:$0xf]
      %v250 = vld [vmem:[%s2 + $0xc] sm:$0xf]
      %v251 = vld [vmem:[%s238] sm:$0x3]
      %s252 = scalar_lea.vmem %s2, 16
      %v253 = vld [vmem:[%s252] sm:$0xf]
      %v254 = vld [vmem:[%s252 + $0x4] sm:$0xf]
      %v255 = vld [vmem:[%s252 + $0x8] sm:$0xf]
      %v256 = vld [vmem:[%s252 + $0xc] sm:$0xf]
      %v261 = vunpack.c.l.b16 %v253
      %v262 = vunpack.c.l.b16 %v254
      %v263 = vunpack.c.l.b16 %v255
      %v264 = vunpack.c.l.b16 %v256
      %v265 = vpack.c.b16 %v262, %v261
      %v266 = vpack.c.b16 %v264, %v263
      %vm269 = vcmask 261120
      %v271 = vsel %vm269, %v251, 0
      %273 = vmatprep.subr.bf16.mxu0 0
      %274 = vmatpush1.bf16.msra.mxu0 %v265
      %275 = vmatprep.subr.bf16.mxu0 0
      %276 = vmatpush1.bf16.msra.mxu0 %v266
      %277 = vmatprep.subr.bf16.mxu0 0
      %278 = vmatpush1.bf16.msra.mxu0 0
      %279 = vmatprep.subr.bf16.mxu0 0
      %280 = vmatpush1.bf16.msra.mxu0 0
      %281 = vmatprep.subr.bf16.mxu0 0
      %282 = vmatpush1.bf16.msra.mxu0 0
      %283 = vmatprep.subr.bf16.mxu0 0
      %284 = vmatpush1.bf16.msra.mxu0 0
      %285 = vmatprep.subr.bf16.mxu0 0
      %286 = vmatpush1.bf16.msra.mxu0 0
      %287 = vmatprep.subr.bf16.mxu0 0
      %288 = vmatpush1.bf16.msra.mxu0 0
      %289 = vmatprep.subr.bf16.mxu0 0
      %290 = vmatpush1.bf16.msra.mxu0 0
      %291 = vmatprep.subr.bf16.mxu0 0
      %292 = vmatpush1.bf16.msra.mxu0 0
      %293 = vmatprep.subr.bf16.mxu0 0
      %294 = vmatpush1.bf16.msra.mxu0 0
      %295 = vmatprep.subr.bf16.mxu0 0
      %296 = vmatpush1.bf16.msra.mxu0 0
      %297 = vmatprep.subr.bf16.mxu0 0
      %298 = vmatpush1.bf16.msra.mxu0 0
      %299 = vmatprep.subr.bf16.mxu0 0
      %300 = vmatpush1.bf16.msra.mxu0 0
      %301 = vmatprep.subr.bf16.mxu0 0
      %302 = vmatpush1.bf16.msra.mxu0 0
      %303 = vmatprep.subr.bf16.mxu0 0
      %304 = vmatpush1.bf16.msra.mxu0 0
      %305 = vmatprep.mubr.bf16.mxu0 0
      %306 = vmatmul.mubr.bf16.gmra.mrb[0].mxu0 %v271
      %v307 = vpop.f32.mrb[0].mxu0
      %v308 = vadd.f32 0.0, %v307
      %v309 = vpop.f32.mrb[0].mxu0
      %v310 = vpop.f32.mrb[0].mxu0
      %v311 = vpop.f32.mrb[0].mxu0
      %312 = vdwg.mxu0
      %v317 = vunpack.c.l.b16 %v247
      %v318 = vunpack.c.l.b16 %v248
      %v319 = vunpack.c.l.b16 %v249
      %v320 = vunpack.c.l.b16 %v250
      %v321 = vpack.c.b16 %v318, %v317
      %v322 = vpack.c.b16 %v320, %v319
      %v326 = vsel %vm269, %v246, 0
      %328 = vmatprep.subr.bf16.mxu0 0
      %329 = vmatpush1.bf16.msra.mxu0 %v321
      %330 = vmatprep.subr.bf16.mxu0 0
      %331 = vmatpush1.bf16.msra.mxu0 %v322
      %332 = vmatprep.subr.bf16.mxu0 0
      %333 = vmatpush1.bf16.msra.mxu0 0
      %334 = vmatprep.subr.bf16.mxu0 0
      %335 = vmatpush1.bf16.msra.mxu0 0
      %336 = vmatprep.subr.bf16.mxu0 0
      %337 = vmatpush1.bf16.msra.mxu0 0
      %338 = vmatprep.subr.bf16.mxu0 0
      %339 = vmatpush1.bf16.msra.mxu0 0
      %340 = vmatprep.subr.bf16.mxu0 0
      %341 = vmatpush1.bf16.msra.mxu0 0
      %342 = vmatprep.subr.bf16.mxu0 0
      %343 = vmatpush1.bf16.msra.mxu0 0
      %344 = vmatprep.subr.bf16.mxu0 0
      %345 = vmatpush1.bf16.msra.mxu0 0
      %346 = vmatprep.subr.bf16.mxu0 0
      %347 = vmatpush1.bf16.msra.mxu0 0
      %348 = vmatprep.subr.bf16.mxu0 0
      %349 = vmatpush1.bf16.msra.mxu0 0
      %350 = vmatprep.subr.bf16.mxu0 0
      %351 = vmatpush1.bf16.msra.mxu0 0
      %352 = vmatprep.subr.bf16.mxu0 0
      %353 = vmatpush1.bf16.msra.mxu0 0
      %354 = vmatprep.subr.bf16.mxu0 0
      %355 = vmatpush1.bf16.msra.mxu0 0
      %356 = vmatprep.subr.bf16.mxu0 0
      %357 = vmatpush1.bf16.msra.mxu0 0
      %358 = vmatprep.subr.bf16.mxu0 0
      %359 = vmatpush1.bf16.msra.mxu0 0
      %360 = vmatprep.mubr.bf16.mxu0 0
      %361 = vmatmul.mubr.bf16.gmra.mrb[0].mxu0 %v326
      %v362 = vpop.f32.mrb[0].mxu0
      %v363 = vadd.f32 %v308, %v362
      %v364 = vpop.f32.mrb[0].mxu0
      %v365 = vpop.f32.mrb[0].mxu0
      %v366 = vpop.f32.mrb[0].mxu0
      %367 = vdwg.mxu0
      %v368 = vld [vmem:[%s233] sm:$0x7]
      %s369 = scalar_lea.vmem %s2, 32
      %v370 = vld [vmem:[%s369] sm:$0xf]
      %v371 = vld [vmem:[%s369 + $0x4] sm:$0xf]
      %v372 = vld [vmem:[%s369 + $0x8] sm:$0xf]
      %v373 = vld [vmem:[%s369 + $0xc] sm:$0xf]
      %v375 = vunpack.c.l.b16 %v368
      %v376 = vpack.c.b16 %v375, %v375
      %v378 = vshrl.u32 %v376, 16
      %v380 = vshll.u32 %v376, 16
      %v382 = vrot.slane %v380, 1
      %v383 = vor.u32 %v378, %v382
      %v388 = vunpack.c.l.b16 %v370
      %v389 = vunpack.c.l.b16 %v371
      %v390 = vunpack.c.l.b16 %v372
      %v391 = vunpack.c.l.b16 %v373
      %v392 = vpack.c.b16 %v389, %v388
      %v393 = vpack.c.b16 %v391, %v390
      %v397 = vsel %vm269, %v383, 0
      %399 = vmatprep.subr.bf16.mxu0 0
      %400 = vmatpush1.bf16.msra.mxu0 %v392
      %401 = vmatprep.subr.bf16.mxu0 0
      %402 = vmatpush1.bf16.msra.mxu0 %v393
      %403 = vmatprep.subr.bf16.mxu0 0
      %404 = vmatpush1.bf16.msra.mxu0 0
      %405 = vmatprep.subr.bf16.mxu0 0
      %406 = vmatpush1.bf16.msra.mxu0 0
      %407 = vmatprep.subr.bf16.mxu0 0
      %408 = vmatpush1.bf16.msra.mxu0 0
      %409 = vmatprep.subr.bf16.mxu0 0
      %410 = vmatpush1.bf16.msra.mxu0 0
      %411 = vmatprep.subr.bf16.mxu0 0
      %412 = vmatpush1.bf16.msra.mxu0 0
      %413 = vmatprep.subr.bf16.mxu0 0
      %414 = vmatpush1.bf16.msra.mxu0 0
      %415 = vmatprep.subr.bf16.mxu0 0
      %416 = vmatpush1.bf16.msra.mxu0 0
      %417 = vmatprep.subr.bf16.mxu0 0
      %418 = vmatpush1.bf16.msra.mxu0 0
      %419 = vmatprep.subr.bf16.mxu0 0
      %420 = vmatpush1.bf16.msra.mxu0 0
      %421 = vmatprep.subr.bf16.mxu0 0
      %422 = vmatpush1.bf16.msra.mxu0 0
      %423 = vmatprep.subr.bf16.mxu0 0
      %424 = vmatpush1.bf16.msra.mxu0 0
      %425 = vmatprep.subr.bf16.mxu0 0
      %426 = vmatpush1.bf16.msra.mxu0 0
      %427 = vmatprep.subr.bf16.mxu0 0
      %428 = vmatpush1.bf16.msra.mxu0 0
      %429 = vmatprep.subr.bf16.mxu0 0
      %430 = vmatpush1.bf16.msra.mxu0 0
      %431 = vmatprep.mubr.bf16.mxu0 0
      %432 = vmatmul.mubr.bf16.gmra.mrb[0].mxu0 %v397
      %v433 = vpop.f32.mrb[0].mxu0
      %v434 = vadd.f32 0.0, %v433
      %v435 = vpop.f32.mrb[0].mxu0
      %v436 = vpop.f32.mrb[0].mxu0
      %v437 = vpop.f32.mrb[0].mxu0
      %438 = vdwg.mxu0
      %v439 = vadd.f32 %v363, %v434
      %v440 = vld [vmem:[%s233] sm:$0x6]
      %s441 = scalar_lea.vmem %s2, 48
      %v442 = vld [vmem:[%s441] sm:$0xf]
      %v443 = vld [vmem:[%s441 + $0x4] sm:$0xf]
      %v444 = vld [vmem:[%s441 + $0x8] sm:$0xf]
      %v445 = vld [vmem:[%s441 + $0xc] sm:$0xf]
      %v447 = vunpack.c.l.b16 %v440
      %v448 = vpack.c.b16 %v447, %v447
      %v449 = vrot.slane %v448, 1
      %v454 = vunpack.c.l.b16 %v442
      %v455 = vunpack.c.l.b16 %v443
      %v456 = vunpack.c.l.b16 %v444
      %v457 = vunpack.c.l.b16 %v445
      %v458 = vpack.c.b16 %v455, %v454
      %v459 = vpack.c.b16 %v457, %v456
      %v463 = vsel %vm269, %v449, 0
      %465 = vmatprep.subr.bf16.mxu0 0
      %466 = vmatpush1.bf16.msra.mxu0 %v458
      %467 = vmatprep.subr.bf16.mxu0 0
      %468 = vmatpush1.bf16.msra.mxu0 %v459
      %469 = vmatprep.subr.bf16.mxu0 0
      %470 = vmatpush1.bf16.msra.mxu0 0
      %471 = vmatprep.subr.bf16.mxu0 0
      %472 = vmatpush1.bf16.msra.mxu0 0
      %473 = vmatprep.subr.bf16.mxu0 0
      %474 = vmatpush1.bf16.msra.mxu0 0
      %475 = vmatprep.subr.bf16.mxu0 0
      %476 = vmatpush1.bf16.msra.mxu0 0
      %477 = vmatprep.subr.bf16.mxu0 0
      %478 = vmatpush1.bf16.msra.mxu0 0
      %479 = vmatprep.subr.bf16.mxu0 0
      %480 = vmatpush1.bf16.msra.mxu0 0
      %481 = vmatprep.subr.bf16.mxu0 0
      %482 = vmatpush1.bf16.msra.mxu0 0
      %483 = vmatprep.subr.bf16.mxu0 0
      %484 = vmatpush1.bf16.msra.mxu0 0
      %485 = vmatprep.subr.bf16.mxu0 0
      %486 = vmatpush1.bf16.msra.mxu0 0
      %487 = vmatprep.subr.bf16.mxu0 0
      %488 = vmatpush1.bf16.msra.mxu0 0
      %489 = vmatprep.subr.bf16.mxu0 0
      %490 = vmatpush1.bf16.msra.mxu0 0
      %491 = vmatprep.subr.bf16.mxu0 0
      %492 = vmatpush1.bf16.msra.mxu0 0
      %493 = vmatprep.subr.bf16.mxu0 0
      %494 = vmatpush1.bf16.msra.mxu0 0
      %495 = vmatprep.subr.bf16.mxu0 0
      %496 = vmatpush1.bf16.msra.mxu0 0
      %497 = vmatprep.mubr.bf16.mxu0 0
      %498 = vmatmul.mubr.bf16.gmra.mrb[0].mxu0 %v463
      %v499 = vpop.f32.mrb[0].mxu0
      %v500 = vadd.f32 0.0, %v499
      %v501 = vpop.f32.mrb[0].mxu0
      %v502 = vpop.f32.mrb[0].mxu0
      %v503 = vpop.f32.mrb[0].mxu0
      %504 = vdwg.mxu0
      %v505 = vadd.f32 %v439, %v500
      %v506 = vld [vmem:[%s238] sm:$0x6]
      %s507 = scalar_lea.vmem %s2, 64
      %v508 = vld [vmem:[%s507] sm:$0xf]
      %v509 = vld [vmem:[%s507 + $0x4] sm:$0xf]
      %v510 = vld [vmem:[%s507 + $0x8] sm:$0xf]
      %v511 = vld [vmem:[%s507 + $0xc] sm:$0xf]
      %v513 = vunpack.c.l.b16 %v506
      %v514 = vpack.c.b16 %v513, %v513
      %v515 = vrot.slane %v514, 1
      %v520 = vunpack.c.l.b16 %v508
      %v521 = vunpack.c.l.b16 %v509
      %v522 = vunpack.c.l.b16 %v510
      %v523 = vunpack.c.l.b16 %v511
      %v524 = vpack.c.b16 %v521, %v520
      %v525 = vpack.c.b16 %v523, %v522
      %v529 = vsel %vm269, %v515, 0
      %531 = vmatprep.subr.bf16.mxu0 0
      %532 = vmatpush1.bf16.msra.mxu0 %v524
      %533 = vmatprep.subr.bf16.mxu0 0
      %534 = vmatpush1.bf16.msra.mxu0 %v525
      %535 = vmatprep.subr.bf16.mxu0 0
      %536 = vmatpush1.bf16.msra.mxu0 0
      %537 = vmatprep.subr.bf16.mxu0 0
      %538 = vmatpush1.bf16.msra.mxu0 0
      %539 = vmatprep.subr.bf16.mxu0 0
      %540 = vmatpush1.bf16.msra.mxu0 0
      %541 = vmatprep.subr.bf16.mxu0 0
      %542 = vmatpush1.bf16.msra.mxu0 0
      %543 = vmatprep.subr.bf16.mxu0 0
      %544 = vmatpush1.bf16.msra.mxu0 0
      %545 = vmatprep.subr.bf16.mxu0 0
      %546 = vmatpush1.bf16.msra.mxu0 0
      %547 = vmatprep.subr.bf16.mxu0 0
      %548 = vmatpush1.bf16.msra.mxu0 0
      %549 = vmatprep.subr.bf16.mxu0 0
      %550 = vmatpush1.bf16.msra.mxu0 0
      %551 = vmatprep.subr.bf16.mxu0 0
      %552 = vmatpush1.bf16.msra.mxu0 0
      %553 = vmatprep.subr.bf16.mxu0 0
      %554 = vmatpush1.bf16.msra.mxu0 0
      %555 = vmatprep.subr.bf16.mxu0 0
      %556 = vmatpush1.bf16.msra.mxu0 0
      %557 = vmatprep.subr.bf16.mxu0 0
      %558 = vmatpush1.bf16.msra.mxu0 0
      %559 = vmatprep.subr.bf16.mxu0 0
      %560 = vmatpush1.bf16.msra.mxu0 0
      %561 = vmatprep.subr.bf16.mxu0 0
      %562 = vmatpush1.bf16.msra.mxu0 0
      %563 = vmatprep.mubr.bf16.mxu0 0
      %564 = vmatmul.mubr.bf16.gmra.mrb[0].mxu0 %v529
      %v565 = vpop.f32.mrb[0].mxu0
      %v566 = vadd.f32 0.0, %v565
      %v567 = vpop.f32.mrb[0].mxu0
      %v568 = vpop.f32.mrb[0].mxu0
      %v569 = vpop.f32.mrb[0].mxu0
      %570 = vdwg.mxu0
      %v571 = vadd.f32 %v505, %v566
      %v572 = vld [vmem:[%s233] sm:$0xe]
      %s573 = scalar_lea.vmem %s2, 80
      %v574 = vld [vmem:[%s573] sm:$0xf]
      %v575 = vld [vmem:[%s573 + $0x4] sm:$0xf]
      %v576 = vld [vmem:[%s573 + $0x8] sm:$0xf]
      %v577 = vld [vmem:[%s573 + $0xc] sm:$0xf]
      %v579 = vunpack.c.l.b16 %v572
      %v580 = vpack.c.b16 %v579, %v579
      %v582 = vshrl.u32 %v580, 16
      %v584 = vrot.slane %v582, 1
      %v585 = vshll.u32 %v580, 16
      %v587 = vrot.slane %v585, 2
      %v588 = vor.u32 %v584, %v587
      %v593 = vunpack.c.l.b16 %v574
      %v594 = vunpack.c.l.b16 %v575
      %v595 = vunpack.c.l.b16 %v576
      %v596 = vunpack.c.l.b16 %v577
      %v597 = vpack.c.b16 %v594, %v593
      %v598 = vpack.c.b16 %v596, %v595
      %v602 = vsel %vm269, %v588, 0
      %604 = vmatprep.subr.bf16.mxu0 0
      %605 = vmatpush1.bf16.msra.mxu0 %v597
      %606 = vmatprep.subr.bf16.mxu0 0
      %607 = vmatpush1.bf16.msra.mxu0 %v598
      %608 = vmatprep.subr.bf16.mxu0 0
      %609 = vmatpush1.bf16.msra.mxu0 0
      %610 = vmatprep.subr.bf16.mxu0 0
      %611 = vmatpush1.bf16.msra.mxu0 0
      %612 = vmatprep.subr.bf16.mxu0 0
      %613 = vmatpush1.bf16.msra.mxu0 0
      %614 = vmatprep.subr.bf16.mxu0 0
      %615 = vmatpush1.bf16.msra.mxu0 0
      %616 = vmatprep.subr.bf16.mxu0 0
      %617 = vmatpush1.bf16.msra.mxu0 0
      %618 = vmatprep.subr.bf16.mxu0 0
      %619 = vmatpush1.bf16.msra.mxu0 0
      %620 = vmatprep.subr.bf16.mxu0 0
      %621 = vmatpush1.bf16.msra.mxu0 0
      %622 = vmatprep.subr.bf16.mxu0 0
      %623 = vmatpush1.bf16.msra.mxu0 0
      %624 = vmatprep.subr.bf16.mxu0 0
      %625 = vmatpush1.bf16.msra.mxu0 0
      %626 = vmatprep.subr.bf16.mxu0 0
      %627 = vmatpush1.bf16.msra.mxu0 0
      %628 = vmatprep.subr.bf16.mxu0 0
      %629 = vmatpush1.bf16.msra.mxu0 0
      %630 = vmatprep.subr.bf16.mxu0 0
      %631 = vmatpush1.bf16.msra.mxu0 0
      %632 = vmatprep.subr.bf16.mxu0 0
      %633 = vmatpush1.bf16.msra.mxu0 0
      %634 = vmatprep.subr.bf16.mxu0 0
      %635 = vmatpush1.bf16.msra.mxu0 0
      %636 = vmatprep.mubr.bf16.mxu0 0
      %637 = vmatmul.mubr.bf16.gmra.mrb[0].mxu0 %v602
      %v638 = vpop.f32.mrb[0].mxu0
      %v639 = vadd.f32 0.0, %v638
      %v640 = vpop.f32.mrb[0].mxu0
      %v641 = vpop.f32.mrb[0].mxu0
      %v642 = vpop.f32.mrb[0].mxu0
      %643 = vdwg.mxu0
      %v644 = vadd.f32 %v571, %v639
      %v645 = vld [vmem:[%s233] sm:$0xc]
      %s646 = scalar_lea.vmem %s2, 96
      %v647 = vld [vmem:[%s646] sm:$0xf]
      %v648 = vld [vmem:[%s646 + $0x4] sm:$0xf]
      %v649 = vld [vmem:[%s646 + $0x8] sm:$0xf]
      %v650 = vld [vmem:[%s646 + $0xc] sm:$0xf]
      %v652 = vunpack.c.l.b16 %v645
      %v653 = vpack.c.b16 %v652, %v652
      %v654 = vrot.slane %v653, 2
      %v659 = vunpack.c.l.b16 %v647
      %v660 = vunpack.c.l.b16 %v648
      %v661 = vunpack.c.l.b16 %v649
      %v662 = vunpack.c.l.b16 %v650
      %v663 = vpack.c.b16 %v660, %v659
      %v664 = vpack.c.b16 %v662, %v661
      %v668 = vsel %vm269, %v654, 0
      %670 = vmatprep.subr.bf16.mxu0 0
      %671 = vmatpush1.bf16.msra.mxu0 %v663
      %672 = vmatprep.subr.bf16.mxu0 0
      %673 = vmatpush1.bf16.msra.mxu0 %v664
      %674 = vmatprep.subr.bf16.mxu0 0
      %675 = vmatpush1.bf16.msra.mxu0 0
      %676 = vmatprep.subr.bf16.mxu0 0
      %677 = vmatpush1.bf16.msra.mxu0 0
      %678 = vmatprep.subr.bf16.mxu0 0
      %679 = vmatpush1.bf16.msra.mxu0 0
      %680 = vmatprep.subr.bf16.mxu0 0
      %681 = vmatpush1.bf16.msra.mxu0 0
      %682 = vmatprep.subr.bf16.mxu0 0
      %683 = vmatpush1.bf16.msra.mxu0 0
      %684 = vmatprep.subr.bf16.mxu0 0
      %685 = vmatpush1.bf16.msra.mxu0 0
      %686 = vmatprep.subr.bf16.mxu0 0
      %687 = vmatpush1.bf16.msra.mxu0 0
      %688 = vmatprep.subr.bf16.mxu0 0
      %689 = vmatpush1.bf16.msra.mxu0 0
      %690 = vmatprep.subr.bf16.mxu0 0
      %691 = vmatpush1.bf16.msra.mxu0 0
      %692 = vmatprep.subr.bf16.mxu0 0
      %693 = vmatpush1.bf16.msra.mxu0 0
      %694 = vmatprep.subr.bf16.mxu0 0
      %695 = vmatpush1.bf16.msra.mxu0 0
      %696 = vmatprep.subr.bf16.mxu0 0
      %697 = vmatpush1.bf16.msra.mxu0 0
      %698 = vmatprep.subr.bf16.mxu0 0
      %699 = vmatpush1.bf16.msra.mxu0 0
      %700 = vmatprep.subr.bf16.mxu0 0
      %701 = vmatpush1.bf16.msra.mxu0 0
      %702 = vmatprep.mubr.bf16.mxu0 0
      %703 = vmatmul.mubr.bf16.gmra.mrb[0].mxu0 %v668
      %v704 = vpop.f32.mrb[0].mxu0
      %v705 = vadd.f32 0.0, %v704
      %v706 = vpop.f32.mrb[0].mxu0
      %v707 = vpop.f32.mrb[0].mxu0
      %v708 = vpop.f32.mrb[0].mxu0
      %709 = vdwg.mxu0
      %v710 = vadd.f32 %v644, %v705
      %v711 = vld [vmem:[%s238] sm:$0xc]
      %s712 = scalar_lea.vmem %s2, 112
      %v713 = vld [vmem:[%s712] sm:$0xf]
      %v714 = vld [vmem:[%s712 + $0x4] sm:$0xf]
      %v715 = vld [vmem:[%s712 + $0x8] sm:$0xf]
      %v716 = vld [vmem:[%s712 + $0xc] sm:$0xf]
      %v718 = vunpack.c.l.b16 %v711
      %v719 = vpack.c.b16 %v718, %v718
      %v720 = vrot.slane %v719, 2
      %v725 = vunpack.c.l.b16 %v713
      %v726 = vunpack.c.l.b16 %v714
      %v727 = vunpack.c.l.b16 %v715
      %v728 = vunpack.c.l.b16 %v716
      %v729 = vpack.c.b16 %v726, %v725
      %v730 = vpack.c.b16 %v728, %v727
      %v734 = vsel %vm269, %v720, 0
      %736 = vmatprep.subr.bf16.mxu0 0
      %737 = vmatpush1.bf16.msra.mxu0 %v729
      %738 = vmatprep.subr.bf16.mxu0 0
      %739 = vmatpush1.bf16.msra.mxu0 %v730
      %740 = vmatprep.subr.bf16.mxu0 0
      %741 = vmatpush1.bf16.msra.mxu0 0
      %742 = vmatprep.subr.bf16.mxu0 0
      %743 = vmatpush1.bf16.msra.mxu0 0
      %744 = vmatprep.subr.bf16.mxu0 0
      %745 = vmatpush1.bf16.msra.mxu0 0
      %746 = vmatprep.subr.bf16.mxu0 0
      %747 = vmatpush1.bf16.msra.mxu0 0
      %748 = vmatprep.subr.bf16.mxu0 0
      %749 = vmatpush1.bf16.msra.mxu0 0
      %750 = vmatprep.subr.bf16.mxu0 0
      %751 = vmatpush1.bf16.msra.mxu0 0
      %752 = vmatprep.subr.bf16.mxu0 0
      %753 = vmatpush1.bf16.msra.mxu0 0
      %754 = vmatprep.subr.bf16.mxu0 0
      %755 = vmatpush1.bf16.msra.mxu0 0
      %756 = vmatprep.subr.bf16.mxu0 0
      %757 = vmatpush1.bf16.msra.mxu0 0
      %758 = vmatprep.subr.bf16.mxu0 0
      %759 = vmatpush1.bf16.msra.mxu0 0
      %760 = vmatprep.subr.bf16.mxu0 0
      %761 = vmatpush1.bf16.msra.mxu0 0
      %762 = vmatprep.subr.bf16.mxu0 0
      %763 = vmatpush1.bf16.msra.mxu0 0
      %764 = vmatprep.subr.bf16.mxu0 0
      %765 = vmatpush1.bf16.msra.mxu0 0
      %766 = vmatprep.subr.bf16.mxu0 0
      %767 = vmatpush1.bf16.msra.mxu0 0
      %768 = vmatprep.mubr.bf16.mxu0 0
      %769 = vmatmul.mubr.bf16.gmra.mrb[0].mxu0 %v734
      %v770 = vpop.f32.mrb[0].mxu0
      %v771 = vadd.f32 0.0, %v770
      %v772 = vpop.f32.mrb[0].mxu0
      %v773 = vpop.f32.mrb[0].mxu0
      %v774 = vpop.f32.mrb[0].mxu0
      %775 = vdwg.mxu0
      %v776 = vadd.f32 %v710, %v771
      %v777 = vld [vmem:[%s233] sm:$0xc]
      %v778 = vld [vmem:[%s233 + $0x4] sm:$0x1]
      %s779 = scalar_lea.vmem %s2, 128
      %v780 = vld [vmem:[%s779] sm:$0xf]
      %v781 = vld [vmem:[%s779 + $0x4] sm:$0xf]
      %v782 = vld [vmem:[%s779 + $0x8] sm:$0xf]
      %v783 = vld [vmem:[%s779 + $0xc] sm:$0xf]
      %v786 = vunpack.c.l.b16 %v777
      %v787 = vunpack.c.l.b16 %v778
      %v788 = vpack.c.b16 %v787, %v786
      %v790 = vshrl.u32 %v788, 16
      %v792 = vrot.slane %v790, 2
      %v793 = vshll.u32 %v788, 16
      %v795 = vrot.slane %v793, 3
      %v796 = vor.u32 %v792, %v795
      %v801 = vunpack.c.l.b16 %v780
      %v802 = vunpack.c.l.b16 %v781
      %v803 = vunpack.c.l.b16 %v782
      %v804 = vunpack.c.l.b16 %v783
      %v805 = vpack.c.b16 %v802, %v801
      %v806 = vpack.c.b16 %v804, %v803
      %v810 = vsel %vm269, %v796, 0
      %812 = vmatprep.subr.bf16.mxu0 0
      %813 = vmatpush1.bf16.msra.mxu0 %v805
      %814 = vmatprep.subr.bf16.mxu0 0
      %815 = vmatpush1.bf16.msra.mxu0 %v806
      %816 = vmatprep.subr.bf16.mxu0 0
      %817 = vmatpush1.bf16.msra.mxu0 0
      %818 = vmatprep.subr.bf16.mxu0 0
      %819 = vmatpush1.bf16.msra.mxu0 0
      %820 = vmatprep.subr.bf16.mxu0 0
      %821 = vmatpush1.bf16.msra.mxu0 0
      %822 = vmatprep.subr.bf16.mxu0 0
      %823 = vmatpush1.bf16.msra.mxu0 0
      %824 = vmatprep.subr.bf16.mxu0 0
      %825 = vmatpush1.bf16.msra.mxu0 0
      %826 = vmatprep.subr.bf16.mxu0 0
      %827 = vmatpush1.bf16.msra.mxu0 0
      %828 = vmatprep.subr.bf16.mxu0 0
      %829 = vmatpush1.bf16.msra.mxu0 0
      %830 = vmatprep.subr.bf16.mxu0 0
      %831 = vmatpush1.bf16.msra.mxu0 0
      %832 = vmatprep.subr.bf16.mxu0 0
      %833 = vmatpush1.bf16.msra.mxu0 0
      %834 = vmatprep.subr.bf16.mxu0 0
      %835 = vmatpush1.bf16.msra.mxu0 0
      %836 = vmatprep.subr.bf16.mxu0 0
      %837 = vmatpush1.bf16.msra.mxu0 0
      %838 = vmatprep.subr.bf16.mxu0 0
      %839 = vmatpush1.bf16.msra.mxu0 0
      %840 = vmatprep.subr.bf16.mxu0 0
      %841 = vmatpush1.bf16.msra.mxu0 0
      %842 = vmatprep.subr.bf16.mxu0 0
      %843 = vmatpush1.bf16.msra.mxu0 0
      %844 = vmatprep.mubr.bf16.mxu0 0
      %845 = vmatmul.mubr.bf16.gmra.mrb[0].mxu0 %v810
      %v846 = vpop.f32.mrb[0].mxu0
      %v847 = vadd.f32 0.0, %v846
      %v848 = vpop.f32.mrb[0].mxu0
      %v849 = vpop.f32.mrb[0].mxu0
      %v850 = vpop.f32.mrb[0].mxu0
      %851 = vdwg.mxu0
      %v852 = vadd.f32 %v776, %v847
      %v854 = vlaneseq
      %v855 = vshrl.u32 %v854, 7
      %v856 = vsub.s32 0, %v855
      %v857 = vrot.slane %v244, %v856
      %v859 = vmul.f32 %v852, %v857
      %v861 = vlaneseq
      %v862 = vshrl.u32 %v861, 7
      %v863 = vsub.s32 0, %v862
      %v864 = vrot.slane %v245, %v863
      %v866 = vadd.f32 %v859, %v864
      %v867 = vmax.f32 %v866, 0.0
      %868 = vmatprep.subr.bf16.mxu0 0
      %869 = vmatpush1.bf16.msra.mxu0 %v265
      %870 = vmatprep.subr.bf16.mxu0 0
      %871 = vmatpush1.bf16.msra.mxu0 %v266
      %872 = vmatprep.subr.bf16.mxu0 0
      %873 = vmatpush1.bf16.msra.mxu0 0
      %874 = vmatprep.subr.bf16.mxu0 0
      %875 = vmatpush1.bf16.msra.mxu0 0
      %876 = vmatprep.subr.bf16.mxu0 0
      %877 = vmatpush1.bf16.msra.mxu0 0
      %878 = vmatprep.subr.bf16.mxu0 0
      %879 = vmatpush1.bf16.msra.mxu0 0
      %880 = vmatprep.subr.bf16.mxu0 0
      %881 = vmatpush1.bf16.msra.mxu0 0
      %882 = vmatprep.subr.bf16.mxu0 0
      %883 = vmatpush1.bf16.msra.mxu0 0
      %884 = vmatprep.subr.bf16.mxu0 0
      %885 = vmatpush1.bf16.msra.mxu0 0
      %886 = vmatprep.subr.bf16.mxu0 0
      %887 = vmatpush1.bf16.msra.mxu0 0
      %888 = vmatprep.subr.bf16.mxu0 0
      %889 = vmatpush1.bf16.msra.mxu0 0
      %890 = vmatprep.subr.bf16.mxu0 0
      %891 = vmatpush1.bf16.msra.mxu0 0
      %892 = vmatprep.subr.bf16.mxu0 0
      %893 = vmatpush1.bf16.msra.mxu0 0
      %894 = vmatprep.subr.bf16.mxu0 0
      %895 = vmatpush1.bf16.msra.mxu0 0
      %896 = vmatprep.subr.bf16.mxu0 0
      %897 = vmatpush1.bf16.msra.mxu0 0
      %898 = vmatprep.subr.bf16.mxu0 0
      %899 = vmatpush1.bf16.msra.mxu0 0
      %900 = vmatprep.mubr.bf16.mxu0 0
      %901 = vmatmul.mubr.bf16.gmra.mrb[0].mxu0 %v397
      %v902 = vpop.f32.mrb[0].mxu0
      %v903 = vadd.f32 0.0, %v902
      %v904 = vpop.f32.mrb[0].mxu0
      %v905 = vpop.f32.mrb[0].mxu0
      %v906 = vpop.f32.mrb[0].mxu0
      %907 = vdwg.mxu0
      %908 = vmatprep.subr.bf16.mxu0 0
      %909 = vmatpush1.bf16.msra.mxu0 %v321
      %910 = vmatprep.subr.bf16.mxu0 0
      %911 = vmatpush1.bf16.msra.mxu0 %v322
      %912 = vmatprep.subr.bf16.mxu0 0
      %913 = vmatpush1.bf16.msra.mxu0 0
      %914 = vmatprep.subr.bf16.mxu0 0
      %915 = vmatpush1.bf16.msra.mxu0 0
      %916 = vmatprep.subr.bf16.mxu0 0
      %917 = vmatpush1.bf16.msra.mxu0 0
      %918 = vmatprep.subr.bf16.mxu0 0
      %919 = vmatpush1.bf16.msra.mxu0 0
      %920 = vmatprep.subr.bf16.mxu0 0
      %921 = vmatpush1.bf16.msra.mxu0 0
      %922 = vmatprep.subr.bf16.mxu0 0
      %923 = vmatpush1.bf16.msra.mxu0 0
      %924 = vmatprep.subr.bf16.mxu0 0
      %925 = vmatpush1.bf16.msra.mxu0 0
      %926 = vmatprep.subr.bf16.mxu0 0
      %927 = vmatpush1.bf16.msra.mxu0 0
      %928 = vmatprep.subr.bf16.mxu0 0
      %929 = vmatpush1.bf16.msra.mxu0 0
      %930 = vmatprep.subr.bf16.mxu0 0
      %931 = vmatpush1.bf16.msra.mxu0 0
      %932 = vmatprep.subr.bf16.mxu0 0
      %933 = vmatpush1.bf16.msra.mxu0 0
      %934 = vmatprep.subr.bf16.mxu0 0
      %935 = vmatpush1.bf16.msra.mxu0 0
      %936 = vmatprep.subr.bf16.mxu0 0
      %937 = vmatpush1.bf16.msra.mxu0 0
      %938 = vmatprep.subr.bf16.mxu0 0
      %939 = vmatpush1.bf16.msra.mxu0 0
      %940 = vmatprep.mubr.bf16.mxu0 0
      %941 = vmatmul.mubr.bf16.gmra.mrb[0].mxu0 %v271
      %v942 = vpop.f32.mrb[0].mxu0
      %v943 = vadd.f32 %v903, %v942
      %v944 = vpop.f32.mrb[0].mxu0
      %v945 = vpop.f32.mrb[0].mxu0
      %v946 = vpop.f32.mrb[0].mxu0
      %947 = vdwg.mxu0
      %v948 = vld [vmem:[%s238] sm:$0x7]
      %v950 = vunpack.c.l.b16 %v948
      %v951 = vpack.c.b16 %v950, %v950
      %v953 = vshrl.u32 %v951, 16
      %v955 = vshll.u32 %v951, 16
      %v957 = vrot.slane %v955, 1
      %v958 = vor.u32 %v953, %v957
      %v960 = vsel %vm269, %v958, 0
      %962 = vmatprep.subr.bf16.mxu0 0
      %963 = vmatpush1.bf16.msra.mxu0 %v392
      %964 = vmatprep.subr.bf16.mxu0 0
      %965 = vmatpush1.bf16.msra.mxu0 %v393
      %966 = vmatprep.subr.bf16.mxu0 0
      %967 = vmatpush1.bf16.msra.mxu0 0
      %968 = vmatprep.subr.bf16.mxu0 0
      %969 = vmatpush1.bf16.msra.mxu0 0
      %970 = vmatprep.subr.bf16.mxu0 0
      %971 = vmatpush1.bf16.msra.mxu0 0
      %972 = vmatprep.subr.bf16.mxu0 0
      %973 = vmatpush1.bf16.msra.mxu0 0
      %974 = vmatprep.subr.bf16.mxu0 0
      %975 = vmatpush1.bf16.msra.mxu0 0
      %976 = vmatprep.subr.bf16.mxu0 0
      %977 = vmatpush1.bf16.msra.mxu0 0
      %978 = vmatprep.subr.bf16.mxu0 0
      %979 = vmatpush1.bf16.msra.mxu0 0
      %980 = vmatprep.subr.bf16.mxu0 0
      %981 = vmatpush1.bf16.msra.mxu0 0
      %982 = vmatprep.subr.bf16.mxu0 0
      %983 = vmatpush1.bf16.msra.mxu0 0
      %984 = vmatprep.subr.bf16.mxu0 0
      %985 = vmatpush1.bf16.msra.mxu0 0
      %986 = vmatprep.subr.bf16.mxu0 0
      %987 = vmatpush1.bf16.msra.mxu0 0
      %988 = vmatprep.subr.bf16.mxu0 0
      %989 = vmatpush1.bf16.msra.mxu0 0
      %990 = vmatprep.subr.bf16.mxu0 0
      %991 = vmatpush1.bf16.msra.mxu0 0
      %992 = vmatprep.subr.bf16.mxu0 0
      %993 = vmatpush1.bf16.msra.mxu0 0
      %994 = vmatprep.mubr.bf16.mxu0 0
      %995 = vmatmul.mubr.bf16.gmra.mrb[0].mxu0 %v960
      %v996 = vpop.f32.mrb[0].mxu0
      %v997 = vadd.f32 0.0, %v996
      %v998 = vpop.f32.mrb[0].mxu0
      %v999 = vpop.f32.mrb[0].mxu0
      %v1000 = vpop.f32.mrb[0].mxu0
      %1001 = vdwg.mxu0
      %v1002 = vadd.f32 %v943, %v997
      %1003 = vmatprep.subr.bf16.mxu0 0
      %1004 = vmatpush1.bf16.msra.mxu0 %v458
      %1005 = vmatprep.subr.bf16.mxu0 0
      %1006 = vmatpush1.bf16.msra.mxu0 %v459
      %1007 = vmatprep.subr.bf16.mxu0 0
      %1008 = vmatpush1.bf16.msra.mxu0 0
      %1009 = vmatprep.subr.bf16.mxu0 0
      %1010 = vmatpush1.bf16.msra.mxu0 0
      %1011 = vmatprep.subr.bf16.mxu0 0
      %1012 = vmatpush1.bf16.msra.mxu0 0
      %1013 = vmatprep.subr.bf16.mxu0 0
      %1014 = vmatpush1.bf16.msra.mxu0 0
      %1015 = vmatprep.subr.bf16.mxu0 0
      %1016 = vmatpush1.bf16.msra.mxu0 0
      %1017 = vmatprep.subr.bf16.mxu0 0
      %1018 = vmatpush1.bf16.msra.mxu0 0
      %1019 = vmatprep.subr.bf16.mxu0 0
      %1020 = vmatpush1.bf16.msra.mxu0 0
      %1021 = vmatprep.subr.bf16.mxu0 0
      %1022 = vmatpush1.bf16.msra.mxu0 0
      %1023 = vmatprep.subr.bf16.mxu0 0
      %1024 = vmatpush1.bf16.msra.mxu0 0
      %1025 = vmatprep.subr.bf16.mxu0 0
      %1026 = vmatpush1.bf16.msra.mxu0 0
      %1027 = vmatprep.subr.bf16.mxu0 0
      %1028 = vmatpush1.bf16.msra.mxu0 0
      %1029 = vmatprep.subr.bf16.mxu0 0
      %1030 = vmatpush1.bf16.msra.mxu0 0
      %1031 = vmatprep.subr.bf16.mxu0 0
      %1032 = vmatpush1.bf16.msra.mxu0 0
      %1033 = vmatprep.subr.bf16.mxu0 0
      %1034 = vmatpush1.bf16.msra.mxu0 0
      %1035 = vmatprep.mubr.bf16.mxu0 0
      %1036 = vmatmul.mubr.bf16.gmra.mrb[0].mxu0 %v529
      %v1037 = vpop.f32.mrb[0].mxu0
      %v1038 = vadd.f32 0.0, %v1037
      %v1039 = vpop.f32.mrb[0].mxu0
      %v1040 = vpop.f32.mrb[0].mxu0
      %v1041 = vpop.f32.mrb[0].mxu0
      %1042 = vdwg.mxu0
      %v1043 = vadd.f32 %v1002, %v1038
      %1044 = vmatprep.subr.bf16.mxu0 0
      %1045 = vmatpush1.bf16.msra.mxu0 %v524
      %1046 = vmatprep.subr.bf16.mxu0 0
      %1047 = vmatpush1.bf16.msra.mxu0 %v525
      %1048 = vmatprep.subr.bf16.mxu0 0
      %1049 = vmatpush1.bf16.msra.mxu0 0
      %1050 = vmatprep.subr.bf16.mxu0 0
      %1051 = vmatpush1.bf16.msra.mxu0 0
      %1052 = vmatprep.subr.bf16.mxu0 0
      %1053 = vmatpush1.bf16.msra.mxu0 0
      %1054 = vmatprep.subr.bf16.mxu0 0
      %1055 = vmatpush1.bf16.msra.mxu0 0
      %1056 = vmatprep.subr.bf16.mxu0 0
      %1057 = vmatpush1.bf16.msra.mxu0 0
      %1058 = vmatprep.subr.bf16.mxu0 0
      %1059 = vmatpush1.bf16.msra.mxu0 0
      %1060 = vmatprep.subr.bf16.mxu0 0
      %1061 = vmatpush1.bf16.msra.mxu0 0
      %1062 = vmatprep.subr.bf16.mxu0 0
      %1063 = vmatpush1.bf16.msra.mxu0 0
      %1064 = vmatprep.subr.bf16.mxu0 0
      %1065 = vmatpush1.bf16.msra.mxu0 0
      %1066 = vmatprep.subr.bf16.mxu0 0
      %1067 = vmatpush1.bf16.msra.mxu0 0
      %1068 = vmatprep.subr.bf16.mxu0 0
      %1069 = vmatpush1.bf16.msra.mxu0 0
      %1070 = vmatprep.subr.bf16.mxu0 0
      %1071 = vmatpush1.bf16.msra.mxu0 0
      %1072 = vmatprep.subr.bf16.mxu0 0
      %1073 = vmatpush1.bf16.msra.mxu0 0
      %1074 = vmatprep.subr.bf16.mxu0 0
      %1075 = vmatpush1.bf16.msra.mxu0 0
      %1076 = vmatprep.mubr.bf16.mxu0 0
      %1077 = vmatmul.mubr.bf16.gmra.mrb[0].mxu0 %v602
      %v1078 = vpop.f32.mrb[0].mxu0
      %v1079 = vadd.f32 0.0, %v1078
      %v1080 = vpop.f32.mrb[0].mxu0
      %v1081 = vpop.f32.mrb[0].mxu0
      %v1082 = vpop.f32.mrb[0].mxu0
      %1083 = vdwg.mxu0
      %v1084 = vadd.f32 %v1043, %v1079
      %v1085 = vld [vmem:[%s238] sm:$0xe]
      %v1087 = vunpack.c.l.b16 %v1085
      %v1088 = vpack.c.b16 %v1087, %v1087
      %v1090 = vshrl.u32 %v1088, 16
      %v1092 = vrot.slane %v1090, 1
      %v1093 = vshll.u32 %v1088, 16
      %v1095 = vrot.slane %v1093, 2
      %v1096 = vor.u32 %v1092, %v1095
      %v1098 = vsel %vm269, %v1096, 0
      %1100 = vmatprep.subr.bf16.mxu0 0
      %1101 = vmatpush1.bf16.msra.mxu0 %v597
      %1102 = vmatprep.subr.bf16.mxu0 0
      %1103 = vmatpush1.bf16.msra.mxu0 %v598
      %1104 = vmatprep.subr.bf16.mxu0 0
      %1105 = vmatpush1.bf16.msra.mxu0 0
      %1106 = vmatprep.subr.bf16.mxu0 0
      %1107 = vmatpush1.bf16.msra.mxu0 0
      %1108 = vmatprep.subr.bf16.mxu0 0
      %1109 = vmatpush1.bf16.msra.mxu0 0
      %1110 = vmatprep.subr.bf16.mxu0 0
      %1111 = vmatpush1.bf16.msra.mxu0 0
      %1112 = vmatprep.subr.bf16.mxu0 0
      %1113 = vmatpush1.bf16.msra.mxu0 0
      %1114 = vmatprep.subr.bf16.mxu0 0
      %1115 = vmatpush1.bf16.msra.mxu0 0
      %1116 = vmatprep.subr.bf16.mxu0 0
      %1117 = vmatpush1.bf16.msra.mxu0 0
      %1118 = vmatprep.subr.bf16.mxu0 0
      %1119 = vmatpush1.bf16.msra.mxu0 0
      %1120 = vmatprep.subr.bf16.mxu0 0
      %1121 = vmatpush1.bf16.msra.mxu0 0
      %1122 = vmatprep.subr.bf16.mxu0 0
      %1123 = vmatpush1.bf16.msra.mxu0 0
      %1124 = vmatprep.subr.bf16.mxu0 0
      %1125 = vmatpush1.bf16.msra.mxu0 0
      %1126 = vmatprep.subr.bf16.mxu0 0
      %1127 = vmatpush1.bf16.msra.mxu0 0
      %1128 = vmatprep.subr.bf16.mxu0 0
      %1129 = vmatpush1.bf16.msra.mxu0 0
      %1130 = vmatprep.subr.bf16.mxu0 0
      %1131 = vmatpush1.bf16.msra.mxu0 0
      %1132 = vmatprep.mubr.bf16.mxu0 0
      %1133 = vmatmul.mubr.bf16.gmra.mrb[0].mxu0 %v1098
      %v1134 = vpop.f32.mrb[0].mxu0
      %v1135 = vadd.f32 0.0, %v1134
      %v1136 = vpop.f32.mrb[0].mxu0
      %v1137 = vpop.f32.mrb[0].mxu0
      %v1138 = vpop.f32.mrb[0].mxu0
      %1139 = vdwg.mxu0
      %v1140 = vadd.f32 %v1084, %v1135
      %1141 = vmatprep.subr.bf16.mxu0 0
      %1142 = vmatpush1.bf16.msra.mxu0 %v663
      %1143 = vmatprep.subr.bf16.mxu0 0
      %1144 = vmatpush1.bf16.msra.mxu0 %v664
      %1145 = vmatprep.subr.bf16.mxu0 0
      %1146 = vmatpush1.bf16.msra.mxu0 0
      %1147 = vmatprep.subr.bf16.mxu0 0
      %1148 = vmatpush1.bf16.msra.mxu0 0
      %1149 = vmatprep.subr.bf16.mxu0 0
      %1150 = vmatpush1.bf16.msra.mxu0 0
      %1151 = vmatprep.subr.bf16.mxu0 0
      %1152 = vmatpush1.bf16.msra.mxu0 0
      %1153 = vmatprep.subr.bf16.mxu0 0
      %1154 = vmatpush1.bf16.msra.mxu0 0
      %1155 = vmatprep.subr.bf16.mxu0 0
      %1156 = vmatpush1.bf16.msra.mxu0 0
      %1157 = vmatprep.subr.bf16.mxu0 0
      %1158 = vmatpush1.bf16.msra.mxu0 0
      %1159 = vmatprep.subr.bf16.mxu0 0
      %1160 = vmatpush1.bf16.msra.mxu0 0
      %1161 = vmatprep.subr.bf16.mxu0 0
      %1162 = vmatpush1.bf16.msra.mxu0 0
      %1163 = vmatprep.subr.bf16.mxu0 0
      %1164 = vmatpush1.bf16.msra.mxu0 0
      %1165 = vmatprep.subr.bf16.mxu0 0
      %1166 = vmatpush1.bf16.msra.mxu0 0
      %1167 = vmatprep.subr.bf16.mxu0 0
      %1168 = vmatpush1.bf16.msra.mxu0 0
      %1169 = vmatprep.subr.bf16.mxu0 0
      %1170 = vmatpush1.bf16.msra.mxu0 0
      %1171 = vmatprep.subr.bf16.mxu0 0
      %1172 = vmatpush1.bf16.msra.mxu0 0
      %1173 = vmatprep.mubr.bf16.mxu0 0
      %1174 = vmatmul.mubr.bf16.gmra.mrb[0].mxu0 %v734
      %v1175 = vpop.f32.mrb[0].mxu0
      %v1176 = vadd.f32 0.0, %v1175
      %v1177 = vpop.f32.mrb[0].mxu0
      %v1178 = vpop.f32.mrb[0].mxu0
      %v1179 = vpop.f32.mrb[0].mxu0
      %1180 = vdwg.mxu0
      %v1181 = vadd.f32 %v1140, %v1176
      %1182 = vmatprep.subr.bf16.mxu0 0
      %1183 = vmatpush1.bf16.msra.mxu0 %v729
      %1184 = vmatprep.subr.bf16.mxu0 0
      %1185 = vmatpush1.bf16.msra.mxu0 %v730
      %1186 = vmatprep.subr.bf16.mxu0 0
      %1187 = vmatpush1.bf16.msra.mxu0 0
      %1188 = vmatprep.subr.bf16.mxu0 0
      %1189 = vmatpush1.bf16.msra.mxu0 0
      %1190 = vmatprep.subr.bf16.mxu0 0
      %1191 = vmatpush1.bf16.msra.mxu0 0
      %1192 = vmatprep.subr.bf16.mxu0 0
      %1193 = vmatpush1.bf16.msra.mxu0 0
      %1194 = vmatprep.subr.bf16.mxu0 0
      %1195 = vmatpush1.bf16.msra.mxu0 0
      %1196 = vmatprep.subr.bf16.mxu0 0
      %1197 = vmatpush1.bf16.msra.mxu0 0
      %1198 = vmatprep.subr.bf16.mxu0 0
      %1199 = vmatpush1.bf16.msra.mxu0 0
      %1200 = vmatprep.subr.bf16.mxu0 0
      %1201 = vmatpush1.bf16.msra.mxu0 0
      %1202 = vmatprep.subr.bf16.mxu0 0
      %1203 = vmatpush1.bf16.msra.mxu0 0
      %1204 = vmatprep.subr.bf16.mxu0 0
      %1205 = vmatpush1.bf16.msra.mxu0 0
      %1206 = vmatprep.subr.bf16.mxu0 0
      %1207 = vmatpush1.bf16.msra.mxu0 0
      %1208 = vmatprep.subr.bf16.mxu0 0
      %1209 = vmatpush1.bf16.msra.mxu0 0
      %1210 = vmatprep.subr.bf16.mxu0 0
      %1211 = vmatpush1.bf16.msra.mxu0 0
      %1212 = vmatprep.subr.bf16.mxu0 0
      %1213 = vmatpush1.bf16.msra.mxu0 0
      %1214 = vmatprep.mubr.bf16.mxu0 0
      %1215 = vmatmul.mubr.bf16.gmra.mrb[0].mxu0 %v810
      %v1216 = vpop.f32.mrb[0].mxu0
      %v1217 = vadd.f32 0.0, %v1216
      %v1218 = vpop.f32.mrb[0].mxu0
      %v1219 = vpop.f32.mrb[0].mxu0
      %v1220 = vpop.f32.mrb[0].mxu0
      %1221 = vdwg.mxu0
      %v1222 = vadd.f32 %v1181, %v1217
      %v1223 = vld [vmem:[%s238] sm:$0xc]
      %v1224 = vld [vmem:[%s238 + $0x4] sm:$0x1]
      %v1227 = vunpack.c.l.b16 %v1223
      %v1228 = vunpack.c.l.b16 %v1224
      %v1229 = vpack.c.b16 %v1228, %v1227
      %v1231 = vshrl.u32 %v1229, 16
      %v1233 = vrot.slane %v1231, 2
      %v1234 = vshll.u32 %v1229, 16
      %v1236 = vrot.slane %v1234, 3
      %v1237 = vor.u32 %v1233, %v1236
      %v1239 = vsel %vm269, %v1237, 0
      %1241 = vmatprep.subr.bf16.mxu0 0
      %1242 = vmatpush1.bf16.msra.mxu0 %v805
      %1243 = vmatprep.subr.bf16.mxu0 0
      %1244 = vmatpush1.bf16.msra.mxu0 %v806
      %1245 = vmatprep.subr.bf16.mxu0 0
      %1246 = vmatpush1.bf16.msra.mxu0 0
      %1247 = vmatprep.subr.bf16.mxu0 0
      %1248 = vmatpush1.bf16.msra.mxu0 0
      %1249 = vmatprep.subr.bf16.mxu0 0
      %1250 = vmatpush1.bf16.msra.mxu0 0
      %1251 = vmatprep.subr.bf16.mxu0 0
      %1252 = vmatpush1.bf16.msra.mxu0 0
      %1253 = vmatprep.subr.bf16.mxu0 0
      %1254 = vmatpush1.bf16.msra.mxu0 0
      %1255 = vmatprep.subr.bf16.mxu0 0
      %1256 = vmatpush1.bf16.msra.mxu0 0
      %1257 = vmatprep.subr.bf16.mxu0 0
      %1258 = vmatpush1.bf16.msra.mxu0 0
      %1259 = vmatprep.subr.bf16.mxu0 0
      %1260 = vmatpush1.bf16.msra.mxu0 0
      %1261 = vmatprep.subr.bf16.mxu0 0
      %1262 = vmatpush1.bf16.msra.mxu0 0
      %1263 = vmatprep.subr.bf16.mxu0 0
      %1264 = vmatpush1.bf16.msra.mxu0 0
      %1265 = vmatprep.subr.bf16.mxu0 0
      %1266 = vmatpush1.bf16.msra.mxu0 0
      %1267 = vmatprep.subr.bf16.mxu0 0
      %1268 = vmatpush1.bf16.msra.mxu0 0
      %1269 = vmatprep.subr.bf16.mxu0 0
      %1270 = vmatpush1.bf16.msra.mxu0 0
      %1271 = vmatprep.subr.bf16.mxu0 0
      %1272 = vmatpush1.bf16.msra.mxu0 0
      %1273 = vmatprep.mubr.bf16.mxu0 0
      %1274 = vmatmul.mubr.bf16.gmra.mrb[0].mxu0 %v1239
      %v1275 = vpop.f32.mrb[0].mxu0
      %v1276 = vadd.f32 0.0, %v1275
      %v1277 = vpop.f32.mrb[0].mxu0
      %v1278 = vpop.f32.mrb[0].mxu0
      %v1279 = vpop.f32.mrb[0].mxu0
      %1280 = vdwg.mxu0
      %v1281 = vadd.f32 %v1222, %v1276
      %v1282 = vmul.f32 %v1281, %v857
      %v1283 = vadd.f32 %v1282, %v864
      %v1284 = vmax.f32 %v1283, 0.0
      %v1285 = vmax.f32 %v867, %v1284
      %vm1286 = vcmask 257024
      %1287 = vst.msk [vmem:[%s242] sm:$0xf] %vm1286, %v1285
      %p1288 = scmp.lt.s32.totalorder %s16, 19
      %s1289 = scalar_select %p1288, %s16, 19
      %s1290 = smul.addr %s1289, 4
      %s1291 = scalar_lea.vmem %s5, %s1290
      // Predicated region
      $region41: #{_lambda_.11} parent=39 // pred_check
        %p1292 = pneg %p149
      $region42: #{_lambda_.11} parent=39 // pred_check_branch
        %1294 = sbr.rel (%p1292) target = $region44
      $region43: #{_lambda_.11} parent=39 // pred_region
        _
      $region44: #{_lambda_.11} parent=39 // pred_fallthru
        _
    $region40: #{_lambda_.11} parent=5 // pred_fallthru
      _
    %p1295 = scmp.le.s32.totalorder 2, %s11
    // Predicated region
    $region45: #{_lambda_.11} parent=5 // pred_check
      %p1296 = pneg %p1295
    $region46: #{_lambda_.11} parent=5 // pred_check_branch
      %1298 = sbr.rel (%p1296) target = $region48
    $region47: #{_lambda_.11} parent=5 // pred_region
      %s1299 = ssub.s32 %s11, 2
      // Predicated region
      $region49: #{_lambda_.11} parent=47 // pred_check
        %p1300 = pneg %p155
      $region50: #{_lambda_.11} parent=47 // pred_check_branch
        %1302 = sbr.rel (%p1300) target = $region52
      $region51: #{_lambda_.11} parent=47 // pred_region
        %p1303 = scmp.lt.s32.totalorder %s17, 19
        %s1304 = scalar_select %p1303, %s17, 19
        %s1305 = smul.addr %s1304, 4
        %s1306 = scalar_lea.vmem %s5, %s1305
      $region52: #{_lambda_.11} parent=47 // pred_fallthru
        _
    $region48: #{_lambda_.11} parent=5 // pred_fallthru
      _
  $region6: #{_lambda_.11} parent=0 // loop_footer
    %s15 = sadd.s32 1, %s11
  $region7: #{_lambda_.11} parent=0 // loop_footer_branch
    %10 = sbr.rel target = $region3
  $region8: #{_lambda_.11} parent=0 // loop_exit
    _

// kernel: _lambda_.13
$region0: #{_lambda_.13}
  #allocation0 [shape = 'u32[]', space=smem, size = 0x4, offset = 0x4, fixed_abs, tag = 'smem constant byte address 0x4 - core index']
  #allocation1 [shape = 'u32[144,128]{1,0:T(1,128)}', space=vmem, size = 0x12000, scoped, tag = 'internal scratch']
  %s0 = inlined_call_operand.vmem [shape: f32[5,32], index: 0, kind: input, shape index: {}]
  %s1 = inlined_call_operand.vmem [shape: f32[32,15], index: 1, kind: input, shape index: {}]
  %s2 = inlined_call_operand.vmem [shape: f32[5,1], index: 2, kind: input, shape index: {}]
  %s3 = inlined_call_operand.vmem [shape: f32[5,15], index: 3, kind: output, shape index: {}]
  %s4 = sld [smem:[#allocation0]]
  $region22: #{_lambda_.13} parent=0
    _
  %s6 = ssub.s32 1, %s4
  %s7 = scalar_select 0, %s6, %s4
  // Predicated region
  $region2: #{_lambda_.13} parent=0 // pred_check
    _
  $region3: #{_lambda_.13} parent=0 // pred_check_branch
    %9 = sbr.rel (0) target = $region5
  $region4: #{_lambda_.13} parent=0 // pred_region
    _
  $region5: #{_lambda_.13} parent=0 // pred_fallthru
    _
  // Predicated region
  $region6: #{_lambda_.13} parent=0 // pred_check
    _
  $region7: #{_lambda_.13} parent=0 // pred_check_branch
    %11 = sbr.rel (0) target = $region9
  $region8: #{_lambda_.13} parent=0 // pred_region
    _
  $region9: #{_lambda_.13} parent=0 // pred_fallthru
    _
  // Predicated region
  $region10: #{_lambda_.13} parent=0 // pred_check
    _
  $region11: #{_lambda_.13} parent=0 // pred_check_branch
    %13 = sbr.rel (0) target = $region13
  $region12: #{_lambda_.13} parent=0 // pred_region
    _
  $region13: #{_lambda_.13} parent=0 // pred_fallthru
    _
  %v14 = vld [vmem:[%s0] sm:$0x1f]
  %v15 = vld [vmem:[%s1] sm:$0xff]
  %v16 = vld [vmem:[%s1 + $0x8] sm:$0xff]
  %v17 = vld [vmem:[%s1 + $0x10] sm:$0xff]
  %v18 = vld [vmem:[%s1 + $0x18] sm:$0xff]
  %v19 = vld [vmem:[%s2] sm:$0x1f]
  %v20 = vrsqrt.pop %v19
  %v21 = vmul.f32 %v19, %v20
  %vm22 = vcmp.eq.f32.partialorder %v19, inf
  %v23 = vsel %vm22, %v19, %v21
  %vm24 = vcmp.eq.f32.partialorder %v19, 0.0
  %v25 = vand.u32 %v19, 2147483648
  %v26 = vsel %vm24, %v25, %v23
  %v27 = vrsqrt.pop %v19
  %v28 = vmul.f32 %v27, 0.996
  %v29 = vmul.f32 %v14, %v14
  %vm30 = vcmask 258048
  %v31 = vsel %vm30, %v29, 0.0
  %32 = vadd.xlane.f32.xlu0 %v31
  %v33 = vpop.xlane.xlu0 %32
  %v34 = vrsqrt.pop %v33
  %v35 = vmul.f32 %v33, %v34
  %vm36 = vcmp.eq.f32.partialorder %v33, inf
  %v37 = vsel %vm36, %v33, %v35
  %vm38 = vcmp.eq.f32.partialorder %v33, 0.0
  %v39 = vand.u32 %v33, 2147483648
  %v40 = vsel %vm38, %v39, %v37
  %v41 = vmax.f32 %v40, 1e-05
  %v42 = vmul.f32 %v26, %v41
  %v43 = vtanh.pop %v42
  %v44 = vrcp.pop %v42
  %v45 = vmul.f32 %v43, %v44
  %v46 = vmul.f32 %v45, %v40
  %v47 = vmax.f32 %v46, 1e-05
  %vm48 = vcmp.gt.f32.partialorder %v47, %v28
  %v49 = vrcp.pop %v47
  %v50 = vmul.f32 %v28, %v49
  %v51 = vsel %vm48, %v50, 1.0
  %v52 = vmul.f32 %v45, %v51
  %v53 = vmul.f32 %v52, %v52
  %v54 = vmul.f32 %v53, %v33
  %v55 = vmul.f32 %v15, %v15
  %v56 = vmul.f32 %v16, %v16
  %v57 = vmul.f32 %v17, %v17
  %v58 = vmul.f32 %v18, %v18
  %vm59 = vcmask 121856
  %v60 = vsel %vm59, %v55, 0.0
  %v61 = vsel %vm59, %v56, 0.0
  %v62 = vadd.f32 %v60, %v61
  %v63 = vsel %vm59, %v57, 0.0
  %v64 = vadd.f32 %v62, %v63
  %v65 = vsel %vm59, %v58, 0.0
  %v66 = vadd.f32 %v64, %v65
  %v67 = vrot.slane %v66, 4
  %v68 = vadd.f32 %v66, %v67
  %v69 = vrot.slane %v68, 2
  %v70 = vadd.f32 %v68, %v69
  %v71 = vrot.slane %v70, 1
  %v72 = vadd.f32 %v70, %v71
  %v73 = vrsqrt.pop %v72
  %v74 = vmul.f32 %v72, %v73
  %vm75 = vcmp.eq.f32.partialorder %v72, inf
  %v76 = vsel %vm75, %v72, %v74
  %vm77 = vcmp.eq.f32.partialorder %v72, 0.0
  %v78 = vand.u32 %v72, 2147483648
  %v79 = vsel %vm77, %v78, %v76
  %v80 = vmax.f32 %v79, 1e-05
  %82 = vset.pattern.permute.xlu0 0
  %83 = vperm.xlu0 %82, %v26
  %v84 = vpop.permute.xlu0 %83
  %v86 = vmul.f32 %v84, %v80
  %v87 = vtanh.pop %v86
  %v88 = vrcp.pop %v86
  %v89 = vmul.f32 %v87, %v88
  %v90 = vmul.f32 %v89, %v79
  %v91 = vmax.f32 %v90, 1e-05
  %93 = vset.pattern.permute.xlu0 0
  %94 = vperm.xlu0 %93, %v28
  %v95 = vpop.permute.xlu0 %94
  %vm97 = vcmp.gt.f32.partialorder %v91, %v95
  %v98 = vrcp.pop %v91
  %v99 = vmul.f32 %v95, %v98
  %v100 = vsel %vm97, %v99, 1.0
  %v101 = vmul.f32 %v89, %v100
  %v102 = vmul.f32 %v101, %v101
  %v103 = vmul.f32 %v102, %v72
  %vm104 = vcmask 261120
  %v106 = vsel %vm104, %v14, 0
  %108 = vmatprep.subr.mxu0 0.0
  %109 = vmatpush1.msra.mxu0 %v15
  %110 = vmatprep.subr.mxu0 0.0
  %111 = vmatpush1.msra.mxu0 %v16
  %112 = vmatprep.subr.mxu0 0.0
  %113 = vmatpush1.msra.mxu0 %v17
  %114 = vmatprep.subr.mxu0 0.0
  %115 = vmatpush1.msra.mxu0 %v18
  %116 = vmatprep.subr.mxu0 0.0
  %117 = vmatpush1.msra.mxu0 0.0
  %118 = vmatprep.subr.mxu0 0.0
  %119 = vmatpush1.msra.mxu0 0.0
  %120 = vmatprep.subr.mxu0 0.0
  %121 = vmatpush1.msra.mxu0 0.0
  %122 = vmatprep.subr.mxu0 0.0
  %123 = vmatpush1.msra.mxu0 0.0
  %124 = vmatprep.subr.mxu0 0.0
  %125 = vmatpush1.msra.mxu0 0.0
  %126 = vmatprep.subr.mxu0 0.0
  %127 = vmatpush1.msra.mxu0 0.0
  %128 = vmatprep.subr.mxu0 0.0
  %129 = vmatpush1.msra.mxu0 0.0
  %130 = vmatprep.subr.mxu0 0.0
  %131 = vmatpush1.msra.mxu0 0.0
  %132 = vmatprep.subr.mxu0 0.0
  %133 = vmatpush1.msra.mxu0 0.0
  %134 = vmatprep.subr.mxu0 0.0
  %135 = vmatpush1.msra.mxu0 0.0
  %136 = vmatprep.subr.mxu0 0.0
  %137 = vmatpush1.msra.mxu0 0.0
  %138 = vmatprep.subr.mxu0 0.0
  %139 = vmatpush1.msra.mxu0 0.0
  %140 = vmatprep.subr.mxu0 0.0
  %141 = vmatpush1.msra.mxu0 0.0
  %142 = vmatprep.subr.mxu0 0.0
  %143 = vmatpush1.msra.mxu0 0.0
  %144 = vmatprep.subr.mxu0 0.0
  %145 = vmatpush1.msra.mxu0 0.0
  %146 = vmatprep.subr.mxu0 0.0
  %147 = vmatpush1.msra.mxu0 0.0
  %148 = vmatprep.subr.mxu0 0.0
  %149 = vmatpush1.msra.mxu0 0.0
  %150 = vmatprep.subr.mxu0 0.0
  %151 = vmatpush1.msra.mxu0 0.0
  %152 = vmatprep.subr.mxu0 0.0
  %153 = vmatpush1.msra.mxu0 0.0
  %154 = vmatprep.subr.mxu0 0.0
  %155 = vmatpush1.msra.mxu0 0.0
  %156 = vmatprep.subr.mxu0 0.0
  %157 = vmatpush1.msra.mxu0 0.0
  %158 = vmatprep.subr.mxu0 0.0
  %159 = vmatpush1.msra.mxu0 0.0
  %160 = vmatprep.subr.mxu0 0.0
  %161 = vmatpush1.msra.mxu0 0.0
  %162 = vmatprep.subr.mxu0 0.0
  %163 = vmatpush1.msra.mxu0 0.0
  %164 = vmatprep.subr.mxu0 0.0
  %165 = vmatpush1.msra.mxu0 0.0
  %166 = vmatprep.subr.mxu0 0.0
  %167 = vmatpush1.msra.mxu0 0.0
  %168 = vmatprep.subr.mxu0 0.0
  %169 = vmatpush1.msra.mxu0 0.0
  %170 = vmatprep.subr.mxu0 0.0
  %171 = vmatpush1.msra.mxu0 0.0
  %172 = vmatprep.mubr.f32.mxu0 0.0
  %173 = vmatmul.mubr.f32.gmra.mrb[0].mxu0 %v106
  %v174 = vpop.f32.mrb[0].mxu0
  %v175 = vadd.f32 0.0, %v174
  %v176 = vpop.f32.mrb[0].mxu0
  %177 = vdwg.mxu0
  %179 = vset.pattern.permute.xlu0 0
  %180 = vperm.xlu0 %179, %v52
  %v181 = vpop.permute.xlu0 %180
  %v183 = vmul.f32 %v181, %v101
  %v184 = vmul.f32 %v183, %v175
  %v185 = vmul.f32 %v19, 2.0
  %187 = vset.pattern.permute.xlu0 0
  %188 = vperm.xlu0 %187, %v185
  %v189 = vpop.permute.xlu0 %188
  %v191 = vmul.f32 %v189, %v184
  %v192 = vsub.f32 1.0, %v191
  %194 = vset.pattern.permute.xlu0 0
  %195 = vperm.xlu0 %194, %v19
  %v196 = vpop.permute.xlu0 %195
  %v198 = vmul.f32 %v196, %v103
  %v199 = vadd.f32 %v192, %v198
  %v200 = vmul.f32 %v19, %v54
  %v201 = vsub.f32 1.0, %v200
  %v202 = vmul.f32 %v19, %v19
  %v203 = vmul.f32 %v202, %v54
  %205 = vset.pattern.permute.xlu0 0
  %206 = vperm.xlu0 %205, %v203
  %v207 = vpop.permute.xlu0 %206
  %v209 = vmul.f32 %v207, %v103
  %v210 = vadd.f32 %v192, %v209
  %v211 = vadd.f32 %v210, 1e-05
  %v212 = vmul.f32 %v199, %v199
  %214 = vset.pattern.permute.xlu0 0
  %215 = vperm.xlu0 %214, %v54
  %v216 = vpop.permute.xlu0 %215
  %v218 = vmul.f32 %v212, %v216
  %v219 = vmul.f32 %v199, 2.0
  %221 = vset.pattern.permute.xlu0 0
  %222 = vperm.xlu0 %221, %v201
  %v223 = vpop.permute.xlu0 %222
  %v225 = vmul.f32 %v219, %v223
  %v226 = vmul.f32 %v225, %v184
  %v227 = vsub.f32 %v218, %v226
  %v228 = vmul.f32 %v201, %v201
  %230 = vset.pattern.permute.xlu0 0
  %231 = vperm.xlu0 %230, %v228
  %v232 = vpop.permute.xlu0 %231
  %v234 = vmul.f32 %v232, %v103
  %v235 = vadd.f32 %v227, %v234
  %v236 = vmax.f32 %v235, 0.0
  %v237 = vrsqrt.pop %v236
  %v238 = vmul.f32 %v236, %v237
  %vm239 = vcmp.eq.f32.partialorder %v236, inf
  %v240 = vsel %vm239, %v236, %v238
  %vm241 = vcmp.eq.f32.partialorder %v236, 0.0
  %v242 = vand.u32 %v236, 2147483648
  %v243 = vsel %vm241, %v242, %v240
  %v244 = vrcp.pop %v211
  %v245 = vmul.f32 %v243, %v244
  %v246 = vmul.f32 %v84, %v245
  %v247 = vmax.f32 %v246, -0.99999
  %v248 = vmin.f32 %v247, 0.99999
  %v249 = vadd.f32 %v248, 1.0
  %v250 = vsub.f32 1.0, %v248
  %v251 = vrcp.pop %v250
  %v252 = vmul.f32 %v249, %v251
  %v253 = vlog2.pop %v252
  %v254 = vmul.f32 %v253, 0.6931472
  %256 = vset.pattern.permute.xlu0 0
  %257 = vperm.xlu0 %256, %v27
  %v258 = vpop.permute.xlu0 %257
  %v260 = vmul.f32 %v258, %v254
  %vm261 = vcmask 118784
  %262 = vst.msk [vmem:[%s3] sm:$0x1f] %vm261, %v260
  // Predicated region
  $region14: #{_lambda_.13} parent=0 // pred_check
    _
  $region15: #{_lambda_.13} parent=0 // pred_check_branch
    %264 = sbr.rel (0) target = $region17
  $region16: #{_lambda_.13} parent=0 // pred_region
    _
  $region17: #{_lambda_.13} parent=0 // pred_fallthru
    _
  // Predicated region
  $region18: #{_lambda_.13} parent=0 // pred_check
    _
  $region19: #{_lambda_.13} parent=0 // pred_check_branch
    %266 = sbr.rel (0) target = $region21
  $region20: #{_lambda_.13} parent=0 // pred_region
    _
  $region21: #{_lambda_.13} parent=0 // pred_fallthru
    _

// kernel: _lambda_.14
$region0: #{_lambda_.14}
  #allocation0 [shape = 'u32[]', space=smem, size = 0x4, offset = 0x4, fixed_abs, tag = 'smem constant byte address 0x4 - core index']
  #allocation1 [shape = 'u32[144,128]{1,0:T(1,128)}', space=vmem, size = 0x12000, scoped, tag = 'internal scratch']
  %s0 = inlined_call_operand.vmem [shape: f32[5,10], index: 0, kind: input, shape index: {}]
  %s1 = inlined_call_operand.vmem [shape: f32[10,4], index: 1, kind: input, shape index: {}]
  %s2 = inlined_call_operand.vmem [shape: f32[1,4], index: 2, kind: input, shape index: {}]
  %s3 = inlined_call_operand.vmem [shape: f32[4,5], index: 3, kind: input, shape index: {}]
  %s4 = inlined_call_operand.vmem [shape: f32[1,5], index: 4, kind: input, shape index: {}]
  %s5 = inlined_call_operand.vmem [shape: f32[5,4], index: 5, kind: output, shape index: {0}]
  %s6 = inlined_call_operand.vmem [shape: f32[5,1], index: 6, kind: output, shape index: {1}]
  %7 = xla_tuple %s5, %s6
  %s8 = sld [smem:[#allocation0]]
  $region38: #{_lambda_.14} parent=0
    _
  %s10 = ssub.s32 1, %s8
  %s11 = scalar_select 0, %s10, %s8
  // Predicated region
  $region2: #{_lambda_.14} parent=0 // pred_check
    _
  $region3: #{_lambda_.14} parent=0 // pred_check_branch
    %13 = sbr.rel (0) target = $region5
  $region4: #{_lambda_.14} parent=0 // pred_region
    _
  $region5: #{_lambda_.14} parent=0 // pred_fallthru
    _
  // Predicated region
  $region6: #{_lambda_.14} parent=0 // pred_check
    _
  $region7: #{_lambda_.14} parent=0 // pred_check_branch
    %15 = sbr.rel (0) target = $region9
  $region8: #{_lambda_.14} parent=0 // pred_region
    _
  $region9: #{_lambda_.14} parent=0 // pred_fallthru
    _
  // Predicated region
  $region10: #{_lambda_.14} parent=0 // pred_check
    _
  $region11: #{_lambda_.14} parent=0 // pred_check_branch
    %17 = sbr.rel (0) target = $region13
  $region12: #{_lambda_.14} parent=0 // pred_region
    _
  $region13: #{_lambda_.14} parent=0 // pred_fallthru
    _
  // Predicated region
  $region14: #{_lambda_.14} parent=0 // pred_check
    _
  $region15: #{_lambda_.14} parent=0 // pred_check_branch
    %19 = sbr.rel (0) target = $region17
  $region16: #{_lambda_.14} parent=0 // pred_region
    _
  $region17: #{_lambda_.14} parent=0 // pred_fallthru
    _
  // Predicated region
  $region18: #{_lambda_.14} parent=0 // pred_check
    _
  $region19: #{_lambda_.14} parent=0 // pred_check_branch
    %21 = sbr.rel (0) target = $region21
  $region20: #{_lambda_.14} parent=0 // pred_region
    _
  $region21: #{_lambda_.14} parent=0 // pred_fallthru
    _
  %v22 = vld [vmem:[%s0] sm:$0x1f]
  %v23 = vld [vmem:[%s1] sm:$0xff]
  %v24 = vld [vmem:[%s1 + $0x8] sm:$0x3]
  %v25 = vld [vmem:[%s2] sm:$0x1]
  %v27 = vlaneseq
  %v28 = vshrl.u32 %v27, 7
  %v29 = vsub.s32 0, %v28
  %v30 = vrot.slane %v25, %v29
  %vm32 = vcmask 80896
  %v34 = vsel %vm32, %v22, 0
  %vm36 = vcmask 1041408
  %v38 = vsel %vm36, %v24, 0
  %40 = vmatprep.subr.mxu0 0.0
  %41 = vmatpush1.msra.mxu0 %v23
  %42 = vmatprep.subr.mxu0 0.0
  %43 = vmatpush1.msra.mxu0 %v38
  %44 = vmatprep.subr.mxu0 0.0
  %45 = vmatpush1.msra.mxu0 0.0
  %46 = vmatprep.subr.mxu0 0.0
  %47 = vmatpush1.msra.mxu0 0.0
  %48 = vmatprep.subr.mxu0 0.0
  %49 = vmatpush1.msra.mxu0 0.0
  %50 = vmatprep.subr.mxu0 0.0
  %51 = vmatpush1.msra.mxu0 0.0
  %52 = vmatprep.subr.mxu0 0.0
  %53 = vmatpush1.msra.mxu0 0.0
  %54 = vmatprep.subr.mxu0 0.0
  %55 = vmatpush1.msra.mxu0 0.0
  %56 = vmatprep.subr.mxu0 0.0
  %57 = vmatpush1.msra.mxu0 0.0
  %58 = vmatprep.subr.mxu0 0.0
  %59 = vmatpush1.msra.mxu0 0.0
  %60 = vmatprep.subr.mxu0 0.0
  %61 = vmatpush1.msra.mxu0 0.0
  %62 = vmatprep.subr.mxu0 0.0
  %63 = vmatpush1.msra.mxu0 0.0
  %64 = vmatprep.subr.mxu0 0.0
  %65 = vmatpush1.msra.mxu0 0.0
  %66 = vmatprep.subr.mxu0 0.0
  %67 = vmatpush1.msra.mxu0 0.0
  %68 = vmatprep.subr.mxu0 0.0
  %69 = vmatpush1.msra.mxu0 0.0
  %70 = vmatprep.subr.mxu0 0.0
  %71 = vmatpush1.msra.mxu0 0.0
  %72 = vmatprep.subr.mxu0 0.0
  %73 = vmatpush1.msra.mxu0 0.0
  %74 = vmatprep.subr.mxu0 0.0
  %75 = vmatpush1.msra.mxu0 0.0
  %76 = vmatprep.subr.mxu0 0.0
  %77 = vmatpush1.msra.mxu0 0.0
  %78 = vmatprep.subr.mxu0 0.0
  %79 = vmatpush1.msra.mxu0 0.0
  %80 = vmatprep.subr.mxu0 0.0
  %81 = vmatpush1.msra.mxu0 0.0
  %82 = vmatprep.subr.mxu0 0.0
  %83 = vmatpush1.msra.mxu0 0.0
  %84 = vmatprep.subr.mxu0 0.0
  %85 = vmatpush1.msra.mxu0 0.0
  %86 = vmatprep.subr.mxu0 0.0
  %87 = vmatpush1.msra.mxu0 0.0
  %88 = vmatprep.subr.mxu0 0.0
  %89 = vmatpush1.msra.mxu0 0.0
  %90 = vmatprep.subr.mxu0 0.0
  %91 = vmatpush1.msra.mxu0 0.0
  %92 = vmatprep.subr.mxu0 0.0
  %93 = vmatpush1.msra.mxu0 0.0
  %94 = vmatprep.subr.mxu0 0.0
  %95 = vmatpush1.msra.mxu0 0.0
  %96 = vmatprep.subr.mxu0 0.0
  %97 = vmatpush1.msra.mxu0 0.0
  %98 = vmatprep.subr.mxu0 0.0
  %99 = vmatpush1.msra.mxu0 0.0
  %100 = vmatprep.subr.mxu0 0.0
  %101 = vmatpush1.msra.mxu0 0.0
  %102 = vmatprep.subr.mxu0 0.0
  %103 = vmatpush1.msra.mxu0 0.0
  %104 = vmatprep.mubr.f32.mxu0 0.0
  %105 = vmatmul.mubr.f32.gmra.mrb[0].mxu0 %v34
  %v106 = vpop.f32.mrb[0].mxu0
  %v107 = vadd.f32 %v30, %v106
  %v108 = vpop.f32.mrb[0].mxu0
  %109 = vdwg.mxu0
  %v110 = vmax.f32 %v107, 0.0
  %v111 = vld [vmem:[%s3] sm:$0xf]
  %v112 = vld [vmem:[%s4] sm:$0x1]
  %v114 = vlaneseq
  %v115 = vshrl.u32 %v114, 7
  %v116 = vsub.s32 0, %v115
  %v117 = vrot.slane %v112, %v116
  %vm119 = vcmask 31744
  %v121 = vsel %vm119, %v110, 0
  %vm123 = vcmask 1043456
  %v125 = vsel %vm123, %v111, 0
  %127 = vmatprep.subr.mxu0 0.0
  %128 = vmatpush1.msra.mxu0 %v125
  %129 = vmatprep.subr.mxu0 0.0
  %130 = vmatpush1.msra.mxu0 0.0
  %131 = vmatprep.subr.mxu0 0.0
  %132 = vmatpush1.msra.mxu0 0.0
  %133 = vmatprep.subr.mxu0 0.0
  %134 = vmatpush1.msra.mxu0 0.0
  %135 = vmatprep.subr.mxu0 0.0
  %136 = vmatpush1.msra.mxu0 0.0
  %137 = vmatprep.subr.mxu0 0.0
  %138 = vmatpush1.msra.mxu0 0.0
  %139 = vmatprep.subr.mxu0 0.0
  %140 = vmatpush1.msra.mxu0 0.0
  %141 = vmatprep.subr.mxu0 0.0
  %142 = vmatpush1.msra.mxu0 0.0
  %143 = vmatprep.subr.mxu0 0.0
  %144 = vmatpush1.msra.mxu0 0.0
  %145 = vmatprep.subr.mxu0 0.0
  %146 = vmatpush1.msra.mxu0 0.0
  %147 = vmatprep.subr.mxu0 0.0
  %148 = vmatpush1.msra.mxu0 0.0
  %149 = vmatprep.subr.mxu0 0.0
  %150 = vmatpush1.msra.mxu0 0.0
  %151 = vmatprep.subr.mxu0 0.0
  %152 = vmatpush1.msra.mxu0 0.0
  %153 = vmatprep.subr.mxu0 0.0
  %154 = vmatpush1.msra.mxu0 0.0
  %155 = vmatprep.subr.mxu0 0.0
  %156 = vmatpush1.msra.mxu0 0.0
  %157 = vmatprep.subr.mxu0 0.0
  %158 = vmatpush1.msra.mxu0 0.0
  %159 = vmatprep.subr.mxu0 0.0
  %160 = vmatpush1.msra.mxu0 0.0
  %161 = vmatprep.subr.mxu0 0.0
  %162 = vmatpush1.msra.mxu0 0.0
  %163 = vmatprep.subr.mxu0 0.0
  %164 = vmatpush1.msra.mxu0 0.0
  %165 = vmatprep.subr.mxu0 0.0
  %166 = vmatpush1.msra.mxu0 0.0
  %167 = vmatprep.subr.mxu0 0.0
  %168 = vmatpush1.msra.mxu0 0.0
  %169 = vmatprep.subr.mxu0 0.0
  %170 = vmatpush1.msra.mxu0 0.0
  %171 = vmatprep.subr.mxu0 0.0
  %172 = vmatpush1.msra.mxu0 0.0
  %173 = vmatprep.subr.mxu0 0.0
  %174 = vmatpush1.msra.mxu0 0.0
  %175 = vmatprep.subr.mxu0 0.0
  %176 = vmatpush1.msra.mxu0 0.0
  %177 = vmatprep.subr.mxu0 0.0
  %178 = vmatpush1.msra.mxu0 0.0
  %179 = vmatprep.subr.mxu0 0.0
  %180 = vmatpush1.msra.mxu0 0.0
  %181 = vmatprep.subr.mxu0 0.0
  %182 = vmatpush1.msra.mxu0 0.0
  %183 = vmatprep.subr.mxu0 0.0
  %184 = vmatpush1.msra.mxu0 0.0
  %185 = vmatprep.subr.mxu0 0.0
  %186 = vmatpush1.msra.mxu0 0.0
  %187 = vmatprep.subr.mxu0 0.0
  %188 = vmatpush1.msra.mxu0 0.0
  %189 = vmatprep.subr.mxu0 0.0
  %190 = vmatpush1.msra.mxu0 0.0
  %191 = vmatprep.mubr.f32.mxu0 0.0
  %192 = vmatmul.mubr.f32.gmra.mrb[0].mxu0 %v121
  %v193 = vpop.f32.mrb[0].mxu0
  %v194 = vadd.f32 %v117, %v193
  %v195 = vpop.f32.mrb[0].mxu0
  %196 = vdwg.mxu0
  %vm197 = vcmask 28672
  %v198 = vsel %vm197, %v194, -inf
  %199 = vmax.xlane.f32.xlu0 %v198
  %v200 = vpop.xlane.xlu0 %199
  %v201 = vsub.f32 %v194, %v200
  %v202 = vmul.f32 %v201, 1.442695
  %v203 = vpow.pop %v202
  %v204 = vsel %vm197, %v203, 0.0
  %205 = vadd.xlane.f32.xlu0 %v204
  %v206 = vpop.xlane.xlu0 %205
  %v207 = vrcp.pop %v206
  %v208 = vmul.f32 %v203, %v207
  %209 = vst.msk [vmem:[%s5] sm:$0x1f] %vm197, %v208
  %v210 = vsub.f32 0.0, %v194
  %v211 = vmul.f32 %v210, 1.442695
  %v212 = vpow.pop %v211
  %v213 = vadd.f32 %v212, 1.0
  %v214 = vrcp.pop %v213
  %216 = vrot.lane.b32.xlu0 %v214, 124
  %v217 = vpop.permute.xlu0 %216
  %vm219 = vcmask 4096
  %220 = vst.msk [vmem:[%s6] sm:$0x1f] %vm219, %v217
  // Predicated region
  $region22: #{_lambda_.14} parent=0 // pred_check
    _
  $region23: #{_lambda_.14} parent=0 // pred_check_branch
    %222 = sbr.rel (0) target = $region25
  $region24: #{_lambda_.14} parent=0 // pred_region
    _
  $region25: #{_lambda_.14} parent=0 // pred_fallthru
    _
  // Predicated region
  $region26: #{_lambda_.14} parent=0 // pred_check
    _
  $region27: #{_lambda_.14} parent=0 // pred_check_branch
    %224 = sbr.rel (0) target = $region29
  $region28: #{_lambda_.14} parent=0 // pred_region
    _
  $region29: #{_lambda_.14} parent=0 // pred_fallthru
    _
  // Predicated region
  $region30: #{_lambda_.14} parent=0 // pred_check
    _
  $region31: #{_lambda_.14} parent=0 // pred_check_branch
    %226 = sbr.rel (0) target = $region33
  $region32: #{_lambda_.14} parent=0 // pred_region
    _
  $region33: #{_lambda_.14} parent=0 // pred_fallthru
    _
  // Predicated region
  $region34: #{_lambda_.14} parent=0 // pred_check
    _
  $region35: #{_lambda_.14} parent=0 // pred_check_branch
    %228 = sbr.rel (0) target = $region37
  $region36: #{_lambda_.14} parent=0 // pred_region
    _
  $region37: #{_lambda_.14} parent=0 // pred_fallthru
    _

</llo_original>
